<compile_context>
chip_gen: v7x
topology: tpu7x:2x2x1
jax: 0.10.0
libtpu: 0.0.40
codegen_flags: <defaults>
</compile_context>

<pallas_src>
import numpy as np
import jax
import jax.numpy as jnp
from jax.experimental import pallas as pl
from jax.experimental.pallas import tpu as pltpu


# ---------------------------------------------------------------------------
# Pallas kernel: pool (VPU) -> projection (MXU) -> +consts -> LayerNorm ->
#                dropout mask -> row stores (no concat)
# ---------------------------------------------------------------------------
def image_embed_kernel(feat_ref, pt_ref, wp_ref, consts_ref, mask_ref, out_ref):
    tb = feat_ref.shape[0]                 # images per grid step
    s_img = pt_ref.shape[0]                # 3 image tokens (AdaptiveAvgPool2d((3,1)))
    d = wp_ref.shape[1]                    # 768

    feat = feat_ref[...].astype(jnp.float32)          # (TB, HW, C)
    pt = pt_ref[...]                                   # (S_img, HW, 1) f32

    # AdaptiveAvgPool2d((3,1)) as a VPU weighted sum over HW (sublane reduce).
    # K = HW is far below 128, so keep this off the MXU.
    pooled = jnp.sum(feat[:, None, :, :] * pt[None, :, :, :], axis=2)   # (TB, S_img, C)

    # proj_embeddings: one big bf16 MXU matmul with f32 accumulation.
    pooled2 = pooled.reshape(tb * s_img, -1).astype(jnp.bfloat16)
    tok = jnp.dot(pooled2, wp_ref[...],
                  preferred_element_type=jnp.float32)                    # (TB*S_img, D)
    tok = tok.reshape(tb, s_img, d)

    # + (bias + position + token-type), pre-folded into consts rows 0..S_img-1.
    emb = tok + consts_ref[0:s_img, :][None]

    # LayerNorm over the hidden dim, eps = 1e-12 (BERT default).
    mean = jnp.mean(emb, axis=-1, keepdims=True)
    var = jnp.mean(jnp.square(emb - mean), axis=-1, keepdims=True)
    y = (emb - mean) * jax.lax.rsqrt(var + 1e-12)
    y = (y * consts_ref[s_img:s_img + 1, :][None]
         + consts_ref[s_img + 1:s_img + 2, :][None])

    cls_row = consts_ref[s_img + 2:s_img + 3, :]       # (1, D), already LayerNorm'd
    sep_row = consts_ref[s_img + 3:s_img + 4, :]       # (1, D)

    # Dropout (inverted-dropout scale mask) + direct row stores.
    out_ref[:, 0:1, :] = (cls_row[None] * mask_ref[:, 0:1, :]).astype(out_ref.dtype)
    out_ref[:, 1:1 + s_img, :] = (y * mask_ref[:, 1:1 + s_img, :]).astype(out_ref.dtype)
    out_ref[:, 1 + s_img:2 + s_img, :] = (
        sep_row[None] * mask_ref[:, 1 + s_img:2 + s_img, :]).astype(out_ref.dtype)


def image_embeddings_pallas(feat_bhwc, Pt, Wp, bp, cls_e, sep_e, pos, tt,
                            gamma, beta, *, dropout_p=0.0, rng_key=None, tb=None):
    B, HW, C = feat_bhwc.shape
    S_img = Pt.shape[0]
    S = S_img + 2
    D = Wp.shape[1]

    # Images per grid step: fill MXU rows / amortize per-step pipeline overhead.
    if tb is None:
        tb = max(div for div in range(1, min(B, 64) + 1) if B % div == 0)
    assert B % tb == 0

    # bf16 operands for DMA + MXU; accumulation stays f32 in the kernel.
    feat_bf = feat_bhwc.astype(jnp.bfloat16)
    wp_bf = Wp.astype(jnp.bfloat16)
    pt3 = Pt.reshape(S_img, HW, 1).astype(jnp.float32)

    # Batch-independent constants, packed into one padded (8, D) operand:
    #   rows 0..S_img-1 : bias + position + token-type for the image tokens
    #   row  S_img      : LayerNorm gamma
    #   row  S_img+1    : LayerNorm beta
    #   row  S_img+2    : [CLS] row (emb + pos + tt, LayerNorm'd)
    #   row  S_img+3    : [SEP] row (emb + pos + tt, LayerNorm'd)
    def _ln(v):
        m = jnp.mean(v, axis=-1, keepdims=True)
        var = jnp.mean(jnp.square(v - m), axis=-1, keepdims=True)
        return (v - m) * jax.lax.rsqrt(var + 1e-12) * gamma + beta

    cls_row = _ln(cls_e + pos[0:1] + tt)                       # (1, D)
    sep_row = _ln(sep_e + pos[S_img + 1:S_img + 2] + tt)       # (1, D)
    add_const = bp + pos[1:1 + S_img] + tt                     # (S_img, D)
    n_rows = S_img + 4
    n_pad = (-n_rows) % 8
    consts = jnp.concatenate(
        [add_const, gamma, beta, cls_row, sep_row,
         jnp.zeros((n_pad, D), jnp.float32)], axis=0).astype(jnp.float32)

    # Dropout mask (inverted dropout).  p=0 -> ones (eval mode).
    if dropout_p > 0.0:
        keep = jax.random.bernoulli(rng_key, 1.0 - dropout_p, (B, S, D))
        mask = keep.astype(jnp.float32) * (1.0 / (1.0 - dropout_p))
    else:
        mask = jnp.ones((B, S, D), jnp.float32)

    return pl.pallas_call(
        image_embed_kernel,
        out_shape=jax.ShapeDtypeStruct((B, S, D), jnp.float32),
        grid_spec=pltpu.PrefetchScalarGridSpec(
            num_scalar_prefetch=0,
            grid=(B // tb,),
            in_specs=[
                pl.BlockSpec((tb, HW, C), lambda b: (b, 0, 0)),
                pl.BlockSpec(pt3.shape,    lambda b: (0, 0, 0)),
                pl.BlockSpec(wp_bf.shape,  lambda b: (0, 0)),
                pl.BlockSpec(consts.shape, lambda b: (0, 0)),
                pl.BlockSpec((tb, S, D),   lambda b: (b, 0, 0)),
            ],
            out_specs=pl.BlockSpec((tb, S, D), lambda b: (b, 0, 0)),
        ),
        compiler_params=pltpu.CompilerParams(
            dimension_semantics=("parallel",),
            vmem_limit_bytes=48 * 1024 * 1024),
    )(feat_bf, pt3, wp_bf, consts, mask)


# ---------------------------------------------------------------------------
# Glue (plain JAX)
# ---------------------------------------------------------------------------
def backbone_stub(x_nchw, w_conv):
    """Stand-in for ResNet-50 feature extractor: (B,3,H,W) -> (B,2048,H/32,W/32)."""
    y = jax.lax.conv_general_dilated(
        x_nchw, w_conv, window_strides=(32, 32), padding="SAME",
        dimension_numbers=("NCHW", "OIHW", "NCHW"))
    return jax.nn.relu(y)


def adaptive_pool_matrix(H, W, out_h=3, out_w=1):
    """Pt[o, h*W+w] = 1/count for pixels in adaptive bin o (PyTorch semantics)."""
    Pt = np.zeros((out_h * out_w, H * W), np.float32)
    for oi in range(out_h):
        hs, he = (oi * H) // out_h, -(-((oi + 1) * H) // out_h)
        for oj in range(out_w):
            ws, we = (oj * W) // out_w, -(-((oj + 1) * W) // out_w)
            cnt = float((he - hs) * (we - ws))
            for r in range(hs, he):
                for c in range(ws, we):
                    Pt[oi * out_w + oj, r * W + c] = 1.0 / cnt
    return Pt


def reference_forward(feat_bhwc, Pt, Wp, bp, cls_e, sep_e, pos, tt, gamma, beta):
    """Pure-JAX reference (no dropout), mirroring the kernel's bf16 rounding."""
    P = jax.lax.Precision.HIGHEST
    f = feat_bhwc.astype(jnp.bfloat16).astype(jnp.float32)
    pooled = jnp.einsum("sk,bkc->bsc", Pt, f, precision=P)
    w = Wp.astype(jnp.bfloat16).astype(jnp.float32)
    tok = jnp.einsum("bsc,cd->bsd",
                     pooled.astype(jnp.bfloat16).astype(jnp.float32), w,
                     precision=P) + bp[0]
    B = feat_bhwc.shape[0]
    D = Wp.shape[1]
    seq = jnp.concatenate([jnp.broadcast_to(cls_e, (B, 1, D)),
                           tok,
                           jnp.broadcast_to(sep_e, (B, 1, D))], axis=1)
    emb = seq + pos[None] + tt[0][None, None]
    mean = emb.mean(-1, keepdims=True)
    var = ((emb - mean) ** 2).mean(-1, keepdims=True)
    return (emb - mean) * jax.lax.rsqrt(var + 1e-12) * gamma[0] + beta[0]


if __name__ == "__main__":
    key = jax.random.PRNGKey(0)
    ks = jax.random.split(key, 8)

    # Small but module-consistent shapes.
    B, Cin, Himg, Wimg = 2, 3, 64, 64
    Cfeat, D = 2048, 768          # hard-coded by proj_embeddings = Linear(2048, 768)
    vocab, max_pos = 128, 16
    cls_id, sep_id = 1, 2

    x = jax.random.normal(ks[0], (B, Cin, Himg, Wimg), jnp.float32)
    w_conv = jax.random.normal(ks[1], (Cfeat, Cin, 7, 7), jnp.float32) * 0.05
    word_emb = jax.random.normal(ks[2], (vocab, D), jnp.float32) * 0.02
    pos_emb = jax.random.normal(ks[3], (max_pos, D), jnp.float32) * 0.02
    tt_emb = jax.random.normal(ks[4], (2, D), jnp.float32) * 0.02
    Wp = jax.random.normal(ks[5], (Cfeat, D), jnp.float32) * 0.02   # Linear weight^T
    bp = jax.random.normal(ks[6], (1, D), jnp.float32) * 0.02
    gamma = jnp.ones((1, D), jnp.float32)
    beta = jnp.zeros((1, D), jnp.float32)

    # Backbone (stub) + layout prep: NCHW -> (B, Hf*Wf, 2048).
    feat = backbone_stub(x, w_conv)                       # (B, 2048, 2, 2)
    Bf, Cf, Hf, Wf = feat.shape
    feat_bhwc = jnp.transpose(feat, (0, 2, 3, 1)).reshape(Bf, Hf * Wf, Cf)
    Pt = jnp.asarray(adaptive_pool_matrix(Hf, Wf, 3, 1))  # (3, Hf*Wf)

    cls_e = word_emb[cls_id][None, :]                     # (1, 768)
    sep_e = word_emb[sep_id][None, :]                     # (1, 768)
    seq_len = 3 + 2
    pos = pos_emb[:seq_len]                               # (5, 768)
    tt = tt_emb[0:1]                                      # (1, 768)

    # Correctness check with dropout disabled.
    out_eval = image_embeddings_pallas(feat_bhwc, Pt, Wp, bp, cls_e, sep_e,
                                       pos, tt, gamma, beta, dropout_p=0.0)
    out_eval = jax.block_until_ready(out_eval)
    ref = reference_forward(feat_bhwc, Pt, Wp, bp, cls_e, sep_e,
                            pos, tt, gamma, beta)
    assert out_eval.shape == (B, seq_len, D)
    assert jnp.allclose(out_eval, ref, atol=2e-2, rtol=2e-2), (
        float(jnp.max(jnp.abs(out_eval - ref))))

    # Training-mode run (dropout p=0.4).
    out_train = image_embeddings_pallas(feat_bhwc, Pt, Wp, bp, cls_e, sep_e,
                                        pos, tt, gamma, beta,
                                        dropout_p=0.4,
                                        rng_key=jax.random.PRNGKey(1))
    jax.block_until_ready(out_train)

    print("KERNEL_OK")
</pallas_src>

<mosaic_0001>
module attributes {stable_mosaic.version = 11 : i64} {
  func.func @image_embed_kernel(%arg0: i32, %arg1: memref<2x4x2048xbf16, #tpu.memory_space<vmem>>, %arg2: memref<3x4x1xf32, #tpu.memory_space<vmem>>, %arg3: memref<2048x768xbf16, #tpu.memory_space<vmem>>, %arg4: memref<8x768xf32, #tpu.memory_space<vmem>>, %arg5: memref<2x5x768xf32, #tpu.memory_space<vmem>>, %arg6: memref<2x5x768xf32, #tpu.memory_space<vmem>>) attributes {dimension_semantics = [#tpu.dimension_semantics<parallel>], iteration_bounds = array<i64: 1>, scalar_prefetch = 0 : i64, scratch_operands = 0 : i64, tpu.core_type = #tpu.core_type<tc>, window_params = [{transform_indices = @transform_0, window_bounds = array<i64: 2, 4, 2048>}, {pipeline_mode = #tpu.pipeline_mode<synchronous>, transform_indices = @transform_1, window_bounds = array<i64: 3, 4, 1>}, {pipeline_mode = #tpu.pipeline_mode<synchronous>, transform_indices = @transform_2, window_bounds = array<i64: 2048, 768>}, {pipeline_mode = #tpu.pipeline_mode<synchronous>, transform_indices = @transform_3, window_bounds = array<i64: 8, 768>}, {transform_indices = @transform_4, window_bounds = array<i64: 2, 5, 768>}, {transform_indices = @transform_5, window_bounds = array<i64: 2, 5, 768>}]} {
    %c0 = arith.constant 0 : index
    %c0_0 = arith.constant 0 : index
    %c0_1 = arith.constant 0 : index
    %0 = vector.load %arg1[%c0, %c0_0, %c0_1] : memref<2x4x2048xbf16, #tpu.memory_space<vmem>>, vector<2x4x2048xbf16>
    %1 = arith.extf %0 : vector<2x4x2048xbf16> to vector<2x4x2048xf32>
    %c0_2 = arith.constant 0 : index
    %c0_3 = arith.constant 0 : index
    %c0_4 = arith.constant 0 : index
    %2 = vector.load %arg2[%c0_2, %c0_3, %c0_4] : memref<3x4x1xf32, #tpu.memory_space<vmem>>, vector<3x4x1xf32>
    %3 = vector.shape_cast %1 : vector<2x4x2048xf32> to vector<2x1x4x2048xf32>
    %4 = vector.shape_cast %2 : vector<3x4x1xf32> to vector<1x3x4x1xf32>
    %5 = vector.broadcast %3 : vector<2x1x4x2048xf32> to vector<2x3x4x2048xf32>
    %6 = vector.broadcast %4 : vector<1x3x4x1xf32> to vector<2x3x4x2048xf32>
    %7 = arith.mulf %5, %6 : vector<2x3x4x2048xf32>
    %cst = arith.constant dense<0.000000e+00> : vector<2x3x2048xf32>
    %8 = vector.multi_reduction <add>, %7, %cst [2] : vector<2x3x4x2048xf32> to vector<2x3x2048xf32>
    %9 = vector.shape_cast %8 : vector<2x3x2048xf32> to vector<6x2048xf32>
    %10 = arith.truncf %9 : vector<6x2048xf32> to vector<6x2048xbf16>
    %c0_5 = arith.constant 0 : index
    %c0_6 = arith.constant 0 : index
    %11 = vector.load %arg3[%c0_5, %c0_6] : memref<2048x768xbf16, #tpu.memory_space<vmem>>, vector<2048x768xbf16>
    %cst_7 = arith.constant dense<0.000000e+00> : vector<6x768xf32>
    %12 = tpu.matmul %10, %11, %cst_7 {dimension_numbers = #tpu.dot_dimension_numbers<[1], [0], [0], [1], [0, 0, 1, 1], [], []>} : vector<6x2048xbf16>, vector<2048x768xbf16>, vector<6x768xf32> -> vector<6x768xf32>
    %13 = vector.shape_cast %12 : vector<6x768xf32> to vector<2x3x768xf32>
    %c0_8 = arith.constant 0 : index
    %c0_9 = arith.constant 0 : index
    %14 = vector.load %arg4[%c0_8, %c0_9] : memref<8x768xf32, #tpu.memory_space<vmem>>, vector<3x768xf32>
    %15 = vector.shape_cast %14 : vector<3x768xf32> to vector<1x3x768xf32>
    %16 = vector.broadcast %15 : vector<1x3x768xf32> to vector<2x3x768xf32>
    %17 = arith.addf %13, %16 : vector<2x3x768xf32>
    %cst_10 = arith.constant dense<0.000000e+00> : vector<2x3xf32>
    %18 = vector.multi_reduction <add>, %17, %cst_10 [2] : vector<2x3x768xf32> to vector<2x3xf32>
    %19 = vector.shape_cast %18 : vector<2x3xf32> to vector<2x3x1xf32>
    %cst_11 = arith.constant 7.680000e+02 : f32
    %20 = vector.broadcast %cst_11 : f32 to vector<2x3x1xf32>
    %21 = arith.divf %19, %20 : vector<2x3x1xf32>
    %22 = vector.broadcast %21 : vector<2x3x1xf32> to vector<2x3x768xf32>
    %23 = arith.subf %17, %22 : vector<2x3x768xf32>
    %24 = arith.mulf %23, %23 : vector<2x3x768xf32>
    %cst_12 = arith.constant dense<0.000000e+00> : vector<2x3xf32>
    %25 = vector.multi_reduction <add>, %24, %cst_12 [2] : vector<2x3x768xf32> to vector<2x3xf32>
    %26 = vector.shape_cast %25 : vector<2x3xf32> to vector<2x3x1xf32>
    %cst_13 = arith.constant 7.680000e+02 : f32
    %27 = vector.broadcast %cst_13 : f32 to vector<2x3x1xf32>
    %28 = arith.divf %26, %27 : vector<2x3x1xf32>
    %29 = vector.broadcast %21 : vector<2x3x1xf32> to vector<2x3x768xf32>
    %30 = arith.subf %17, %29 : vector<2x3x768xf32>
    %cst_14 = arith.constant 9.99999996E-13 : f32
    %31 = vector.broadcast %cst_14 : f32 to vector<2x3x1xf32>
    %32 = arith.addf %28, %31 : vector<2x3x1xf32>
    %33 = math.rsqrt %32 : vector<2x3x1xf32>
    %34 = vector.broadcast %33 : vector<2x3x1xf32> to vector<2x3x768xf32>
    %35 = arith.mulf %30, %34 : vector<2x3x768xf32>
    %c3 = arith.constant 3 : index
    %c0_15 = arith.constant 0 : index
    %36 = vector.load %arg4[%c3, %c0_15] : memref<8x768xf32, #tpu.memory_space<vmem>>, vector<1x768xf32>
    %37 = vector.shape_cast %36 : vector<1x768xf32> to vector<1x1x768xf32>
    %38 = vector.broadcast %37 : vector<1x1x768xf32> to vector<2x3x768xf32>
    %39 = arith.mulf %35, %38 : vector<2x3x768xf32>
    %c4 = arith.constant 4 : index
    %c0_16 = arith.constant 0 : index
    %40 = vector.load %arg4[%c4, %c0_16] : memref<8x768xf32, #tpu.memory_space<vmem>>, vector<1x768xf32>
    %41 = vector.shape_cast %40 : vector<1x768xf32> to vector<1x1x768xf32>
    %42 = vector.broadcast %41 : vector<1x1x768xf32> to vector<2x3x768xf32>
    %43 = arith.addf %39, %42 : vector<2x3x768xf32>
    %c5 = arith.constant 5 : index
    %c0_17 = arith.constant 0 : index
    %44 = vector.load %arg4[%c5, %c0_17] : memref<8x768xf32, #tpu.memory_space<vmem>>, vector<1x768xf32>
    %c6 = arith.constant 6 : index
    %c0_18 = arith.constant 0 : index
    %45 = vector.load %arg4[%c6, %c0_18] : memref<8x768xf32, #tpu.memory_space<vmem>>, vector<1x768xf32>
    %46 = vector.shape_cast %44 : vector<1x768xf32> to vector<1x1x768xf32>
    %c0_19 = arith.constant 0 : index
    %c0_20 = arith.constant 0 : index
    %c0_21 = arith.constant 0 : index
    %47 = vector.load %arg5[%c0_19, %c0_20, %c0_21] : memref<2x5x768xf32, #tpu.memory_space<vmem>>, vector<2x1x768xf32>
    %48 = vector.broadcast %46 : vector<1x1x768xf32> to vector<2x1x768xf32>
    %49 = arith.mulf %48, %47 : vector<2x1x768xf32>
    %c0_22 = arith.constant 0 : index
    %c0_23 = arith.constant 0 : index
    %c0_24 = arith.constant 0 : index
    %50 = vector.load %arg6[%c0_22, %c0_23, %c0_24] : memref<2x5x768xf32, #tpu.memory_space<vmem>>, vector<2x1x768xf32>
    tpu.vector_store %arg6[%c0_22, %c0_23, %c0_24], %49 {strides = array<i32>} : memref<2x5x768xf32, #tpu.memory_space<vmem>>, vector<2x1x768xf32>,
    %c0_25 = arith.constant 0 : index
    %c1 = arith.constant 1 : index
    %c0_26 = arith.constant 0 : index
    %51 = vector.load %arg5[%c0_25, %c1, %c0_26] : memref<2x5x768xf32, #tpu.memory_space<vmem>>, vector<2x3x768xf32>
    %52 = arith.mulf %43, %51 : vector<2x3x768xf32>
    %c0_27 = arith.constant 0 : index
    %c1_28 = arith.constant 1 : index
    %c0_29 = arith.constant 0 : index
    %53 = vector.load %arg6[%c0_27, %c1_28, %c0_29] : memref<2x5x768xf32, #tpu.memory_space<vmem>>, vector<2x3x768xf32>
    tpu.vector_store %arg6[%c0_27, %c1_28, %c0_29], %52 {strides = array<i32>} : memref<2x5x768xf32, #tpu.memory_space<vmem>>, vector<2x3x768xf32>,
    %54 = vector.shape_cast %45 : vector<1x768xf32> to vector<1x1x768xf32>
    %c0_30 = arith.constant 0 : index
    %c4_31 = arith.constant 4 : index
    %c0_32 = arith.constant 0 : index
    %55 = vector.load %arg5[%c0_30, %c4_31, %c0_32] : memref<2x5x768xf32, #tpu.memory_space<vmem>>, vector<2x1x768xf32>
    %56 = vector.broadcast %54 : vector<1x1x768xf32> to vector<2x1x768xf32>
    %57 = arith.mulf %56, %55 : vector<2x1x768xf32>
    %c0_33 = arith.constant 0 : index
    %c4_34 = arith.constant 4 : index
    %c0_35 = arith.constant 0 : index
    %58 = vector.load %arg6[%c0_33, %c4_34, %c0_35] : memref<2x5x768xf32, #tpu.memory_space<vmem>>, vector<2x1x768xf32>
    tpu.vector_store %arg6[%c0_33, %c4_34, %c0_35], %57 {strides = array<i32>} : memref<2x5x768xf32, #tpu.memory_space<vmem>>, vector<2x1x768xf32>,
    return
  }
  func.func @transform_0(%arg0: i32) -> (i32, i32, i32) {
    %c0_i32 = arith.constant 0 : i32
    %c0_i32_0 = arith.constant 0 : i32
    %c0_i32_1 = arith.constant 0 : i32
    return %arg0, %c0_i32, %c0_i32_0 : i32, i32, i32
  }
  func.func @transform_1(%arg0: i32) -> (i32, i32, i32) {
    %c0_i32 = arith.constant 0 : i32
    %c0_i32_0 = arith.constant 0 : i32
    %c0_i32_1 = arith.constant 0 : i32
    %c0_i32_2 = arith.constant 0 : i32
    return %c0_i32, %c0_i32_0, %c0_i32_1 : i32, i32, i32
  }
  func.func @transform_2(%arg0: i32) -> (i32, i32) {
    %c0_i32 = arith.constant 0 : i32
    %c0_i32_0 = arith.constant 0 : i32
    %c0_i32_1 = arith.constant 0 : i32
    return %c0_i32, %c0_i32_0 : i32, i32
  }
  func.func @transform_3(%arg0: i32) -> (i32, i32) {
    %c0_i32 = arith.constant 0 : i32
    %c0_i32_0 = arith.constant 0 : i32
    %c0_i32_1 = arith.constant 0 : i32
    return %c0_i32, %c0_i32_0 : i32, i32
  }
  func.func @transform_4(%arg0: i32) -> (i32, i32, i32) {
    %c0_i32 = arith.constant 0 : i32
    %c0_i32_0 = arith.constant 0 : i32
    %c0_i32_1 = arith.constant 0 : i32
    return %arg0, %c0_i32, %c0_i32_0 : i32, i32, i32
  }
  func.func @transform_5(%arg0: i32) -> (i32, i32, i32) {
    %c0_i32 = arith.constant 0 : i32
    %c0_i32_0 = arith.constant 0 : i32
    %c0_i32_1 = arith.constant 0 : i32
    return %arg0, %c0_i32, %c0_i32_0 : i32, i32, i32
  }
}

</mosaic_0001>

<llo_original>
// kernel: tpu_custom_call.1
$region0: #{tpu_custom_call.1}
  #allocation0 [shape = 'u32[]', space=smem, size = 0x4, offset = 0x4, fixed_abs, tag = 'smem constant byte address 0x4 - core index']
  #allocation1 [shape = 'u32[144,128]{1,0:T(1,128)}', space=vmem, size = 0x12000, scoped, tag = 'internal scratch']
  %s0 = inlined_call_operand.hbm [shape: bf16[2,4,2048], index: 0, kind: input, shape index: {}]
  %s1 = inlined_call_operand.vmem [shape: f32[3,4,1], index: 1, kind: input, shape index: {}]
  %s2 = inlined_call_operand.hbm [shape: bf16[2048,768], index: 2, kind: input, shape index: {}]
  %s3 = inlined_call_operand.hbm [shape: f32[8,768], index: 3, kind: input, shape index: {}]
  %s4 = inlined_call_operand.vmem [shape: f32[2,5,768], index: 4, kind: input, shape index: {}]
  %s5 = inlined_call_operand.vmem [shape: f32[2,5,768], index: 5, kind: output, shape index: {}]
  %s6 = sld [smem:[#allocation0]]
  $region42: #{tpu_custom_call.1} parent=0
    _
  %s8 = ssub.s32 1, %s6
  %s9 = scalar_select 0, %s8, %s6
  $region1: #{tpu_custom_call.1} parent=0
    #allocation2 [shape = 'u8[32768]{0}', space=vmem, size = 0x8000, scoped, tag = 'input window, operand 0, single buffered']
    #allocation3 [shape = 's32[1]{0}', space=sflag, size = 0x4, scoped, tag = 'scoped memory for tpu_custom_call.1']
    #allocation4 [shape = 'u8[3145728]{0}', space=vmem, size = 0x300000, scoped, tag = 'input window, operand 2, single buffered']
    #allocation5 [shape = 's32[1]{0}', space=sflag, size = 0x4, scoped, tag = 'scoped memory for tpu_custom_call.1']
    #allocation6 [shape = 'u8[24576]{0}', space=vmem, size = 0x6000, scoped, tag = 'input window, operand 3, single buffered']
    %10 = vsyncpa [#allocation3], 0
    %11 = vsyncpa [#allocation5], 0
    // Predicated region
    $region2: #{tpu_custom_call.1} parent=1 // pred_check
      _
    $region3: #{tpu_custom_call.1} parent=1 // pred_check_branch
      %13 = sbr.rel (0) target = $region5
    $region4: #{tpu_custom_call.1} parent=1 // pred_region
      %s15 = ssub.s32 1024, 1024
      %16 = vsyncadd [#allocation3], %s15
      %s17 = sshll.u32 [#allocation2], 4
      %s18 = int_to_ptr.vmem [resolvable:$true] %s17
      %23 = dma.hbm_to_vmem [thread:$0]  %s0, 1024, %s18, [#allocation3], 512, 512, 32
    $region5: #{tpu_custom_call.1} parent=1 // pred_fallthru
      _
    // Predicated region
    $region6: #{tpu_custom_call.1} parent=1 // pred_check
      _
    $region7: #{tpu_custom_call.1} parent=1 // pred_check_branch
      %25 = sbr.rel (0) target = $region9
    $region8: #{tpu_custom_call.1} parent=1 // pred_region
      _
    $region9: #{tpu_custom_call.1} parent=1 // pred_fallthru
      _
    // Predicated region
    $region10: #{tpu_custom_call.1} parent=1 // pred_check
      _
    $region11: #{tpu_custom_call.1} parent=1 // pred_check_branch
      %27 = sbr.rel (0) target = $region13
    $region12: #{tpu_custom_call.1} parent=1 // pred_region
      %s29 = ssub.s32 98304, 98304
      %30 = vsyncadd [#allocation5], %s29
      %s31 = sshll.u32 [#allocation4], 4
      %s32 = int_to_ptr.vmem [resolvable:$true] %s31
      %37 = dma.hbm_to_vmem [thread:$0]  %s2, 98304, %s32, [#allocation5], 384, 384, 24
    $region13: #{tpu_custom_call.1} parent=1 // pred_fallthru
      _
    // Predicated region
    $region14: #{tpu_custom_call.1} parent=1 // pred_check
      _
    $region15: #{tpu_custom_call.1} parent=1 // pred_check_branch
      %39 = sbr.rel (0) target = $region17
    $region16: #{tpu_custom_call.1} parent=1 // pred_region
      %s41 = ssub.s32 768, 768
      %42 = vsyncadd [#allocation5], %s41
      %s44 = sshll.u32 [#allocation6], 4
      %s45 = int_to_ptr.vmem [resolvable:$true] %s44
      %47 = dma.hbm_to_vmem [thread:$0]  %s3, 768, %s45, [#allocation5]
    $region17: #{tpu_custom_call.1} parent=1 // pred_fallthru
      _
    // Predicated region
    $region18: #{tpu_custom_call.1} parent=1 // pred_check
      _
    $region19: #{tpu_custom_call.1} parent=1 // pred_check_branch
      %49 = sbr.rel (0) target = $region21
    $region20: #{tpu_custom_call.1} parent=1 // pred_region
      _
    $region21: #{tpu_custom_call.1} parent=1 // pred_fallthru
      _
    // Predicated region
    $region22: #{tpu_custom_call.1} parent=1 // pred_check
      _
    $region23: #{tpu_custom_call.1} parent=1 // pred_check_branch
      %51 = sbr.rel (0) target = $region25
    $region24: #{tpu_custom_call.1} parent=1 // pred_region
      %52 = dma.done [#allocation3], 1024
    $region25: #{tpu_custom_call.1} parent=1 // pred_fallthru
      _
    // Predicated region
    $region26: #{tpu_custom_call.1} parent=1 // pred_check
      _
    $region27: #{tpu_custom_call.1} parent=1 // pred_check_branch
      %54 = sbr.rel (0) target = $region29
    $region28: #{tpu_custom_call.1} parent=1 // pred_region
      %55 = dma.done [#allocation5], 98304
    $region29: #{tpu_custom_call.1} parent=1 // pred_fallthru
      _
    // Predicated region
    $region30: #{tpu_custom_call.1} parent=1 // pred_check
      _
    $region31: #{tpu_custom_call.1} parent=1 // pred_check_branch
      %57 = sbr.rel (0) target = $region33
    $region32: #{tpu_custom_call.1} parent=1 // pred_region
      %58 = dma.done [#allocation5], 768
    $region33: #{tpu_custom_call.1} parent=1 // pred_fallthru
      _
    %v59 = vld [vmem:[#allocation2] sm:$0xff]
    %v60 = vld [vmem:[#allocation2 + $0x8] sm:$0xff]
    %v61 = vld [vmem:[#allocation2 + $0x10] sm:$0xff]
    %v62 = vld [vmem:[#allocation2 + $0x18] sm:$0xff]
    %v63 = vld [vmem:[#allocation2 + $0x20] sm:$0xff]
    %v64 = vld [vmem:[#allocation2 + $0x28] sm:$0xff]
    %v65 = vld [vmem:[#allocation2 + $0x30] sm:$0xff]
    %v66 = vld [vmem:[#allocation2 + $0x38] sm:$0xff]
    %v67 = vunpack.c.l.bf16 %v59
    %v68 = vunpack.c.h.bf16 %v59
    %v69 = vunpack.c.l.bf16 %v60
    %v70 = vunpack.c.h.bf16 %v60
    %v71 = vunpack.c.l.bf16 %v61
    %v72 = vunpack.c.h.bf16 %v61
    %v73 = vunpack.c.l.bf16 %v62
    %v74 = vunpack.c.h.bf16 %v62
    %v75 = vunpack.c.l.bf16 %v63
    %v76 = vunpack.c.h.bf16 %v63
    %v77 = vunpack.c.l.bf16 %v64
    %v78 = vunpack.c.h.bf16 %v64
    %v79 = vunpack.c.l.bf16 %v65
    %v80 = vunpack.c.h.bf16 %v65
    %v81 = vunpack.c.l.bf16 %v66
    %v82 = vunpack.c.h.bf16 %v66
    %v83 = vld [vmem:[%s1] sm:$0xf]
    %v84 = vld [vmem:[%s1 + $0x4] sm:$0xf]
    %v85 = vld [vmem:[%s1 + $0x8] sm:$0xf]
    %87 = vset.pattern.permute.xlu0 0
    %88 = vperm.xlu0 %87, %v83
    %v89 = vpop.permute.xlu0 %88
    %91 = vset.pattern.permute.xlu0 0
    %92 = vperm.xlu0 %91, %v84
    %v93 = vpop.permute.xlu0 %92
    %95 = vset.pattern.permute.xlu0 0
    %96 = vperm.xlu0 %95, %v85
    %v97 = vpop.permute.xlu0 %96
    %v99 = vunpack.c.l.s4 839922192
    %v100 = vunpack.c.0.s8 %v99
    %v101 = vlaneseq
    %v102 = vshrl.u32 %v101, 7
    %v103 = vsub.s32 %v100, %v102
    %v104 = vrot.slane %v89, %v103
    %v106 = vunpack.c.l.s4 839922192
    %v107 = vunpack.c.0.s8 %v106
    %v108 = vlaneseq
    %v109 = vshrl.u32 %v108, 7
    %v110 = vsub.s32 %v107, %v109
    %v111 = vrot.slane %v93, %v110
    %v113 = vunpack.c.l.s4 839922192
    %v114 = vunpack.c.0.s8 %v113
    %v115 = vlaneseq
    %v116 = vshrl.u32 %v115, 7
    %v117 = vsub.s32 %v114, %v116
    %v118 = vrot.slane %v97, %v117
    %v122 = vmul.f32 %v67, %v104
    %v123 = vmul.f32 %v68, %v104
    %v124 = vmul.f32 %v69, %v104
    %v125 = vmul.f32 %v70, %v104
    %v126 = vmul.f32 %v71, %v104
    %v127 = vmul.f32 %v72, %v104
    %v128 = vmul.f32 %v73, %v104
    %v129 = vmul.f32 %v74, %v104
    %v130 = vmul.f32 %v67, %v111
    %v131 = vmul.f32 %v68, %v111
    %v132 = vmul.f32 %v69, %v111
    %v133 = vmul.f32 %v70, %v111
    %v134 = vmul.f32 %v71, %v111
    %v135 = vmul.f32 %v72, %v111
    %v136 = vmul.f32 %v73, %v111
    %v137 = vmul.f32 %v74, %v111
    %v138 = vmul.f32 %v67, %v118
    %v139 = vmul.f32 %v68, %v118
    %v140 = vmul.f32 %v69, %v118
    %v141 = vmul.f32 %v70, %v118
    %v142 = vmul.f32 %v71, %v118
    %v143 = vmul.f32 %v72, %v118
    %v144 = vmul.f32 %v73, %v118
    %v145 = vmul.f32 %v74, %v118
    %v146 = vmul.f32 %v75, %v104
    %v147 = vmul.f32 %v76, %v104
    %v148 = vmul.f32 %v77, %v104
    %v149 = vmul.f32 %v78, %v104
    %v150 = vmul.f32 %v79, %v104
    %v151 = vmul.f32 %v80, %v104
    %v152 = vmul.f32 %v81, %v104
    %v153 = vmul.f32 %v82, %v104
    %v154 = vmul.f32 %v75, %v111
    %v155 = vmul.f32 %v76, %v111
    %v156 = vmul.f32 %v77, %v111
    %v157 = vmul.f32 %v78, %v111
    %v158 = vmul.f32 %v79, %v111
    %v159 = vmul.f32 %v80, %v111
    %v160 = vmul.f32 %v81, %v111
    %v161 = vmul.f32 %v82, %v111
    %v162 = vmul.f32 %v75, %v118
    %v163 = vmul.f32 %v76, %v118
    %v164 = vmul.f32 %v77, %v118
    %v165 = vmul.f32 %v78, %v118
    %v166 = vmul.f32 %v79, %v118
    %v167 = vmul.f32 %v80, %v118
    %v168 = vmul.f32 %v81, %v118
    %v169 = vmul.f32 %v82, %v118
    %v218 = vcombine.high %v122, %v122
    %v219 = vcombine.high %v123, %v123
    %v220 = vcombine.high %v124, %v124
    %v221 = vcombine.high %v125, %v125
    %v222 = vcombine.high %v126, %v126
    %v223 = vcombine.high %v127, %v127
    %v224 = vcombine.high %v128, %v128
    %v225 = vcombine.high %v129, %v129
    %v226 = vcombine.high %v130, %v130
    %v227 = vcombine.high %v131, %v131
    %v228 = vcombine.high %v132, %v132
    %v229 = vcombine.high %v133, %v133
    %v230 = vcombine.high %v134, %v134
    %v231 = vcombine.high %v135, %v135
    %v232 = vcombine.high %v136, %v136
    %v233 = vcombine.high %v137, %v137
    %v234 = vcombine.high %v138, %v138
    %v235 = vcombine.high %v139, %v139
    %v236 = vcombine.high %v140, %v140
    %v237 = vcombine.high %v141, %v141
    %v238 = vcombine.high %v142, %v142
    %v239 = vcombine.high %v143, %v143
    %v240 = vcombine.high %v144, %v144
    %v241 = vcombine.high %v145, %v145
    %v242 = vcombine.high %v146, %v146
    %v243 = vcombine.high %v147, %v147
    %v244 = vcombine.high %v148, %v148
    %v245 = vcombine.high %v149, %v149
    %v246 = vcombine.high %v150, %v150
    %v247 = vcombine.high %v151, %v151
    %v248 = vcombine.high %v152, %v152
    %v249 = vcombine.high %v153, %v153
    %v250 = vcombine.high %v154, %v154
    %v251 = vcombine.high %v155, %v155
    %v252 = vcombine.high %v156, %v156
    %v253 = vcombine.high %v157, %v157
    %v254 = vcombine.high %v158, %v158
    %v255 = vcombine.high %v159, %v159
    %v256 = vcombine.high %v160, %v160
    %v257 = vcombine.high %v161, %v161
    %v258 = vcombine.high %v162, %v162
    %v259 = vcombine.high %v163, %v163
    %v260 = vcombine.high %v164, %v164
    %v261 = vcombine.high %v165, %v165
    %v262 = vcombine.high %v166, %v166
    %v263 = vcombine.high %v167, %v167
    %v264 = vcombine.high %v168, %v168
    %v265 = vcombine.high %v169, %v169
    %vm314 = vcmask 1043456
    %v315 = vsel %vm314, %v122, 0.0
    %v316 = vrot.slane %v315, 4
    %v317 = vadd.f32 %v315, %v316
    %v318 = vrot.slane %v317, 2
    %v319 = vadd.f32 %v317, %v318
    %v320 = vrot.slane %v319, 1
    %v321 = vadd.f32 %v319, %v320
    %v322 = vsel %vm314, %v218, 0.0
    %v323 = vrot.slane %v322, 4
    %v324 = vadd.f32 %v322, %v323
    %v325 = vrot.slane %v324, 2
    %v326 = vadd.f32 %v324, %v325
    %v327 = vrot.slane %v326, 1
    %v328 = vadd.f32 %v326, %v327
    %v329 = vsel %vm314, %v123, 0.0
    %v330 = vrot.slane %v329, 4
    %v331 = vadd.f32 %v329, %v330
    %v332 = vrot.slane %v331, 2
    %v333 = vadd.f32 %v331, %v332
    %v334 = vrot.slane %v333, 1
    %v335 = vadd.f32 %v333, %v334
    %v336 = vsel %vm314, %v219, 0.0
    %v337 = vrot.slane %v336, 4
    %v338 = vadd.f32 %v336, %v337
    %v339 = vrot.slane %v338, 2
    %v340 = vadd.f32 %v338, %v339
    %v341 = vrot.slane %v340, 1
    %v342 = vadd.f32 %v340, %v341
    %v343 = vsel %vm314, %v124, 0.0
    %v344 = vrot.slane %v343, 4
    %v345 = vadd.f32 %v343, %v344
    %v346 = vrot.slane %v345, 2
    %v347 = vadd.f32 %v345, %v346
    %v348 = vrot.slane %v347, 1
    %v349 = vadd.f32 %v347, %v348
    %v350 = vsel %vm314, %v220, 0.0
    %v351 = vrot.slane %v350, 4
    %v352 = vadd.f32 %v350, %v351
    %v353 = vrot.slane %v352, 2
    %v354 = vadd.f32 %v352, %v353
    %v355 = vrot.slane %v354, 1
    %v356 = vadd.f32 %v354, %v355
    %v357 = vsel %vm314, %v125, 0.0
    %v358 = vrot.slane %v357, 4
    %v359 = vadd.f32 %v357, %v358
    %v360 = vrot.slane %v359, 2
    %v361 = vadd.f32 %v359, %v360
    %v362 = vrot.slane %v361, 1
    %v363 = vadd.f32 %v361, %v362
    %v364 = vsel %vm314, %v221, 0.0
    %v365 = vrot.slane %v364, 4
    %v366 = vadd.f32 %v364, %v365
    %v367 = vrot.slane %v366, 2
    %v368 = vadd.f32 %v366, %v367
    %v369 = vrot.slane %v368, 1
    %v370 = vadd.f32 %v368, %v369
    %v371 = vsel %vm314, %v126, 0.0
    %v372 = vrot.slane %v371, 4
    %v373 = vadd.f32 %v371, %v372
    %v374 = vrot.slane %v373, 2
    %v375 = vadd.f32 %v373, %v374
    %v376 = vrot.slane %v375, 1
    %v377 = vadd.f32 %v375, %v376
    %v378 = vsel %vm314, %v222, 0.0
    %v379 = vrot.slane %v378, 4
    %v380 = vadd.f32 %v378, %v379
    %v381 = vrot.slane %v380, 2
    %v382 = vadd.f32 %v380, %v381
    %v383 = vrot.slane %v382, 1
    %v384 = vadd.f32 %v382, %v383
    %v385 = vsel %vm314, %v127, 0.0
    %v386 = vrot.slane %v385, 4
    %v387 = vadd.f32 %v385, %v386
    %v388 = vrot.slane %v387, 2
    %v389 = vadd.f32 %v387, %v388
    %v390 = vrot.slane %v389, 1
    %v391 = vadd.f32 %v389, %v390
    %v392 = vsel %vm314, %v223, 0.0
    %v393 = vrot.slane %v392, 4
    %v394 = vadd.f32 %v392, %v393
    %v395 = vrot.slane %v394, 2
    %v396 = vadd.f32 %v394, %v395
    %v397 = vrot.slane %v396, 1
    %v398 = vadd.f32 %v396, %v397
    %v399 = vsel %vm314, %v128, 0.0
    %v400 = vrot.slane %v399, 4
    %v401 = vadd.f32 %v399, %v400
    %v402 = vrot.slane %v401, 2
    %v403 = vadd.f32 %v401, %v402
    %v404 = vrot.slane %v403, 1
    %v405 = vadd.f32 %v403, %v404
    %v406 = vsel %vm314, %v224, 0.0
    %v407 = vrot.slane %v406, 4
    %v408 = vadd.f32 %v406, %v407
    %v409 = vrot.slane %v408, 2
    %v410 = vadd.f32 %v408, %v409
    %v411 = vrot.slane %v410, 1
    %v412 = vadd.f32 %v410, %v411
    %v413 = vsel %vm314, %v129, 0.0
    %v414 = vrot.slane %v413, 4
    %v415 = vadd.f32 %v413, %v414
    %v416 = vrot.slane %v415, 2
    %v417 = vadd.f32 %v415, %v416
    %v418 = vrot.slane %v417, 1
    %v419 = vadd.f32 %v417, %v418
    %v420 = vsel %vm314, %v225, 0.0
    %v421 = vrot.slane %v420, 4
    %v422 = vadd.f32 %v420, %v421
    %v423 = vrot.slane %v422, 2
    %v424 = vadd.f32 %v422, %v423
    %v425 = vrot.slane %v424, 1
    %v426 = vadd.f32 %v424, %v425
    %v427 = vsel %vm314, %v130, 0.0
    %v428 = vrot.slane %v427, 4
    %v429 = vadd.f32 %v427, %v428
    %v430 = vrot.slane %v429, 2
    %v431 = vadd.f32 %v429, %v430
    %v432 = vrot.slane %v431, 1
    %v433 = vadd.f32 %v431, %v432
    %v434 = vsel %vm314, %v226, 0.0
    %v435 = vrot.slane %v434, 4
    %v436 = vadd.f32 %v434, %v435
    %v437 = vrot.slane %v436, 2
    %v438 = vadd.f32 %v436, %v437
    %v439 = vrot.slane %v438, 1
    %v440 = vadd.f32 %v438, %v439
    %v441 = vsel %vm314, %v131, 0.0
    %v442 = vrot.slane %v441, 4
    %v443 = vadd.f32 %v441, %v442
    %v444 = vrot.slane %v443, 2
    %v445 = vadd.f32 %v443, %v444
    %v446 = vrot.slane %v445, 1
    %v447 = vadd.f32 %v445, %v446
    %v448 = vsel %vm314, %v227, 0.0
    %v449 = vrot.slane %v448, 4
    %v450 = vadd.f32 %v448, %v449
    %v451 = vrot.slane %v450, 2
    %v452 = vadd.f32 %v450, %v451
    %v453 = vrot.slane %v452, 1
    %v454 = vadd.f32 %v452, %v453
    %v455 = vsel %vm314, %v132, 0.0
    %v456 = vrot.slane %v455, 4
    %v457 = vadd.f32 %v455, %v456
    %v458 = vrot.slane %v457, 2
    %v459 = vadd.f32 %v457, %v458
    %v460 = vrot.slane %v459, 1
    %v461 = vadd.f32 %v459, %v460
    %v462 = vsel %vm314, %v228, 0.0
    %v463 = vrot.slane %v462, 4
    %v464 = vadd.f32 %v462, %v463
    %v465 = vrot.slane %v464, 2
    %v466 = vadd.f32 %v464, %v465
    %v467 = vrot.slane %v466, 1
    %v468 = vadd.f32 %v466, %v467
    %v469 = vsel %vm314, %v133, 0.0
    %v470 = vrot.slane %v469, 4
    %v471 = vadd.f32 %v469, %v470
    %v472 = vrot.slane %v471, 2
    %v473 = vadd.f32 %v471, %v472
    %v474 = vrot.slane %v473, 1
    %v475 = vadd.f32 %v473, %v474
    %v476 = vsel %vm314, %v229, 0.0
    %v477 = vrot.slane %v476, 4
    %v478 = vadd.f32 %v476, %v477
    %v479 = vrot.slane %v478, 2
    %v480 = vadd.f32 %v478, %v479
    %v481 = vrot.slane %v480, 1
    %v482 = vadd.f32 %v480, %v481
    %v483 = vsel %vm314, %v134, 0.0
    %v484 = vrot.slane %v483, 4
    %v485 = vadd.f32 %v483, %v484
    %v486 = vrot.slane %v485, 2
    %v487 = vadd.f32 %v485, %v486
    %v488 = vrot.slane %v487, 1
    %v489 = vadd.f32 %v487, %v488
    %v490 = vsel %vm314, %v230, 0.0
    %v491 = vrot.slane %v490, 4
    %v492 = vadd.f32 %v490, %v491
    %v493 = vrot.slane %v492, 2
    %v494 = vadd.f32 %v492, %v493
    %v495 = vrot.slane %v494, 1
    %v496 = vadd.f32 %v494, %v495
    %v497 = vsel %vm314, %v135, 0.0
    %v498 = vrot.slane %v497, 4
    %v499 = vadd.f32 %v497, %v498
    %v500 = vrot.slane %v499, 2
    %v501 = vadd.f32 %v499, %v500
    %v502 = vrot.slane %v501, 1
    %v503 = vadd.f32 %v501, %v502
    %v504 = vsel %vm314, %v231, 0.0
    %v505 = vrot.slane %v504, 4
    %v506 = vadd.f32 %v504, %v505
    %v507 = vrot.slane %v506, 2
    %v508 = vadd.f32 %v506, %v507
    %v509 = vrot.slane %v508, 1
    %v510 = vadd.f32 %v508, %v509
    %v511 = vsel %vm314, %v136, 0.0
    %v512 = vrot.slane %v511, 4
    %v513 = vadd.f32 %v511, %v512
    %v514 = vrot.slane %v513, 2
    %v515 = vadd.f32 %v513, %v514
    %v516 = vrot.slane %v515, 1
    %v517 = vadd.f32 %v515, %v516
    %v518 = vsel %vm314, %v232, 0.0
    %v519 = vrot.slane %v518, 4
    %v520 = vadd.f32 %v518, %v519
    %v521 = vrot.slane %v520, 2
    %v522 = vadd.f32 %v520, %v521
    %v523 = vrot.slane %v522, 1
    %v524 = vadd.f32 %v522, %v523
    %v525 = vsel %vm314, %v137, 0.0
    %v526 = vrot.slane %v525, 4
    %v527 = vadd.f32 %v525, %v526
    %v528 = vrot.slane %v527, 2
    %v529 = vadd.f32 %v527, %v528
    %v530 = vrot.slane %v529, 1
    %v531 = vadd.f32 %v529, %v530
    %v532 = vsel %vm314, %v233, 0.0
    %v533 = vrot.slane %v532, 4
    %v534 = vadd.f32 %v532, %v533
    %v535 = vrot.slane %v534, 2
    %v536 = vadd.f32 %v534, %v535
    %v537 = vrot.slane %v536, 1
    %v538 = vadd.f32 %v536, %v537
    %v539 = vsel %vm314, %v138, 0.0
    %v540 = vrot.slane %v539, 4
    %v541 = vadd.f32 %v539, %v540
    %v542 = vrot.slane %v541, 2
    %v543 = vadd.f32 %v541, %v542
    %v544 = vrot.slane %v543, 1
    %v545 = vadd.f32 %v543, %v544
    %v546 = vsel %vm314, %v234, 0.0
    %v547 = vrot.slane %v546, 4
    %v548 = vadd.f32 %v546, %v547
    %v549 = vrot.slane %v548, 2
    %v550 = vadd.f32 %v548, %v549
    %v551 = vrot.slane %v550, 1
    %v552 = vadd.f32 %v550, %v551
    %v553 = vsel %vm314, %v139, 0.0
    %v554 = vrot.slane %v553, 4
    %v555 = vadd.f32 %v553, %v554
    %v556 = vrot.slane %v555, 2
    %v557 = vadd.f32 %v555, %v556
    %v558 = vrot.slane %v557, 1
    %v559 = vadd.f32 %v557, %v558
    %v560 = vsel %vm314, %v235, 0.0
    %v561 = vrot.slane %v560, 4
    %v562 = vadd.f32 %v560, %v561
    %v563 = vrot.slane %v562, 2
    %v564 = vadd.f32 %v562, %v563
    %v565 = vrot.slane %v564, 1
    %v566 = vadd.f32 %v564, %v565
    %v567 = vsel %vm314, %v140, 0.0
    %v568 = vrot.slane %v567, 4
    %v569 = vadd.f32 %v567, %v568
    %v570 = vrot.slane %v569, 2
    %v571 = vadd.f32 %v569, %v570
    %v572 = vrot.slane %v571, 1
    %v573 = vadd.f32 %v571, %v572
    %v574 = vsel %vm314, %v236, 0.0
    %v575 = vrot.slane %v574, 4
    %v576 = vadd.f32 %v574, %v575
    %v577 = vrot.slane %v576, 2
    %v578 = vadd.f32 %v576, %v577
    %v579 = vrot.slane %v578, 1
    %v580 = vadd.f32 %v578, %v579
    %v581 = vsel %vm314, %v141, 0.0
    %v582 = vrot.slane %v581, 4
    %v583 = vadd.f32 %v581, %v582
    %v584 = vrot.slane %v583, 2
    %v585 = vadd.f32 %v583, %v584
    %v586 = vrot.slane %v585, 1
    %v587 = vadd.f32 %v585, %v586
    %v588 = vsel %vm314, %v237, 0.0
    %v589 = vrot.slane %v588, 4
    %v590 = vadd.f32 %v588, %v589
    %v591 = vrot.slane %v590, 2
    %v592 = vadd.f32 %v590, %v591
    %v593 = vrot.slane %v592, 1
    %v594 = vadd.f32 %v592, %v593
    %v595 = vsel %vm314, %v142, 0.0
    %v596 = vrot.slane %v595, 4
    %v597 = vadd.f32 %v595, %v596
    %v598 = vrot.slane %v597, 2
    %v599 = vadd.f32 %v597, %v598
    %v600 = vrot.slane %v599, 1
    %v601 = vadd.f32 %v599, %v600
    %v602 = vsel %vm314, %v238, 0.0
    %v603 = vrot.slane %v602, 4
    %v604 = vadd.f32 %v602, %v603
    %v605 = vrot.slane %v604, 2
    %v606 = vadd.f32 %v604, %v605
    %v607 = vrot.slane %v606, 1
    %v608 = vadd.f32 %v606, %v607
    %v609 = vsel %vm314, %v143, 0.0
    %v610 = vrot.slane %v609, 4
    %v611 = vadd.f32 %v609, %v610
    %v612 = vrot.slane %v611, 2
    %v613 = vadd.f32 %v611, %v612
    %v614 = vrot.slane %v613, 1
    %v615 = vadd.f32 %v613, %v614
    %v616 = vsel %vm314, %v239, 0.0
    %v617 = vrot.slane %v616, 4
    %v618 = vadd.f32 %v616, %v617
    %v619 = vrot.slane %v618, 2
    %v620 = vadd.f32 %v618, %v619
    %v621 = vrot.slane %v620, 1
    %v622 = vadd.f32 %v620, %v621
    %v623 = vsel %vm314, %v144, 0.0
    %v624 = vrot.slane %v623, 4
    %v625 = vadd.f32 %v623, %v624
    %v626 = vrot.slane %v625, 2
    %v627 = vadd.f32 %v625, %v626
    %v628 = vrot.slane %v627, 1
    %v629 = vadd.f32 %v627, %v628
    %v630 = vsel %vm314, %v240, 0.0
    %v631 = vrot.slane %v630, 4
    %v632 = vadd.f32 %v630, %v631
    %v633 = vrot.slane %v632, 2
    %v634 = vadd.f32 %v632, %v633
    %v635 = vrot.slane %v634, 1
    %v636 = vadd.f32 %v634, %v635
    %v637 = vsel %vm314, %v145, 0.0
    %v638 = vrot.slane %v637, 4
    %v639 = vadd.f32 %v637, %v638
    %v640 = vrot.slane %v639, 2
    %v641 = vadd.f32 %v639, %v640
    %v642 = vrot.slane %v641, 1
    %v643 = vadd.f32 %v641, %v642
    %v644 = vsel %vm314, %v241, 0.0
    %v645 = vrot.slane %v644, 4
    %v646 = vadd.f32 %v644, %v645
    %v647 = vrot.slane %v646, 2
    %v648 = vadd.f32 %v646, %v647
    %v649 = vrot.slane %v648, 1
    %v650 = vadd.f32 %v648, %v649
    %v651 = vsel %vm314, %v146, 0.0
    %v652 = vrot.slane %v651, 4
    %v653 = vadd.f32 %v651, %v652
    %v654 = vrot.slane %v653, 2
    %v655 = vadd.f32 %v653, %v654
    %v656 = vrot.slane %v655, 1
    %v657 = vadd.f32 %v655, %v656
    %v658 = vsel %vm314, %v242, 0.0
    %v659 = vrot.slane %v658, 4
    %v660 = vadd.f32 %v658, %v659
    %v661 = vrot.slane %v660, 2
    %v662 = vadd.f32 %v660, %v661
    %v663 = vrot.slane %v662, 1
    %v664 = vadd.f32 %v662, %v663
    %v665 = vsel %vm314, %v147, 0.0
    %v666 = vrot.slane %v665, 4
    %v667 = vadd.f32 %v665, %v666
    %v668 = vrot.slane %v667, 2
    %v669 = vadd.f32 %v667, %v668
    %v670 = vrot.slane %v669, 1
    %v671 = vadd.f32 %v669, %v670
    %v672 = vsel %vm314, %v243, 0.0
    %v673 = vrot.slane %v672, 4
    %v674 = vadd.f32 %v672, %v673
    %v675 = vrot.slane %v674, 2
    %v676 = vadd.f32 %v674, %v675
    %v677 = vrot.slane %v676, 1
    %v678 = vadd.f32 %v676, %v677
    %v679 = vsel %vm314, %v148, 0.0
    %v680 = vrot.slane %v679, 4
    %v681 = vadd.f32 %v679, %v680
    %v682 = vrot.slane %v681, 2
    %v683 = vadd.f32 %v681, %v682
    %v684 = vrot.slane %v683, 1
    %v685 = vadd.f32 %v683, %v684
    %v686 = vsel %vm314, %v244, 0.0
    %v687 = vrot.slane %v686, 4
    %v688 = vadd.f32 %v686, %v687
    %v689 = vrot.slane %v688, 2
    %v690 = vadd.f32 %v688, %v689
    %v691 = vrot.slane %v690, 1
    %v692 = vadd.f32 %v690, %v691
    %v693 = vsel %vm314, %v149, 0.0
    %v694 = vrot.slane %v693, 4
    %v695 = vadd.f32 %v693, %v694
    %v696 = vrot.slane %v695, 2
    %v697 = vadd.f32 %v695, %v696
    %v698 = vrot.slane %v697, 1
    %v699 = vadd.f32 %v697, %v698
    %v700 = vsel %vm314, %v245, 0.0
    %v701 = vrot.slane %v700, 4
    %v702 = vadd.f32 %v700, %v701
    %v703 = vrot.slane %v702, 2
    %v704 = vadd.f32 %v702, %v703
    %v705 = vrot.slane %v704, 1
    %v706 = vadd.f32 %v704, %v705
    %v707 = vsel %vm314, %v150, 0.0
    %v708 = vrot.slane %v707, 4
    %v709 = vadd.f32 %v707, %v708
    %v710 = vrot.slane %v709, 2
    %v711 = vadd.f32 %v709, %v710
    %v712 = vrot.slane %v711, 1
    %v713 = vadd.f32 %v711, %v712
    %v714 = vsel %vm314, %v246, 0.0
    %v715 = vrot.slane %v714, 4
    %v716 = vadd.f32 %v714, %v715
    %v717 = vrot.slane %v716, 2
    %v718 = vadd.f32 %v716, %v717
    %v719 = vrot.slane %v718, 1
    %v720 = vadd.f32 %v718, %v719
    %v721 = vsel %vm314, %v151, 0.0
    %v722 = vrot.slane %v721, 4
    %v723 = vadd.f32 %v721, %v722
    %v724 = vrot.slane %v723, 2
    %v725 = vadd.f32 %v723, %v724
    %v726 = vrot.slane %v725, 1
    %v727 = vadd.f32 %v725, %v726
    %v728 = vsel %vm314, %v247, 0.0
    %v729 = vrot.slane %v728, 4
    %v730 = vadd.f32 %v728, %v729
    %v731 = vrot.slane %v730, 2
    %v732 = vadd.f32 %v730, %v731
    %v733 = vrot.slane %v732, 1
    %v734 = vadd.f32 %v732, %v733
    %v735 = vsel %vm314, %v152, 0.0
    %v736 = vrot.slane %v735, 4
    %v737 = vadd.f32 %v735, %v736
    %v738 = vrot.slane %v737, 2
    %v739 = vadd.f32 %v737, %v738
    %v740 = vrot.slane %v739, 1
    %v741 = vadd.f32 %v739, %v740
    %v742 = vsel %vm314, %v248, 0.0
    %v743 = vrot.slane %v742, 4
    %v744 = vadd.f32 %v742, %v743
    %v745 = vrot.slane %v744, 2
    %v746 = vadd.f32 %v744, %v745
    %v747 = vrot.slane %v746, 1
    %v748 = vadd.f32 %v746, %v747
    %v749 = vsel %vm314, %v153, 0.0
    %v750 = vrot.slane %v749, 4
    %v751 = vadd.f32 %v749, %v750
    %v752 = vrot.slane %v751, 2
    %v753 = vadd.f32 %v751, %v752
    %v754 = vrot.slane %v753, 1
    %v755 = vadd.f32 %v753, %v754
    %v756 = vsel %vm314, %v249, 0.0
    %v757 = vrot.slane %v756, 4
    %v758 = vadd.f32 %v756, %v757
    %v759 = vrot.slane %v758, 2
    %v760 = vadd.f32 %v758, %v759
    %v761 = vrot.slane %v760, 1
    %v762 = vadd.f32 %v760, %v761
    %v763 = vsel %vm314, %v154, 0.0
    %v764 = vrot.slane %v763, 4
    %v765 = vadd.f32 %v763, %v764
    %v766 = vrot.slane %v765, 2
    %v767 = vadd.f32 %v765, %v766
    %v768 = vrot.slane %v767, 1
    %v769 = vadd.f32 %v767, %v768
    %v770 = vsel %vm314, %v250, 0.0
    %v771 = vrot.slane %v770, 4
    %v772 = vadd.f32 %v770, %v771
    %v773 = vrot.slane %v772, 2
    %v774 = vadd.f32 %v772, %v773
    %v775 = vrot.slane %v774, 1
    %v776 = vadd.f32 %v774, %v775
    %v777 = vsel %vm314, %v155, 0.0
    %v778 = vrot.slane %v777, 4
    %v779 = vadd.f32 %v777, %v778
    %v780 = vrot.slane %v779, 2
    %v781 = vadd.f32 %v779, %v780
    %v782 = vrot.slane %v781, 1
    %v783 = vadd.f32 %v781, %v782
    %v784 = vsel %vm314, %v251, 0.0
    %v785 = vrot.slane %v784, 4
    %v786 = vadd.f32 %v784, %v785
    %v787 = vrot.slane %v786, 2
    %v788 = vadd.f32 %v786, %v787
    %v789 = vrot.slane %v788, 1
    %v790 = vadd.f32 %v788, %v789
    %v791 = vsel %vm314, %v156, 0.0
    %v792 = vrot.slane %v791, 4
    %v793 = vadd.f32 %v791, %v792
    %v794 = vrot.slane %v793, 2
    %v795 = vadd.f32 %v793, %v794
    %v796 = vrot.slane %v795, 1
    %v797 = vadd.f32 %v795, %v796
    %v798 = vsel %vm314, %v252, 0.0
    %v799 = vrot.slane %v798, 4
    %v800 = vadd.f32 %v798, %v799
    %v801 = vrot.slane %v800, 2
    %v802 = vadd.f32 %v800, %v801
    %v803 = vrot.slane %v802, 1
    %v804 = vadd.f32 %v802, %v803
    %v805 = vsel %vm314, %v157, 0.0
    %v806 = vrot.slane %v805, 4
    %v807 = vadd.f32 %v805, %v806
    %v808 = vrot.slane %v807, 2
    %v809 = vadd.f32 %v807, %v808
    %v810 = vrot.slane %v809, 1
    %v811 = vadd.f32 %v809, %v810
    %v812 = vsel %vm314, %v253, 0.0
    %v813 = vrot.slane %v812, 4
    %v814 = vadd.f32 %v812, %v813
    %v815 = vrot.slane %v814, 2
    %v816 = vadd.f32 %v814, %v815
    %v817 = vrot.slane %v816, 1
    %v818 = vadd.f32 %v816, %v817
    %v819 = vsel %vm314, %v158, 0.0
    %v820 = vrot.slane %v819, 4
    %v821 = vadd.f32 %v819, %v820
    %v822 = vrot.slane %v821, 2
    %v823 = vadd.f32 %v821, %v822
    %v824 = vrot.slane %v823, 1
    %v825 = vadd.f32 %v823, %v824
    %v826 = vsel %vm314, %v254, 0.0
    %v827 = vrot.slane %v826, 4
    %v828 = vadd.f32 %v826, %v827
    %v829 = vrot.slane %v828, 2
    %v830 = vadd.f32 %v828, %v829
    %v831 = vrot.slane %v830, 1
    %v832 = vadd.f32 %v830, %v831
    %v833 = vsel %vm314, %v159, 0.0
    %v834 = vrot.slane %v833, 4
    %v835 = vadd.f32 %v833, %v834
    %v836 = vrot.slane %v835, 2
    %v837 = vadd.f32 %v835, %v836
    %v838 = vrot.slane %v837, 1
    %v839 = vadd.f32 %v837, %v838
    %v840 = vsel %vm314, %v255, 0.0
    %v841 = vrot.slane %v840, 4
    %v842 = vadd.f32 %v840, %v841
    %v843 = vrot.slane %v842, 2
    %v844 = vadd.f32 %v842, %v843
    %v845 = vrot.slane %v844, 1
    %v846 = vadd.f32 %v844, %v845
    %v847 = vsel %vm314, %v160, 0.0
    %v848 = vrot.slane %v847, 4
    %v849 = vadd.f32 %v847, %v848
    %v850 = vrot.slane %v849, 2
    %v851 = vadd.f32 %v849, %v850
    %v852 = vrot.slane %v851, 1
    %v853 = vadd.f32 %v851, %v852
    %v854 = vsel %vm314, %v256, 0.0
    %v855 = vrot.slane %v854, 4
    %v856 = vadd.f32 %v854, %v855
    %v857 = vrot.slane %v856, 2
    %v858 = vadd.f32 %v856, %v857
    %v859 = vrot.slane %v858, 1
    %v860 = vadd.f32 %v858, %v859
    %v861 = vsel %vm314, %v161, 0.0
    %v862 = vrot.slane %v861, 4
    %v863 = vadd.f32 %v861, %v862
    %v864 = vrot.slane %v863, 2
    %v865 = vadd.f32 %v863, %v864
    %v866 = vrot.slane %v865, 1
    %v867 = vadd.f32 %v865, %v866
    %v868 = vsel %vm314, %v257, 0.0
    %v869 = vrot.slane %v868, 4
    %v870 = vadd.f32 %v868, %v869
    %v871 = vrot.slane %v870, 2
    %v872 = vadd.f32 %v870, %v871
    %v873 = vrot.slane %v872, 1
    %v874 = vadd.f32 %v872, %v873
    %v875 = vsel %vm314, %v162, 0.0
    %v876 = vrot.slane %v875, 4
    %v877 = vadd.f32 %v875, %v876
    %v878 = vrot.slane %v877, 2
    %v879 = vadd.f32 %v877, %v878
    %v880 = vrot.slane %v879, 1
    %v881 = vadd.f32 %v879, %v880
    %v882 = vsel %vm314, %v258, 0.0
    %v883 = vrot.slane %v882, 4
    %v884 = vadd.f32 %v882, %v883
    %v885 = vrot.slane %v884, 2
    %v886 = vadd.f32 %v884, %v885
    %v887 = vrot.slane %v886, 1
    %v888 = vadd.f32 %v886, %v887
    %v889 = vsel %vm314, %v163, 0.0
    %v890 = vrot.slane %v889, 4
    %v891 = vadd.f32 %v889, %v890
    %v892 = vrot.slane %v891, 2
    %v893 = vadd.f32 %v891, %v892
    %v894 = vrot.slane %v893, 1
    %v895 = vadd.f32 %v893, %v894
    %v896 = vsel %vm314, %v259, 0.0
    %v897 = vrot.slane %v896, 4
    %v898 = vadd.f32 %v896, %v897
    %v899 = vrot.slane %v898, 2
    %v900 = vadd.f32 %v898, %v899
    %v901 = vrot.slane %v900, 1
    %v902 = vadd.f32 %v900, %v901
    %v903 = vsel %vm314, %v164, 0.0
    %v904 = vrot.slane %v903, 4
    %v905 = vadd.f32 %v903, %v904
    %v906 = vrot.slane %v905, 2
    %v907 = vadd.f32 %v905, %v906
    %v908 = vrot.slane %v907, 1
    %v909 = vadd.f32 %v907, %v908
    %v910 = vsel %vm314, %v260, 0.0
    %v911 = vrot.slane %v910, 4
    %v912 = vadd.f32 %v910, %v911
    %v913 = vrot.slane %v912, 2
    %v914 = vadd.f32 %v912, %v913
    %v915 = vrot.slane %v914, 1
    %v916 = vadd.f32 %v914, %v915
    %v917 = vsel %vm314, %v165, 0.0
    %v918 = vrot.slane %v917, 4
    %v919 = vadd.f32 %v917, %v918
    %v920 = vrot.slane %v919, 2
    %v921 = vadd.f32 %v919, %v920
    %v922 = vrot.slane %v921, 1
    %v923 = vadd.f32 %v921, %v922
    %v924 = vsel %vm314, %v261, 0.0
    %v925 = vrot.slane %v924, 4
    %v926 = vadd.f32 %v924, %v925
    %v927 = vrot.slane %v926, 2
    %v928 = vadd.f32 %v926, %v927
    %v929 = vrot.slane %v928, 1
    %v930 = vadd.f32 %v928, %v929
    %v931 = vsel %vm314, %v166, 0.0
    %v932 = vrot.slane %v931, 4
    %v933 = vadd.f32 %v931, %v932
    %v934 = vrot.slane %v933, 2
    %v935 = vadd.f32 %v933, %v934
    %v936 = vrot.slane %v935, 1
    %v937 = vadd.f32 %v935, %v936
    %v938 = vsel %vm314, %v262, 0.0
    %v939 = vrot.slane %v938, 4
    %v940 = vadd.f32 %v938, %v939
    %v941 = vrot.slane %v940, 2
    %v942 = vadd.f32 %v940, %v941
    %v943 = vrot.slane %v942, 1
    %v944 = vadd.f32 %v942, %v943
    %v945 = vsel %vm314, %v167, 0.0
    %v946 = vrot.slane %v945, 4
    %v947 = vadd.f32 %v945, %v946
    %v948 = vrot.slane %v947, 2
    %v949 = vadd.f32 %v947, %v948
    %v950 = vrot.slane %v949, 1
    %v951 = vadd.f32 %v949, %v950
    %v952 = vsel %vm314, %v263, 0.0
    %v953 = vrot.slane %v952, 4
    %v954 = vadd.f32 %v952, %v953
    %v955 = vrot.slane %v954, 2
    %v956 = vadd.f32 %v954, %v955
    %v957 = vrot.slane %v956, 1
    %v958 = vadd.f32 %v956, %v957
    %v959 = vsel %vm314, %v168, 0.0
    %v960 = vrot.slane %v959, 4
    %v961 = vadd.f32 %v959, %v960
    %v962 = vrot.slane %v961, 2
    %v963 = vadd.f32 %v961, %v962
    %v964 = vrot.slane %v963, 1
    %v965 = vadd.f32 %v963, %v964
    %v966 = vsel %vm314, %v264, 0.0
    %v967 = vrot.slane %v966, 4
    %v968 = vadd.f32 %v966, %v967
    %v969 = vrot.slane %v968, 2
    %v970 = vadd.f32 %v968, %v969
    %v971 = vrot.slane %v970, 1
    %v972 = vadd.f32 %v970, %v971
    %v973 = vsel %vm314, %v169, 0.0
    %v974 = vrot.slane %v973, 4
    %v975 = vadd.f32 %v973, %v974
    %v976 = vrot.slane %v975, 2
    %v977 = vadd.f32 %v975, %v976
    %v978 = vrot.slane %v977, 1
    %v979 = vadd.f32 %v977, %v978
    %v980 = vsel %vm314, %v265, 0.0
    %v981 = vrot.slane %v980, 4
    %v982 = vadd.f32 %v980, %v981
    %v983 = vrot.slane %v982, 2
    %v984 = vadd.f32 %v982, %v983
    %v985 = vrot.slane %v984, 1
    %v986 = vadd.f32 %v984, %v985
    %v987 = vpack.c.bf16 %v321, %v321
    %v988 = vpack.c.bf16 %v328, %v328
    %v989 = vpack.c.bf16 %v335, %v335
    %v990 = vpack.c.bf16 %v342, %v342
    %v991 = vpack.c.bf16 %v349, %v349
    %v992 = vpack.c.bf16 %v356, %v356
    %v993 = vpack.c.bf16 %v363, %v363
    %v994 = vpack.c.bf16 %v370, %v370
    %v995 = vpack.c.bf16 %v377, %v377
    %v996 = vpack.c.bf16 %v384, %v384
    %v997 = vpack.c.bf16 %v391, %v391
    %v998 = vpack.c.bf16 %v398, %v398
    %v999 = vpack.c.bf16 %v405, %v405
    %v1000 = vpack.c.bf16 %v412, %v412
    %v1001 = vpack.c.bf16 %v419, %v419
    %v1002 = vpack.c.bf16 %v426, %v426
    %v1003 = vpack.c.bf16 %v433, %v433
    %v1004 = vpack.c.bf16 %v440, %v440
    %v1005 = vpack.c.bf16 %v447, %v447
    %v1006 = vpack.c.bf16 %v454, %v454
    %v1007 = vpack.c.bf16 %v461, %v461
    %v1008 = vpack.c.bf16 %v468, %v468
    %v1009 = vpack.c.bf16 %v475, %v475
    %v1010 = vpack.c.bf16 %v482, %v482
    %v1011 = vpack.c.bf16 %v489, %v489
    %v1012 = vpack.c.bf16 %v496, %v496
    %v1013 = vpack.c.bf16 %v503, %v503
    %v1014 = vpack.c.bf16 %v510, %v510
    %v1015 = vpack.c.bf16 %v517, %v517
    %v1016 = vpack.c.bf16 %v524, %v524
    %v1017 = vpack.c.bf16 %v531, %v531
    %v1018 = vpack.c.bf16 %v538, %v538
    %v1019 = vpack.c.bf16 %v545, %v545
    %v1020 = vpack.c.bf16 %v552, %v552
    %v1021 = vpack.c.bf16 %v559, %v559
    %v1022 = vpack.c.bf16 %v566, %v566
    %v1023 = vpack.c.bf16 %v573, %v573
    %v1024 = vpack.c.bf16 %v580, %v580
    %v1025 = vpack.c.bf16 %v587, %v587
    %v1026 = vpack.c.bf16 %v594, %v594
    %v1027 = vpack.c.bf16 %v601, %v601
    %v1028 = vpack.c.bf16 %v608, %v608
    %v1029 = vpack.c.bf16 %v615, %v615
    %v1030 = vpack.c.bf16 %v622, %v622
    %v1031 = vpack.c.bf16 %v629, %v629
    %v1032 = vpack.c.bf16 %v636, %v636
    %v1033 = vpack.c.bf16 %v643, %v643
    %v1034 = vpack.c.bf16 %v650, %v650
    %v1035 = vpack.c.bf16 %v657, %v657
    %v1036 = vpack.c.bf16 %v664, %v664
    %v1037 = vpack.c.bf16 %v671, %v671
    %v1038 = vpack.c.bf16 %v678, %v678
    %v1039 = vpack.c.bf16 %v685, %v685
    %v1040 = vpack.c.bf16 %v692, %v692
    %v1041 = vpack.c.bf16 %v699, %v699
    %v1042 = vpack.c.bf16 %v706, %v706
    %v1043 = vpack.c.bf16 %v713, %v713
    %v1044 = vpack.c.bf16 %v720, %v720
    %v1045 = vpack.c.bf16 %v727, %v727
    %v1046 = vpack.c.bf16 %v734, %v734
    %v1047 = vpack.c.bf16 %v741, %v741
    %v1048 = vpack.c.bf16 %v748, %v748
    %v1049 = vpack.c.bf16 %v755, %v755
    %v1050 = vpack.c.bf16 %v762, %v762
    %v1051 = vpack.c.bf16 %v769, %v769
    %v1052 = vpack.c.bf16 %v776, %v776
    %v1053 = vpack.c.bf16 %v783, %v783
    %v1054 = vpack.c.bf16 %v790, %v790
    %v1055 = vpack.c.bf16 %v797, %v797
    %v1056 = vpack.c.bf16 %v804, %v804
    %v1057 = vpack.c.bf16 %v811, %v811
    %v1058 = vpack.c.bf16 %v818, %v818
    %v1059 = vpack.c.bf16 %v825, %v825
    %v1060 = vpack.c.bf16 %v832, %v832
    %v1061 = vpack.c.bf16 %v839, %v839
    %v1062 = vpack.c.bf16 %v846, %v846
    %v1063 = vpack.c.bf16 %v853, %v853
    %v1064 = vpack.c.bf16 %v860, %v860
    %v1065 = vpack.c.bf16 %v867, %v867
    %v1066 = vpack.c.bf16 %v874, %v874
    %v1067 = vpack.c.bf16 %v881, %v881
    %v1068 = vpack.c.bf16 %v888, %v888
    %v1069 = vpack.c.bf16 %v895, %v895
    %v1070 = vpack.c.bf16 %v902, %v902
    %v1071 = vpack.c.bf16 %v909, %v909
    %v1072 = vpack.c.bf16 %v916, %v916
    %v1073 = vpack.c.bf16 %v923, %v923
    %v1074 = vpack.c.bf16 %v930, %v930
    %v1075 = vpack.c.bf16 %v937, %v937
    %v1076 = vpack.c.bf16 %v944, %v944
    %v1077 = vpack.c.bf16 %v951, %v951
    %v1078 = vpack.c.bf16 %v958, %v958
    %v1079 = vpack.c.bf16 %v965, %v965
    %v1080 = vpack.c.bf16 %v972, %v972
    %v1081 = vpack.c.bf16 %v979, %v979
    %v1082 = vpack.c.bf16 %v986, %v986
    %v1083 = vld [vmem:[#allocation4] sm:$0xff]
    %v1084 = vld [vmem:[#allocation4 + $0x8] sm:$0xff]
    %v1085 = vld [vmem:[#allocation4 + $0x10] sm:$0xff]
    %v1086 = vld [vmem:[#allocation4 + $0x18] sm:$0xff]
    %v1087 = vld [vmem:[#allocation4 + $0x20] sm:$0xff]
    %v1088 = vld [vmem:[#allocation4 + $0x28] sm:$0xff]
    %v1089 = vld [vmem:[#allocation4 + $0x30] sm:$0xff]
    %v1090 = vld [vmem:[#allocation4 + $0x38] sm:$0xff]
    %v1091 = vld [vmem:[#allocation4 + $0x40] sm:$0xff]
    %v1092 = vld [vmem:[#allocation4 + $0x48] sm:$0xff]
    %v1093 = vld [vmem:[#allocation4 + $0x50] sm:$0xff]
    %v1094 = vld [vmem:[#allocation4 + $0x58] sm:$0xff]
    %v1095 = vld [vmem:[#allocation4 + $0x60] sm:$0xff]
    %v1096 = vld [vmem:[#allocation4 + $0x68] sm:$0xff]
    %v1097 = vld [vmem:[#allocation4 + $0x70] sm:$0xff]
    %v1098 = vld [vmem:[#allocation4 + $0x78] sm:$0xff]
    %v1099 = vld [vmem:[#allocation4 + $0x80] sm:$0xff]
    %v1100 = vld [vmem:[#allocation4 + $0x88] sm:$0xff]
    %v1101 = vld [vmem:[#allocation4 + $0x90] sm:$0xff]
    %v1102 = vld [vmem:[#allocation4 + $0x98] sm:$0xff]
    %v1103 = vld [vmem:[#allocation4 + $0xa0] sm:$0xff]
    %v1104 = vld [vmem:[#allocation4 + $0xa8] sm:$0xff]
    %v1105 = vld [vmem:[#allocation4 + $0xb0] sm:$0xff]
    %v1106 = vld [vmem:[#allocation4 + $0xb8] sm:$0xff]
    %v1107 = vld [vmem:[#allocation4 + $0xc0] sm:$0xff]
    %v1108 = vld [vmem:[#allocation4 + $0xc8] sm:$0xff]
    %v1109 = vld [vmem:[#allocation4 + $0xd0] sm:$0xff]
    %v1110 = vld [vmem:[#allocation4 + $0xd8] sm:$0xff]
    %v1111 = vld [vmem:[#allocation4 + $0xe0] sm:$0xff]
    %v1112 = vld [vmem:[#allocation4 + $0xe8] sm:$0xff]
    %v1113 = vld [vmem:[#allocation4 + $0xf0] sm:$0xff]
    %v1114 = vld [vmem:[#allocation4 + $0xf8] sm:$0xff]
    %v1115 = vld [vmem:[#allocation4 + $0x100] sm:$0xff]
    %v1116 = vld [vmem:[#allocation4 + $0x108] sm:$0xff]
    %v1117 = vld [vmem:[#allocation4 + $0x110] sm:$0xff]
    %v1118 = vld [vmem:[#allocation4 + $0x118] sm:$0xff]
    %v1119 = vld [vmem:[#allocation4 + $0x120] sm:$0xff]
    %v1120 = vld [vmem:[#allocation4 + $0x128] sm:$0xff]
    %v1121 = vld [vmem:[#allocation4 + $0x130] sm:$0xff]
    %v1122 = vld [vmem:[#allocation4 + $0x138] sm:$0xff]
    %v1123 = vld [vmem:[#allocation4 + $0x140] sm:$0xff]
    %v1124 = vld [vmem:[#allocation4 + $0x148] sm:$0xff]
    %v1125 = vld [vmem:[#allocation4 + $0x150] sm:$0xff]
    %v1126 = vld [vmem:[#allocation4 + $0x158] sm:$0xff]
    %v1127 = vld [vmem:[#allocation4 + $0x160] sm:$0xff]
    %v1128 = vld [vmem:[#allocation4 + $0x168] sm:$0xff]
    %v1129 = vld [vmem:[#allocation4 + $0x170] sm:$0xff]
    %v1130 = vld [vmem:[#allocation4 + $0x178] sm:$0xff]
    %v1131 = vld [vmem:[#allocation4 + $0x180] sm:$0xff]
    %v1132 = vld [vmem:[#allocation4 + $0x188] sm:$0xff]
    %v1133 = vld [vmem:[#allocation4 + $0x190] sm:$0xff]
    %v1134 = vld [vmem:[#allocation4 + $0x198] sm:$0xff]
    %v1135 = vld [vmem:[#allocation4 + $0x1a0] sm:$0xff]
    %v1136 = vld [vmem:[#allocation4 + $0x1a8] sm:$0xff]
    %v1137 = vld [vmem:[#allocation4 + $0x1b0] sm:$0xff]
    %v1138 = vld [vmem:[#allocation4 + $0x1b8] sm:$0xff]
    %v1139 = vld [vmem:[#allocation4 + $0x1c0] sm:$0xff]
    %v1140 = vld [vmem:[#allocation4 + $0x1c8] sm:$0xff]
    %v1141 = vld [vmem:[#allocation4 + $0x1d0] sm:$0xff]
    %v1142 = vld [vmem:[#allocation4 + $0x1d8] sm:$0xff]
    %v1143 = vld [vmem:[#allocation4 + $0x1e0] sm:$0xff]
    %v1144 = vld [vmem:[#allocation4 + $0x1e8] sm:$0xff]
    %v1145 = vld [vmem:[#allocation4 + $0x1f0] sm:$0xff]
    %v1146 = vld [vmem:[#allocation4 + $0x1f8] sm:$0xff]
    %v1147 = vld [vmem:[#allocation4 + $0x200] sm:$0xff]
    %v1148 = vld [vmem:[#allocation4 + $0x208] sm:$0xff]
    %v1149 = vld [vmem:[#allocation4 + $0x210] sm:$0xff]
    %v1150 = vld [vmem:[#allocation4 + $0x218] sm:$0xff]
    %v1151 = vld [vmem:[#allocation4 + $0x220] sm:$0xff]
    %v1152 = vld [vmem:[#allocation4 + $0x228] sm:$0xff]
    %v1153 = vld [vmem:[#allocation4 + $0x230] sm:$0xff]
    %v1154 = vld [vmem:[#allocation4 + $0x238] sm:$0xff]
    %v1155 = vld [vmem:[#allocation4 + $0x240] sm:$0xff]
    %v1156 = vld [vmem:[#allocation4 + $0x248] sm:$0xff]
    %v1157 = vld [vmem:[#allocation4 + $0x250] sm:$0xff]
    %v1158 = vld [vmem:[#allocation4 + $0x258] sm:$0xff]
    %v1159 = vld [vmem:[#allocation4 + $0x260] sm:$0xff]
    %v1160 = vld [vmem:[#allocation4 + $0x268] sm:$0xff]
    %v1161 = vld [vmem:[#allocation4 + $0x270] sm:$0xff]
    %v1162 = vld [vmem:[#allocation4 + $0x278] sm:$0xff]
    %v1163 = vld [vmem:[#allocation4 + $0x280] sm:$0xff]
    %v1164 = vld [vmem:[#allocation4 + $0x288] sm:$0xff]
    %v1165 = vld [vmem:[#allocation4 + $0x290] sm:$0xff]
    %v1166 = vld [vmem:[#allocation4 + $0x298] sm:$0xff]
    %v1167 = vld [vmem:[#allocation4 + $0x2a0] sm:$0xff]
    %v1168 = vld [vmem:[#allocation4 + $0x2a8] sm:$0xff]
    %v1169 = vld [vmem:[#allocation4 + $0x2b0] sm:$0xff]
    %v1170 = vld [vmem:[#allocation4 + $0x2b8] sm:$0xff]
    %v1171 = vld [vmem:[#allocation4 + $0x2c0] sm:$0xff]
    %v1172 = vld [vmem:[#allocation4 + $0x2c8] sm:$0xff]
    %v1173 = vld [vmem:[#allocation4 + $0x2d0] sm:$0xff]
    %v1174 = vld [vmem:[#allocation4 + $0x2d8] sm:$0xff]
    %v1175 = vld [vmem:[#allocation4 + $0x2e0] sm:$0xff]
    %v1176 = vld [vmem:[#allocation4 + $0x2e8] sm:$0xff]
    %v1177 = vld [vmem:[#allocation4 + $0x2f0] sm:$0xff]
    %v1178 = vld [vmem:[#allocation4 + $0x2f8] sm:$0xff]
    %v1179 = vld [vmem:[#allocation4 + $0x300] sm:$0xff]
    %v1180 = vld [vmem:[#allocation4 + $0x308] sm:$0xff]
    %v1181 = vld [vmem:[#allocation4 + $0x310] sm:$0xff]
    %v1182 = vld [vmem:[#allocation4 + $0x318] sm:$0xff]
    %v1183 = vld [vmem:[#allocation4 + $0x320] sm:$0xff]
    %v1184 = vld [vmem:[#allocation4 + $0x328] sm:$0xff]
    %v1185 = vld [vmem:[#allocation4 + $0x330] sm:$0xff]
    %v1186 = vld [vmem:[#allocation4 + $0x338] sm:$0xff]
    %v1187 = vld [vmem:[#allocation4 + $0x340] sm:$0xff]
    %v1188 = vld [vmem:[#allocation4 + $0x348] sm:$0xff]
    %v1189 = vld [vmem:[#allocation4 + $0x350] sm:$0xff]
    %v1190 = vld [vmem:[#allocation4 + $0x358] sm:$0xff]
    %v1191 = vld [vmem:[#allocation4 + $0x360] sm:$0xff]
    %v1192 = vld [vmem:[#allocation4 + $0x368] sm:$0xff]
    %v1193 = vld [vmem:[#allocation4 + $0x370] sm:$0xff]
    %v1194 = vld [vmem:[#allocation4 + $0x378] sm:$0xff]
    %v1195 = vld [vmem:[#allocation4 + $0x380] sm:$0xff]
    %v1196 = vld [vmem:[#allocation4 + $0x388] sm:$0xff]
    %v1197 = vld [vmem:[#allocation4 + $0x390] sm:$0xff]
    %v1198 = vld [vmem:[#allocation4 + $0x398] sm:$0xff]
    %v1199 = vld [vmem:[#allocation4 + $0x3a0] sm:$0xff]
    %v1200 = vld [vmem:[#allocation4 + $0x3a8] sm:$0xff]
    %v1201 = vld [vmem:[#allocation4 + $0x3b0] sm:$0xff]
    %v1202 = vld [vmem:[#allocation4 + $0x3b8] sm:$0xff]
    %v1203 = vld [vmem:[#allocation4 + $0x3c0] sm:$0xff]
    %v1204 = vld [vmem:[#allocation4 + $0x3c8] sm:$0xff]
    %v1205 = vld [vmem:[#allocation4 + $0x3d0] sm:$0xff]
    %v1206 = vld [vmem:[#allocation4 + $0x3d8] sm:$0xff]
    %v1207 = vld [vmem:[#allocation4 + $0x3e0] sm:$0xff]
    %v1208 = vld [vmem:[#allocation4 + $0x3e8] sm:$0xff]
    %v1209 = vld [vmem:[#allocation4 + $0x3f0] sm:$0xff]
    %v1210 = vld [vmem:[#allocation4 + $0x3f8] sm:$0xff]
    %v1211 = vld [vmem:[#allocation4 + $0x400] sm:$0xff]
    %v1212 = vld [vmem:[#allocation4 + $0x408] sm:$0xff]
    %v1213 = vld [vmem:[#allocation4 + $0x410] sm:$0xff]
    %v1214 = vld [vmem:[#allocation4 + $0x418] sm:$0xff]
    %v1215 = vld [vmem:[#allocation4 + $0x420] sm:$0xff]
    %v1216 = vld [vmem:[#allocation4 + $0x428] sm:$0xff]
    %v1217 = vld [vmem:[#allocation4 + $0x430] sm:$0xff]
    %v1218 = vld [vmem:[#allocation4 + $0x438] sm:$0xff]
    %v1219 = vld [vmem:[#allocation4 + $0x440] sm:$0xff]
    %v1220 = vld [vmem:[#allocation4 + $0x448] sm:$0xff]
    %v1221 = vld [vmem:[#allocation4 + $0x450] sm:$0xff]
    %v1222 = vld [vmem:[#allocation4 + $0x458] sm:$0xff]
    %v1223 = vld [vmem:[#allocation4 + $0x460] sm:$0xff]
    %v1224 = vld [vmem:[#allocation4 + $0x468] sm:$0xff]
    %v1225 = vld [vmem:[#allocation4 + $0x470] sm:$0xff]
    %v1226 = vld [vmem:[#allocation4 + $0x478] sm:$0xff]
    %v1227 = vld [vmem:[#allocation4 + $0x480] sm:$0xff]
    %v1228 = vld [vmem:[#allocation4 + $0x488] sm:$0xff]
    %v1229 = vld [vmem:[#allocation4 + $0x490] sm:$0xff]
    %v1230 = vld [vmem:[#allocation4 + $0x498] sm:$0xff]
    %v1231 = vld [vmem:[#allocation4 + $0x4a0] sm:$0xff]
    %v1232 = vld [vmem:[#allocation4 + $0x4a8] sm:$0xff]
    %v1233 = vld [vmem:[#allocation4 + $0x4b0] sm:$0xff]
    %v1234 = vld [vmem:[#allocation4 + $0x4b8] sm:$0xff]
    %v1235 = vld [vmem:[#allocation4 + $0x4c0] sm:$0xff]
    %v1236 = vld [vmem:[#allocation4 + $0x4c8] sm:$0xff]
    %v1237 = vld [vmem:[#allocation4 + $0x4d0] sm:$0xff]
    %v1238 = vld [vmem:[#allocation4 + $0x4d8] sm:$0xff]
    %v1239 = vld [vmem:[#allocation4 + $0x4e0] sm:$0xff]
    %v1240 = vld [vmem:[#allocation4 + $0x4e8] sm:$0xff]
    %v1241 = vld [vmem:[#allocation4 + $0x4f0] sm:$0xff]
    %v1242 = vld [vmem:[#allocation4 + $0x4f8] sm:$0xff]
    %v1243 = vld [vmem:[#allocation4 + $0x500] sm:$0xff]
    %v1244 = vld [vmem:[#allocation4 + $0x508] sm:$0xff]
    %v1245 = vld [vmem:[#allocation4 + $0x510] sm:$0xff]
    %v1246 = vld [vmem:[#allocation4 + $0x518] sm:$0xff]
    %v1247 = vld [vmem:[#allocation4 + $0x520] sm:$0xff]
    %v1248 = vld [vmem:[#allocation4 + $0x528] sm:$0xff]
    %v1249 = vld [vmem:[#allocation4 + $0x530] sm:$0xff]
    %v1250 = vld [vmem:[#allocation4 + $0x538] sm:$0xff]
    %v1251 = vld [vmem:[#allocation4 + $0x540] sm:$0xff]
    %v1252 = vld [vmem:[#allocation4 + $0x548] sm:$0xff]
    %v1253 = vld [vmem:[#allocation4 + $0x550] sm:$0xff]
    %v1254 = vld [vmem:[#allocation4 + $0x558] sm:$0xff]
    %v1255 = vld [vmem:[#allocation4 + $0x560] sm:$0xff]
    %v1256 = vld [vmem:[#allocation4 + $0x568] sm:$0xff]
    %v1257 = vld [vmem:[#allocation4 + $0x570] sm:$0xff]
    %v1258 = vld [vmem:[#allocation4 + $0x578] sm:$0xff]
    %v1259 = vld [vmem:[#allocation4 + $0x580] sm:$0xff]
    %v1260 = vld [vmem:[#allocation4 + $0x588] sm:$0xff]
    %v1261 = vld [vmem:[#allocation4 + $0x590] sm:$0xff]
    %v1262 = vld [vmem:[#allocation4 + $0x598] sm:$0xff]
    %v1263 = vld [vmem:[#allocation4 + $0x5a0] sm:$0xff]
    %v1264 = vld [vmem:[#allocation4 + $0x5a8] sm:$0xff]
    %v1265 = vld [vmem:[#allocation4 + $0x5b0] sm:$0xff]
    %v1266 = vld [vmem:[#allocation4 + $0x5b8] sm:$0xff]
    %v1267 = vld [vmem:[#allocation4 + $0x5c0] sm:$0xff]
    %v1268 = vld [vmem:[#allocation4 + $0x5c8] sm:$0xff]
    %v1269 = vld [vmem:[#allocation4 + $0x5d0] sm:$0xff]
    %v1270 = vld [vmem:[#allocation4 + $0x5d8] sm:$0xff]
    %v1271 = vld [vmem:[#allocation4 + $0x5e0] sm:$0xff]
    %v1272 = vld [vmem:[#allocation4 + $0x5e8] sm:$0xff]
    %v1273 = vld [vmem:[#allocation4 + $0x5f0] sm:$0xff]
    %v1274 = vld [vmem:[#allocation4 + $0x5f8] sm:$0xff]
    %v1275 = vld [vmem:[#allocation4 + $0x600] sm:$0xff]
    %v1276 = vld [vmem:[#allocation4 + $0x608] sm:$0xff]
    %v1277 = vld [vmem:[#allocation4 + $0x610] sm:$0xff]
    %v1278 = vld [vmem:[#allocation4 + $0x618] sm:$0xff]
    %v1279 = vld [vmem:[#allocation4 + $0x620] sm:$0xff]
    %v1280 = vld [vmem:[#allocation4 + $0x628] sm:$0xff]
    %v1281 = vld [vmem:[#allocation4 + $0x630] sm:$0xff]
    %v1282 = vld [vmem:[#allocation4 + $0x638] sm:$0xff]
    %v1283 = vld [vmem:[#allocation4 + $0x640] sm:$0xff]
    %v1284 = vld [vmem:[#allocation4 + $0x648] sm:$0xff]
    %v1285 = vld [vmem:[#allocation4 + $0x650] sm:$0xff]
    %v1286 = vld [vmem:[#allocation4 + $0x658] sm:$0xff]
    %v1287 = vld [vmem:[#allocation4 + $0x660] sm:$0xff]
    %v1288 = vld [vmem:[#allocation4 + $0x668] sm:$0xff]
    %v1289 = vld [vmem:[#allocation4 + $0x670] sm:$0xff]
    %v1290 = vld [vmem:[#allocation4 + $0x678] sm:$0xff]
    %v1291 = vld [vmem:[#allocation4 + $0x680] sm:$0xff]
    %v1292 = vld [vmem:[#allocation4 + $0x688] sm:$0xff]
    %v1293 = vld [vmem:[#allocation4 + $0x690] sm:$0xff]
    %v1294 = vld [vmem:[#allocation4 + $0x698] sm:$0xff]
    %v1295 = vld [vmem:[#allocation4 + $0x6a0] sm:$0xff]
    %v1296 = vld [vmem:[#allocation4 + $0x6a8] sm:$0xff]
    %v1297 = vld [vmem:[#allocation4 + $0x6b0] sm:$0xff]
    %v1298 = vld [vmem:[#allocation4 + $0x6b8] sm:$0xff]
    %v1299 = vld [vmem:[#allocation4 + $0x6c0] sm:$0xff]
    %v1300 = vld [vmem:[#allocation4 + $0x6c8] sm:$0xff]
    %v1301 = vld [vmem:[#allocation4 + $0x6d0] sm:$0xff]
    %v1302 = vld [vmem:[#allocation4 + $0x6d8] sm:$0xff]
    %v1303 = vld [vmem:[#allocation4 + $0x6e0] sm:$0xff]
    %v1304 = vld [vmem:[#allocation4 + $0x6e8] sm:$0xff]
    %v1305 = vld [vmem:[#allocation4 + $0x6f0] sm:$0xff]
    %v1306 = vld [vmem:[#allocation4 + $0x6f8] sm:$0xff]
    %v1307 = vld [vmem:[#allocation4 + $0x700] sm:$0xff]
    %v1308 = vld [vmem:[#allocation4 + $0x708] sm:$0xff]
    %v1309 = vld [vmem:[#allocation4 + $0x710] sm:$0xff]
    %v1310 = vld [vmem:[#allocation4 + $0x718] sm:$0xff]
    %v1311 = vld [vmem:[#allocation4 + $0x720] sm:$0xff]
    %v1312 = vld [vmem:[#allocation4 + $0x728] sm:$0xff]
    %v1313 = vld [vmem:[#allocation4 + $0x730] sm:$0xff]
    %v1314 = vld [vmem:[#allocation4 + $0x738] sm:$0xff]
    %v1315 = vld [vmem:[#allocation4 + $0x740] sm:$0xff]
    %v1316 = vld [vmem:[#allocation4 + $0x748] sm:$0xff]
    %v1317 = vld [vmem:[#allocation4 + $0x750] sm:$0xff]
    %v1318 = vld [vmem:[#allocation4 + $0x758] sm:$0xff]
    %v1319 = vld [vmem:[#allocation4 + $0x760] sm:$0xff]
    %v1320 = vld [vmem:[#allocation4 + $0x768] sm:$0xff]
    %v1321 = vld [vmem:[#allocation4 + $0x770] sm:$0xff]
    %v1322 = vld [vmem:[#allocation4 + $0x778] sm:$0xff]
    %v1323 = vld [vmem:[#allocation4 + $0x780] sm:$0xff]
    %v1324 = vld [vmem:[#allocation4 + $0x788] sm:$0xff]
    %v1325 = vld [vmem:[#allocation4 + $0x790] sm:$0xff]
    %v1326 = vld [vmem:[#allocation4 + $0x798] sm:$0xff]
    %v1327 = vld [vmem:[#allocation4 + $0x7a0] sm:$0xff]
    %v1328 = vld [vmem:[#allocation4 + $0x7a8] sm:$0xff]
    %v1329 = vld [vmem:[#allocation4 + $0x7b0] sm:$0xff]
    %v1330 = vld [vmem:[#allocation4 + $0x7b8] sm:$0xff]
    %v1331 = vld [vmem:[#allocation4 + $0x7c0] sm:$0xff]
    %v1332 = vld [vmem:[#allocation4 + $0x7c8] sm:$0xff]
    %v1333 = vld [vmem:[#allocation4 + $0x7d0] sm:$0xff]
    %v1334 = vld [vmem:[#allocation4 + $0x7d8] sm:$0xff]
    %v1335 = vld [vmem:[#allocation4 + $0x7e0] sm:$0xff]
    %v1336 = vld [vmem:[#allocation4 + $0x7e8] sm:$0xff]
    %v1337 = vld [vmem:[#allocation4 + $0x7f0] sm:$0xff]
    %v1338 = vld [vmem:[#allocation4 + $0x7f8] sm:$0xff]
    %v1339 = vld [vmem:[#allocation4 + $0x800] sm:$0xff]
    %v1340 = vld [vmem:[#allocation4 + $0x808] sm:$0xff]
    %v1341 = vld [vmem:[#allocation4 + $0x810] sm:$0xff]
    %v1342 = vld [vmem:[#allocation4 + $0x818] sm:$0xff]
    %v1343 = vld [vmem:[#allocation4 + $0x820] sm:$0xff]
    %v1344 = vld [vmem:[#allocation4 + $0x828] sm:$0xff]
    %v1345 = vld [vmem:[#allocation4 + $0x830] sm:$0xff]
    %v1346 = vld [vmem:[#allocation4 + $0x838] sm:$0xff]
    %v1347 = vld [vmem:[#allocation4 + $0x840] sm:$0xff]
    %v1348 = vld [vmem:[#allocation4 + $0x848] sm:$0xff]
    %v1349 = vld [vmem:[#allocation4 + $0x850] sm:$0xff]
    %v1350 = vld [vmem:[#allocation4 + $0x858] sm:$0xff]
    %v1351 = vld [vmem:[#allocation4 + $0x860] sm:$0xff]
    %v1352 = vld [vmem:[#allocation4 + $0x868] sm:$0xff]
    %v1353 = vld [vmem:[#allocation4 + $0x870] sm:$0xff]
    %v1354 = vld [vmem:[#allocation4 + $0x878] sm:$0xff]
    %v1355 = vld [vmem:[#allocation4 + $0x880] sm:$0xff]
    %v1356 = vld [vmem:[#allocation4 + $0x888] sm:$0xff]
    %v1357 = vld [vmem:[#allocation4 + $0x890] sm:$0xff]
    %v1358 = vld [vmem:[#allocation4 + $0x898] sm:$0xff]
    %v1359 = vld [vmem:[#allocation4 + $0x8a0] sm:$0xff]
    %v1360 = vld [vmem:[#allocation4 + $0x8a8] sm:$0xff]
    %v1361 = vld [vmem:[#allocation4 + $0x8b0] sm:$0xff]
    %v1362 = vld [vmem:[#allocation4 + $0x8b8] sm:$0xff]
    %v1363 = vld [vmem:[#allocation4 + $0x8c0] sm:$0xff]
    %v1364 = vld [vmem:[#allocation4 + $0x8c8] sm:$0xff]
    %v1365 = vld [vmem:[#allocation4 + $0x8d0] sm:$0xff]
    %v1366 = vld [vmem:[#allocation4 + $0x8d8] sm:$0xff]
    %v1367 = vld [vmem:[#allocation4 + $0x8e0] sm:$0xff]
    %v1368 = vld [vmem:[#allocation4 + $0x8e8] sm:$0xff]
    %v1369 = vld [vmem:[#allocation4 + $0x8f0] sm:$0xff]
    %v1370 = vld [vmem:[#allocation4 + $0x8f8] sm:$0xff]
    %v1371 = vld [vmem:[#allocation4 + $0x900] sm:$0xff]
    %v1372 = vld [vmem:[#allocation4 + $0x908] sm:$0xff]
    %v1373 = vld [vmem:[#allocation4 + $0x910] sm:$0xff]
    %v1374 = vld [vmem:[#allocation4 + $0x918] sm:$0xff]
    %v1375 = vld [vmem:[#allocation4 + $0x920] sm:$0xff]
    %v1376 = vld [vmem:[#allocation4 + $0x928] sm:$0xff]
    %v1377 = vld [vmem:[#allocation4 + $0x930] sm:$0xff]
    %v1378 = vld [vmem:[#allocation4 + $0x938] sm:$0xff]
    %v1379 = vld [vmem:[#allocation4 + $0x940] sm:$0xff]
    %v1380 = vld [vmem:[#allocation4 + $0x948] sm:$0xff]
    %v1381 = vld [vmem:[#allocation4 + $0x950] sm:$0xff]
    %v1382 = vld [vmem:[#allocation4 + $0x958] sm:$0xff]
    %v1383 = vld [vmem:[#allocation4 + $0x960] sm:$0xff]
    %v1384 = vld [vmem:[#allocation4 + $0x968] sm:$0xff]
    %v1385 = vld [vmem:[#allocation4 + $0x970] sm:$0xff]
    %v1386 = vld [vmem:[#allocation4 + $0x978] sm:$0xff]
    %v1387 = vld [vmem:[#allocation4 + $0x980] sm:$0xff]
    %v1388 = vld [vmem:[#allocation4 + $0x988] sm:$0xff]
    %v1389 = vld [vmem:[#allocation4 + $0x990] sm:$0xff]
    %v1390 = vld [vmem:[#allocation4 + $0x998] sm:$0xff]
    %v1391 = vld [vmem:[#allocation4 + $0x9a0] sm:$0xff]
    %v1392 = vld [vmem:[#allocation4 + $0x9a8] sm:$0xff]
    %v1393 = vld [vmem:[#allocation4 + $0x9b0] sm:$0xff]
    %v1394 = vld [vmem:[#allocation4 + $0x9b8] sm:$0xff]
    %v1395 = vld [vmem:[#allocation4 + $0x9c0] sm:$0xff]
    %v1396 = vld [vmem:[#allocation4 + $0x9c8] sm:$0xff]
    %v1397 = vld [vmem:[#allocation4 + $0x9d0] sm:$0xff]
    %v1398 = vld [vmem:[#allocation4 + $0x9d8] sm:$0xff]
    %v1399 = vld [vmem:[#allocation4 + $0x9e0] sm:$0xff]
    %v1400 = vld [vmem:[#allocation4 + $0x9e8] sm:$0xff]
    %v1401 = vld [vmem:[#allocation4 + $0x9f0] sm:$0xff]
    %v1402 = vld [vmem:[#allocation4 + $0x9f8] sm:$0xff]
    %v1403 = vld [vmem:[#allocation4 + $0xa00] sm:$0xff]
    %v1404 = vld [vmem:[#allocation4 + $0xa08] sm:$0xff]
    %v1405 = vld [vmem:[#allocation4 + $0xa10] sm:$0xff]
    %v1406 = vld [vmem:[#allocation4 + $0xa18] sm:$0xff]
    %v1407 = vld [vmem:[#allocation4 + $0xa20] sm:$0xff]
    %v1408 = vld [vmem:[#allocation4 + $0xa28] sm:$0xff]
    %v1409 = vld [vmem:[#allocation4 + $0xa30] sm:$0xff]
    %v1410 = vld [vmem:[#allocation4 + $0xa38] sm:$0xff]
    %v1411 = vld [vmem:[#allocation4 + $0xa40] sm:$0xff]
    %v1412 = vld [vmem:[#allocation4 + $0xa48] sm:$0xff]
    %v1413 = vld [vmem:[#allocation4 + $0xa50] sm:$0xff]
    %v1414 = vld [vmem:[#allocation4 + $0xa58] sm:$0xff]
    %v1415 = vld [vmem:[#allocation4 + $0xa60] sm:$0xff]
    %v1416 = vld [vmem:[#allocation4 + $0xa68] sm:$0xff]
    %v1417 = vld [vmem:[#allocation4 + $0xa70] sm:$0xff]
    %v1418 = vld [vmem:[#allocation4 + $0xa78] sm:$0xff]
    %v1419 = vld [vmem:[#allocation4 + $0xa80] sm:$0xff]
    %v1420 = vld [vmem:[#allocation4 + $0xa88] sm:$0xff]
    %v1421 = vld [vmem:[#allocation4 + $0xa90] sm:$0xff]
    %v1422 = vld [vmem:[#allocation4 + $0xa98] sm:$0xff]
    %v1423 = vld [vmem:[#allocation4 + $0xaa0] sm:$0xff]
    %v1424 = vld [vmem:[#allocation4 + $0xaa8] sm:$0xff]
    %v1425 = vld [vmem:[#allocation4 + $0xab0] sm:$0xff]
    %v1426 = vld [vmem:[#allocation4 + $0xab8] sm:$0xff]
    %v1427 = vld [vmem:[#allocation4 + $0xac0] sm:$0xff]
    %v1428 = vld [vmem:[#allocation4 + $0xac8] sm:$0xff]
    %v1429 = vld [vmem:[#allocation4 + $0xad0] sm:$0xff]
    %v1430 = vld [vmem:[#allocation4 + $0xad8] sm:$0xff]
    %v1431 = vld [vmem:[#allocation4 + $0xae0] sm:$0xff]
    %v1432 = vld [vmem:[#allocation4 + $0xae8] sm:$0xff]
    %v1433 = vld [vmem:[#allocation4 + $0xaf0] sm:$0xff]
    %v1434 = vld [vmem:[#allocation4 + $0xaf8] sm:$0xff]
    %v1435 = vld [vmem:[#allocation4 + $0xb00] sm:$0xff]
    %v1436 = vld [vmem:[#allocation4 + $0xb08] sm:$0xff]
    %v1437 = vld [vmem:[#allocation4 + $0xb10] sm:$0xff]
    %v1438 = vld [vmem:[#allocation4 + $0xb18] sm:$0xff]
    %v1439 = vld [vmem:[#allocation4 + $0xb20] sm:$0xff]
    %v1440 = vld [vmem:[#allocation4 + $0xb28] sm:$0xff]
    %v1441 = vld [vmem:[#allocation4 + $0xb30] sm:$0xff]
    %v1442 = vld [vmem:[#allocation4 + $0xb38] sm:$0xff]
    %v1443 = vld [vmem:[#allocation4 + $0xb40] sm:$0xff]
    %v1444 = vld [vmem:[#allocation4 + $0xb48] sm:$0xff]
    %v1445 = vld [vmem:[#allocation4 + $0xb50] sm:$0xff]
    %v1446 = vld [vmem:[#allocation4 + $0xb58] sm:$0xff]
    %v1447 = vld [vmem:[#allocation4 + $0xb60] sm:$0xff]
    %v1448 = vld [vmem:[#allocation4 + $0xb68] sm:$0xff]
    %v1449 = vld [vmem:[#allocation4 + $0xb70] sm:$0xff]
    %v1450 = vld [vmem:[#allocation4 + $0xb78] sm:$0xff]
    %v1451 = vld [vmem:[#allocation4 + $0xb80] sm:$0xff]
    %v1452 = vld [vmem:[#allocation4 + $0xb88] sm:$0xff]
    %v1453 = vld [vmem:[#allocation4 + $0xb90] sm:$0xff]
    %v1454 = vld [vmem:[#allocation4 + $0xb98] sm:$0xff]
    %v1455 = vld [vmem:[#allocation4 + $0xba0] sm:$0xff]
    %v1456 = vld [vmem:[#allocation4 + $0xba8] sm:$0xff]
    %v1457 = vld [vmem:[#allocation4 + $0xbb0] sm:$0xff]
    %v1458 = vld [vmem:[#allocation4 + $0xbb8] sm:$0xff]
    %v1459 = vld [vmem:[#allocation4 + $0xbc0] sm:$0xff]
    %v1460 = vld [vmem:[#allocation4 + $0xbc8] sm:$0xff]
    %v1461 = vld [vmem:[#allocation4 + $0xbd0] sm:$0xff]
    %v1462 = vld [vmem:[#allocation4 + $0xbd8] sm:$0xff]
    %v1463 = vld [vmem:[#allocation4 + $0xbe0] sm:$0xff]
    %v1464 = vld [vmem:[#allocation4 + $0xbe8] sm:$0xff]
    %v1465 = vld [vmem:[#allocation4 + $0xbf0] sm:$0xff]
    %v1466 = vld [vmem:[#allocation4 + $0xbf8] sm:$0xff]
    %v1467 = vld [vmem:[#allocation4 + $0xc00] sm:$0xff]
    %v1468 = vld [vmem:[#allocation4 + $0xc08] sm:$0xff]
    %v1469 = vld [vmem:[#allocation4 + $0xc10] sm:$0xff]
    %v1470 = vld [vmem:[#allocation4 + $0xc18] sm:$0xff]
    %v1471 = vld [vmem:[#allocation4 + $0xc20] sm:$0xff]
    %v1472 = vld [vmem:[#allocation4 + $0xc28] sm:$0xff]
    %v1473 = vld [vmem:[#allocation4 + $0xc30] sm:$0xff]
    %v1474 = vld [vmem:[#allocation4 + $0xc38] sm:$0xff]
    %v1475 = vld [vmem:[#allocation4 + $0xc40] sm:$0xff]
    %v1476 = vld [vmem:[#allocation4 + $0xc48] sm:$0xff]
    %v1477 = vld [vmem:[#allocation4 + $0xc50] sm:$0xff]
    %v1478 = vld [vmem:[#allocation4 + $0xc58] sm:$0xff]
    %v1479 = vld [vmem:[#allocation4 + $0xc60] sm:$0xff]
    %v1480 = vld [vmem:[#allocation4 + $0xc68] sm:$0xff]
    %v1481 = vld [vmem:[#allocation4 + $0xc70] sm:$0xff]
    %v1482 = vld [vmem:[#allocation4 + $0xc78] sm:$0xff]
    %v1483 = vld [vmem:[#allocation4 + $0xc80] sm:$0xff]
    %v1484 = vld [vmem:[#allocation4 + $0xc88] sm:$0xff]
    %v1485 = vld [vmem:[#allocation4 + $0xc90] sm:$0xff]
    %v1486 = vld [vmem:[#allocation4 + $0xc98] sm:$0xff]
    %v1487 = vld [vmem:[#allocation4 + $0xca0] sm:$0xff]
    %v1488 = vld [vmem:[#allocation4 + $0xca8] sm:$0xff]
    %v1489 = vld [vmem:[#allocation4 + $0xcb0] sm:$0xff]
    %v1490 = vld [vmem:[#allocation4 + $0xcb8] sm:$0xff]
    %v1491 = vld [vmem:[#allocation4 + $0xcc0] sm:$0xff]
    %v1492 = vld [vmem:[#allocation4 + $0xcc8] sm:$0xff]
    %v1493 = vld [vmem:[#allocation4 + $0xcd0] sm:$0xff]
    %v1494 = vld [vmem:[#allocation4 + $0xcd8] sm:$0xff]
    %v1495 = vld [vmem:[#allocation4 + $0xce0] sm:$0xff]
    %v1496 = vld [vmem:[#allocation4 + $0xce8] sm:$0xff]
    %v1497 = vld [vmem:[#allocation4 + $0xcf0] sm:$0xff]
    %v1498 = vld [vmem:[#allocation4 + $0xcf8] sm:$0xff]
    %v1499 = vld [vmem:[#allocation4 + $0xd00] sm:$0xff]
    %v1500 = vld [vmem:[#allocation4 + $0xd08] sm:$0xff]
    %v1501 = vld [vmem:[#allocation4 + $0xd10] sm:$0xff]
    %v1502 = vld [vmem:[#allocation4 + $0xd18] sm:$0xff]
    %v1503 = vld [vmem:[#allocation4 + $0xd20] sm:$0xff]
    %v1504 = vld [vmem:[#allocation4 + $0xd28] sm:$0xff]
    %v1505 = vld [vmem:[#allocation4 + $0xd30] sm:$0xff]
    %v1506 = vld [vmem:[#allocation4 + $0xd38] sm:$0xff]
    %v1507 = vld [vmem:[#allocation4 + $0xd40] sm:$0xff]
    %v1508 = vld [vmem:[#allocation4 + $0xd48] sm:$0xff]
    %v1509 = vld [vmem:[#allocation4 + $0xd50] sm:$0xff]
    %v1510 = vld [vmem:[#allocation4 + $0xd58] sm:$0xff]
    %v1511 = vld [vmem:[#allocation4 + $0xd60] sm:$0xff]
    %v1512 = vld [vmem:[#allocation4 + $0xd68] sm:$0xff]
    %v1513 = vld [vmem:[#allocation4 + $0xd70] sm:$0xff]
    %v1514 = vld [vmem:[#allocation4 + $0xd78] sm:$0xff]
    %v1515 = vld [vmem:[#allocation4 + $0xd80] sm:$0xff]
    %v1516 = vld [vmem:[#allocation4 + $0xd88] sm:$0xff]
    %v1517 = vld [vmem:[#allocation4 + $0xd90] sm:$0xff]
    %v1518 = vld [vmem:[#allocation4 + $0xd98] sm:$0xff]
    %v1519 = vld [vmem:[#allocation4 + $0xda0] sm:$0xff]
    %v1520 = vld [vmem:[#allocation4 + $0xda8] sm:$0xff]
    %v1521 = vld [vmem:[#allocation4 + $0xdb0] sm:$0xff]
    %v1522 = vld [vmem:[#allocation4 + $0xdb8] sm:$0xff]
    %v1523 = vld [vmem:[#allocation4 + $0xdc0] sm:$0xff]
    %v1524 = vld [vmem:[#allocation4 + $0xdc8] sm:$0xff]
    %v1525 = vld [vmem:[#allocation4 + $0xdd0] sm:$0xff]
    %v1526 = vld [vmem:[#allocation4 + $0xdd8] sm:$0xff]
    %v1527 = vld [vmem:[#allocation4 + $0xde0] sm:$0xff]
    %v1528 = vld [vmem:[#allocation4 + $0xde8] sm:$0xff]
    %v1529 = vld [vmem:[#allocation4 + $0xdf0] sm:$0xff]
    %v1530 = vld [vmem:[#allocation4 + $0xdf8] sm:$0xff]
    %v1531 = vld [vmem:[#allocation4 + $0xe00] sm:$0xff]
    %v1532 = vld [vmem:[#allocation4 + $0xe08] sm:$0xff]
    %v1533 = vld [vmem:[#allocation4 + $0xe10] sm:$0xff]
    %v1534 = vld [vmem:[#allocation4 + $0xe18] sm:$0xff]
    %v1535 = vld [vmem:[#allocation4 + $0xe20] sm:$0xff]
    %v1536 = vld [vmem:[#allocation4 + $0xe28] sm:$0xff]
    %v1537 = vld [vmem:[#allocation4 + $0xe30] sm:$0xff]
    %v1538 = vld [vmem:[#allocation4 + $0xe38] sm:$0xff]
    %v1539 = vld [vmem:[#allocation4 + $0xe40] sm:$0xff]
    %v1540 = vld [vmem:[#allocation4 + $0xe48] sm:$0xff]
    %v1541 = vld [vmem:[#allocation4 + $0xe50] sm:$0xff]
    %v1542 = vld [vmem:[#allocation4 + $0xe58] sm:$0xff]
    %v1543 = vld [vmem:[#allocation4 + $0xe60] sm:$0xff]
    %v1544 = vld [vmem:[#allocation4 + $0xe68] sm:$0xff]
    %v1545 = vld [vmem:[#allocation4 + $0xe70] sm:$0xff]
    %v1546 = vld [vmem:[#allocation4 + $0xe78] sm:$0xff]
    %v1547 = vld [vmem:[#allocation4 + $0xe80] sm:$0xff]
    %v1548 = vld [vmem:[#allocation4 + $0xe88] sm:$0xff]
    %v1549 = vld [vmem:[#allocation4 + $0xe90] sm:$0xff]
    %v1550 = vld [vmem:[#allocation4 + $0xe98] sm:$0xff]
    %v1551 = vld [vmem:[#allocation4 + $0xea0] sm:$0xff]
    %v1552 = vld [vmem:[#allocation4 + $0xea8] sm:$0xff]
    %v1553 = vld [vmem:[#allocation4 + $0xeb0] sm:$0xff]
    %v1554 = vld [vmem:[#allocation4 + $0xeb8] sm:$0xff]
    %v1555 = vld [vmem:[#allocation4 + $0xec0] sm:$0xff]
    %v1556 = vld [vmem:[#allocation4 + $0xec8] sm:$0xff]
    %v1557 = vld [vmem:[#allocation4 + $0xed0] sm:$0xff]
    %v1558 = vld [vmem:[#allocation4 + $0xed8] sm:$0xff]
    %v1559 = vld [vmem:[#allocation4 + $0xee0] sm:$0xff]
    %v1560 = vld [vmem:[#allocation4 + $0xee8] sm:$0xff]
    %v1561 = vld [vmem:[#allocation4 + $0xef0] sm:$0xff]
    %v1562 = vld [vmem:[#allocation4 + $0xef8] sm:$0xff]
    %v1563 = vld [vmem:[#allocation4 + $0xf00] sm:$0xff]
    %v1564 = vld [vmem:[#allocation4 + $0xf08] sm:$0xff]
    %v1565 = vld [vmem:[#allocation4 + $0xf10] sm:$0xff]
    %v1566 = vld [vmem:[#allocation4 + $0xf18] sm:$0xff]
    %v1567 = vld [vmem:[#allocation4 + $0xf20] sm:$0xff]
    %v1568 = vld [vmem:[#allocation4 + $0xf28] sm:$0xff]
    %v1569 = vld [vmem:[#allocation4 + $0xf30] sm:$0xff]
    %v1570 = vld [vmem:[#allocation4 + $0xf38] sm:$0xff]
    %v1571 = vld [vmem:[#allocation4 + $0xf40] sm:$0xff]
    %v1572 = vld [vmem:[#allocation4 + $0xf48] sm:$0xff]
    %v1573 = vld [vmem:[#allocation4 + $0xf50] sm:$0xff]
    %v1574 = vld [vmem:[#allocation4 + $0xf58] sm:$0xff]
    %v1575 = vld [vmem:[#allocation4 + $0xf60] sm:$0xff]
    %v1576 = vld [vmem:[#allocation4 + $0xf68] sm:$0xff]
    %v1577 = vld [vmem:[#allocation4 + $0xf70] sm:$0xff]
    %v1578 = vld [vmem:[#allocation4 + $0xf78] sm:$0xff]
    %v1579 = vld [vmem:[#allocation4 + $0xf80] sm:$0xff]
    %v1580 = vld [vmem:[#allocation4 + $0xf88] sm:$0xff]
    %v1581 = vld [vmem:[#allocation4 + $0xf90] sm:$0xff]
    %v1582 = vld [vmem:[#allocation4 + $0xf98] sm:$0xff]
    %v1583 = vld [vmem:[#allocation4 + $0xfa0] sm:$0xff]
    %v1584 = vld [vmem:[#allocation4 + $0xfa8] sm:$0xff]
    %v1585 = vld [vmem:[#allocation4 + $0xfb0] sm:$0xff]
    %v1586 = vld [vmem:[#allocation4 + $0xfb8] sm:$0xff]
    %v1587 = vld [vmem:[#allocation4 + $0xfc0] sm:$0xff]
    %v1588 = vld [vmem:[#allocation4 + $0xfc8] sm:$0xff]
    %v1589 = vld [vmem:[#allocation4 + $0xfd0] sm:$0xff]
    %v1590 = vld [vmem:[#allocation4 + $0xfd8] sm:$0xff]
    %v1591 = vld [vmem:[#allocation4 + $0xfe0] sm:$0xff]
    %v1592 = vld [vmem:[#allocation4 + $0xfe8] sm:$0xff]
    %v1593 = vld [vmem:[#allocation4 + $0xff0] sm:$0xff]
    %v1594 = vld [vmem:[#allocation4 + $0xff8] sm:$0xff]
    %v1595 = vld [vmem:[#allocation4 + $0x1000] sm:$0xff]
    %v1596 = vld [vmem:[#allocation4 + $0x1008] sm:$0xff]
    %v1597 = vld [vmem:[#allocation4 + $0x1010] sm:$0xff]
    %v1598 = vld [vmem:[#allocation4 + $0x1018] sm:$0xff]
    %v1599 = vld [vmem:[#allocation4 + $0x1020] sm:$0xff]
    %v1600 = vld [vmem:[#allocation4 + $0x1028] sm:$0xff]
    %v1601 = vld [vmem:[#allocation4 + $0x1030] sm:$0xff]
    %v1602 = vld [vmem:[#allocation4 + $0x1038] sm:$0xff]
    %v1603 = vld [vmem:[#allocation4 + $0x1040] sm:$0xff]
    %v1604 = vld [vmem:[#allocation4 + $0x1048] sm:$0xff]
    %v1605 = vld [vmem:[#allocation4 + $0x1050] sm:$0xff]
    %v1606 = vld [vmem:[#allocation4 + $0x1058] sm:$0xff]
    %v1607 = vld [vmem:[#allocation4 + $0x1060] sm:$0xff]
    %v1608 = vld [vmem:[#allocation4 + $0x1068] sm:$0xff]
    %v1609 = vld [vmem:[#allocation4 + $0x1070] sm:$0xff]
    %v1610 = vld [vmem:[#allocation4 + $0x1078] sm:$0xff]
    %v1611 = vld [vmem:[#allocation4 + $0x1080] sm:$0xff]
    %v1612 = vld [vmem:[#allocation4 + $0x1088] sm:$0xff]
    %v1613 = vld [vmem:[#allocation4 + $0x1090] sm:$0xff]
    %v1614 = vld [vmem:[#allocation4 + $0x1098] sm:$0xff]
    %v1615 = vld [vmem:[#allocation4 + $0x10a0] sm:$0xff]
    %v1616 = vld [vmem:[#allocation4 + $0x10a8] sm:$0xff]
    %v1617 = vld [vmem:[#allocation4 + $0x10b0] sm:$0xff]
    %v1618 = vld [vmem:[#allocation4 + $0x10b8] sm:$0xff]
    %v1619 = vld [vmem:[#allocation4 + $0x10c0] sm:$0xff]
    %v1620 = vld [vmem:[#allocation4 + $0x10c8] sm:$0xff]
    %v1621 = vld [vmem:[#allocation4 + $0x10d0] sm:$0xff]
    %v1622 = vld [vmem:[#allocation4 + $0x10d8] sm:$0xff]
    %v1623 = vld [vmem:[#allocation4 + $0x10e0] sm:$0xff]
    %v1624 = vld [vmem:[#allocation4 + $0x10e8] sm:$0xff]
    %v1625 = vld [vmem:[#allocation4 + $0x10f0] sm:$0xff]
    %v1626 = vld [vmem:[#allocation4 + $0x10f8] sm:$0xff]
    %v1627 = vld [vmem:[#allocation4 + $0x1100] sm:$0xff]
    %v1628 = vld [vmem:[#allocation4 + $0x1108] sm:$0xff]
    %v1629 = vld [vmem:[#allocation4 + $0x1110] sm:$0xff]
    %v1630 = vld [vmem:[#allocation4 + $0x1118] sm:$0xff]
    %v1631 = vld [vmem:[#allocation4 + $0x1120] sm:$0xff]
    %v1632 = vld [vmem:[#allocation4 + $0x1128] sm:$0xff]
    %v1633 = vld [vmem:[#allocation4 + $0x1130] sm:$0xff]
    %v1634 = vld [vmem:[#allocation4 + $0x1138] sm:$0xff]
    %v1635 = vld [vmem:[#allocation4 + $0x1140] sm:$0xff]
    %v1636 = vld [vmem:[#allocation4 + $0x1148] sm:$0xff]
    %v1637 = vld [vmem:[#allocation4 + $0x1150] sm:$0xff]
    %v1638 = vld [vmem:[#allocation4 + $0x1158] sm:$0xff]
    %v1639 = vld [vmem:[#allocation4 + $0x1160] sm:$0xff]
    %v1640 = vld [vmem:[#allocation4 + $0x1168] sm:$0xff]
    %v1641 = vld [vmem:[#allocation4 + $0x1170] sm:$0xff]
    %v1642 = vld [vmem:[#allocation4 + $0x1178] sm:$0xff]
    %v1643 = vld [vmem:[#allocation4 + $0x1180] sm:$0xff]
    %v1644 = vld [vmem:[#allocation4 + $0x1188] sm:$0xff]
    %v1645 = vld [vmem:[#allocation4 + $0x1190] sm:$0xff]
    %v1646 = vld [vmem:[#allocation4 + $0x1198] sm:$0xff]
    %v1647 = vld [vmem:[#allocation4 + $0x11a0] sm:$0xff]
    %v1648 = vld [vmem:[#allocation4 + $0x11a8] sm:$0xff]
    %v1649 = vld [vmem:[#allocation4 + $0x11b0] sm:$0xff]
    %v1650 = vld [vmem:[#allocation4 + $0x11b8] sm:$0xff]
    %v1651 = vld [vmem:[#allocation4 + $0x11c0] sm:$0xff]
    %v1652 = vld [vmem:[#allocation4 + $0x11c8] sm:$0xff]
    %v1653 = vld [vmem:[#allocation4 + $0x11d0] sm:$0xff]
    %v1654 = vld [vmem:[#allocation4 + $0x11d8] sm:$0xff]
    %v1655 = vld [vmem:[#allocation4 + $0x11e0] sm:$0xff]
    %v1656 = vld [vmem:[#allocation4 + $0x11e8] sm:$0xff]
    %v1657 = vld [vmem:[#allocation4 + $0x11f0] sm:$0xff]
    %v1658 = vld [vmem:[#allocation4 + $0x11f8] sm:$0xff]
    %v1659 = vld [vmem:[#allocation4 + $0x1200] sm:$0xff]
    %v1660 = vld [vmem:[#allocation4 + $0x1208] sm:$0xff]
    %v1661 = vld [vmem:[#allocation4 + $0x1210] sm:$0xff]
    %v1662 = vld [vmem:[#allocation4 + $0x1218] sm:$0xff]
    %v1663 = vld [vmem:[#allocation4 + $0x1220] sm:$0xff]
    %v1664 = vld [vmem:[#allocation4 + $0x1228] sm:$0xff]
    %v1665 = vld [vmem:[#allocation4 + $0x1230] sm:$0xff]
    %v1666 = vld [vmem:[#allocation4 + $0x1238] sm:$0xff]
    %v1667 = vld [vmem:[#allocation4 + $0x1240] sm:$0xff]
    %v1668 = vld [vmem:[#allocation4 + $0x1248] sm:$0xff]
    %v1669 = vld [vmem:[#allocation4 + $0x1250] sm:$0xff]
    %v1670 = vld [vmem:[#allocation4 + $0x1258] sm:$0xff]
    %v1671 = vld [vmem:[#allocation4 + $0x1260] sm:$0xff]
    %v1672 = vld [vmem:[#allocation4 + $0x1268] sm:$0xff]
    %v1673 = vld [vmem:[#allocation4 + $0x1270] sm:$0xff]
    %v1674 = vld [vmem:[#allocation4 + $0x1278] sm:$0xff]
    %v1675 = vld [vmem:[#allocation4 + $0x1280] sm:$0xff]
    %v1676 = vld [vmem:[#allocation4 + $0x1288] sm:$0xff]
    %v1677 = vld [vmem:[#allocation4 + $0x1290] sm:$0xff]
    %v1678 = vld [vmem:[#allocation4 + $0x1298] sm:$0xff]
    %v1679 = vld [vmem:[#allocation4 + $0x12a0] sm:$0xff]
    %v1680 = vld [vmem:[#allocation4 + $0x12a8] sm:$0xff]
    %v1681 = vld [vmem:[#allocation4 + $0x12b0] sm:$0xff]
    %v1682 = vld [vmem:[#allocation4 + $0x12b8] sm:$0xff]
    %v1683 = vld [vmem:[#allocation4 + $0x12c0] sm:$0xff]
    %v1684 = vld [vmem:[#allocation4 + $0x12c8] sm:$0xff]
    %v1685 = vld [vmem:[#allocation4 + $0x12d0] sm:$0xff]
    %v1686 = vld [vmem:[#allocation4 + $0x12d8] sm:$0xff]
    %v1687 = vld [vmem:[#allocation4 + $0x12e0] sm:$0xff]
    %v1688 = vld [vmem:[#allocation4 + $0x12e8] sm:$0xff]
    %v1689 = vld [vmem:[#allocation4 + $0x12f0] sm:$0xff]
    %v1690 = vld [vmem:[#allocation4 + $0x12f8] sm:$0xff]
    %v1691 = vld [vmem:[#allocation4 + $0x1300] sm:$0xff]
    %v1692 = vld [vmem:[#allocation4 + $0x1308] sm:$0xff]
    %v1693 = vld [vmem:[#allocation4 + $0x1310] sm:$0xff]
    %v1694 = vld [vmem:[#allocation4 + $0x1318] sm:$0xff]
    %v1695 = vld [vmem:[#allocation4 + $0x1320] sm:$0xff]
    %v1696 = vld [vmem:[#allocation4 + $0x1328] sm:$0xff]
    %v1697 = vld [vmem:[#allocation4 + $0x1330] sm:$0xff]
    %v1698 = vld [vmem:[#allocation4 + $0x1338] sm:$0xff]
    %v1699 = vld [vmem:[#allocation4 + $0x1340] sm:$0xff]
    %v1700 = vld [vmem:[#allocation4 + $0x1348] sm:$0xff]
    %v1701 = vld [vmem:[#allocation4 + $0x1350] sm:$0xff]
    %v1702 = vld [vmem:[#allocation4 + $0x1358] sm:$0xff]
    %v1703 = vld [vmem:[#allocation4 + $0x1360] sm:$0xff]
    %v1704 = vld [vmem:[#allocation4 + $0x1368] sm:$0xff]
    %v1705 = vld [vmem:[#allocation4 + $0x1370] sm:$0xff]
    %v1706 = vld [vmem:[#allocation4 + $0x1378] sm:$0xff]
    %v1707 = vld [vmem:[#allocation4 + $0x1380] sm:$0xff]
    %v1708 = vld [vmem:[#allocation4 + $0x1388] sm:$0xff]
    %v1709 = vld [vmem:[#allocation4 + $0x1390] sm:$0xff]
    %v1710 = vld [vmem:[#allocation4 + $0x1398] sm:$0xff]
    %v1711 = vld [vmem:[#allocation4 + $0x13a0] sm:$0xff]
    %v1712 = vld [vmem:[#allocation4 + $0x13a8] sm:$0xff]
    %v1713 = vld [vmem:[#allocation4 + $0x13b0] sm:$0xff]
    %v1714 = vld [vmem:[#allocation4 + $0x13b8] sm:$0xff]
    %v1715 = vld [vmem:[#allocation4 + $0x13c0] sm:$0xff]
    %v1716 = vld [vmem:[#allocation4 + $0x13c8] sm:$0xff]
    %v1717 = vld [vmem:[#allocation4 + $0x13d0] sm:$0xff]
    %v1718 = vld [vmem:[#allocation4 + $0x13d8] sm:$0xff]
    %v1719 = vld [vmem:[#allocation4 + $0x13e0] sm:$0xff]
    %v1720 = vld [vmem:[#allocation4 + $0x13e8] sm:$0xff]
    %v1721 = vld [vmem:[#allocation4 + $0x13f0] sm:$0xff]
    %v1722 = vld [vmem:[#allocation4 + $0x13f8] sm:$0xff]
    %v1723 = vld [vmem:[#allocation4 + $0x1400] sm:$0xff]
    %v1724 = vld [vmem:[#allocation4 + $0x1408] sm:$0xff]
    %v1725 = vld [vmem:[#allocation4 + $0x1410] sm:$0xff]
    %v1726 = vld [vmem:[#allocation4 + $0x1418] sm:$0xff]
    %v1727 = vld [vmem:[#allocation4 + $0x1420] sm:$0xff]
    %v1728 = vld [vmem:[#allocation4 + $0x1428] sm:$0xff]
    %v1729 = vld [vmem:[#allocation4 + $0x1430] sm:$0xff]
    %v1730 = vld [vmem:[#allocation4 + $0x1438] sm:$0xff]
    %v1731 = vld [vmem:[#allocation4 + $0x1440] sm:$0xff]
    %v1732 = vld [vmem:[#allocation4 + $0x1448] sm:$0xff]
    %v1733 = vld [vmem:[#allocation4 + $0x1450] sm:$0xff]
    %v1734 = vld [vmem:[#allocation4 + $0x1458] sm:$0xff]
    %v1735 = vld [vmem:[#allocation4 + $0x1460] sm:$0xff]
    %v1736 = vld [vmem:[#allocation4 + $0x1468] sm:$0xff]
    %v1737 = vld [vmem:[#allocation4 + $0x1470] sm:$0xff]
    %v1738 = vld [vmem:[#allocation4 + $0x1478] sm:$0xff]
    %v1739 = vld [vmem:[#allocation4 + $0x1480] sm:$0xff]
    %v1740 = vld [vmem:[#allocation4 + $0x1488] sm:$0xff]
    %v1741 = vld [vmem:[#allocation4 + $0x1490] sm:$0xff]
    %v1742 = vld [vmem:[#allocation4 + $0x1498] sm:$0xff]
    %v1743 = vld [vmem:[#allocation4 + $0x14a0] sm:$0xff]
    %v1744 = vld [vmem:[#allocation4 + $0x14a8] sm:$0xff]
    %v1745 = vld [vmem:[#allocation4 + $0x14b0] sm:$0xff]
    %v1746 = vld [vmem:[#allocation4 + $0x14b8] sm:$0xff]
    %v1747 = vld [vmem:[#allocation4 + $0x14c0] sm:$0xff]
    %v1748 = vld [vmem:[#allocation4 + $0x14c8] sm:$0xff]
    %v1749 = vld [vmem:[#allocation4 + $0x14d0] sm:$0xff]
    %v1750 = vld [vmem:[#allocation4 + $0x14d8] sm:$0xff]
    %v1751 = vld [vmem:[#allocation4 + $0x14e0] sm:$0xff]
    %v1752 = vld [vmem:[#allocation4 + $0x14e8] sm:$0xff]
    %v1753 = vld [vmem:[#allocation4 + $0x14f0] sm:$0xff]
    %v1754 = vld [vmem:[#allocation4 + $0x14f8] sm:$0xff]
    %v1755 = vld [vmem:[#allocation4 + $0x1500] sm:$0xff]
    %v1756 = vld [vmem:[#allocation4 + $0x1508] sm:$0xff]
    %v1757 = vld [vmem:[#allocation4 + $0x1510] sm:$0xff]
    %v1758 = vld [vmem:[#allocation4 + $0x1518] sm:$0xff]
    %v1759 = vld [vmem:[#allocation4 + $0x1520] sm:$0xff]
    %v1760 = vld [vmem:[#allocation4 + $0x1528] sm:$0xff]
    %v1761 = vld [vmem:[#allocation4 + $0x1530] sm:$0xff]
    %v1762 = vld [vmem:[#allocation4 + $0x1538] sm:$0xff]
    %v1763 = vld [vmem:[#allocation4 + $0x1540] sm:$0xff]
    %v1764 = vld [vmem:[#allocation4 + $0x1548] sm:$0xff]
    %v1765 = vld [vmem:[#allocation4 + $0x1550] sm:$0xff]
    %v1766 = vld [vmem:[#allocation4 + $0x1558] sm:$0xff]
    %v1767 = vld [vmem:[#allocation4 + $0x1560] sm:$0xff]
    %v1768 = vld [vmem:[#allocation4 + $0x1568] sm:$0xff]
    %v1769 = vld [vmem:[#allocation4 + $0x1570] sm:$0xff]
    %v1770 = vld [vmem:[#allocation4 + $0x1578] sm:$0xff]
    %v1771 = vld [vmem:[#allocation4 + $0x1580] sm:$0xff]
    %v1772 = vld [vmem:[#allocation4 + $0x1588] sm:$0xff]
    %v1773 = vld [vmem:[#allocation4 + $0x1590] sm:$0xff]
    %v1774 = vld [vmem:[#allocation4 + $0x1598] sm:$0xff]
    %v1775 = vld [vmem:[#allocation4 + $0x15a0] sm:$0xff]
    %v1776 = vld [vmem:[#allocation4 + $0x15a8] sm:$0xff]
    %v1777 = vld [vmem:[#allocation4 + $0x15b0] sm:$0xff]
    %v1778 = vld [vmem:[#allocation4 + $0x15b8] sm:$0xff]
    %v1779 = vld [vmem:[#allocation4 + $0x15c0] sm:$0xff]
    %v1780 = vld [vmem:[#allocation4 + $0x15c8] sm:$0xff]
    %v1781 = vld [vmem:[#allocation4 + $0x15d0] sm:$0xff]
    %v1782 = vld [vmem:[#allocation4 + $0x15d8] sm:$0xff]
    %v1783 = vld [vmem:[#allocation4 + $0x15e0] sm:$0xff]
    %v1784 = vld [vmem:[#allocation4 + $0x15e8] sm:$0xff]
    %v1785 = vld [vmem:[#allocation4 + $0x15f0] sm:$0xff]
    %v1786 = vld [vmem:[#allocation4 + $0x15f8] sm:$0xff]
    %v1787 = vld [vmem:[#allocation4 + $0x1600] sm:$0xff]
    %v1788 = vld [vmem:[#allocation4 + $0x1608] sm:$0xff]
    %v1789 = vld [vmem:[#allocation4 + $0x1610] sm:$0xff]
    %v1790 = vld [vmem:[#allocation4 + $0x1618] sm:$0xff]
    %v1791 = vld [vmem:[#allocation4 + $0x1620] sm:$0xff]
    %v1792 = vld [vmem:[#allocation4 + $0x1628] sm:$0xff]
    %v1793 = vld [vmem:[#allocation4 + $0x1630] sm:$0xff]
    %v1794 = vld [vmem:[#allocation4 + $0x1638] sm:$0xff]
    %v1795 = vld [vmem:[#allocation4 + $0x1640] sm:$0xff]
    %v1796 = vld [vmem:[#allocation4 + $0x1648] sm:$0xff]
    %v1797 = vld [vmem:[#allocation4 + $0x1650] sm:$0xff]
    %v1798 = vld [vmem:[#allocation4 + $0x1658] sm:$0xff]
    %v1799 = vld [vmem:[#allocation4 + $0x1660] sm:$0xff]
    %v1800 = vld [vmem:[#allocation4 + $0x1668] sm:$0xff]
    %v1801 = vld [vmem:[#allocation4 + $0x1670] sm:$0xff]
    %v1802 = vld [vmem:[#allocation4 + $0x1678] sm:$0xff]
    %v1803 = vld [vmem:[#allocation4 + $0x1680] sm:$0xff]
    %v1804 = vld [vmem:[#allocation4 + $0x1688] sm:$0xff]
    %v1805 = vld [vmem:[#allocation4 + $0x1690] sm:$0xff]
    %v1806 = vld [vmem:[#allocation4 + $0x1698] sm:$0xff]
    %v1807 = vld [vmem:[#allocation4 + $0x16a0] sm:$0xff]
    %v1808 = vld [vmem:[#allocation4 + $0x16a8] sm:$0xff]
    %v1809 = vld [vmem:[#allocation4 + $0x16b0] sm:$0xff]
    %v1810 = vld [vmem:[#allocation4 + $0x16b8] sm:$0xff]
    %v1811 = vld [vmem:[#allocation4 + $0x16c0] sm:$0xff]
    %v1812 = vld [vmem:[#allocation4 + $0x16c8] sm:$0xff]
    %v1813 = vld [vmem:[#allocation4 + $0x16d0] sm:$0xff]
    %v1814 = vld [vmem:[#allocation4 + $0x16d8] sm:$0xff]
    %v1815 = vld [vmem:[#allocation4 + $0x16e0] sm:$0xff]
    %v1816 = vld [vmem:[#allocation4 + $0x16e8] sm:$0xff]
    %v1817 = vld [vmem:[#allocation4 + $0x16f0] sm:$0xff]
    %v1818 = vld [vmem:[#allocation4 + $0x16f8] sm:$0xff]
    %v1819 = vld [vmem:[#allocation4 + $0x1700] sm:$0xff]
    %v1820 = vld [vmem:[#allocation4 + $0x1708] sm:$0xff]
    %v1821 = vld [vmem:[#allocation4 + $0x1710] sm:$0xff]
    %v1822 = vld [vmem:[#allocation4 + $0x1718] sm:$0xff]
    %v1823 = vld [vmem:[#allocation4 + $0x1720] sm:$0xff]
    %v1824 = vld [vmem:[#allocation4 + $0x1728] sm:$0xff]
    %v1825 = vld [vmem:[#allocation4 + $0x1730] sm:$0xff]
    %v1826 = vld [vmem:[#allocation4 + $0x1738] sm:$0xff]
    %v1827 = vld [vmem:[#allocation4 + $0x1740] sm:$0xff]
    %v1828 = vld [vmem:[#allocation4 + $0x1748] sm:$0xff]
    %v1829 = vld [vmem:[#allocation4 + $0x1750] sm:$0xff]
    %v1830 = vld [vmem:[#allocation4 + $0x1758] sm:$0xff]
    %v1831 = vld [vmem:[#allocation4 + $0x1760] sm:$0xff]
    %v1832 = vld [vmem:[#allocation4 + $0x1768] sm:$0xff]
    %v1833 = vld [vmem:[#allocation4 + $0x1770] sm:$0xff]
    %v1834 = vld [vmem:[#allocation4 + $0x1778] sm:$0xff]
    %v1835 = vld [vmem:[#allocation4 + $0x1780] sm:$0xff]
    %v1836 = vld [vmem:[#allocation4 + $0x1788] sm:$0xff]
    %v1837 = vld [vmem:[#allocation4 + $0x1790] sm:$0xff]
    %v1838 = vld [vmem:[#allocation4 + $0x1798] sm:$0xff]
    %v1839 = vld [vmem:[#allocation4 + $0x17a0] sm:$0xff]
    %v1840 = vld [vmem:[#allocation4 + $0x17a8] sm:$0xff]
    %v1841 = vld [vmem:[#allocation4 + $0x17b0] sm:$0xff]
    %v1842 = vld [vmem:[#allocation4 + $0x17b8] sm:$0xff]
    %v1843 = vld [vmem:[#allocation4 + $0x17c0] sm:$0xff]
    %v1844 = vld [vmem:[#allocation4 + $0x17c8] sm:$0xff]
    %v1845 = vld [vmem:[#allocation4 + $0x17d0] sm:$0xff]
    %v1846 = vld [vmem:[#allocation4 + $0x17d8] sm:$0xff]
    %v1847 = vld [vmem:[#allocation4 + $0x17e0] sm:$0xff]
    %v1848 = vld [vmem:[#allocation4 + $0x17e8] sm:$0xff]
    %v1849 = vld [vmem:[#allocation4 + $0x17f0] sm:$0xff]
    %v1850 = vld [vmem:[#allocation4 + $0x17f8] sm:$0xff]
    %v1947 = vunpack.c.l.b16 %v987
    %v1948 = vunpack.c.l.b16 %v988
    %v1949 = vunpack.c.l.b16 %v989
    %v1950 = vunpack.c.l.b16 %v990
    %v1951 = vunpack.c.l.b16 %v991
    %v1952 = vunpack.c.l.b16 %v992
    %v1953 = vunpack.c.l.b16 %v993
    %v1954 = vunpack.c.l.b16 %v994
    %v1955 = vunpack.c.l.b16 %v995
    %v1956 = vunpack.c.l.b16 %v996
    %v1957 = vunpack.c.l.b16 %v997
    %v1958 = vunpack.c.l.b16 %v998
    %v1959 = vunpack.c.l.b16 %v999
    %v1960 = vunpack.c.l.b16 %v1000
    %v1961 = vunpack.c.l.b16 %v1001
    %v1962 = vunpack.c.l.b16 %v1002
    %v1963 = vunpack.c.l.b16 %v1003
    %v1964 = vunpack.c.l.b16 %v1004
    %v1965 = vunpack.c.l.b16 %v1005
    %v1966 = vunpack.c.l.b16 %v1006
    %v1967 = vunpack.c.l.b16 %v1007
    %v1968 = vunpack.c.l.b16 %v1008
    %v1969 = vunpack.c.l.b16 %v1009
    %v1970 = vunpack.c.l.b16 %v1010
    %v1971 = vunpack.c.l.b16 %v1011
    %v1972 = vunpack.c.l.b16 %v1012
    %v1973 = vunpack.c.l.b16 %v1013
    %v1974 = vunpack.c.l.b16 %v1014
    %v1975 = vunpack.c.l.b16 %v1015
    %v1976 = vunpack.c.l.b16 %v1016
    %v1977 = vunpack.c.l.b16 %v1017
    %v1978 = vunpack.c.l.b16 %v1018
    %v1979 = vunpack.c.l.b16 %v1019
    %v1980 = vunpack.c.l.b16 %v1020
    %v1981 = vunpack.c.l.b16 %v1021
    %v1982 = vunpack.c.l.b16 %v1022
    %v1983 = vunpack.c.l.b16 %v1023
    %v1984 = vunpack.c.l.b16 %v1024
    %v1985 = vunpack.c.l.b16 %v1025
    %v1986 = vunpack.c.l.b16 %v1026
    %v1987 = vunpack.c.l.b16 %v1027
    %v1988 = vunpack.c.l.b16 %v1028
    %v1989 = vunpack.c.l.b16 %v1029
    %v1990 = vunpack.c.l.b16 %v1030
    %v1991 = vunpack.c.l.b16 %v1031
    %v1992 = vunpack.c.l.b16 %v1032
    %v1993 = vunpack.c.l.b16 %v1033
    %v1994 = vunpack.c.l.b16 %v1034
    %v1995 = vunpack.c.l.b16 %v1035
    %v1996 = vunpack.c.l.b16 %v1036
    %v1997 = vunpack.c.l.b16 %v1037
    %v1998 = vunpack.c.l.b16 %v1038
    %v1999 = vunpack.c.l.b16 %v1039
    %v2000 = vunpack.c.l.b16 %v1040
    %v2001 = vunpack.c.l.b16 %v1041
    %v2002 = vunpack.c.l.b16 %v1042
    %v2003 = vunpack.c.l.b16 %v1043
    %v2004 = vunpack.c.l.b16 %v1044
    %v2005 = vunpack.c.l.b16 %v1045
    %v2006 = vunpack.c.l.b16 %v1046
    %v2007 = vunpack.c.l.b16 %v1047
    %v2008 = vunpack.c.l.b16 %v1048
    %v2009 = vunpack.c.l.b16 %v1049
    %v2010 = vunpack.c.l.b16 %v1050
    %v2011 = vunpack.c.l.b16 %v1051
    %v2012 = vunpack.c.l.b16 %v1052
    %v2013 = vunpack.c.l.b16 %v1053
    %v2014 = vunpack.c.l.b16 %v1054
    %v2015 = vunpack.c.l.b16 %v1055
    %v2016 = vunpack.c.l.b16 %v1056
    %v2017 = vunpack.c.l.b16 %v1057
    %v2018 = vunpack.c.l.b16 %v1058
    %v2019 = vunpack.c.l.b16 %v1059
    %v2020 = vunpack.c.l.b16 %v1060
    %v2021 = vunpack.c.l.b16 %v1061
    %v2022 = vunpack.c.l.b16 %v1062
    %v2023 = vunpack.c.l.b16 %v1063
    %v2024 = vunpack.c.l.b16 %v1064
    %v2025 = vunpack.c.l.b16 %v1065
    %v2026 = vunpack.c.l.b16 %v1066
    %v2027 = vunpack.c.l.b16 %v1067
    %v2028 = vunpack.c.l.b16 %v1068
    %v2029 = vunpack.c.l.b16 %v1069
    %v2030 = vunpack.c.l.b16 %v1070
    %v2031 = vunpack.c.l.b16 %v1071
    %v2032 = vunpack.c.l.b16 %v1072
    %v2033 = vunpack.c.l.b16 %v1073
    %v2034 = vunpack.c.l.b16 %v1074
    %v2035 = vunpack.c.l.b16 %v1075
    %v2036 = vunpack.c.l.b16 %v1076
    %v2037 = vunpack.c.l.b16 %v1077
    %v2038 = vunpack.c.l.b16 %v1078
    %v2039 = vunpack.c.l.b16 %v1079
    %v2040 = vunpack.c.l.b16 %v1080
    %v2041 = vunpack.c.l.b16 %v1081
    %v2042 = vunpack.c.l.b16 %v1082
    %vm2043 = vcmask 1041409
    %v2044 = vsel %vm2043, %v1963, %v1947
    %vm2045 = vcmask 1042434
    %v2046 = vsel %vm2045, %v1979, %v2044
    %vm2047 = vcmask 1043459
    %v2048 = vsel %vm2047, %v1995, %v2046
    %vm2049 = vcmask 1044484
    %v2050 = vsel %vm2049, %v2011, %v2048
    %vm2051 = vcmask 1045509
    %v2052 = vsel %vm2051, %v2027, %v2050
    %v2053 = vsel %vm2043, %v1964, %v1948
    %v2054 = vsel %vm2045, %v1980, %v2053
    %v2055 = vsel %vm2047, %v1996, %v2054
    %v2056 = vsel %vm2049, %v2012, %v2055
    %v2057 = vsel %vm2051, %v2028, %v2056
    %v2058 = vsel %vm2043, %v1965, %v1949
    %v2059 = vsel %vm2045, %v1981, %v2058
    %v2060 = vsel %vm2047, %v1997, %v2059
    %v2061 = vsel %vm2049, %v2013, %v2060
    %v2062 = vsel %vm2051, %v2029, %v2061
    %v2063 = vsel %vm2043, %v1966, %v1950
    %v2064 = vsel %vm2045, %v1982, %v2063
    %v2065 = vsel %vm2047, %v1998, %v2064
    %v2066 = vsel %vm2049, %v2014, %v2065
    %v2067 = vsel %vm2051, %v2030, %v2066
    %v2068 = vsel %vm2043, %v1967, %v1951
    %v2069 = vsel %vm2045, %v1983, %v2068
    %v2070 = vsel %vm2047, %v1999, %v2069
    %v2071 = vsel %vm2049, %v2015, %v2070
    %v2072 = vsel %vm2051, %v2031, %v2071
    %v2073 = vsel %vm2043, %v1968, %v1952
    %v2074 = vsel %vm2045, %v1984, %v2073
    %v2075 = vsel %vm2047, %v2000, %v2074
    %v2076 = vsel %vm2049, %v2016, %v2075
    %v2077 = vsel %vm2051, %v2032, %v2076
    %v2078 = vsel %vm2043, %v1969, %v1953
    %v2079 = vsel %vm2045, %v1985, %v2078
    %v2080 = vsel %vm2047, %v2001, %v2079
    %v2081 = vsel %vm2049, %v2017, %v2080
    %v2082 = vsel %vm2051, %v2033, %v2081
    %v2083 = vsel %vm2043, %v1970, %v1954
    %v2084 = vsel %vm2045, %v1986, %v2083
    %v2085 = vsel %vm2047, %v2002, %v2084
    %v2086 = vsel %vm2049, %v2018, %v2085
    %v2087 = vsel %vm2051, %v2034, %v2086
    %v2088 = vsel %vm2043, %v1971, %v1955
    %v2089 = vsel %vm2045, %v1987, %v2088
    %v2090 = vsel %vm2047, %v2003, %v2089
    %v2091 = vsel %vm2049, %v2019, %v2090
    %v2092 = vsel %vm2051, %v2035, %v2091
    %v2093 = vsel %vm2043, %v1972, %v1956
    %v2094 = vsel %vm2045, %v1988, %v2093
    %v2095 = vsel %vm2047, %v2004, %v2094
    %v2096 = vsel %vm2049, %v2020, %v2095
    %v2097 = vsel %vm2051, %v2036, %v2096
    %v2098 = vsel %vm2043, %v1973, %v1957
    %v2099 = vsel %vm2045, %v1989, %v2098
    %v2100 = vsel %vm2047, %v2005, %v2099
    %v2101 = vsel %vm2049, %v2021, %v2100
    %v2102 = vsel %vm2051, %v2037, %v2101
    %v2103 = vsel %vm2043, %v1974, %v1958
    %v2104 = vsel %vm2045, %v1990, %v2103
    %v2105 = vsel %vm2047, %v2006, %v2104
    %v2106 = vsel %vm2049, %v2022, %v2105
    %v2107 = vsel %vm2051, %v2038, %v2106
    %v2108 = vsel %vm2043, %v1975, %v1959
    %v2109 = vsel %vm2045, %v1991, %v2108
    %v2110 = vsel %vm2047, %v2007, %v2109
    %v2111 = vsel %vm2049, %v2023, %v2110
    %v2112 = vsel %vm2051, %v2039, %v2111
    %v2113 = vsel %vm2043, %v1976, %v1960
    %v2114 = vsel %vm2045, %v1992, %v2113
    %v2115 = vsel %vm2047, %v2008, %v2114
    %v2116 = vsel %vm2049, %v2024, %v2115
    %v2117 = vsel %vm2051, %v2040, %v2116
    %v2118 = vsel %vm2043, %v1977, %v1961
    %v2119 = vsel %vm2045, %v1993, %v2118
    %v2120 = vsel %vm2047, %v2009, %v2119
    %v2121 = vsel %vm2049, %v2025, %v2120
    %v2122 = vsel %vm2051, %v2041, %v2121
    %v2123 = vsel %vm2043, %v1978, %v1962
    %v2124 = vsel %vm2045, %v1994, %v2123
    %v2125 = vsel %vm2047, %v2010, %v2124
    %v2126 = vsel %vm2049, %v2026, %v2125
    %v2127 = vsel %vm2051, %v2042, %v2126
    %v2128 = vpack.c.b16 %v2052, %v2052
    %v2129 = vpack.c.b16 %v2057, %v2057
    %v2130 = vpack.c.b16 %v2062, %v2062
    %v2131 = vpack.c.b16 %v2067, %v2067
    %v2132 = vpack.c.b16 %v2072, %v2072
    %v2133 = vpack.c.b16 %v2077, %v2077
    %v2134 = vpack.c.b16 %v2082, %v2082
    %v2135 = vpack.c.b16 %v2087, %v2087
    %v2136 = vpack.c.b16 %v2092, %v2092
    %v2137 = vpack.c.b16 %v2097, %v2097
    %v2138 = vpack.c.b16 %v2102, %v2102
    %v2139 = vpack.c.b16 %v2107, %v2107
    %v2140 = vpack.c.b16 %v2112, %v2112
    %v2141 = vpack.c.b16 %v2117, %v2117
    %v2142 = vpack.c.b16 %v2122, %v2122
    %v2143 = vpack.c.b16 %v2127, %v2127
    %v2928 = vunpack.c.l.b16 %v1083
    %v2929 = vunpack.c.h.b16 %v1083
    %v2930 = vunpack.c.l.b16 %v1084
    %v2931 = vunpack.c.h.b16 %v1084
    %v2932 = vunpack.c.l.b16 %v1085
    %v2933 = vunpack.c.h.b16 %v1085
    %v2934 = vunpack.c.l.b16 %v1086
    %v2935 = vunpack.c.h.b16 %v1086
    %v2936 = vunpack.c.l.b16 %v1087
    %v2937 = vunpack.c.h.b16 %v1087
    %v2938 = vunpack.c.l.b16 %v1088
    %v2939 = vunpack.c.h.b16 %v1088
    %v2940 = vunpack.c.l.b16 %v1089
    %v2941 = vunpack.c.h.b16 %v1089
    %v2942 = vunpack.c.l.b16 %v1090
    %v2943 = vunpack.c.h.b16 %v1090
    %v2944 = vunpack.c.l.b16 %v1091
    %v2945 = vunpack.c.h.b16 %v1091
    %v2946 = vunpack.c.l.b16 %v1092
    %v2947 = vunpack.c.h.b16 %v1092
    %v2948 = vunpack.c.l.b16 %v1093
    %v2949 = vunpack.c.h.b16 %v1093
    %v2950 = vunpack.c.l.b16 %v1094
    %v2951 = vunpack.c.h.b16 %v1094
    %v2952 = vunpack.c.l.b16 %v1095
    %v2953 = vunpack.c.h.b16 %v1095
    %v2954 = vunpack.c.l.b16 %v1096
    %v2955 = vunpack.c.h.b16 %v1096
    %v2956 = vunpack.c.l.b16 %v1097
    %v2957 = vunpack.c.h.b16 %v1097
    %v2958 = vunpack.c.l.b16 %v1098
    %v2959 = vunpack.c.h.b16 %v1098
    %v2960 = vunpack.c.l.b16 %v1099
    %v2961 = vunpack.c.h.b16 %v1099
    %v2962 = vunpack.c.l.b16 %v1100
    %v2963 = vunpack.c.h.b16 %v1100
    %v2964 = vunpack.c.l.b16 %v1101
    %v2965 = vunpack.c.h.b16 %v1101
    %v2966 = vunpack.c.l.b16 %v1102
    %v2967 = vunpack.c.h.b16 %v1102
    %v2968 = vunpack.c.l.b16 %v1103
    %v2969 = vunpack.c.h.b16 %v1103
    %v2970 = vunpack.c.l.b16 %v1104
    %v2971 = vunpack.c.h.b16 %v1104
    %v2972 = vunpack.c.l.b16 %v1105
    %v2973 = vunpack.c.h.b16 %v1105
    %v2974 = vunpack.c.l.b16 %v1106
    %v2975 = vunpack.c.h.b16 %v1106
    %v2976 = vunpack.c.l.b16 %v1107
    %v2977 = vunpack.c.h.b16 %v1107
    %v2978 = vunpack.c.l.b16 %v1108
    %v2979 = vunpack.c.h.b16 %v1108
    %v2980 = vunpack.c.l.b16 %v1109
    %v2981 = vunpack.c.h.b16 %v1109
    %v2982 = vunpack.c.l.b16 %v1110
    %v2983 = vunpack.c.h.b16 %v1110
    %v2984 = vunpack.c.l.b16 %v1111
    %v2985 = vunpack.c.h.b16 %v1111
    %v2986 = vunpack.c.l.b16 %v1112
    %v2987 = vunpack.c.h.b16 %v1112
    %v2988 = vunpack.c.l.b16 %v1113
    %v2989 = vunpack.c.h.b16 %v1113
    %v2990 = vunpack.c.l.b16 %v1114
    %v2991 = vunpack.c.h.b16 %v1114
    %v2992 = vunpack.c.l.b16 %v1115
    %v2993 = vunpack.c.h.b16 %v1115
    %v2994 = vunpack.c.l.b16 %v1116
    %v2995 = vunpack.c.h.b16 %v1116
    %v2996 = vunpack.c.l.b16 %v1117
    %v2997 = vunpack.c.h.b16 %v1117
    %v2998 = vunpack.c.l.b16 %v1118
    %v2999 = vunpack.c.h.b16 %v1118
    %v3000 = vunpack.c.l.b16 %v1119
    %v3001 = vunpack.c.h.b16 %v1119
    %v3002 = vunpack.c.l.b16 %v1120
    %v3003 = vunpack.c.h.b16 %v1120
    %v3004 = vunpack.c.l.b16 %v1121
    %v3005 = vunpack.c.h.b16 %v1121
    %v3006 = vunpack.c.l.b16 %v1122
    %v3007 = vunpack.c.h.b16 %v1122
    %v3008 = vunpack.c.l.b16 %v1123
    %v3009 = vunpack.c.h.b16 %v1123
    %v3010 = vunpack.c.l.b16 %v1124
    %v3011 = vunpack.c.h.b16 %v1124
    %v3012 = vunpack.c.l.b16 %v1125
    %v3013 = vunpack.c.h.b16 %v1125
    %v3014 = vunpack.c.l.b16 %v1126
    %v3015 = vunpack.c.h.b16 %v1126
    %v3016 = vunpack.c.l.b16 %v1127
    %v3017 = vunpack.c.h.b16 %v1127
    %v3018 = vunpack.c.l.b16 %v1128
    %v3019 = vunpack.c.h.b16 %v1128
    %v3020 = vunpack.c.l.b16 %v1129
    %v3021 = vunpack.c.h.b16 %v1129
    %v3022 = vunpack.c.l.b16 %v1130
    %v3023 = vunpack.c.h.b16 %v1130
    %v3024 = vunpack.c.l.b16 %v1131
    %v3025 = vunpack.c.h.b16 %v1131
    %v3026 = vunpack.c.l.b16 %v1132
    %v3027 = vunpack.c.h.b16 %v1132
    %v3028 = vunpack.c.l.b16 %v1133
    %v3029 = vunpack.c.h.b16 %v1133
    %v3030 = vunpack.c.l.b16 %v1134
    %v3031 = vunpack.c.h.b16 %v1134
    %v3032 = vunpack.c.l.b16 %v1135
    %v3033 = vunpack.c.h.b16 %v1135
    %v3034 = vunpack.c.l.b16 %v1136
    %v3035 = vunpack.c.h.b16 %v1136
    %v3036 = vunpack.c.l.b16 %v1137
    %v3037 = vunpack.c.h.b16 %v1137
    %v3038 = vunpack.c.l.b16 %v1138
    %v3039 = vunpack.c.h.b16 %v1138
    %v3040 = vunpack.c.l.b16 %v1139
    %v3041 = vunpack.c.h.b16 %v1139
    %v3042 = vunpack.c.l.b16 %v1140
    %v3043 = vunpack.c.h.b16 %v1140
    %v3044 = vunpack.c.l.b16 %v1141
    %v3045 = vunpack.c.h.b16 %v1141
    %v3046 = vunpack.c.l.b16 %v1142
    %v3047 = vunpack.c.h.b16 %v1142
    %v3048 = vunpack.c.l.b16 %v1143
    %v3049 = vunpack.c.h.b16 %v1143
    %v3050 = vunpack.c.l.b16 %v1144
    %v3051 = vunpack.c.h.b16 %v1144
    %v3052 = vunpack.c.l.b16 %v1145
    %v3053 = vunpack.c.h.b16 %v1145
    %v3054 = vunpack.c.l.b16 %v1146
    %v3055 = vunpack.c.h.b16 %v1146
    %v3056 = vunpack.c.l.b16 %v1147
    %v3057 = vunpack.c.h.b16 %v1147
    %v3058 = vunpack.c.l.b16 %v1148
    %v3059 = vunpack.c.h.b16 %v1148
    %v3060 = vunpack.c.l.b16 %v1149
    %v3061 = vunpack.c.h.b16 %v1149
    %v3062 = vunpack.c.l.b16 %v1150
    %v3063 = vunpack.c.h.b16 %v1150
    %v3064 = vunpack.c.l.b16 %v1151
    %v3065 = vunpack.c.h.b16 %v1151
    %v3066 = vunpack.c.l.b16 %v1152
    %v3067 = vunpack.c.h.b16 %v1152
    %v3068 = vunpack.c.l.b16 %v1153
    %v3069 = vunpack.c.h.b16 %v1153
    %v3070 = vunpack.c.l.b16 %v1154
    %v3071 = vunpack.c.h.b16 %v1154
    %v3072 = vunpack.c.l.b16 %v1155
    %v3073 = vunpack.c.h.b16 %v1155
    %v3074 = vunpack.c.l.b16 %v1156
    %v3075 = vunpack.c.h.b16 %v1156
    %v3076 = vunpack.c.l.b16 %v1157
    %v3077 = vunpack.c.h.b16 %v1157
    %v3078 = vunpack.c.l.b16 %v1158
    %v3079 = vunpack.c.h.b16 %v1158
    %v3080 = vunpack.c.l.b16 %v1159
    %v3081 = vunpack.c.h.b16 %v1159
    %v3082 = vunpack.c.l.b16 %v1160
    %v3083 = vunpack.c.h.b16 %v1160
    %v3084 = vunpack.c.l.b16 %v1161
    %v3085 = vunpack.c.h.b16 %v1161
    %v3086 = vunpack.c.l.b16 %v1162
    %v3087 = vunpack.c.h.b16 %v1162
    %v3088 = vunpack.c.l.b16 %v1163
    %v3089 = vunpack.c.h.b16 %v1163
    %v3090 = vunpack.c.l.b16 %v1164
    %v3091 = vunpack.c.h.b16 %v1164
    %v3092 = vunpack.c.l.b16 %v1165
    %v3093 = vunpack.c.h.b16 %v1165
    %v3094 = vunpack.c.l.b16 %v1166
    %v3095 = vunpack.c.h.b16 %v1166
    %v3096 = vunpack.c.l.b16 %v1167
    %v3097 = vunpack.c.h.b16 %v1167
    %v3098 = vunpack.c.l.b16 %v1168
    %v3099 = vunpack.c.h.b16 %v1168
    %v3100 = vunpack.c.l.b16 %v1169
    %v3101 = vunpack.c.h.b16 %v1169
    %v3102 = vunpack.c.l.b16 %v1170
    %v3103 = vunpack.c.h.b16 %v1170
    %v3104 = vunpack.c.l.b16 %v1171
    %v3105 = vunpack.c.h.b16 %v1171
    %v3106 = vunpack.c.l.b16 %v1172
    %v3107 = vunpack.c.h.b16 %v1172
    %v3108 = vunpack.c.l.b16 %v1173
    %v3109 = vunpack.c.h.b16 %v1173
    %v3110 = vunpack.c.l.b16 %v1174
    %v3111 = vunpack.c.h.b16 %v1174
    %v3112 = vunpack.c.l.b16 %v1175
    %v3113 = vunpack.c.h.b16 %v1175
    %v3114 = vunpack.c.l.b16 %v1176
    %v3115 = vunpack.c.h.b16 %v1176
    %v3116 = vunpack.c.l.b16 %v1177
    %v3117 = vunpack.c.h.b16 %v1177
    %v3118 = vunpack.c.l.b16 %v1178
    %v3119 = vunpack.c.h.b16 %v1178
    %v3120 = vunpack.c.l.b16 %v1179
    %v3121 = vunpack.c.h.b16 %v1179
    %v3122 = vunpack.c.l.b16 %v1180
    %v3123 = vunpack.c.h.b16 %v1180
    %v3124 = vunpack.c.l.b16 %v1181
    %v3125 = vunpack.c.h.b16 %v1181
    %v3126 = vunpack.c.l.b16 %v1182
    %v3127 = vunpack.c.h.b16 %v1182
    %v3128 = vunpack.c.l.b16 %v1183
    %v3129 = vunpack.c.h.b16 %v1183
    %v3130 = vunpack.c.l.b16 %v1184
    %v3131 = vunpack.c.h.b16 %v1184
    %v3132 = vunpack.c.l.b16 %v1185
    %v3133 = vunpack.c.h.b16 %v1185
    %v3134 = vunpack.c.l.b16 %v1186
    %v3135 = vunpack.c.h.b16 %v1186
    %v3136 = vunpack.c.l.b16 %v1187
    %v3137 = vunpack.c.h.b16 %v1187
    %v3138 = vunpack.c.l.b16 %v1188
    %v3139 = vunpack.c.h.b16 %v1188
    %v3140 = vunpack.c.l.b16 %v1189
    %v3141 = vunpack.c.h.b16 %v1189
    %v3142 = vunpack.c.l.b16 %v1190
    %v3143 = vunpack.c.h.b16 %v1190
    %v3144 = vunpack.c.l.b16 %v1191
    %v3145 = vunpack.c.h.b16 %v1191
    %v3146 = vunpack.c.l.b16 %v1192
    %v3147 = vunpack.c.h.b16 %v1192
    %v3148 = vunpack.c.l.b16 %v1193
    %v3149 = vunpack.c.h.b16 %v1193
    %v3150 = vunpack.c.l.b16 %v1194
    %v3151 = vunpack.c.h.b16 %v1194
    %v3152 = vunpack.c.l.b16 %v1195
    %v3153 = vunpack.c.h.b16 %v1195
    %v3154 = vunpack.c.l.b16 %v1196
    %v3155 = vunpack.c.h.b16 %v1196
    %v3156 = vunpack.c.l.b16 %v1197
    %v3157 = vunpack.c.h.b16 %v1197
    %v3158 = vunpack.c.l.b16 %v1198
    %v3159 = vunpack.c.h.b16 %v1198
    %v3160 = vunpack.c.l.b16 %v1199
    %v3161 = vunpack.c.h.b16 %v1199
    %v3162 = vunpack.c.l.b16 %v1200
    %v3163 = vunpack.c.h.b16 %v1200
    %v3164 = vunpack.c.l.b16 %v1201
    %v3165 = vunpack.c.h.b16 %v1201
    %v3166 = vunpack.c.l.b16 %v1202
    %v3167 = vunpack.c.h.b16 %v1202
    %v3168 = vunpack.c.l.b16 %v1203
    %v3169 = vunpack.c.h.b16 %v1203
    %v3170 = vunpack.c.l.b16 %v1204
    %v3171 = vunpack.c.h.b16 %v1204
    %v3172 = vunpack.c.l.b16 %v1205
    %v3173 = vunpack.c.h.b16 %v1205
    %v3174 = vunpack.c.l.b16 %v1206
    %v3175 = vunpack.c.h.b16 %v1206
    %v3176 = vunpack.c.l.b16 %v1207
    %v3177 = vunpack.c.h.b16 %v1207
    %v3178 = vunpack.c.l.b16 %v1208
    %v3179 = vunpack.c.h.b16 %v1208
    %v3180 = vunpack.c.l.b16 %v1209
    %v3181 = vunpack.c.h.b16 %v1209
    %v3182 = vunpack.c.l.b16 %v1210
    %v3183 = vunpack.c.h.b16 %v1210
    %v3184 = vunpack.c.l.b16 %v1211
    %v3185 = vunpack.c.h.b16 %v1211
    %v3186 = vunpack.c.l.b16 %v1212
    %v3187 = vunpack.c.h.b16 %v1212
    %v3188 = vunpack.c.l.b16 %v1213
    %v3189 = vunpack.c.h.b16 %v1213
    %v3190 = vunpack.c.l.b16 %v1214
    %v3191 = vunpack.c.h.b16 %v1214
    %v3192 = vunpack.c.l.b16 %v1215
    %v3193 = vunpack.c.h.b16 %v1215
    %v3194 = vunpack.c.l.b16 %v1216
    %v3195 = vunpack.c.h.b16 %v1216
    %v3196 = vunpack.c.l.b16 %v1217
    %v3197 = vunpack.c.h.b16 %v1217
    %v3198 = vunpack.c.l.b16 %v1218
    %v3199 = vunpack.c.h.b16 %v1218
    %v3200 = vunpack.c.l.b16 %v1219
    %v3201 = vunpack.c.h.b16 %v1219
    %v3202 = vunpack.c.l.b16 %v1220
    %v3203 = vunpack.c.h.b16 %v1220
    %v3204 = vunpack.c.l.b16 %v1221
    %v3205 = vunpack.c.h.b16 %v1221
    %v3206 = vunpack.c.l.b16 %v1222
    %v3207 = vunpack.c.h.b16 %v1222
    %v3208 = vunpack.c.l.b16 %v1223
    %v3209 = vunpack.c.h.b16 %v1223
    %v3210 = vunpack.c.l.b16 %v1224
    %v3211 = vunpack.c.h.b16 %v1224
    %v3212 = vunpack.c.l.b16 %v1225
    %v3213 = vunpack.c.h.b16 %v1225
    %v3214 = vunpack.c.l.b16 %v1226
    %v3215 = vunpack.c.h.b16 %v1226
    %v3216 = vunpack.c.l.b16 %v1227
    %v3217 = vunpack.c.h.b16 %v1227
    %v3218 = vunpack.c.l.b16 %v1228
    %v3219 = vunpack.c.h.b16 %v1228
    %v3220 = vunpack.c.l.b16 %v1229
    %v3221 = vunpack.c.h.b16 %v1229
    %v3222 = vunpack.c.l.b16 %v1230
    %v3223 = vunpack.c.h.b16 %v1230
    %v3224 = vunpack.c.l.b16 %v1231
    %v3225 = vunpack.c.h.b16 %v1231
    %v3226 = vunpack.c.l.b16 %v1232
    %v3227 = vunpack.c.h.b16 %v1232
    %v3228 = vunpack.c.l.b16 %v1233
    %v3229 = vunpack.c.h.b16 %v1233
    %v3230 = vunpack.c.l.b16 %v1234
    %v3231 = vunpack.c.h.b16 %v1234
    %v3232 = vunpack.c.l.b16 %v1235
    %v3233 = vunpack.c.h.b16 %v1235
    %v3234 = vunpack.c.l.b16 %v1236
    %v3235 = vunpack.c.h.b16 %v1236
    %v3236 = vunpack.c.l.b16 %v1237
    %v3237 = vunpack.c.h.b16 %v1237
    %v3238 = vunpack.c.l.b16 %v1238
    %v3239 = vunpack.c.h.b16 %v1238
    %v3240 = vunpack.c.l.b16 %v1239
    %v3241 = vunpack.c.h.b16 %v1239
    %v3242 = vunpack.c.l.b16 %v1240
    %v3243 = vunpack.c.h.b16 %v1240
    %v3244 = vunpack.c.l.b16 %v1241
    %v3245 = vunpack.c.h.b16 %v1241
    %v3246 = vunpack.c.l.b16 %v1242
    %v3247 = vunpack.c.h.b16 %v1242
    %v3248 = vunpack.c.l.b16 %v1243
    %v3249 = vunpack.c.h.b16 %v1243
    %v3250 = vunpack.c.l.b16 %v1244
    %v3251 = vunpack.c.h.b16 %v1244
    %v3252 = vunpack.c.l.b16 %v1245
    %v3253 = vunpack.c.h.b16 %v1245
    %v3254 = vunpack.c.l.b16 %v1246
    %v3255 = vunpack.c.h.b16 %v1246
    %v3256 = vunpack.c.l.b16 %v1247
    %v3257 = vunpack.c.h.b16 %v1247
    %v3258 = vunpack.c.l.b16 %v1248
    %v3259 = vunpack.c.h.b16 %v1248
    %v3260 = vunpack.c.l.b16 %v1249
    %v3261 = vunpack.c.h.b16 %v1249
    %v3262 = vunpack.c.l.b16 %v1250
    %v3263 = vunpack.c.h.b16 %v1250
    %v3264 = vunpack.c.l.b16 %v1251
    %v3265 = vunpack.c.h.b16 %v1251
    %v3266 = vunpack.c.l.b16 %v1252
    %v3267 = vunpack.c.h.b16 %v1252
    %v3268 = vunpack.c.l.b16 %v1253
    %v3269 = vunpack.c.h.b16 %v1253
    %v3270 = vunpack.c.l.b16 %v1254
    %v3271 = vunpack.c.h.b16 %v1254
    %v3272 = vunpack.c.l.b16 %v1255
    %v3273 = vunpack.c.h.b16 %v1255
    %v3274 = vunpack.c.l.b16 %v1256
    %v3275 = vunpack.c.h.b16 %v1256
    %v3276 = vunpack.c.l.b16 %v1257
    %v3277 = vunpack.c.h.b16 %v1257
    %v3278 = vunpack.c.l.b16 %v1258
    %v3279 = vunpack.c.h.b16 %v1258
    %v3280 = vunpack.c.l.b16 %v1259
    %v3281 = vunpack.c.h.b16 %v1259
    %v3282 = vunpack.c.l.b16 %v1260
    %v3283 = vunpack.c.h.b16 %v1260
    %v3284 = vunpack.c.l.b16 %v1261
    %v3285 = vunpack.c.h.b16 %v1261
    %v3286 = vunpack.c.l.b16 %v1262
    %v3287 = vunpack.c.h.b16 %v1262
    %v3288 = vunpack.c.l.b16 %v1263
    %v3289 = vunpack.c.h.b16 %v1263
    %v3290 = vunpack.c.l.b16 %v1264
    %v3291 = vunpack.c.h.b16 %v1264
    %v3292 = vunpack.c.l.b16 %v1265
    %v3293 = vunpack.c.h.b16 %v1265
    %v3294 = vunpack.c.l.b16 %v1266
    %v3295 = vunpack.c.h.b16 %v1266
    %v3296 = vunpack.c.l.b16 %v1267
    %v3297 = vunpack.c.h.b16 %v1267
    %v3298 = vunpack.c.l.b16 %v1268
    %v3299 = vunpack.c.h.b16 %v1268
    %v3300 = vunpack.c.l.b16 %v1269
    %v3301 = vunpack.c.h.b16 %v1269
    %v3302 = vunpack.c.l.b16 %v1270
    %v3303 = vunpack.c.h.b16 %v1270
    %v3304 = vunpack.c.l.b16 %v1271
    %v3305 = vunpack.c.h.b16 %v1271
    %v3306 = vunpack.c.l.b16 %v1272
    %v3307 = vunpack.c.h.b16 %v1272
    %v3308 = vunpack.c.l.b16 %v1273
    %v3309 = vunpack.c.h.b16 %v1273
    %v3310 = vunpack.c.l.b16 %v1274
    %v3311 = vunpack.c.h.b16 %v1274
    %v3312 = vunpack.c.l.b16 %v1275
    %v3313 = vunpack.c.h.b16 %v1275
    %v3314 = vunpack.c.l.b16 %v1276
    %v3315 = vunpack.c.h.b16 %v1276
    %v3316 = vunpack.c.l.b16 %v1277
    %v3317 = vunpack.c.h.b16 %v1277
    %v3318 = vunpack.c.l.b16 %v1278
    %v3319 = vunpack.c.h.b16 %v1278
    %v3320 = vunpack.c.l.b16 %v1279
    %v3321 = vunpack.c.h.b16 %v1279
    %v3322 = vunpack.c.l.b16 %v1280
    %v3323 = vunpack.c.h.b16 %v1280
    %v3324 = vunpack.c.l.b16 %v1281
    %v3325 = vunpack.c.h.b16 %v1281
    %v3326 = vunpack.c.l.b16 %v1282
    %v3327 = vunpack.c.h.b16 %v1282
    %v3328 = vunpack.c.l.b16 %v1283
    %v3329 = vunpack.c.h.b16 %v1283
    %v3330 = vunpack.c.l.b16 %v1284
    %v3331 = vunpack.c.h.b16 %v1284
    %v3332 = vunpack.c.l.b16 %v1285
    %v3333 = vunpack.c.h.b16 %v1285
    %v3334 = vunpack.c.l.b16 %v1286
    %v3335 = vunpack.c.h.b16 %v1286
    %v3336 = vunpack.c.l.b16 %v1287
    %v3337 = vunpack.c.h.b16 %v1287
    %v3338 = vunpack.c.l.b16 %v1288
    %v3339 = vunpack.c.h.b16 %v1288
    %v3340 = vunpack.c.l.b16 %v1289
    %v3341 = vunpack.c.h.b16 %v1289
    %v3342 = vunpack.c.l.b16 %v1290
    %v3343 = vunpack.c.h.b16 %v1290
    %v3344 = vunpack.c.l.b16 %v1291
    %v3345 = vunpack.c.h.b16 %v1291
    %v3346 = vunpack.c.l.b16 %v1292
    %v3347 = vunpack.c.h.b16 %v1292
    %v3348 = vunpack.c.l.b16 %v1293
    %v3349 = vunpack.c.h.b16 %v1293
    %v3350 = vunpack.c.l.b16 %v1294
    %v3351 = vunpack.c.h.b16 %v1294
    %v3352 = vunpack.c.l.b16 %v1295
    %v3353 = vunpack.c.h.b16 %v1295
    %v3354 = vunpack.c.l.b16 %v1296
    %v3355 = vunpack.c.h.b16 %v1296
    %v3356 = vunpack.c.l.b16 %v1297
    %v3357 = vunpack.c.h.b16 %v1297
    %v3358 = vunpack.c.l.b16 %v1298
    %v3359 = vunpack.c.h.b16 %v1298
    %v3360 = vunpack.c.l.b16 %v1299
    %v3361 = vunpack.c.h.b16 %v1299
    %v3362 = vunpack.c.l.b16 %v1300
    %v3363 = vunpack.c.h.b16 %v1300
    %v3364 = vunpack.c.l.b16 %v1301
    %v3365 = vunpack.c.h.b16 %v1301
    %v3366 = vunpack.c.l.b16 %v1302
    %v3367 = vunpack.c.h.b16 %v1302
    %v3368 = vunpack.c.l.b16 %v1303
    %v3369 = vunpack.c.h.b16 %v1303
    %v3370 = vunpack.c.l.b16 %v1304
    %v3371 = vunpack.c.h.b16 %v1304
    %v3372 = vunpack.c.l.b16 %v1305
    %v3373 = vunpack.c.h.b16 %v1305
    %v3374 = vunpack.c.l.b16 %v1306
    %v3375 = vunpack.c.h.b16 %v1306
    %v3376 = vunpack.c.l.b16 %v1307
    %v3377 = vunpack.c.h.b16 %v1307
    %v3378 = vunpack.c.l.b16 %v1308
    %v3379 = vunpack.c.h.b16 %v1308
    %v3380 = vunpack.c.l.b16 %v1309
    %v3381 = vunpack.c.h.b16 %v1309
    %v3382 = vunpack.c.l.b16 %v1310
    %v3383 = vunpack.c.h.b16 %v1310
    %v3384 = vunpack.c.l.b16 %v1311
    %v3385 = vunpack.c.h.b16 %v1311
    %v3386 = vunpack.c.l.b16 %v1312
    %v3387 = vunpack.c.h.b16 %v1312
    %v3388 = vunpack.c.l.b16 %v1313
    %v3389 = vunpack.c.h.b16 %v1313
    %v3390 = vunpack.c.l.b16 %v1314
    %v3391 = vunpack.c.h.b16 %v1314
    %v3392 = vunpack.c.l.b16 %v1315
    %v3393 = vunpack.c.h.b16 %v1315
    %v3394 = vunpack.c.l.b16 %v1316
    %v3395 = vunpack.c.h.b16 %v1316
    %v3396 = vunpack.c.l.b16 %v1317
    %v3397 = vunpack.c.h.b16 %v1317
    %v3398 = vunpack.c.l.b16 %v1318
    %v3399 = vunpack.c.h.b16 %v1318
    %v3400 = vunpack.c.l.b16 %v1319
    %v3401 = vunpack.c.h.b16 %v1319
    %v3402 = vunpack.c.l.b16 %v1320
    %v3403 = vunpack.c.h.b16 %v1320
    %v3404 = vunpack.c.l.b16 %v1321
    %v3405 = vunpack.c.h.b16 %v1321
    %v3406 = vunpack.c.l.b16 %v1322
    %v3407 = vunpack.c.h.b16 %v1322
    %v3408 = vunpack.c.l.b16 %v1323
    %v3409 = vunpack.c.h.b16 %v1323
    %v3410 = vunpack.c.l.b16 %v1324
    %v3411 = vunpack.c.h.b16 %v1324
    %v3412 = vunpack.c.l.b16 %v1325
    %v3413 = vunpack.c.h.b16 %v1325
    %v3414 = vunpack.c.l.b16 %v1326
    %v3415 = vunpack.c.h.b16 %v1326
    %v3416 = vunpack.c.l.b16 %v1327
    %v3417 = vunpack.c.h.b16 %v1327
    %v3418 = vunpack.c.l.b16 %v1328
    %v3419 = vunpack.c.h.b16 %v1328
    %v3420 = vunpack.c.l.b16 %v1329
    %v3421 = vunpack.c.h.b16 %v1329
    %v3422 = vunpack.c.l.b16 %v1330
    %v3423 = vunpack.c.h.b16 %v1330
    %v3424 = vunpack.c.l.b16 %v1331
    %v3425 = vunpack.c.h.b16 %v1331
    %v3426 = vunpack.c.l.b16 %v1332
    %v3427 = vunpack.c.h.b16 %v1332
    %v3428 = vunpack.c.l.b16 %v1333
    %v3429 = vunpack.c.h.b16 %v1333
    %v3430 = vunpack.c.l.b16 %v1334
    %v3431 = vunpack.c.h.b16 %v1334
    %v3432 = vunpack.c.l.b16 %v1335
    %v3433 = vunpack.c.h.b16 %v1335
    %v3434 = vunpack.c.l.b16 %v1336
    %v3435 = vunpack.c.h.b16 %v1336
    %v3436 = vunpack.c.l.b16 %v1337
    %v3437 = vunpack.c.h.b16 %v1337
    %v3438 = vunpack.c.l.b16 %v1338
    %v3439 = vunpack.c.h.b16 %v1338
    %v3440 = vunpack.c.l.b16 %v1339
    %v3441 = vunpack.c.h.b16 %v1339
    %v3442 = vunpack.c.l.b16 %v1340
    %v3443 = vunpack.c.h.b16 %v1340
    %v3444 = vunpack.c.l.b16 %v1341
    %v3445 = vunpack.c.h.b16 %v1341
    %v3446 = vunpack.c.l.b16 %v1342
    %v3447 = vunpack.c.h.b16 %v1342
    %v3448 = vunpack.c.l.b16 %v1343
    %v3449 = vunpack.c.h.b16 %v1343
    %v3450 = vunpack.c.l.b16 %v1344
    %v3451 = vunpack.c.h.b16 %v1344
    %v3452 = vunpack.c.l.b16 %v1345
    %v3453 = vunpack.c.h.b16 %v1345
    %v3454 = vunpack.c.l.b16 %v1346
    %v3455 = vunpack.c.h.b16 %v1346
    %v3456 = vunpack.c.l.b16 %v1347
    %v3457 = vunpack.c.h.b16 %v1347
    %v3458 = vunpack.c.l.b16 %v1348
    %v3459 = vunpack.c.h.b16 %v1348
    %v3460 = vunpack.c.l.b16 %v1349
    %v3461 = vunpack.c.h.b16 %v1349
    %v3462 = vunpack.c.l.b16 %v1350
    %v3463 = vunpack.c.h.b16 %v1350
    %v3464 = vunpack.c.l.b16 %v1351
    %v3465 = vunpack.c.h.b16 %v1351
    %v3466 = vunpack.c.l.b16 %v1352
    %v3467 = vunpack.c.h.b16 %v1352
    %v3468 = vunpack.c.l.b16 %v1353
    %v3469 = vunpack.c.h.b16 %v1353
    %v3470 = vunpack.c.l.b16 %v1354
    %v3471 = vunpack.c.h.b16 %v1354
    %v3472 = vunpack.c.l.b16 %v1355
    %v3473 = vunpack.c.h.b16 %v1355
    %v3474 = vunpack.c.l.b16 %v1356
    %v3475 = vunpack.c.h.b16 %v1356
    %v3476 = vunpack.c.l.b16 %v1357
    %v3477 = vunpack.c.h.b16 %v1357
    %v3478 = vunpack.c.l.b16 %v1358
    %v3479 = vunpack.c.h.b16 %v1358
    %v3480 = vunpack.c.l.b16 %v1359
    %v3481 = vunpack.c.h.b16 %v1359
    %v3482 = vunpack.c.l.b16 %v1360
    %v3483 = vunpack.c.h.b16 %v1360
    %v3484 = vunpack.c.l.b16 %v1361
    %v3485 = vunpack.c.h.b16 %v1361
    %v3486 = vunpack.c.l.b16 %v1362
    %v3487 = vunpack.c.h.b16 %v1362
    %v3488 = vunpack.c.l.b16 %v1363
    %v3489 = vunpack.c.h.b16 %v1363
    %v3490 = vunpack.c.l.b16 %v1364
    %v3491 = vunpack.c.h.b16 %v1364
    %v3492 = vunpack.c.l.b16 %v1365
    %v3493 = vunpack.c.h.b16 %v1365
    %v3494 = vunpack.c.l.b16 %v1366
    %v3495 = vunpack.c.h.b16 %v1366
    %v3496 = vunpack.c.l.b16 %v1367
    %v3497 = vunpack.c.h.b16 %v1367
    %v3498 = vunpack.c.l.b16 %v1368
    %v3499 = vunpack.c.h.b16 %v1368
    %v3500 = vunpack.c.l.b16 %v1369
    %v3501 = vunpack.c.h.b16 %v1369
    %v3502 = vunpack.c.l.b16 %v1370
    %v3503 = vunpack.c.h.b16 %v1370
    %v3504 = vunpack.c.l.b16 %v1371
    %v3505 = vunpack.c.h.b16 %v1371
    %v3506 = vunpack.c.l.b16 %v1372
    %v3507 = vunpack.c.h.b16 %v1372
    %v3508 = vunpack.c.l.b16 %v1373
    %v3509 = vunpack.c.h.b16 %v1373
    %v3510 = vunpack.c.l.b16 %v1374
    %v3511 = vunpack.c.h.b16 %v1374
    %v3512 = vunpack.c.l.b16 %v1375
    %v3513 = vunpack.c.h.b16 %v1375
    %v3514 = vunpack.c.l.b16 %v1376
    %v3515 = vunpack.c.h.b16 %v1376
    %v3516 = vunpack.c.l.b16 %v1377
    %v3517 = vunpack.c.h.b16 %v1377
    %v3518 = vunpack.c.l.b16 %v1378
    %v3519 = vunpack.c.h.b16 %v1378
    %v3520 = vunpack.c.l.b16 %v1379
    %v3521 = vunpack.c.h.b16 %v1379
    %v3522 = vunpack.c.l.b16 %v1380
    %v3523 = vunpack.c.h.b16 %v1380
    %v3524 = vunpack.c.l.b16 %v1381
    %v3525 = vunpack.c.h.b16 %v1381
    %v3526 = vunpack.c.l.b16 %v1382
    %v3527 = vunpack.c.h.b16 %v1382
    %v3528 = vunpack.c.l.b16 %v1383
    %v3529 = vunpack.c.h.b16 %v1383
    %v3530 = vunpack.c.l.b16 %v1384
    %v3531 = vunpack.c.h.b16 %v1384
    %v3532 = vunpack.c.l.b16 %v1385
    %v3533 = vunpack.c.h.b16 %v1385
    %v3534 = vunpack.c.l.b16 %v1386
    %v3535 = vunpack.c.h.b16 %v1386
    %v3536 = vunpack.c.l.b16 %v1387
    %v3537 = vunpack.c.h.b16 %v1387
    %v3538 = vunpack.c.l.b16 %v1388
    %v3539 = vunpack.c.h.b16 %v1388
    %v3540 = vunpack.c.l.b16 %v1389
    %v3541 = vunpack.c.h.b16 %v1389
    %v3542 = vunpack.c.l.b16 %v1390
    %v3543 = vunpack.c.h.b16 %v1390
    %v3544 = vunpack.c.l.b16 %v1391
    %v3545 = vunpack.c.h.b16 %v1391
    %v3546 = vunpack.c.l.b16 %v1392
    %v3547 = vunpack.c.h.b16 %v1392
    %v3548 = vunpack.c.l.b16 %v1393
    %v3549 = vunpack.c.h.b16 %v1393
    %v3550 = vunpack.c.l.b16 %v1394
    %v3551 = vunpack.c.h.b16 %v1394
    %v3552 = vunpack.c.l.b16 %v1395
    %v3553 = vunpack.c.h.b16 %v1395
    %v3554 = vunpack.c.l.b16 %v1396
    %v3555 = vunpack.c.h.b16 %v1396
    %v3556 = vunpack.c.l.b16 %v1397
    %v3557 = vunpack.c.h.b16 %v1397
    %v3558 = vunpack.c.l.b16 %v1398
    %v3559 = vunpack.c.h.b16 %v1398
    %v3560 = vunpack.c.l.b16 %v1399
    %v3561 = vunpack.c.h.b16 %v1399
    %v3562 = vunpack.c.l.b16 %v1400
    %v3563 = vunpack.c.h.b16 %v1400
    %v3564 = vunpack.c.l.b16 %v1401
    %v3565 = vunpack.c.h.b16 %v1401
    %v3566 = vunpack.c.l.b16 %v1402
    %v3567 = vunpack.c.h.b16 %v1402
    %v3568 = vunpack.c.l.b16 %v1403
    %v3569 = vunpack.c.h.b16 %v1403
    %v3570 = vunpack.c.l.b16 %v1404
    %v3571 = vunpack.c.h.b16 %v1404
    %v3572 = vunpack.c.l.b16 %v1405
    %v3573 = vunpack.c.h.b16 %v1405
    %v3574 = vunpack.c.l.b16 %v1406
    %v3575 = vunpack.c.h.b16 %v1406
    %v3576 = vunpack.c.l.b16 %v1407
    %v3577 = vunpack.c.h.b16 %v1407
    %v3578 = vunpack.c.l.b16 %v1408
    %v3579 = vunpack.c.h.b16 %v1408
    %v3580 = vunpack.c.l.b16 %v1409
    %v3581 = vunpack.c.h.b16 %v1409
    %v3582 = vunpack.c.l.b16 %v1410
    %v3583 = vunpack.c.h.b16 %v1410
    %v3584 = vunpack.c.l.b16 %v1411
    %v3585 = vunpack.c.h.b16 %v1411
    %v3586 = vunpack.c.l.b16 %v1412
    %v3587 = vunpack.c.h.b16 %v1412
    %v3588 = vunpack.c.l.b16 %v1413
    %v3589 = vunpack.c.h.b16 %v1413
    %v3590 = vunpack.c.l.b16 %v1414
    %v3591 = vunpack.c.h.b16 %v1414
    %v3592 = vunpack.c.l.b16 %v1415
    %v3593 = vunpack.c.h.b16 %v1415
    %v3594 = vunpack.c.l.b16 %v1416
    %v3595 = vunpack.c.h.b16 %v1416
    %v3596 = vunpack.c.l.b16 %v1417
    %v3597 = vunpack.c.h.b16 %v1417
    %v3598 = vunpack.c.l.b16 %v1418
    %v3599 = vunpack.c.h.b16 %v1418
    %v3600 = vunpack.c.l.b16 %v1419
    %v3601 = vunpack.c.h.b16 %v1419
    %v3602 = vunpack.c.l.b16 %v1420
    %v3603 = vunpack.c.h.b16 %v1420
    %v3604 = vunpack.c.l.b16 %v1421
    %v3605 = vunpack.c.h.b16 %v1421
    %v3606 = vunpack.c.l.b16 %v1422
    %v3607 = vunpack.c.h.b16 %v1422
    %v3608 = vunpack.c.l.b16 %v1423
    %v3609 = vunpack.c.h.b16 %v1423
    %v3610 = vunpack.c.l.b16 %v1424
    %v3611 = vunpack.c.h.b16 %v1424
    %v3612 = vunpack.c.l.b16 %v1425
    %v3613 = vunpack.c.h.b16 %v1425
    %v3614 = vunpack.c.l.b16 %v1426
    %v3615 = vunpack.c.h.b16 %v1426
    %v3616 = vunpack.c.l.b16 %v1427
    %v3617 = vunpack.c.h.b16 %v1427
    %v3618 = vunpack.c.l.b16 %v1428
    %v3619 = vunpack.c.h.b16 %v1428
    %v3620 = vunpack.c.l.b16 %v1429
    %v3621 = vunpack.c.h.b16 %v1429
    %v3622 = vunpack.c.l.b16 %v1430
    %v3623 = vunpack.c.h.b16 %v1430
    %v3624 = vunpack.c.l.b16 %v1431
    %v3625 = vunpack.c.h.b16 %v1431
    %v3626 = vunpack.c.l.b16 %v1432
    %v3627 = vunpack.c.h.b16 %v1432
    %v3628 = vunpack.c.l.b16 %v1433
    %v3629 = vunpack.c.h.b16 %v1433
    %v3630 = vunpack.c.l.b16 %v1434
    %v3631 = vunpack.c.h.b16 %v1434
    %v3632 = vunpack.c.l.b16 %v1435
    %v3633 = vunpack.c.h.b16 %v1435
    %v3634 = vunpack.c.l.b16 %v1436
    %v3635 = vunpack.c.h.b16 %v1436
    %v3636 = vunpack.c.l.b16 %v1437
    %v3637 = vunpack.c.h.b16 %v1437
    %v3638 = vunpack.c.l.b16 %v1438
    %v3639 = vunpack.c.h.b16 %v1438
    %v3640 = vunpack.c.l.b16 %v1439
    %v3641 = vunpack.c.h.b16 %v1439
    %v3642 = vunpack.c.l.b16 %v1440
    %v3643 = vunpack.c.h.b16 %v1440
    %v3644 = vunpack.c.l.b16 %v1441
    %v3645 = vunpack.c.h.b16 %v1441
    %v3646 = vunpack.c.l.b16 %v1442
    %v3647 = vunpack.c.h.b16 %v1442
    %v3648 = vunpack.c.l.b16 %v1443
    %v3649 = vunpack.c.h.b16 %v1443
    %v3650 = vunpack.c.l.b16 %v1444
    %v3651 = vunpack.c.h.b16 %v1444
    %v3652 = vunpack.c.l.b16 %v1445
    %v3653 = vunpack.c.h.b16 %v1445
    %v3654 = vunpack.c.l.b16 %v1446
    %v3655 = vunpack.c.h.b16 %v1446
    %v3656 = vunpack.c.l.b16 %v1447
    %v3657 = vunpack.c.h.b16 %v1447
    %v3658 = vunpack.c.l.b16 %v1448
    %v3659 = vunpack.c.h.b16 %v1448
    %v3660 = vunpack.c.l.b16 %v1449
    %v3661 = vunpack.c.h.b16 %v1449
    %v3662 = vunpack.c.l.b16 %v1450
    %v3663 = vunpack.c.h.b16 %v1450
    %v3664 = vunpack.c.l.b16 %v1451
    %v3665 = vunpack.c.h.b16 %v1451
    %v3666 = vunpack.c.l.b16 %v1452
    %v3667 = vunpack.c.h.b16 %v1452
    %v3668 = vunpack.c.l.b16 %v1453
    %v3669 = vunpack.c.h.b16 %v1453
    %v3670 = vunpack.c.l.b16 %v1454
    %v3671 = vunpack.c.h.b16 %v1454
    %v3672 = vunpack.c.l.b16 %v1455
    %v3673 = vunpack.c.h.b16 %v1455
    %v3674 = vunpack.c.l.b16 %v1456
    %v3675 = vunpack.c.h.b16 %v1456
    %v3676 = vunpack.c.l.b16 %v1457
    %v3677 = vunpack.c.h.b16 %v1457
    %v3678 = vunpack.c.l.b16 %v1458
    %v3679 = vunpack.c.h.b16 %v1458
    %v3680 = vunpack.c.l.b16 %v1459
    %v3681 = vunpack.c.h.b16 %v1459
    %v3682 = vunpack.c.l.b16 %v1460
    %v3683 = vunpack.c.h.b16 %v1460
    %v3684 = vunpack.c.l.b16 %v1461
    %v3685 = vunpack.c.h.b16 %v1461
    %v3686 = vunpack.c.l.b16 %v1462
    %v3687 = vunpack.c.h.b16 %v1462
    %v3688 = vunpack.c.l.b16 %v1463
    %v3689 = vunpack.c.h.b16 %v1463
    %v3690 = vunpack.c.l.b16 %v1464
    %v3691 = vunpack.c.h.b16 %v1464
    %v3692 = vunpack.c.l.b16 %v1465
    %v3693 = vunpack.c.h.b16 %v1465
    %v3694 = vunpack.c.l.b16 %v1466
    %v3695 = vunpack.c.h.b16 %v1466
    %v3696 = vunpack.c.l.b16 %v1467
    %v3697 = vunpack.c.h.b16 %v1467
    %v3698 = vunpack.c.l.b16 %v1468
    %v3699 = vunpack.c.h.b16 %v1468
    %v3700 = vunpack.c.l.b16 %v1469
    %v3701 = vunpack.c.h.b16 %v1469
    %v3702 = vunpack.c.l.b16 %v1470
    %v3703 = vunpack.c.h.b16 %v1470
    %v3704 = vunpack.c.l.b16 %v1471
    %v3705 = vunpack.c.h.b16 %v1471
    %v3706 = vunpack.c.l.b16 %v1472
    %v3707 = vunpack.c.h.b16 %v1472
    %v3708 = vunpack.c.l.b16 %v1473
    %v3709 = vunpack.c.h.b16 %v1473
    %v3710 = vunpack.c.l.b16 %v1474
    %v3711 = vunpack.c.h.b16 %v1474
    %v3712 = vunpack.c.l.b16 %v1475
    %v3713 = vunpack.c.h.b16 %v1475
    %v3714 = vunpack.c.l.b16 %v1476
    %v3715 = vunpack.c.h.b16 %v1476
    %v3716 = vunpack.c.l.b16 %v1477
    %v3717 = vunpack.c.h.b16 %v1477
    %v3718 = vunpack.c.l.b16 %v1478
    %v3719 = vunpack.c.h.b16 %v1478
    %v3720 = vunpack.c.l.b16 %v1479
    %v3721 = vunpack.c.h.b16 %v1479
    %v3722 = vunpack.c.l.b16 %v1480
    %v3723 = vunpack.c.h.b16 %v1480
    %v3724 = vunpack.c.l.b16 %v1481
    %v3725 = vunpack.c.h.b16 %v1481
    %v3726 = vunpack.c.l.b16 %v1482
    %v3727 = vunpack.c.h.b16 %v1482
    %v3728 = vunpack.c.l.b16 %v1483
    %v3729 = vunpack.c.h.b16 %v1483
    %v3730 = vunpack.c.l.b16 %v1484
    %v3731 = vunpack.c.h.b16 %v1484
    %v3732 = vunpack.c.l.b16 %v1485
    %v3733 = vunpack.c.h.b16 %v1485
    %v3734 = vunpack.c.l.b16 %v1486
    %v3735 = vunpack.c.h.b16 %v1486
    %v3736 = vunpack.c.l.b16 %v1487
    %v3737 = vunpack.c.h.b16 %v1487
    %v3738 = vunpack.c.l.b16 %v1488
    %v3739 = vunpack.c.h.b16 %v1488
    %v3740 = vunpack.c.l.b16 %v1489
    %v3741 = vunpack.c.h.b16 %v1489
    %v3742 = vunpack.c.l.b16 %v1490
    %v3743 = vunpack.c.h.b16 %v1490
    %v3744 = vunpack.c.l.b16 %v1491
    %v3745 = vunpack.c.h.b16 %v1491
    %v3746 = vunpack.c.l.b16 %v1492
    %v3747 = vunpack.c.h.b16 %v1492
    %v3748 = vunpack.c.l.b16 %v1493
    %v3749 = vunpack.c.h.b16 %v1493
    %v3750 = vunpack.c.l.b16 %v1494
    %v3751 = vunpack.c.h.b16 %v1494
    %v3752 = vunpack.c.l.b16 %v1495
    %v3753 = vunpack.c.h.b16 %v1495
    %v3754 = vunpack.c.l.b16 %v1496
    %v3755 = vunpack.c.h.b16 %v1496
    %v3756 = vunpack.c.l.b16 %v1497
    %v3757 = vunpack.c.h.b16 %v1497
    %v3758 = vunpack.c.l.b16 %v1498
    %v3759 = vunpack.c.h.b16 %v1498
    %v3760 = vunpack.c.l.b16 %v1499
    %v3761 = vunpack.c.h.b16 %v1499
    %v3762 = vunpack.c.l.b16 %v1500
    %v3763 = vunpack.c.h.b16 %v1500
    %v3764 = vunpack.c.l.b16 %v1501
    %v3765 = vunpack.c.h.b16 %v1501
    %v3766 = vunpack.c.l.b16 %v1502
    %v3767 = vunpack.c.h.b16 %v1502
    %v3768 = vunpack.c.l.b16 %v1503
    %v3769 = vunpack.c.h.b16 %v1503
    %v3770 = vunpack.c.l.b16 %v1504
    %v3771 = vunpack.c.h.b16 %v1504
    %v3772 = vunpack.c.l.b16 %v1505
    %v3773 = vunpack.c.h.b16 %v1505
    %v3774 = vunpack.c.l.b16 %v1506
    %v3775 = vunpack.c.h.b16 %v1506
    %v3776 = vunpack.c.l.b16 %v1507
    %v3777 = vunpack.c.h.b16 %v1507
    %v3778 = vunpack.c.l.b16 %v1508
    %v3779 = vunpack.c.h.b16 %v1508
    %v3780 = vunpack.c.l.b16 %v1509
    %v3781 = vunpack.c.h.b16 %v1509
    %v3782 = vunpack.c.l.b16 %v1510
    %v3783 = vunpack.c.h.b16 %v1510
    %v3784 = vunpack.c.l.b16 %v1511
    %v3785 = vunpack.c.h.b16 %v1511
    %v3786 = vunpack.c.l.b16 %v1512
    %v3787 = vunpack.c.h.b16 %v1512
    %v3788 = vunpack.c.l.b16 %v1513
    %v3789 = vunpack.c.h.b16 %v1513
    %v3790 = vunpack.c.l.b16 %v1514
    %v3791 = vunpack.c.h.b16 %v1514
    %v3792 = vunpack.c.l.b16 %v1515
    %v3793 = vunpack.c.h.b16 %v1515
    %v3794 = vunpack.c.l.b16 %v1516
    %v3795 = vunpack.c.h.b16 %v1516
    %v3796 = vunpack.c.l.b16 %v1517
    %v3797 = vunpack.c.h.b16 %v1517
    %v3798 = vunpack.c.l.b16 %v1518
    %v3799 = vunpack.c.h.b16 %v1518
    %v3800 = vunpack.c.l.b16 %v1519
    %v3801 = vunpack.c.h.b16 %v1519
    %v3802 = vunpack.c.l.b16 %v1520
    %v3803 = vunpack.c.h.b16 %v1520
    %v3804 = vunpack.c.l.b16 %v1521
    %v3805 = vunpack.c.h.b16 %v1521
    %v3806 = vunpack.c.l.b16 %v1522
    %v3807 = vunpack.c.h.b16 %v1522
    %v3808 = vunpack.c.l.b16 %v1523
    %v3809 = vunpack.c.h.b16 %v1523
    %v3810 = vunpack.c.l.b16 %v1524
    %v3811 = vunpack.c.h.b16 %v1524
    %v3812 = vunpack.c.l.b16 %v1525
    %v3813 = vunpack.c.h.b16 %v1525
    %v3814 = vunpack.c.l.b16 %v1526
    %v3815 = vunpack.c.h.b16 %v1526
    %v3816 = vunpack.c.l.b16 %v1527
    %v3817 = vunpack.c.h.b16 %v1527
    %v3818 = vunpack.c.l.b16 %v1528
    %v3819 = vunpack.c.h.b16 %v1528
    %v3820 = vunpack.c.l.b16 %v1529
    %v3821 = vunpack.c.h.b16 %v1529
    %v3822 = vunpack.c.l.b16 %v1530
    %v3823 = vunpack.c.h.b16 %v1530
    %v3824 = vunpack.c.l.b16 %v1531
    %v3825 = vunpack.c.h.b16 %v1531
    %v3826 = vunpack.c.l.b16 %v1532
    %v3827 = vunpack.c.h.b16 %v1532
    %v3828 = vunpack.c.l.b16 %v1533
    %v3829 = vunpack.c.h.b16 %v1533
    %v3830 = vunpack.c.l.b16 %v1534
    %v3831 = vunpack.c.h.b16 %v1534
    %v3832 = vunpack.c.l.b16 %v1535
    %v3833 = vunpack.c.h.b16 %v1535
    %v3834 = vunpack.c.l.b16 %v1536
    %v3835 = vunpack.c.h.b16 %v1536
    %v3836 = vunpack.c.l.b16 %v1537
    %v3837 = vunpack.c.h.b16 %v1537
    %v3838 = vunpack.c.l.b16 %v1538
    %v3839 = vunpack.c.h.b16 %v1538
    %v3840 = vunpack.c.l.b16 %v1539
    %v3841 = vunpack.c.h.b16 %v1539
    %v3842 = vunpack.c.l.b16 %v1540
    %v3843 = vunpack.c.h.b16 %v1540
    %v3844 = vunpack.c.l.b16 %v1541
    %v3845 = vunpack.c.h.b16 %v1541
    %v3846 = vunpack.c.l.b16 %v1542
    %v3847 = vunpack.c.h.b16 %v1542
    %v3848 = vunpack.c.l.b16 %v1543
    %v3849 = vunpack.c.h.b16 %v1543
    %v3850 = vunpack.c.l.b16 %v1544
    %v3851 = vunpack.c.h.b16 %v1544
    %v3852 = vunpack.c.l.b16 %v1545
    %v3853 = vunpack.c.h.b16 %v1545
    %v3854 = vunpack.c.l.b16 %v1546
    %v3855 = vunpack.c.h.b16 %v1546
    %v3856 = vunpack.c.l.b16 %v1547
    %v3857 = vunpack.c.h.b16 %v1547
    %v3858 = vunpack.c.l.b16 %v1548
    %v3859 = vunpack.c.h.b16 %v1548
    %v3860 = vunpack.c.l.b16 %v1549
    %v3861 = vunpack.c.h.b16 %v1549
    %v3862 = vunpack.c.l.b16 %v1550
    %v3863 = vunpack.c.h.b16 %v1550
    %v3864 = vunpack.c.l.b16 %v1551
    %v3865 = vunpack.c.h.b16 %v1551
    %v3866 = vunpack.c.l.b16 %v1552
    %v3867 = vunpack.c.h.b16 %v1552
    %v3868 = vunpack.c.l.b16 %v1553
    %v3869 = vunpack.c.h.b16 %v1553
    %v3870 = vunpack.c.l.b16 %v1554
    %v3871 = vunpack.c.h.b16 %v1554
    %v3872 = vunpack.c.l.b16 %v1555
    %v3873 = vunpack.c.h.b16 %v1555
    %v3874 = vunpack.c.l.b16 %v1556
    %v3875 = vunpack.c.h.b16 %v1556
    %v3876 = vunpack.c.l.b16 %v1557
    %v3877 = vunpack.c.h.b16 %v1557
    %v3878 = vunpack.c.l.b16 %v1558
    %v3879 = vunpack.c.h.b16 %v1558
    %v3880 = vunpack.c.l.b16 %v1559
    %v3881 = vunpack.c.h.b16 %v1559
    %v3882 = vunpack.c.l.b16 %v1560
    %v3883 = vunpack.c.h.b16 %v1560
    %v3884 = vunpack.c.l.b16 %v1561
    %v3885 = vunpack.c.h.b16 %v1561
    %v3886 = vunpack.c.l.b16 %v1562
    %v3887 = vunpack.c.h.b16 %v1562
    %v3888 = vunpack.c.l.b16 %v1563
    %v3889 = vunpack.c.h.b16 %v1563
    %v3890 = vunpack.c.l.b16 %v1564
    %v3891 = vunpack.c.h.b16 %v1564
    %v3892 = vunpack.c.l.b16 %v1565
    %v3893 = vunpack.c.h.b16 %v1565
    %v3894 = vunpack.c.l.b16 %v1566
    %v3895 = vunpack.c.h.b16 %v1566
    %v3896 = vunpack.c.l.b16 %v1567
    %v3897 = vunpack.c.h.b16 %v1567
    %v3898 = vunpack.c.l.b16 %v1568
    %v3899 = vunpack.c.h.b16 %v1568
    %v3900 = vunpack.c.l.b16 %v1569
    %v3901 = vunpack.c.h.b16 %v1569
    %v3902 = vunpack.c.l.b16 %v1570
    %v3903 = vunpack.c.h.b16 %v1570
    %v3904 = vunpack.c.l.b16 %v1571
    %v3905 = vunpack.c.h.b16 %v1571
    %v3906 = vunpack.c.l.b16 %v1572
    %v3907 = vunpack.c.h.b16 %v1572
    %v3908 = vunpack.c.l.b16 %v1573
    %v3909 = vunpack.c.h.b16 %v1573
    %v3910 = vunpack.c.l.b16 %v1574
    %v3911 = vunpack.c.h.b16 %v1574
    %v3912 = vunpack.c.l.b16 %v1575
    %v3913 = vunpack.c.h.b16 %v1575
    %v3914 = vunpack.c.l.b16 %v1576
    %v3915 = vunpack.c.h.b16 %v1576
    %v3916 = vunpack.c.l.b16 %v1577
    %v3917 = vunpack.c.h.b16 %v1577
    %v3918 = vunpack.c.l.b16 %v1578
    %v3919 = vunpack.c.h.b16 %v1578
    %v3920 = vunpack.c.l.b16 %v1579
    %v3921 = vunpack.c.h.b16 %v1579
    %v3922 = vunpack.c.l.b16 %v1580
    %v3923 = vunpack.c.h.b16 %v1580
    %v3924 = vunpack.c.l.b16 %v1581
    %v3925 = vunpack.c.h.b16 %v1581
    %v3926 = vunpack.c.l.b16 %v1582
    %v3927 = vunpack.c.h.b16 %v1582
    %v3928 = vunpack.c.l.b16 %v1583
    %v3929 = vunpack.c.h.b16 %v1583
    %v3930 = vunpack.c.l.b16 %v1584
    %v3931 = vunpack.c.h.b16 %v1584
    %v3932 = vunpack.c.l.b16 %v1585
    %v3933 = vunpack.c.h.b16 %v1585
    %v3934 = vunpack.c.l.b16 %v1586
    %v3935 = vunpack.c.h.b16 %v1586
    %v3936 = vunpack.c.l.b16 %v1587
    %v3937 = vunpack.c.h.b16 %v1587
    %v3938 = vunpack.c.l.b16 %v1588
    %v3939 = vunpack.c.h.b16 %v1588
    %v3940 = vunpack.c.l.b16 %v1589
    %v3941 = vunpack.c.h.b16 %v1589
    %v3942 = vunpack.c.l.b16 %v1590
    %v3943 = vunpack.c.h.b16 %v1590
    %v3944 = vunpack.c.l.b16 %v1591
    %v3945 = vunpack.c.h.b16 %v1591
    %v3946 = vunpack.c.l.b16 %v1592
    %v3947 = vunpack.c.h.b16 %v1592
    %v3948 = vunpack.c.l.b16 %v1593
    %v3949 = vunpack.c.h.b16 %v1593
    %v3950 = vunpack.c.l.b16 %v1594
    %v3951 = vunpack.c.h.b16 %v1594
    %v3952 = vunpack.c.l.b16 %v1595
    %v3953 = vunpack.c.h.b16 %v1595
    %v3954 = vunpack.c.l.b16 %v1596
    %v3955 = vunpack.c.h.b16 %v1596
    %v3956 = vunpack.c.l.b16 %v1597
    %v3957 = vunpack.c.h.b16 %v1597
    %v3958 = vunpack.c.l.b16 %v1598
    %v3959 = vunpack.c.h.b16 %v1598
    %v3960 = vunpack.c.l.b16 %v1599
    %v3961 = vunpack.c.h.b16 %v1599
    %v3962 = vunpack.c.l.b16 %v1600
    %v3963 = vunpack.c.h.b16 %v1600
    %v3964 = vunpack.c.l.b16 %v1601
    %v3965 = vunpack.c.h.b16 %v1601
    %v3966 = vunpack.c.l.b16 %v1602
    %v3967 = vunpack.c.h.b16 %v1602
    %v3968 = vunpack.c.l.b16 %v1603
    %v3969 = vunpack.c.h.b16 %v1603
    %v3970 = vunpack.c.l.b16 %v1604
    %v3971 = vunpack.c.h.b16 %v1604
    %v3972 = vunpack.c.l.b16 %v1605
    %v3973 = vunpack.c.h.b16 %v1605
    %v3974 = vunpack.c.l.b16 %v1606
    %v3975 = vunpack.c.h.b16 %v1606
    %v3976 = vunpack.c.l.b16 %v1607
    %v3977 = vunpack.c.h.b16 %v1607
    %v3978 = vunpack.c.l.b16 %v1608
    %v3979 = vunpack.c.h.b16 %v1608
    %v3980 = vunpack.c.l.b16 %v1609
    %v3981 = vunpack.c.h.b16 %v1609
    %v3982 = vunpack.c.l.b16 %v1610
    %v3983 = vunpack.c.h.b16 %v1610
    %v3984 = vunpack.c.l.b16 %v1611
    %v3985 = vunpack.c.h.b16 %v1611
    %v3986 = vunpack.c.l.b16 %v1612
    %v3987 = vunpack.c.h.b16 %v1612
    %v3988 = vunpack.c.l.b16 %v1613
    %v3989 = vunpack.c.h.b16 %v1613
    %v3990 = vunpack.c.l.b16 %v1614
    %v3991 = vunpack.c.h.b16 %v1614
    %v3992 = vunpack.c.l.b16 %v1615
    %v3993 = vunpack.c.h.b16 %v1615
    %v3994 = vunpack.c.l.b16 %v1616
    %v3995 = vunpack.c.h.b16 %v1616
    %v3996 = vunpack.c.l.b16 %v1617
    %v3997 = vunpack.c.h.b16 %v1617
    %v3998 = vunpack.c.l.b16 %v1618
    %v3999 = vunpack.c.h.b16 %v1618
    %v4000 = vunpack.c.l.b16 %v1619
    %v4001 = vunpack.c.h.b16 %v1619
    %v4002 = vunpack.c.l.b16 %v1620
    %v4003 = vunpack.c.h.b16 %v1620
    %v4004 = vunpack.c.l.b16 %v1621
    %v4005 = vunpack.c.h.b16 %v1621
    %v4006 = vunpack.c.l.b16 %v1622
    %v4007 = vunpack.c.h.b16 %v1622
    %v4008 = vunpack.c.l.b16 %v1623
    %v4009 = vunpack.c.h.b16 %v1623
    %v4010 = vunpack.c.l.b16 %v1624
    %v4011 = vunpack.c.h.b16 %v1624
    %v4012 = vunpack.c.l.b16 %v1625
    %v4013 = vunpack.c.h.b16 %v1625
    %v4014 = vunpack.c.l.b16 %v1626
    %v4015 = vunpack.c.h.b16 %v1626
    %v4016 = vunpack.c.l.b16 %v1627
    %v4017 = vunpack.c.h.b16 %v1627
    %v4018 = vunpack.c.l.b16 %v1628
    %v4019 = vunpack.c.h.b16 %v1628
    %v4020 = vunpack.c.l.b16 %v1629
    %v4021 = vunpack.c.h.b16 %v1629
    %v4022 = vunpack.c.l.b16 %v1630
    %v4023 = vunpack.c.h.b16 %v1630
    %v4024 = vunpack.c.l.b16 %v1631
    %v4025 = vunpack.c.h.b16 %v1631
    %v4026 = vunpack.c.l.b16 %v1632
    %v4027 = vunpack.c.h.b16 %v1632
    %v4028 = vunpack.c.l.b16 %v1633
    %v4029 = vunpack.c.h.b16 %v1633
    %v4030 = vunpack.c.l.b16 %v1634
    %v4031 = vunpack.c.h.b16 %v1634
    %v4032 = vunpack.c.l.b16 %v1635
    %v4033 = vunpack.c.h.b16 %v1635
    %v4034 = vunpack.c.l.b16 %v1636
    %v4035 = vunpack.c.h.b16 %v1636
    %v4036 = vunpack.c.l.b16 %v1637
    %v4037 = vunpack.c.h.b16 %v1637
    %v4038 = vunpack.c.l.b16 %v1638
    %v4039 = vunpack.c.h.b16 %v1638
    %v4040 = vunpack.c.l.b16 %v1639
    %v4041 = vunpack.c.h.b16 %v1639
    %v4042 = vunpack.c.l.b16 %v1640
    %v4043 = vunpack.c.h.b16 %v1640
    %v4044 = vunpack.c.l.b16 %v1641
    %v4045 = vunpack.c.h.b16 %v1641
    %v4046 = vunpack.c.l.b16 %v1642
    %v4047 = vunpack.c.h.b16 %v1642
    %v4048 = vunpack.c.l.b16 %v1643
    %v4049 = vunpack.c.h.b16 %v1643
    %v4050 = vunpack.c.l.b16 %v1644
    %v4051 = vunpack.c.h.b16 %v1644
    %v4052 = vunpack.c.l.b16 %v1645
    %v4053 = vunpack.c.h.b16 %v1645
    %v4054 = vunpack.c.l.b16 %v1646
    %v4055 = vunpack.c.h.b16 %v1646
    %v4056 = vunpack.c.l.b16 %v1647
    %v4057 = vunpack.c.h.b16 %v1647
    %v4058 = vunpack.c.l.b16 %v1648
    %v4059 = vunpack.c.h.b16 %v1648
    %v4060 = vunpack.c.l.b16 %v1649
    %v4061 = vunpack.c.h.b16 %v1649
    %v4062 = vunpack.c.l.b16 %v1650
    %v4063 = vunpack.c.h.b16 %v1650
    %v4064 = vunpack.c.l.b16 %v1651
    %v4065 = vunpack.c.h.b16 %v1651
    %v4066 = vunpack.c.l.b16 %v1652
    %v4067 = vunpack.c.h.b16 %v1652
    %v4068 = vunpack.c.l.b16 %v1653
    %v4069 = vunpack.c.h.b16 %v1653
    %v4070 = vunpack.c.l.b16 %v1654
    %v4071 = vunpack.c.h.b16 %v1654
    %v4072 = vunpack.c.l.b16 %v1655
    %v4073 = vunpack.c.h.b16 %v1655
    %v4074 = vunpack.c.l.b16 %v1656
    %v4075 = vunpack.c.h.b16 %v1656
    %v4076 = vunpack.c.l.b16 %v1657
    %v4077 = vunpack.c.h.b16 %v1657
    %v4078 = vunpack.c.l.b16 %v1658
    %v4079 = vunpack.c.h.b16 %v1658
    %v4080 = vunpack.c.l.b16 %v1659
    %v4081 = vunpack.c.h.b16 %v1659
    %v4082 = vunpack.c.l.b16 %v1660
    %v4083 = vunpack.c.h.b16 %v1660
    %v4084 = vunpack.c.l.b16 %v1661
    %v4085 = vunpack.c.h.b16 %v1661
    %v4086 = vunpack.c.l.b16 %v1662
    %v4087 = vunpack.c.h.b16 %v1662
    %v4088 = vunpack.c.l.b16 %v1663
    %v4089 = vunpack.c.h.b16 %v1663
    %v4090 = vunpack.c.l.b16 %v1664
    %v4091 = vunpack.c.h.b16 %v1664
    %v4092 = vunpack.c.l.b16 %v1665
    %v4093 = vunpack.c.h.b16 %v1665
    %v4094 = vunpack.c.l.b16 %v1666
    %v4095 = vunpack.c.h.b16 %v1666
    %v4096 = vunpack.c.l.b16 %v1667
    %v4097 = vunpack.c.h.b16 %v1667
    %v4098 = vunpack.c.l.b16 %v1668
    %v4099 = vunpack.c.h.b16 %v1668
    %v4100 = vunpack.c.l.b16 %v1669
    %v4101 = vunpack.c.h.b16 %v1669
    %v4102 = vunpack.c.l.b16 %v1670
    %v4103 = vunpack.c.h.b16 %v1670
    %v4104 = vunpack.c.l.b16 %v1671
    %v4105 = vunpack.c.h.b16 %v1671
    %v4106 = vunpack.c.l.b16 %v1672
    %v4107 = vunpack.c.h.b16 %v1672
    %v4108 = vunpack.c.l.b16 %v1673
    %v4109 = vunpack.c.h.b16 %v1673
    %v4110 = vunpack.c.l.b16 %v1674
    %v4111 = vunpack.c.h.b16 %v1674
    %v4112 = vunpack.c.l.b16 %v1675
    %v4113 = vunpack.c.h.b16 %v1675
    %v4114 = vunpack.c.l.b16 %v1676
    %v4115 = vunpack.c.h.b16 %v1676
    %v4116 = vunpack.c.l.b16 %v1677
    %v4117 = vunpack.c.h.b16 %v1677
    %v4118 = vunpack.c.l.b16 %v1678
    %v4119 = vunpack.c.h.b16 %v1678
    %v4120 = vunpack.c.l.b16 %v1679
    %v4121 = vunpack.c.h.b16 %v1679
    %v4122 = vunpack.c.l.b16 %v1680
    %v4123 = vunpack.c.h.b16 %v1680
    %v4124 = vunpack.c.l.b16 %v1681
    %v4125 = vunpack.c.h.b16 %v1681
    %v4126 = vunpack.c.l.b16 %v1682
    %v4127 = vunpack.c.h.b16 %v1682
    %v4128 = vunpack.c.l.b16 %v1683
    %v4129 = vunpack.c.h.b16 %v1683
    %v4130 = vunpack.c.l.b16 %v1684
    %v4131 = vunpack.c.h.b16 %v1684
    %v4132 = vunpack.c.l.b16 %v1685
    %v4133 = vunpack.c.h.b16 %v1685
    %v4134 = vunpack.c.l.b16 %v1686
    %v4135 = vunpack.c.h.b16 %v1686
    %v4136 = vunpack.c.l.b16 %v1687
    %v4137 = vunpack.c.h.b16 %v1687
    %v4138 = vunpack.c.l.b16 %v1688
    %v4139 = vunpack.c.h.b16 %v1688
    %v4140 = vunpack.c.l.b16 %v1689
    %v4141 = vunpack.c.h.b16 %v1689
    %v4142 = vunpack.c.l.b16 %v1690
    %v4143 = vunpack.c.h.b16 %v1690
    %v4144 = vunpack.c.l.b16 %v1691
    %v4145 = vunpack.c.h.b16 %v1691
    %v4146 = vunpack.c.l.b16 %v1692
    %v4147 = vunpack.c.h.b16 %v1692
    %v4148 = vunpack.c.l.b16 %v1693
    %v4149 = vunpack.c.h.b16 %v1693
    %v4150 = vunpack.c.l.b16 %v1694
    %v4151 = vunpack.c.h.b16 %v1694
    %v4152 = vunpack.c.l.b16 %v1695
    %v4153 = vunpack.c.h.b16 %v1695
    %v4154 = vunpack.c.l.b16 %v1696
    %v4155 = vunpack.c.h.b16 %v1696
    %v4156 = vunpack.c.l.b16 %v1697
    %v4157 = vunpack.c.h.b16 %v1697
    %v4158 = vunpack.c.l.b16 %v1698
    %v4159 = vunpack.c.h.b16 %v1698
    %v4160 = vunpack.c.l.b16 %v1699
    %v4161 = vunpack.c.h.b16 %v1699
    %v4162 = vunpack.c.l.b16 %v1700
    %v4163 = vunpack.c.h.b16 %v1700
    %v4164 = vunpack.c.l.b16 %v1701
    %v4165 = vunpack.c.h.b16 %v1701
    %v4166 = vunpack.c.l.b16 %v1702
    %v4167 = vunpack.c.h.b16 %v1702
    %v4168 = vunpack.c.l.b16 %v1703
    %v4169 = vunpack.c.h.b16 %v1703
    %v4170 = vunpack.c.l.b16 %v1704
    %v4171 = vunpack.c.h.b16 %v1704
    %v4172 = vunpack.c.l.b16 %v1705
    %v4173 = vunpack.c.h.b16 %v1705
    %v4174 = vunpack.c.l.b16 %v1706
    %v4175 = vunpack.c.h.b16 %v1706
    %v4176 = vunpack.c.l.b16 %v1707
    %v4177 = vunpack.c.h.b16 %v1707
    %v4178 = vunpack.c.l.b16 %v1708
    %v4179 = vunpack.c.h.b16 %v1708
    %v4180 = vunpack.c.l.b16 %v1709
    %v4181 = vunpack.c.h.b16 %v1709
    %v4182 = vunpack.c.l.b16 %v1710
    %v4183 = vunpack.c.h.b16 %v1710
    %v4184 = vunpack.c.l.b16 %v1711
    %v4185 = vunpack.c.h.b16 %v1711
    %v4186 = vunpack.c.l.b16 %v1712
    %v4187 = vunpack.c.h.b16 %v1712
    %v4188 = vunpack.c.l.b16 %v1713
    %v4189 = vunpack.c.h.b16 %v1713
    %v4190 = vunpack.c.l.b16 %v1714
    %v4191 = vunpack.c.h.b16 %v1714
    %v4192 = vunpack.c.l.b16 %v1715
    %v4193 = vunpack.c.h.b16 %v1715
    %v4194 = vunpack.c.l.b16 %v1716
    %v4195 = vunpack.c.h.b16 %v1716
    %v4196 = vunpack.c.l.b16 %v1717
    %v4197 = vunpack.c.h.b16 %v1717
    %v4198 = vunpack.c.l.b16 %v1718
    %v4199 = vunpack.c.h.b16 %v1718
    %v4200 = vunpack.c.l.b16 %v1719
    %v4201 = vunpack.c.h.b16 %v1719
    %v4202 = vunpack.c.l.b16 %v1720
    %v4203 = vunpack.c.h.b16 %v1720
    %v4204 = vunpack.c.l.b16 %v1721
    %v4205 = vunpack.c.h.b16 %v1721
    %v4206 = vunpack.c.l.b16 %v1722
    %v4207 = vunpack.c.h.b16 %v1722
    %v4208 = vunpack.c.l.b16 %v1723
    %v4209 = vunpack.c.h.b16 %v1723
    %v4210 = vunpack.c.l.b16 %v1724
    %v4211 = vunpack.c.h.b16 %v1724
    %v4212 = vunpack.c.l.b16 %v1725
    %v4213 = vunpack.c.h.b16 %v1725
    %v4214 = vunpack.c.l.b16 %v1726
    %v4215 = vunpack.c.h.b16 %v1726
    %v4216 = vunpack.c.l.b16 %v1727
    %v4217 = vunpack.c.h.b16 %v1727
    %v4218 = vunpack.c.l.b16 %v1728
    %v4219 = vunpack.c.h.b16 %v1728
    %v4220 = vunpack.c.l.b16 %v1729
    %v4221 = vunpack.c.h.b16 %v1729
    %v4222 = vunpack.c.l.b16 %v1730
    %v4223 = vunpack.c.h.b16 %v1730
    %v4224 = vunpack.c.l.b16 %v1731
    %v4225 = vunpack.c.h.b16 %v1731
    %v4226 = vunpack.c.l.b16 %v1732
    %v4227 = vunpack.c.h.b16 %v1732
    %v4228 = vunpack.c.l.b16 %v1733
    %v4229 = vunpack.c.h.b16 %v1733
    %v4230 = vunpack.c.l.b16 %v1734
    %v4231 = vunpack.c.h.b16 %v1734
    %v4232 = vunpack.c.l.b16 %v1735
    %v4233 = vunpack.c.h.b16 %v1735
    %v4234 = vunpack.c.l.b16 %v1736
    %v4235 = vunpack.c.h.b16 %v1736
    %v4236 = vunpack.c.l.b16 %v1737
    %v4237 = vunpack.c.h.b16 %v1737
    %v4238 = vunpack.c.l.b16 %v1738
    %v4239 = vunpack.c.h.b16 %v1738
    %v4240 = vunpack.c.l.b16 %v1739
    %v4241 = vunpack.c.h.b16 %v1739
    %v4242 = vunpack.c.l.b16 %v1740
    %v4243 = vunpack.c.h.b16 %v1740
    %v4244 = vunpack.c.l.b16 %v1741
    %v4245 = vunpack.c.h.b16 %v1741
    %v4246 = vunpack.c.l.b16 %v1742
    %v4247 = vunpack.c.h.b16 %v1742
    %v4248 = vunpack.c.l.b16 %v1743
    %v4249 = vunpack.c.h.b16 %v1743
    %v4250 = vunpack.c.l.b16 %v1744
    %v4251 = vunpack.c.h.b16 %v1744
    %v4252 = vunpack.c.l.b16 %v1745
    %v4253 = vunpack.c.h.b16 %v1745
    %v4254 = vunpack.c.l.b16 %v1746
    %v4255 = vunpack.c.h.b16 %v1746
    %v4256 = vunpack.c.l.b16 %v1747
    %v4257 = vunpack.c.h.b16 %v1747
    %v4258 = vunpack.c.l.b16 %v1748
    %v4259 = vunpack.c.h.b16 %v1748
    %v4260 = vunpack.c.l.b16 %v1749
    %v4261 = vunpack.c.h.b16 %v1749
    %v4262 = vunpack.c.l.b16 %v1750
    %v4263 = vunpack.c.h.b16 %v1750
    %v4264 = vunpack.c.l.b16 %v1751
    %v4265 = vunpack.c.h.b16 %v1751
    %v4266 = vunpack.c.l.b16 %v1752
    %v4267 = vunpack.c.h.b16 %v1752
    %v4268 = vunpack.c.l.b16 %v1753
    %v4269 = vunpack.c.h.b16 %v1753
    %v4270 = vunpack.c.l.b16 %v1754
    %v4271 = vunpack.c.h.b16 %v1754
    %v4272 = vunpack.c.l.b16 %v1755
    %v4273 = vunpack.c.h.b16 %v1755
    %v4274 = vunpack.c.l.b16 %v1756
    %v4275 = vunpack.c.h.b16 %v1756
    %v4276 = vunpack.c.l.b16 %v1757
    %v4277 = vunpack.c.h.b16 %v1757
    %v4278 = vunpack.c.l.b16 %v1758
    %v4279 = vunpack.c.h.b16 %v1758
    %v4280 = vunpack.c.l.b16 %v1759
    %v4281 = vunpack.c.h.b16 %v1759
    %v4282 = vunpack.c.l.b16 %v1760
    %v4283 = vunpack.c.h.b16 %v1760
    %v4284 = vunpack.c.l.b16 %v1761
    %v4285 = vunpack.c.h.b16 %v1761
    %v4286 = vunpack.c.l.b16 %v1762
    %v4287 = vunpack.c.h.b16 %v1762
    %v4288 = vunpack.c.l.b16 %v1763
    %v4289 = vunpack.c.h.b16 %v1763
    %v4290 = vunpack.c.l.b16 %v1764
    %v4291 = vunpack.c.h.b16 %v1764
    %v4292 = vunpack.c.l.b16 %v1765
    %v4293 = vunpack.c.h.b16 %v1765
    %v4294 = vunpack.c.l.b16 %v1766
    %v4295 = vunpack.c.h.b16 %v1766
    %v4296 = vunpack.c.l.b16 %v1767
    %v4297 = vunpack.c.h.b16 %v1767
    %v4298 = vunpack.c.l.b16 %v1768
    %v4299 = vunpack.c.h.b16 %v1768
    %v4300 = vunpack.c.l.b16 %v1769
    %v4301 = vunpack.c.h.b16 %v1769
    %v4302 = vunpack.c.l.b16 %v1770
    %v4303 = vunpack.c.h.b16 %v1770
    %v4304 = vunpack.c.l.b16 %v1771
    %v4305 = vunpack.c.h.b16 %v1771
    %v4306 = vunpack.c.l.b16 %v1772
    %v4307 = vunpack.c.h.b16 %v1772
    %v4308 = vunpack.c.l.b16 %v1773
    %v4309 = vunpack.c.h.b16 %v1773
    %v4310 = vunpack.c.l.b16 %v1774
    %v4311 = vunpack.c.h.b16 %v1774
    %v4312 = vunpack.c.l.b16 %v1775
    %v4313 = vunpack.c.h.b16 %v1775
    %v4314 = vunpack.c.l.b16 %v1776
    %v4315 = vunpack.c.h.b16 %v1776
    %v4316 = vunpack.c.l.b16 %v1777
    %v4317 = vunpack.c.h.b16 %v1777
    %v4318 = vunpack.c.l.b16 %v1778
    %v4319 = vunpack.c.h.b16 %v1778
    %v4320 = vunpack.c.l.b16 %v1779
    %v4321 = vunpack.c.h.b16 %v1779
    %v4322 = vunpack.c.l.b16 %v1780
    %v4323 = vunpack.c.h.b16 %v1780
    %v4324 = vunpack.c.l.b16 %v1781
    %v4325 = vunpack.c.h.b16 %v1781
    %v4326 = vunpack.c.l.b16 %v1782
    %v4327 = vunpack.c.h.b16 %v1782
    %v4328 = vunpack.c.l.b16 %v1783
    %v4329 = vunpack.c.h.b16 %v1783
    %v4330 = vunpack.c.l.b16 %v1784
    %v4331 = vunpack.c.h.b16 %v1784
    %v4332 = vunpack.c.l.b16 %v1785
    %v4333 = vunpack.c.h.b16 %v1785
    %v4334 = vunpack.c.l.b16 %v1786
    %v4335 = vunpack.c.h.b16 %v1786
    %v4336 = vunpack.c.l.b16 %v1787
    %v4337 = vunpack.c.h.b16 %v1787
    %v4338 = vunpack.c.l.b16 %v1788
    %v4339 = vunpack.c.h.b16 %v1788
    %v4340 = vunpack.c.l.b16 %v1789
    %v4341 = vunpack.c.h.b16 %v1789
    %v4342 = vunpack.c.l.b16 %v1790
    %v4343 = vunpack.c.h.b16 %v1790
    %v4344 = vunpack.c.l.b16 %v1791
    %v4345 = vunpack.c.h.b16 %v1791
    %v4346 = vunpack.c.l.b16 %v1792
    %v4347 = vunpack.c.h.b16 %v1792
    %v4348 = vunpack.c.l.b16 %v1793
    %v4349 = vunpack.c.h.b16 %v1793
    %v4350 = vunpack.c.l.b16 %v1794
    %v4351 = vunpack.c.h.b16 %v1794
    %v4352 = vunpack.c.l.b16 %v1795
    %v4353 = vunpack.c.h.b16 %v1795
    %v4354 = vunpack.c.l.b16 %v1796
    %v4355 = vunpack.c.h.b16 %v1796
    %v4356 = vunpack.c.l.b16 %v1797
    %v4357 = vunpack.c.h.b16 %v1797
    %v4358 = vunpack.c.l.b16 %v1798
    %v4359 = vunpack.c.h.b16 %v1798
    %v4360 = vunpack.c.l.b16 %v1799
    %v4361 = vunpack.c.h.b16 %v1799
    %v4362 = vunpack.c.l.b16 %v1800
    %v4363 = vunpack.c.h.b16 %v1800
    %v4364 = vunpack.c.l.b16 %v1801
    %v4365 = vunpack.c.h.b16 %v1801
    %v4366 = vunpack.c.l.b16 %v1802
    %v4367 = vunpack.c.h.b16 %v1802
    %v4368 = vunpack.c.l.b16 %v1803
    %v4369 = vunpack.c.h.b16 %v1803
    %v4370 = vunpack.c.l.b16 %v1804
    %v4371 = vunpack.c.h.b16 %v1804
    %v4372 = vunpack.c.l.b16 %v1805
    %v4373 = vunpack.c.h.b16 %v1805
    %v4374 = vunpack.c.l.b16 %v1806
    %v4375 = vunpack.c.h.b16 %v1806
    %v4376 = vunpack.c.l.b16 %v1807
    %v4377 = vunpack.c.h.b16 %v1807
    %v4378 = vunpack.c.l.b16 %v1808
    %v4379 = vunpack.c.h.b16 %v1808
    %v4380 = vunpack.c.l.b16 %v1809
    %v4381 = vunpack.c.h.b16 %v1809
    %v4382 = vunpack.c.l.b16 %v1810
    %v4383 = vunpack.c.h.b16 %v1810
    %v4384 = vunpack.c.l.b16 %v1811
    %v4385 = vunpack.c.h.b16 %v1811
    %v4386 = vunpack.c.l.b16 %v1812
    %v4387 = vunpack.c.h.b16 %v1812
    %v4388 = vunpack.c.l.b16 %v1813
    %v4389 = vunpack.c.h.b16 %v1813
    %v4390 = vunpack.c.l.b16 %v1814
    %v4391 = vunpack.c.h.b16 %v1814
    %v4392 = vunpack.c.l.b16 %v1815
    %v4393 = vunpack.c.h.b16 %v1815
    %v4394 = vunpack.c.l.b16 %v1816
    %v4395 = vunpack.c.h.b16 %v1816
    %v4396 = vunpack.c.l.b16 %v1817
    %v4397 = vunpack.c.h.b16 %v1817
    %v4398 = vunpack.c.l.b16 %v1818
    %v4399 = vunpack.c.h.b16 %v1818
    %v4400 = vunpack.c.l.b16 %v1819
    %v4401 = vunpack.c.h.b16 %v1819
    %v4402 = vunpack.c.l.b16 %v1820
    %v4403 = vunpack.c.h.b16 %v1820
    %v4404 = vunpack.c.l.b16 %v1821
    %v4405 = vunpack.c.h.b16 %v1821
    %v4406 = vunpack.c.l.b16 %v1822
    %v4407 = vunpack.c.h.b16 %v1822
    %v4408 = vunpack.c.l.b16 %v1823
    %v4409 = vunpack.c.h.b16 %v1823
    %v4410 = vunpack.c.l.b16 %v1824
    %v4411 = vunpack.c.h.b16 %v1824
    %v4412 = vunpack.c.l.b16 %v1825
    %v4413 = vunpack.c.h.b16 %v1825
    %v4414 = vunpack.c.l.b16 %v1826
    %v4415 = vunpack.c.h.b16 %v1826
    %v4416 = vunpack.c.l.b16 %v1827
    %v4417 = vunpack.c.h.b16 %v1827
    %v4418 = vunpack.c.l.b16 %v1828
    %v4419 = vunpack.c.h.b16 %v1828
    %v4420 = vunpack.c.l.b16 %v1829
    %v4421 = vunpack.c.h.b16 %v1829
    %v4422 = vunpack.c.l.b16 %v1830
    %v4423 = vunpack.c.h.b16 %v1830
    %v4424 = vunpack.c.l.b16 %v1831
    %v4425 = vunpack.c.h.b16 %v1831
    %v4426 = vunpack.c.l.b16 %v1832
    %v4427 = vunpack.c.h.b16 %v1832
    %v4428 = vunpack.c.l.b16 %v1833
    %v4429 = vunpack.c.h.b16 %v1833
    %v4430 = vunpack.c.l.b16 %v1834
    %v4431 = vunpack.c.h.b16 %v1834
    %v4432 = vunpack.c.l.b16 %v1835
    %v4433 = vunpack.c.h.b16 %v1835
    %v4434 = vunpack.c.l.b16 %v1836
    %v4435 = vunpack.c.h.b16 %v1836
    %v4436 = vunpack.c.l.b16 %v1837
    %v4437 = vunpack.c.h.b16 %v1837
    %v4438 = vunpack.c.l.b16 %v1838
    %v4439 = vunpack.c.h.b16 %v1838
    %v4440 = vunpack.c.l.b16 %v1839
    %v4441 = vunpack.c.h.b16 %v1839
    %v4442 = vunpack.c.l.b16 %v1840
    %v4443 = vunpack.c.h.b16 %v1840
    %v4444 = vunpack.c.l.b16 %v1841
    %v4445 = vunpack.c.h.b16 %v1841
    %v4446 = vunpack.c.l.b16 %v1842
    %v4447 = vunpack.c.h.b16 %v1842
    %v4448 = vunpack.c.l.b16 %v1843
    %v4449 = vunpack.c.h.b16 %v1843
    %v4450 = vunpack.c.l.b16 %v1844
    %v4451 = vunpack.c.h.b16 %v1844
    %v4452 = vunpack.c.l.b16 %v1845
    %v4453 = vunpack.c.h.b16 %v1845
    %v4454 = vunpack.c.l.b16 %v1846
    %v4455 = vunpack.c.h.b16 %v1846
    %v4456 = vunpack.c.l.b16 %v1847
    %v4457 = vunpack.c.h.b16 %v1847
    %v4458 = vunpack.c.l.b16 %v1848
    %v4459 = vunpack.c.h.b16 %v1848
    %v4460 = vunpack.c.l.b16 %v1849
    %v4461 = vunpack.c.h.b16 %v1849
    %v4462 = vunpack.c.l.b16 %v1850
    %v4463 = vunpack.c.h.b16 %v1850
    %v4464 = vpack.c.b16 %v2934, %v2928
    %v4465 = vpack.c.b16 %v2935, %v2929
    %v4466 = vpack.c.b16 %v2936, %v2930
    %v4467 = vpack.c.b16 %v2937, %v2931
    %v4468 = vpack.c.b16 %v2938, %v2932
    %v4469 = vpack.c.b16 %v2939, %v2933
    %v4470 = vpack.c.b16 %v2946, %v2940
    %v4471 = vpack.c.b16 %v2947, %v2941
    %v4472 = vpack.c.b16 %v2948, %v2942
    %v4473 = vpack.c.b16 %v2949, %v2943
    %v4474 = vpack.c.b16 %v2950, %v2944
    %v4475 = vpack.c.b16 %v2951, %v2945
    %v4476 = vpack.c.b16 %v2958, %v2952
    %v4477 = vpack.c.b16 %v2959, %v2953
    %v4478 = vpack.c.b16 %v2960, %v2954
    %v4479 = vpack.c.b16 %v2961, %v2955
    %v4480 = vpack.c.b16 %v2962, %v2956
    %v4481 = vpack.c.b16 %v2963, %v2957
    %v4482 = vpack.c.b16 %v2970, %v2964
    %v4483 = vpack.c.b16 %v2971, %v2965
    %v4484 = vpack.c.b16 %v2972, %v2966
    %v4485 = vpack.c.b16 %v2973, %v2967
    %v4486 = vpack.c.b16 %v2974, %v2968
    %v4487 = vpack.c.b16 %v2975, %v2969
    %v4488 = vpack.c.b16 %v2982, %v2976
    %v4489 = vpack.c.b16 %v2983, %v2977
    %v4490 = vpack.c.b16 %v2984, %v2978
    %v4491 = vpack.c.b16 %v2985, %v2979
    %v4492 = vpack.c.b16 %v2986, %v2980
    %v4493 = vpack.c.b16 %v2987, %v2981
    %v4494 = vpack.c.b16 %v2994, %v2988
    %v4495 = vpack.c.b16 %v2995, %v2989
    %v4496 = vpack.c.b16 %v2996, %v2990
    %v4497 = vpack.c.b16 %v2997, %v2991
    %v4498 = vpack.c.b16 %v2998, %v2992
    %v4499 = vpack.c.b16 %v2999, %v2993
    %v4500 = vpack.c.b16 %v3006, %v3000
    %v4501 = vpack.c.b16 %v3007, %v3001
    %v4502 = vpack.c.b16 %v3008, %v3002
    %v4503 = vpack.c.b16 %v3009, %v3003
    %v4504 = vpack.c.b16 %v3010, %v3004
    %v4505 = vpack.c.b16 %v3011, %v3005
    %v4506 = vpack.c.b16 %v3018, %v3012
    %v4507 = vpack.c.b16 %v3019, %v3013
    %v4508 = vpack.c.b16 %v3020, %v3014
    %v4509 = vpack.c.b16 %v3021, %v3015
    %v4510 = vpack.c.b16 %v3022, %v3016
    %v4511 = vpack.c.b16 %v3023, %v3017
    %v4512 = vpack.c.b16 %v3030, %v3024
    %v4513 = vpack.c.b16 %v3031, %v3025
    %v4514 = vpack.c.b16 %v3032, %v3026
    %v4515 = vpack.c.b16 %v3033, %v3027
    %v4516 = vpack.c.b16 %v3034, %v3028
    %v4517 = vpack.c.b16 %v3035, %v3029
    %v4518 = vpack.c.b16 %v3042, %v3036
    %v4519 = vpack.c.b16 %v3043, %v3037
    %v4520 = vpack.c.b16 %v3044, %v3038
    %v4521 = vpack.c.b16 %v3045, %v3039
    %v4522 = vpack.c.b16 %v3046, %v3040
    %v4523 = vpack.c.b16 %v3047, %v3041
    %v4524 = vpack.c.b16 %v3054, %v3048
    %v4525 = vpack.c.b16 %v3055, %v3049
    %v4526 = vpack.c.b16 %v3056, %v3050
    %v4527 = vpack.c.b16 %v3057, %v3051
    %v4528 = vpack.c.b16 %v3058, %v3052
    %v4529 = vpack.c.b16 %v3059, %v3053
    %v4530 = vpack.c.b16 %v3066, %v3060
    %v4531 = vpack.c.b16 %v3067, %v3061
    %v4532 = vpack.c.b16 %v3068, %v3062
    %v4533 = vpack.c.b16 %v3069, %v3063
    %v4534 = vpack.c.b16 %v3070, %v3064
    %v4535 = vpack.c.b16 %v3071, %v3065
    %v4536 = vpack.c.b16 %v3078, %v3072
    %v4537 = vpack.c.b16 %v3079, %v3073
    %v4538 = vpack.c.b16 %v3080, %v3074
    %v4539 = vpack.c.b16 %v3081, %v3075
    %v4540 = vpack.c.b16 %v3082, %v3076
    %v4541 = vpack.c.b16 %v3083, %v3077
    %v4542 = vpack.c.b16 %v3090, %v3084
    %v4543 = vpack.c.b16 %v3091, %v3085
    %v4544 = vpack.c.b16 %v3092, %v3086
    %v4545 = vpack.c.b16 %v3093, %v3087
    %v4546 = vpack.c.b16 %v3094, %v3088
    %v4547 = vpack.c.b16 %v3095, %v3089
    %v4548 = vpack.c.b16 %v3102, %v3096
    %v4549 = vpack.c.b16 %v3103, %v3097
    %v4550 = vpack.c.b16 %v3104, %v3098
    %v4551 = vpack.c.b16 %v3105, %v3099
    %v4552 = vpack.c.b16 %v3106, %v3100
    %v4553 = vpack.c.b16 %v3107, %v3101
    %v4554 = vpack.c.b16 %v3114, %v3108
    %v4555 = vpack.c.b16 %v3115, %v3109
    %v4556 = vpack.c.b16 %v3116, %v3110
    %v4557 = vpack.c.b16 %v3117, %v3111
    %v4558 = vpack.c.b16 %v3118, %v3112
    %v4559 = vpack.c.b16 %v3119, %v3113
    %v4560 = vpack.c.b16 %v3126, %v3120
    %v4561 = vpack.c.b16 %v3127, %v3121
    %v4562 = vpack.c.b16 %v3128, %v3122
    %v4563 = vpack.c.b16 %v3129, %v3123
    %v4564 = vpack.c.b16 %v3130, %v3124
    %v4565 = vpack.c.b16 %v3131, %v3125
    %v4566 = vpack.c.b16 %v3138, %v3132
    %v4567 = vpack.c.b16 %v3139, %v3133
    %v4568 = vpack.c.b16 %v3140, %v3134
    %v4569 = vpack.c.b16 %v3141, %v3135
    %v4570 = vpack.c.b16 %v3142, %v3136
    %v4571 = vpack.c.b16 %v3143, %v3137
    %v4572 = vpack.c.b16 %v3150, %v3144
    %v4573 = vpack.c.b16 %v3151, %v3145
    %v4574 = vpack.c.b16 %v3152, %v3146
    %v4575 = vpack.c.b16 %v3153, %v3147
    %v4576 = vpack.c.b16 %v3154, %v3148
    %v4577 = vpack.c.b16 %v3155, %v3149
    %v4578 = vpack.c.b16 %v3162, %v3156
    %v4579 = vpack.c.b16 %v3163, %v3157
    %v4580 = vpack.c.b16 %v3164, %v3158
    %v4581 = vpack.c.b16 %v3165, %v3159
    %v4582 = vpack.c.b16 %v3166, %v3160
    %v4583 = vpack.c.b16 %v3167, %v3161
    %v4584 = vpack.c.b16 %v3174, %v3168
    %v4585 = vpack.c.b16 %v3175, %v3169
    %v4586 = vpack.c.b16 %v3176, %v3170
    %v4587 = vpack.c.b16 %v3177, %v3171
    %v4588 = vpack.c.b16 %v3178, %v3172
    %v4589 = vpack.c.b16 %v3179, %v3173
    %v4590 = vpack.c.b16 %v3186, %v3180
    %v4591 = vpack.c.b16 %v3187, %v3181
    %v4592 = vpack.c.b16 %v3188, %v3182
    %v4593 = vpack.c.b16 %v3189, %v3183
    %v4594 = vpack.c.b16 %v3190, %v3184
    %v4595 = vpack.c.b16 %v3191, %v3185
    %v4596 = vpack.c.b16 %v3198, %v3192
    %v4597 = vpack.c.b16 %v3199, %v3193
    %v4598 = vpack.c.b16 %v3200, %v3194
    %v4599 = vpack.c.b16 %v3201, %v3195
    %v4600 = vpack.c.b16 %v3202, %v3196
    %v4601 = vpack.c.b16 %v3203, %v3197
    %v4602 = vpack.c.b16 %v3210, %v3204
    %v4603 = vpack.c.b16 %v3211, %v3205
    %v4604 = vpack.c.b16 %v3212, %v3206
    %v4605 = vpack.c.b16 %v3213, %v3207
    %v4606 = vpack.c.b16 %v3214, %v3208
    %v4607 = vpack.c.b16 %v3215, %v3209
    %v4608 = vpack.c.b16 %v3222, %v3216
    %v4609 = vpack.c.b16 %v3223, %v3217
    %v4610 = vpack.c.b16 %v3224, %v3218
    %v4611 = vpack.c.b16 %v3225, %v3219
    %v4612 = vpack.c.b16 %v3226, %v3220
    %v4613 = vpack.c.b16 %v3227, %v3221
    %v4614 = vpack.c.b16 %v3234, %v3228
    %v4615 = vpack.c.b16 %v3235, %v3229
    %v4616 = vpack.c.b16 %v3236, %v3230
    %v4617 = vpack.c.b16 %v3237, %v3231
    %v4618 = vpack.c.b16 %v3238, %v3232
    %v4619 = vpack.c.b16 %v3239, %v3233
    %v4620 = vpack.c.b16 %v3246, %v3240
    %v4621 = vpack.c.b16 %v3247, %v3241
    %v4622 = vpack.c.b16 %v3248, %v3242
    %v4623 = vpack.c.b16 %v3249, %v3243
    %v4624 = vpack.c.b16 %v3250, %v3244
    %v4625 = vpack.c.b16 %v3251, %v3245
    %v4626 = vpack.c.b16 %v3258, %v3252
    %v4627 = vpack.c.b16 %v3259, %v3253
    %v4628 = vpack.c.b16 %v3260, %v3254
    %v4629 = vpack.c.b16 %v3261, %v3255
    %v4630 = vpack.c.b16 %v3262, %v3256
    %v4631 = vpack.c.b16 %v3263, %v3257
    %v4632 = vpack.c.b16 %v3270, %v3264
    %v4633 = vpack.c.b16 %v3271, %v3265
    %v4634 = vpack.c.b16 %v3272, %v3266
    %v4635 = vpack.c.b16 %v3273, %v3267
    %v4636 = vpack.c.b16 %v3274, %v3268
    %v4637 = vpack.c.b16 %v3275, %v3269
    %v4638 = vpack.c.b16 %v3282, %v3276
    %v4639 = vpack.c.b16 %v3283, %v3277
    %v4640 = vpack.c.b16 %v3284, %v3278
    %v4641 = vpack.c.b16 %v3285, %v3279
    %v4642 = vpack.c.b16 %v3286, %v3280
    %v4643 = vpack.c.b16 %v3287, %v3281
    %v4644 = vpack.c.b16 %v3294, %v3288
    %v4645 = vpack.c.b16 %v3295, %v3289
    %v4646 = vpack.c.b16 %v3296, %v3290
    %v4647 = vpack.c.b16 %v3297, %v3291
    %v4648 = vpack.c.b16 %v3298, %v3292
    %v4649 = vpack.c.b16 %v3299, %v3293
    %v4650 = vpack.c.b16 %v3306, %v3300
    %v4651 = vpack.c.b16 %v3307, %v3301
    %v4652 = vpack.c.b16 %v3308, %v3302
    %v4653 = vpack.c.b16 %v3309, %v3303
    %v4654 = vpack.c.b16 %v3310, %v3304
    %v4655 = vpack.c.b16 %v3311, %v3305
    %v4656 = vpack.c.b16 %v3318, %v3312
    %v4657 = vpack.c.b16 %v3319, %v3313
    %v4658 = vpack.c.b16 %v3320, %v3314
    %v4659 = vpack.c.b16 %v3321, %v3315
    %v4660 = vpack.c.b16 %v3322, %v3316
    %v4661 = vpack.c.b16 %v3323, %v3317
    %v4662 = vpack.c.b16 %v3330, %v3324
    %v4663 = vpack.c.b16 %v3331, %v3325
    %v4664 = vpack.c.b16 %v3332, %v3326
    %v4665 = vpack.c.b16 %v3333, %v3327
    %v4666 = vpack.c.b16 %v3334, %v3328
    %v4667 = vpack.c.b16 %v3335, %v3329
    %v4668 = vpack.c.b16 %v3342, %v3336
    %v4669 = vpack.c.b16 %v3343, %v3337
    %v4670 = vpack.c.b16 %v3344, %v3338
    %v4671 = vpack.c.b16 %v3345, %v3339
    %v4672 = vpack.c.b16 %v3346, %v3340
    %v4673 = vpack.c.b16 %v3347, %v3341
    %v4674 = vpack.c.b16 %v3354, %v3348
    %v4675 = vpack.c.b16 %v3355, %v3349
    %v4676 = vpack.c.b16 %v3356, %v3350
    %v4677 = vpack.c.b16 %v3357, %v3351
    %v4678 = vpack.c.b16 %v3358, %v3352
    %v4679 = vpack.c.b16 %v3359, %v3353
    %v4680 = vpack.c.b16 %v3366, %v3360
    %v4681 = vpack.c.b16 %v3367, %v3361
    %v4682 = vpack.c.b16 %v3368, %v3362
    %v4683 = vpack.c.b16 %v3369, %v3363
    %v4684 = vpack.c.b16 %v3370, %v3364
    %v4685 = vpack.c.b16 %v3371, %v3365
    %v4686 = vpack.c.b16 %v3378, %v3372
    %v4687 = vpack.c.b16 %v3379, %v3373
    %v4688 = vpack.c.b16 %v3380, %v3374
    %v4689 = vpack.c.b16 %v3381, %v3375
    %v4690 = vpack.c.b16 %v3382, %v3376
    %v4691 = vpack.c.b16 %v3383, %v3377
    %v4692 = vpack.c.b16 %v3390, %v3384
    %v4693 = vpack.c.b16 %v3391, %v3385
    %v4694 = vpack.c.b16 %v3392, %v3386
    %v4695 = vpack.c.b16 %v3393, %v3387
    %v4696 = vpack.c.b16 %v3394, %v3388
    %v4697 = vpack.c.b16 %v3395, %v3389
    %v4698 = vpack.c.b16 %v3402, %v3396
    %v4699 = vpack.c.b16 %v3403, %v3397
    %v4700 = vpack.c.b16 %v3404, %v3398
    %v4701 = vpack.c.b16 %v3405, %v3399
    %v4702 = vpack.c.b16 %v3406, %v3400
    %v4703 = vpack.c.b16 %v3407, %v3401
    %v4704 = vpack.c.b16 %v3414, %v3408
    %v4705 = vpack.c.b16 %v3415, %v3409
    %v4706 = vpack.c.b16 %v3416, %v3410
    %v4707 = vpack.c.b16 %v3417, %v3411
    %v4708 = vpack.c.b16 %v3418, %v3412
    %v4709 = vpack.c.b16 %v3419, %v3413
    %v4710 = vpack.c.b16 %v3426, %v3420
    %v4711 = vpack.c.b16 %v3427, %v3421
    %v4712 = vpack.c.b16 %v3428, %v3422
    %v4713 = vpack.c.b16 %v3429, %v3423
    %v4714 = vpack.c.b16 %v3430, %v3424
    %v4715 = vpack.c.b16 %v3431, %v3425
    %v4716 = vpack.c.b16 %v3438, %v3432
    %v4717 = vpack.c.b16 %v3439, %v3433
    %v4718 = vpack.c.b16 %v3440, %v3434
    %v4719 = vpack.c.b16 %v3441, %v3435
    %v4720 = vpack.c.b16 %v3442, %v3436
    %v4721 = vpack.c.b16 %v3443, %v3437
    %v4722 = vpack.c.b16 %v3450, %v3444
    %v4723 = vpack.c.b16 %v3451, %v3445
    %v4724 = vpack.c.b16 %v3452, %v3446
    %v4725 = vpack.c.b16 %v3453, %v3447
    %v4726 = vpack.c.b16 %v3454, %v3448
    %v4727 = vpack.c.b16 %v3455, %v3449
    %v4728 = vpack.c.b16 %v3462, %v3456
    %v4729 = vpack.c.b16 %v3463, %v3457
    %v4730 = vpack.c.b16 %v3464, %v3458
    %v4731 = vpack.c.b16 %v3465, %v3459
    %v4732 = vpack.c.b16 %v3466, %v3460
    %v4733 = vpack.c.b16 %v3467, %v3461
    %v4734 = vpack.c.b16 %v3474, %v3468
    %v4735 = vpack.c.b16 %v3475, %v3469
    %v4736 = vpack.c.b16 %v3476, %v3470
    %v4737 = vpack.c.b16 %v3477, %v3471
    %v4738 = vpack.c.b16 %v3478, %v3472
    %v4739 = vpack.c.b16 %v3479, %v3473
    %v4740 = vpack.c.b16 %v3486, %v3480
    %v4741 = vpack.c.b16 %v3487, %v3481
    %v4742 = vpack.c.b16 %v3488, %v3482
    %v4743 = vpack.c.b16 %v3489, %v3483
    %v4744 = vpack.c.b16 %v3490, %v3484
    %v4745 = vpack.c.b16 %v3491, %v3485
    %v4746 = vpack.c.b16 %v3498, %v3492
    %v4747 = vpack.c.b16 %v3499, %v3493
    %v4748 = vpack.c.b16 %v3500, %v3494
    %v4749 = vpack.c.b16 %v3501, %v3495
    %v4750 = vpack.c.b16 %v3502, %v3496
    %v4751 = vpack.c.b16 %v3503, %v3497
    %v4752 = vpack.c.b16 %v3510, %v3504
    %v4753 = vpack.c.b16 %v3511, %v3505
    %v4754 = vpack.c.b16 %v3512, %v3506
    %v4755 = vpack.c.b16 %v3513, %v3507
    %v4756 = vpack.c.b16 %v3514, %v3508
    %v4757 = vpack.c.b16 %v3515, %v3509
    %v4758 = vpack.c.b16 %v3522, %v3516
    %v4759 = vpack.c.b16 %v3523, %v3517
    %v4760 = vpack.c.b16 %v3524, %v3518
    %v4761 = vpack.c.b16 %v3525, %v3519
    %v4762 = vpack.c.b16 %v3526, %v3520
    %v4763 = vpack.c.b16 %v3527, %v3521
    %v4764 = vpack.c.b16 %v3534, %v3528
    %v4765 = vpack.c.b16 %v3535, %v3529
    %v4766 = vpack.c.b16 %v3536, %v3530
    %v4767 = vpack.c.b16 %v3537, %v3531
    %v4768 = vpack.c.b16 %v3538, %v3532
    %v4769 = vpack.c.b16 %v3539, %v3533
    %v4770 = vpack.c.b16 %v3546, %v3540
    %v4771 = vpack.c.b16 %v3547, %v3541
    %v4772 = vpack.c.b16 %v3548, %v3542
    %v4773 = vpack.c.b16 %v3549, %v3543
    %v4774 = vpack.c.b16 %v3550, %v3544
    %v4775 = vpack.c.b16 %v3551, %v3545
    %v4776 = vpack.c.b16 %v3558, %v3552
    %v4777 = vpack.c.b16 %v3559, %v3553
    %v4778 = vpack.c.b16 %v3560, %v3554
    %v4779 = vpack.c.b16 %v3561, %v3555
    %v4780 = vpack.c.b16 %v3562, %v3556
    %v4781 = vpack.c.b16 %v3563, %v3557
    %v4782 = vpack.c.b16 %v3570, %v3564
    %v4783 = vpack.c.b16 %v3571, %v3565
    %v4784 = vpack.c.b16 %v3572, %v3566
    %v4785 = vpack.c.b16 %v3573, %v3567
    %v4786 = vpack.c.b16 %v3574, %v3568
    %v4787 = vpack.c.b16 %v3575, %v3569
    %v4788 = vpack.c.b16 %v3582, %v3576
    %v4789 = vpack.c.b16 %v3583, %v3577
    %v4790 = vpack.c.b16 %v3584, %v3578
    %v4791 = vpack.c.b16 %v3585, %v3579
    %v4792 = vpack.c.b16 %v3586, %v3580
    %v4793 = vpack.c.b16 %v3587, %v3581
    %v4794 = vpack.c.b16 %v3594, %v3588
    %v4795 = vpack.c.b16 %v3595, %v3589
    %v4796 = vpack.c.b16 %v3596, %v3590
    %v4797 = vpack.c.b16 %v3597, %v3591
    %v4798 = vpack.c.b16 %v3598, %v3592
    %v4799 = vpack.c.b16 %v3599, %v3593
    %v4800 = vpack.c.b16 %v3606, %v3600
    %v4801 = vpack.c.b16 %v3607, %v3601
    %v4802 = vpack.c.b16 %v3608, %v3602
    %v4803 = vpack.c.b16 %v3609, %v3603
    %v4804 = vpack.c.b16 %v3610, %v3604
    %v4805 = vpack.c.b16 %v3611, %v3605
    %v4806 = vpack.c.b16 %v3618, %v3612
    %v4807 = vpack.c.b16 %v3619, %v3613
    %v4808 = vpack.c.b16 %v3620, %v3614
    %v4809 = vpack.c.b16 %v3621, %v3615
    %v4810 = vpack.c.b16 %v3622, %v3616
    %v4811 = vpack.c.b16 %v3623, %v3617
    %v4812 = vpack.c.b16 %v3630, %v3624
    %v4813 = vpack.c.b16 %v3631, %v3625
    %v4814 = vpack.c.b16 %v3632, %v3626
    %v4815 = vpack.c.b16 %v3633, %v3627
    %v4816 = vpack.c.b16 %v3634, %v3628
    %v4817 = vpack.c.b16 %v3635, %v3629
    %v4818 = vpack.c.b16 %v3642, %v3636
    %v4819 = vpack.c.b16 %v3643, %v3637
    %v4820 = vpack.c.b16 %v3644, %v3638
    %v4821 = vpack.c.b16 %v3645, %v3639
    %v4822 = vpack.c.b16 %v3646, %v3640
    %v4823 = vpack.c.b16 %v3647, %v3641
    %v4824 = vpack.c.b16 %v3654, %v3648
    %v4825 = vpack.c.b16 %v3655, %v3649
    %v4826 = vpack.c.b16 %v3656, %v3650
    %v4827 = vpack.c.b16 %v3657, %v3651
    %v4828 = vpack.c.b16 %v3658, %v3652
    %v4829 = vpack.c.b16 %v3659, %v3653
    %v4830 = vpack.c.b16 %v3666, %v3660
    %v4831 = vpack.c.b16 %v3667, %v3661
    %v4832 = vpack.c.b16 %v3668, %v3662
    %v4833 = vpack.c.b16 %v3669, %v3663
    %v4834 = vpack.c.b16 %v3670, %v3664
    %v4835 = vpack.c.b16 %v3671, %v3665
    %v4836 = vpack.c.b16 %v3678, %v3672
    %v4837 = vpack.c.b16 %v3679, %v3673
    %v4838 = vpack.c.b16 %v3680, %v3674
    %v4839 = vpack.c.b16 %v3681, %v3675
    %v4840 = vpack.c.b16 %v3682, %v3676
    %v4841 = vpack.c.b16 %v3683, %v3677
    %v4842 = vpack.c.b16 %v3690, %v3684
    %v4843 = vpack.c.b16 %v3691, %v3685
    %v4844 = vpack.c.b16 %v3692, %v3686
    %v4845 = vpack.c.b16 %v3693, %v3687
    %v4846 = vpack.c.b16 %v3694, %v3688
    %v4847 = vpack.c.b16 %v3695, %v3689
    %v4848 = vpack.c.b16 %v3702, %v3696
    %v4849 = vpack.c.b16 %v3703, %v3697
    %v4850 = vpack.c.b16 %v3704, %v3698
    %v4851 = vpack.c.b16 %v3705, %v3699
    %v4852 = vpack.c.b16 %v3706, %v3700
    %v4853 = vpack.c.b16 %v3707, %v3701
    %v4854 = vpack.c.b16 %v3714, %v3708
    %v4855 = vpack.c.b16 %v3715, %v3709
    %v4856 = vpack.c.b16 %v3716, %v3710
    %v4857 = vpack.c.b16 %v3717, %v3711
    %v4858 = vpack.c.b16 %v3718, %v3712
    %v4859 = vpack.c.b16 %v3719, %v3713
    %v4860 = vpack.c.b16 %v3726, %v3720
    %v4861 = vpack.c.b16 %v3727, %v3721
    %v4862 = vpack.c.b16 %v3728, %v3722
    %v4863 = vpack.c.b16 %v3729, %v3723
    %v4864 = vpack.c.b16 %v3730, %v3724
    %v4865 = vpack.c.b16 %v3731, %v3725
    %v4866 = vpack.c.b16 %v3738, %v3732
    %v4867 = vpack.c.b16 %v3739, %v3733
    %v4868 = vpack.c.b16 %v3740, %v3734
    %v4869 = vpack.c.b16 %v3741, %v3735
    %v4870 = vpack.c.b16 %v3742, %v3736
    %v4871 = vpack.c.b16 %v3743, %v3737
    %v4872 = vpack.c.b16 %v3750, %v3744
    %v4873 = vpack.c.b16 %v3751, %v3745
    %v4874 = vpack.c.b16 %v3752, %v3746
    %v4875 = vpack.c.b16 %v3753, %v3747
    %v4876 = vpack.c.b16 %v3754, %v3748
    %v4877 = vpack.c.b16 %v3755, %v3749
    %v4878 = vpack.c.b16 %v3762, %v3756
    %v4879 = vpack.c.b16 %v3763, %v3757
    %v4880 = vpack.c.b16 %v3764, %v3758
    %v4881 = vpack.c.b16 %v3765, %v3759
    %v4882 = vpack.c.b16 %v3766, %v3760
    %v4883 = vpack.c.b16 %v3767, %v3761
    %v4884 = vpack.c.b16 %v3774, %v3768
    %v4885 = vpack.c.b16 %v3775, %v3769
    %v4886 = vpack.c.b16 %v3776, %v3770
    %v4887 = vpack.c.b16 %v3777, %v3771
    %v4888 = vpack.c.b16 %v3778, %v3772
    %v4889 = vpack.c.b16 %v3779, %v3773
    %v4890 = vpack.c.b16 %v3786, %v3780
    %v4891 = vpack.c.b16 %v3787, %v3781
    %v4892 = vpack.c.b16 %v3788, %v3782
    %v4893 = vpack.c.b16 %v3789, %v3783
    %v4894 = vpack.c.b16 %v3790, %v3784
    %v4895 = vpack.c.b16 %v3791, %v3785
    %v4896 = vpack.c.b16 %v3798, %v3792
    %v4897 = vpack.c.b16 %v3799, %v3793
    %v4898 = vpack.c.b16 %v3800, %v3794
    %v4899 = vpack.c.b16 %v3801, %v3795
    %v4900 = vpack.c.b16 %v3802, %v3796
    %v4901 = vpack.c.b16 %v3803, %v3797
    %v4902 = vpack.c.b16 %v3810, %v3804
    %v4903 = vpack.c.b16 %v3811, %v3805
    %v4904 = vpack.c.b16 %v3812, %v3806
    %v4905 = vpack.c.b16 %v3813, %v3807
    %v4906 = vpack.c.b16 %v3814, %v3808
    %v4907 = vpack.c.b16 %v3815, %v3809
    %v4908 = vpack.c.b16 %v3822, %v3816
    %v4909 = vpack.c.b16 %v3823, %v3817
    %v4910 = vpack.c.b16 %v3824, %v3818
    %v4911 = vpack.c.b16 %v3825, %v3819
    %v4912 = vpack.c.b16 %v3826, %v3820
    %v4913 = vpack.c.b16 %v3827, %v3821
    %v4914 = vpack.c.b16 %v3834, %v3828
    %v4915 = vpack.c.b16 %v3835, %v3829
    %v4916 = vpack.c.b16 %v3836, %v3830
    %v4917 = vpack.c.b16 %v3837, %v3831
    %v4918 = vpack.c.b16 %v3838, %v3832
    %v4919 = vpack.c.b16 %v3839, %v3833
    %v4920 = vpack.c.b16 %v3846, %v3840
    %v4921 = vpack.c.b16 %v3847, %v3841
    %v4922 = vpack.c.b16 %v3848, %v3842
    %v4923 = vpack.c.b16 %v3849, %v3843
    %v4924 = vpack.c.b16 %v3850, %v3844
    %v4925 = vpack.c.b16 %v3851, %v3845
    %v4926 = vpack.c.b16 %v3858, %v3852
    %v4927 = vpack.c.b16 %v3859, %v3853
    %v4928 = vpack.c.b16 %v3860, %v3854
    %v4929 = vpack.c.b16 %v3861, %v3855
    %v4930 = vpack.c.b16 %v3862, %v3856
    %v4931 = vpack.c.b16 %v3863, %v3857
    %v4932 = vpack.c.b16 %v3870, %v3864
    %v4933 = vpack.c.b16 %v3871, %v3865
    %v4934 = vpack.c.b16 %v3872, %v3866
    %v4935 = vpack.c.b16 %v3873, %v3867
    %v4936 = vpack.c.b16 %v3874, %v3868
    %v4937 = vpack.c.b16 %v3875, %v3869
    %v4938 = vpack.c.b16 %v3882, %v3876
    %v4939 = vpack.c.b16 %v3883, %v3877
    %v4940 = vpack.c.b16 %v3884, %v3878
    %v4941 = vpack.c.b16 %v3885, %v3879
    %v4942 = vpack.c.b16 %v3886, %v3880
    %v4943 = vpack.c.b16 %v3887, %v3881
    %v4944 = vpack.c.b16 %v3894, %v3888
    %v4945 = vpack.c.b16 %v3895, %v3889
    %v4946 = vpack.c.b16 %v3896, %v3890
    %v4947 = vpack.c.b16 %v3897, %v3891
    %v4948 = vpack.c.b16 %v3898, %v3892
    %v4949 = vpack.c.b16 %v3899, %v3893
    %v4950 = vpack.c.b16 %v3906, %v3900
    %v4951 = vpack.c.b16 %v3907, %v3901
    %v4952 = vpack.c.b16 %v3908, %v3902
    %v4953 = vpack.c.b16 %v3909, %v3903
    %v4954 = vpack.c.b16 %v3910, %v3904
    %v4955 = vpack.c.b16 %v3911, %v3905
    %v4956 = vpack.c.b16 %v3918, %v3912
    %v4957 = vpack.c.b16 %v3919, %v3913
    %v4958 = vpack.c.b16 %v3920, %v3914
    %v4959 = vpack.c.b16 %v3921, %v3915
    %v4960 = vpack.c.b16 %v3922, %v3916
    %v4961 = vpack.c.b16 %v3923, %v3917
    %v4962 = vpack.c.b16 %v3930, %v3924
    %v4963 = vpack.c.b16 %v3931, %v3925
    %v4964 = vpack.c.b16 %v3932, %v3926
    %v4965 = vpack.c.b16 %v3933, %v3927
    %v4966 = vpack.c.b16 %v3934, %v3928
    %v4967 = vpack.c.b16 %v3935, %v3929
    %v4968 = vpack.c.b16 %v3942, %v3936
    %v4969 = vpack.c.b16 %v3943, %v3937
    %v4970 = vpack.c.b16 %v3944, %v3938
    %v4971 = vpack.c.b16 %v3945, %v3939
    %v4972 = vpack.c.b16 %v3946, %v3940
    %v4973 = vpack.c.b16 %v3947, %v3941
    %v4974 = vpack.c.b16 %v3954, %v3948
    %v4975 = vpack.c.b16 %v3955, %v3949
    %v4976 = vpack.c.b16 %v3956, %v3950
    %v4977 = vpack.c.b16 %v3957, %v3951
    %v4978 = vpack.c.b16 %v3958, %v3952
    %v4979 = vpack.c.b16 %v3959, %v3953
    %v4980 = vpack.c.b16 %v3966, %v3960
    %v4981 = vpack.c.b16 %v3967, %v3961
    %v4982 = vpack.c.b16 %v3968, %v3962
    %v4983 = vpack.c.b16 %v3969, %v3963
    %v4984 = vpack.c.b16 %v3970, %v3964
    %v4985 = vpack.c.b16 %v3971, %v3965
    %v4986 = vpack.c.b16 %v3978, %v3972
    %v4987 = vpack.c.b16 %v3979, %v3973
    %v4988 = vpack.c.b16 %v3980, %v3974
    %v4989 = vpack.c.b16 %v3981, %v3975
    %v4990 = vpack.c.b16 %v3982, %v3976
    %v4991 = vpack.c.b16 %v3983, %v3977
    %v4992 = vpack.c.b16 %v3990, %v3984
    %v4993 = vpack.c.b16 %v3991, %v3985
    %v4994 = vpack.c.b16 %v3992, %v3986
    %v4995 = vpack.c.b16 %v3993, %v3987
    %v4996 = vpack.c.b16 %v3994, %v3988
    %v4997 = vpack.c.b16 %v3995, %v3989
    %v4998 = vpack.c.b16 %v4002, %v3996
    %v4999 = vpack.c.b16 %v4003, %v3997
    %v5000 = vpack.c.b16 %v4004, %v3998
    %v5001 = vpack.c.b16 %v4005, %v3999
    %v5002 = vpack.c.b16 %v4006, %v4000
    %v5003 = vpack.c.b16 %v4007, %v4001
    %v5004 = vpack.c.b16 %v4014, %v4008
    %v5005 = vpack.c.b16 %v4015, %v4009
    %v5006 = vpack.c.b16 %v4016, %v4010
    %v5007 = vpack.c.b16 %v4017, %v4011
    %v5008 = vpack.c.b16 %v4018, %v4012
    %v5009 = vpack.c.b16 %v4019, %v4013
    %v5010 = vpack.c.b16 %v4026, %v4020
    %v5011 = vpack.c.b16 %v4027, %v4021
    %v5012 = vpack.c.b16 %v4028, %v4022
    %v5013 = vpack.c.b16 %v4029, %v4023
    %v5014 = vpack.c.b16 %v4030, %v4024
    %v5015 = vpack.c.b16 %v4031, %v4025
    %v5016 = vpack.c.b16 %v4038, %v4032
    %v5017 = vpack.c.b16 %v4039, %v4033
    %v5018 = vpack.c.b16 %v4040, %v4034
    %v5019 = vpack.c.b16 %v4041, %v4035
    %v5020 = vpack.c.b16 %v4042, %v4036
    %v5021 = vpack.c.b16 %v4043, %v4037
    %v5022 = vpack.c.b16 %v4050, %v4044
    %v5023 = vpack.c.b16 %v4051, %v4045
    %v5024 = vpack.c.b16 %v4052, %v4046
    %v5025 = vpack.c.b16 %v4053, %v4047
    %v5026 = vpack.c.b16 %v4054, %v4048
    %v5027 = vpack.c.b16 %v4055, %v4049
    %v5028 = vpack.c.b16 %v4062, %v4056
    %v5029 = vpack.c.b16 %v4063, %v4057
    %v5030 = vpack.c.b16 %v4064, %v4058
    %v5031 = vpack.c.b16 %v4065, %v4059
    %v5032 = vpack.c.b16 %v4066, %v4060
    %v5033 = vpack.c.b16 %v4067, %v4061
    %v5034 = vpack.c.b16 %v4074, %v4068
    %v5035 = vpack.c.b16 %v4075, %v4069
    %v5036 = vpack.c.b16 %v4076, %v4070
    %v5037 = vpack.c.b16 %v4077, %v4071
    %v5038 = vpack.c.b16 %v4078, %v4072
    %v5039 = vpack.c.b16 %v4079, %v4073
    %v5040 = vpack.c.b16 %v4086, %v4080
    %v5041 = vpack.c.b16 %v4087, %v4081
    %v5042 = vpack.c.b16 %v4088, %v4082
    %v5043 = vpack.c.b16 %v4089, %v4083
    %v5044 = vpack.c.b16 %v4090, %v4084
    %v5045 = vpack.c.b16 %v4091, %v4085
    %v5046 = vpack.c.b16 %v4098, %v4092
    %v5047 = vpack.c.b16 %v4099, %v4093
    %v5048 = vpack.c.b16 %v4100, %v4094
    %v5049 = vpack.c.b16 %v4101, %v4095
    %v5050 = vpack.c.b16 %v4102, %v4096
    %v5051 = vpack.c.b16 %v4103, %v4097
    %v5052 = vpack.c.b16 %v4110, %v4104
    %v5053 = vpack.c.b16 %v4111, %v4105
    %v5054 = vpack.c.b16 %v4112, %v4106
    %v5055 = vpack.c.b16 %v4113, %v4107
    %v5056 = vpack.c.b16 %v4114, %v4108
    %v5057 = vpack.c.b16 %v4115, %v4109
    %v5058 = vpack.c.b16 %v4122, %v4116
    %v5059 = vpack.c.b16 %v4123, %v4117
    %v5060 = vpack.c.b16 %v4124, %v4118
    %v5061 = vpack.c.b16 %v4125, %v4119
    %v5062 = vpack.c.b16 %v4126, %v4120
    %v5063 = vpack.c.b16 %v4127, %v4121
    %v5064 = vpack.c.b16 %v4134, %v4128
    %v5065 = vpack.c.b16 %v4135, %v4129
    %v5066 = vpack.c.b16 %v4136, %v4130
    %v5067 = vpack.c.b16 %v4137, %v4131
    %v5068 = vpack.c.b16 %v4138, %v4132
    %v5069 = vpack.c.b16 %v4139, %v4133
    %v5070 = vpack.c.b16 %v4146, %v4140
    %v5071 = vpack.c.b16 %v4147, %v4141
    %v5072 = vpack.c.b16 %v4148, %v4142
    %v5073 = vpack.c.b16 %v4149, %v4143
    %v5074 = vpack.c.b16 %v4150, %v4144
    %v5075 = vpack.c.b16 %v4151, %v4145
    %v5076 = vpack.c.b16 %v4158, %v4152
    %v5077 = vpack.c.b16 %v4159, %v4153
    %v5078 = vpack.c.b16 %v4160, %v4154
    %v5079 = vpack.c.b16 %v4161, %v4155
    %v5080 = vpack.c.b16 %v4162, %v4156
    %v5081 = vpack.c.b16 %v4163, %v4157
    %v5082 = vpack.c.b16 %v4170, %v4164
    %v5083 = vpack.c.b16 %v4171, %v4165
    %v5084 = vpack.c.b16 %v4172, %v4166
    %v5085 = vpack.c.b16 %v4173, %v4167
    %v5086 = vpack.c.b16 %v4174, %v4168
    %v5087 = vpack.c.b16 %v4175, %v4169
    %v5088 = vpack.c.b16 %v4182, %v4176
    %v5089 = vpack.c.b16 %v4183, %v4177
    %v5090 = vpack.c.b16 %v4184, %v4178
    %v5091 = vpack.c.b16 %v4185, %v4179
    %v5092 = vpack.c.b16 %v4186, %v4180
    %v5093 = vpack.c.b16 %v4187, %v4181
    %v5094 = vpack.c.b16 %v4194, %v4188
    %v5095 = vpack.c.b16 %v4195, %v4189
    %v5096 = vpack.c.b16 %v4196, %v4190
    %v5097 = vpack.c.b16 %v4197, %v4191
    %v5098 = vpack.c.b16 %v4198, %v4192
    %v5099 = vpack.c.b16 %v4199, %v4193
    %v5100 = vpack.c.b16 %v4206, %v4200
    %v5101 = vpack.c.b16 %v4207, %v4201
    %v5102 = vpack.c.b16 %v4208, %v4202
    %v5103 = vpack.c.b16 %v4209, %v4203
    %v5104 = vpack.c.b16 %v4210, %v4204
    %v5105 = vpack.c.b16 %v4211, %v4205
    %v5106 = vpack.c.b16 %v4218, %v4212
    %v5107 = vpack.c.b16 %v4219, %v4213
    %v5108 = vpack.c.b16 %v4220, %v4214
    %v5109 = vpack.c.b16 %v4221, %v4215
    %v5110 = vpack.c.b16 %v4222, %v4216
    %v5111 = vpack.c.b16 %v4223, %v4217
    %v5112 = vpack.c.b16 %v4230, %v4224
    %v5113 = vpack.c.b16 %v4231, %v4225
    %v5114 = vpack.c.b16 %v4232, %v4226
    %v5115 = vpack.c.b16 %v4233, %v4227
    %v5116 = vpack.c.b16 %v4234, %v4228
    %v5117 = vpack.c.b16 %v4235, %v4229
    %v5118 = vpack.c.b16 %v4242, %v4236
    %v5119 = vpack.c.b16 %v4243, %v4237
    %v5120 = vpack.c.b16 %v4244, %v4238
    %v5121 = vpack.c.b16 %v4245, %v4239
    %v5122 = vpack.c.b16 %v4246, %v4240
    %v5123 = vpack.c.b16 %v4247, %v4241
    %v5124 = vpack.c.b16 %v4254, %v4248
    %v5125 = vpack.c.b16 %v4255, %v4249
    %v5126 = vpack.c.b16 %v4256, %v4250
    %v5127 = vpack.c.b16 %v4257, %v4251
    %v5128 = vpack.c.b16 %v4258, %v4252
    %v5129 = vpack.c.b16 %v4259, %v4253
    %v5130 = vpack.c.b16 %v4266, %v4260
    %v5131 = vpack.c.b16 %v4267, %v4261
    %v5132 = vpack.c.b16 %v4268, %v4262
    %v5133 = vpack.c.b16 %v4269, %v4263
    %v5134 = vpack.c.b16 %v4270, %v4264
    %v5135 = vpack.c.b16 %v4271, %v4265
    %v5136 = vpack.c.b16 %v4278, %v4272
    %v5137 = vpack.c.b16 %v4279, %v4273
    %v5138 = vpack.c.b16 %v4280, %v4274
    %v5139 = vpack.c.b16 %v4281, %v4275
    %v5140 = vpack.c.b16 %v4282, %v4276
    %v5141 = vpack.c.b16 %v4283, %v4277
    %v5142 = vpack.c.b16 %v4290, %v4284
    %v5143 = vpack.c.b16 %v4291, %v4285
    %v5144 = vpack.c.b16 %v4292, %v4286
    %v5145 = vpack.c.b16 %v4293, %v4287
    %v5146 = vpack.c.b16 %v4294, %v4288
    %v5147 = vpack.c.b16 %v4295, %v4289
    %v5148 = vpack.c.b16 %v4302, %v4296
    %v5149 = vpack.c.b16 %v4303, %v4297
    %v5150 = vpack.c.b16 %v4304, %v4298
    %v5151 = vpack.c.b16 %v4305, %v4299
    %v5152 = vpack.c.b16 %v4306, %v4300
    %v5153 = vpack.c.b16 %v4307, %v4301
    %v5154 = vpack.c.b16 %v4314, %v4308
    %v5155 = vpack.c.b16 %v4315, %v4309
    %v5156 = vpack.c.b16 %v4316, %v4310
    %v5157 = vpack.c.b16 %v4317, %v4311
    %v5158 = vpack.c.b16 %v4318, %v4312
    %v5159 = vpack.c.b16 %v4319, %v4313
    %v5160 = vpack.c.b16 %v4326, %v4320
    %v5161 = vpack.c.b16 %v4327, %v4321
    %v5162 = vpack.c.b16 %v4328, %v4322
    %v5163 = vpack.c.b16 %v4329, %v4323
    %v5164 = vpack.c.b16 %v4330, %v4324
    %v5165 = vpack.c.b16 %v4331, %v4325
    %v5166 = vpack.c.b16 %v4338, %v4332
    %v5167 = vpack.c.b16 %v4339, %v4333
    %v5168 = vpack.c.b16 %v4340, %v4334
    %v5169 = vpack.c.b16 %v4341, %v4335
    %v5170 = vpack.c.b16 %v4342, %v4336
    %v5171 = vpack.c.b16 %v4343, %v4337
    %v5172 = vpack.c.b16 %v4350, %v4344
    %v5173 = vpack.c.b16 %v4351, %v4345
    %v5174 = vpack.c.b16 %v4352, %v4346
    %v5175 = vpack.c.b16 %v4353, %v4347
    %v5176 = vpack.c.b16 %v4354, %v4348
    %v5177 = vpack.c.b16 %v4355, %v4349
    %v5178 = vpack.c.b16 %v4362, %v4356
    %v5179 = vpack.c.b16 %v4363, %v4357
    %v5180 = vpack.c.b16 %v4364, %v4358
    %v5181 = vpack.c.b16 %v4365, %v4359
    %v5182 = vpack.c.b16 %v4366, %v4360
    %v5183 = vpack.c.b16 %v4367, %v4361
    %v5184 = vpack.c.b16 %v4374, %v4368
    %v5185 = vpack.c.b16 %v4375, %v4369
    %v5186 = vpack.c.b16 %v4376, %v4370
    %v5187 = vpack.c.b16 %v4377, %v4371
    %v5188 = vpack.c.b16 %v4378, %v4372
    %v5189 = vpack.c.b16 %v4379, %v4373
    %v5190 = vpack.c.b16 %v4386, %v4380
    %v5191 = vpack.c.b16 %v4387, %v4381
    %v5192 = vpack.c.b16 %v4388, %v4382
    %v5193 = vpack.c.b16 %v4389, %v4383
    %v5194 = vpack.c.b16 %v4390, %v4384
    %v5195 = vpack.c.b16 %v4391, %v4385
    %v5196 = vpack.c.b16 %v4398, %v4392
    %v5197 = vpack.c.b16 %v4399, %v4393
    %v5198 = vpack.c.b16 %v4400, %v4394
    %v5199 = vpack.c.b16 %v4401, %v4395
    %v5200 = vpack.c.b16 %v4402, %v4396
    %v5201 = vpack.c.b16 %v4403, %v4397
    %v5202 = vpack.c.b16 %v4410, %v4404
    %v5203 = vpack.c.b16 %v4411, %v4405
    %v5204 = vpack.c.b16 %v4412, %v4406
    %v5205 = vpack.c.b16 %v4413, %v4407
    %v5206 = vpack.c.b16 %v4414, %v4408
    %v5207 = vpack.c.b16 %v4415, %v4409
    %v5208 = vpack.c.b16 %v4422, %v4416
    %v5209 = vpack.c.b16 %v4423, %v4417
    %v5210 = vpack.c.b16 %v4424, %v4418
    %v5211 = vpack.c.b16 %v4425, %v4419
    %v5212 = vpack.c.b16 %v4426, %v4420
    %v5213 = vpack.c.b16 %v4427, %v4421
    %v5214 = vpack.c.b16 %v4434, %v4428
    %v5215 = vpack.c.b16 %v4435, %v4429
    %v5216 = vpack.c.b16 %v4436, %v4430
    %v5217 = vpack.c.b16 %v4437, %v4431
    %v5218 = vpack.c.b16 %v4438, %v4432
    %v5219 = vpack.c.b16 %v4439, %v4433
    %v5220 = vpack.c.b16 %v4446, %v4440
    %v5221 = vpack.c.b16 %v4447, %v4441
    %v5222 = vpack.c.b16 %v4448, %v4442
    %v5223 = vpack.c.b16 %v4449, %v4443
    %v5224 = vpack.c.b16 %v4450, %v4444
    %v5225 = vpack.c.b16 %v4451, %v4445
    %v5226 = vpack.c.b16 %v4458, %v4452
    %v5227 = vpack.c.b16 %v4459, %v4453
    %v5228 = vpack.c.b16 %v4460, %v4454
    %v5229 = vpack.c.b16 %v4461, %v4455
    %v5230 = vpack.c.b16 %v4462, %v4456
    %v5231 = vpack.c.b16 %v4463, %v4457
    %6000 = vmatprep.subr.bf16.mxu0 %v4465
    %6001 = vmatpush1.bf16.msra.mxu0 %v4464
    %6002 = vmatprep.subr.bf16.mxu0 %v4471
    %6003 = vmatpush1.bf16.msra.mxu0 %v4470
    %6004 = vmatprep.subr.bf16.mxu0 %v4477
    %6005 = vmatpush1.bf16.msra.mxu0 %v4476
    %6006 = vmatprep.subr.bf16.mxu0 %v4483
    %6007 = vmatpush1.bf16.msra.mxu0 %v4482
    %6008 = vmatprep.subr.bf16.mxu0 %v4489
    %6009 = vmatpush1.bf16.msra.mxu0 %v4488
    %6010 = vmatprep.subr.bf16.mxu0 %v4495
    %6011 = vmatpush1.bf16.msra.mxu0 %v4494
    %6012 = vmatprep.subr.bf16.mxu0 %v4501
    %6013 = vmatpush1.bf16.msra.mxu0 %v4500
    %6014 = vmatprep.subr.bf16.mxu0 %v4507
    %6015 = vmatpush1.bf16.msra.mxu0 %v4506
    %6016 = vmatprep.subr.bf16.mxu0 %v4513
    %6017 = vmatpush1.bf16.msra.mxu0 %v4512
    %6018 = vmatprep.subr.bf16.mxu0 %v4519
    %6019 = vmatpush1.bf16.msra.mxu0 %v4518
    %6020 = vmatprep.subr.bf16.mxu0 %v4525
    %6021 = vmatpush1.bf16.msra.mxu0 %v4524
    %6022 = vmatprep.subr.bf16.mxu0 %v4531
    %6023 = vmatpush1.bf16.msra.mxu0 %v4530
    %6024 = vmatprep.subr.bf16.mxu0 %v4537
    %6025 = vmatpush1.bf16.msra.mxu0 %v4536
    %6026 = vmatprep.subr.bf16.mxu0 %v4543
    %6027 = vmatpush1.bf16.msra.mxu0 %v4542
    %6028 = vmatprep.subr.bf16.mxu0 %v4549
    %6029 = vmatpush1.bf16.msra.mxu0 %v4548
    %6030 = vmatprep.subr.bf16.mxu0 %v4555
    %6031 = vmatpush1.bf16.msra.mxu0 %v4554
    %6032 = vmatprep.mubr.bf16.mxu0 %v2129
    %6033 = vmatmul.mubr.bf16.gmra.mrb[0].mxu0 %v2128
    %v6034 = vpop.f32.mrb[0].mxu0
    %v6035 = vadd.f32 0.0, %v6034
    %v6036 = vpop.f32.mrb[0].mxu0
    %v6037 = vadd.f32 0.0, %v6036
    %v6038 = vpop.f32.mrb[0].mxu0
    %v6039 = vpop.f32.mrb[0].mxu0
    %6040 = vdwg.mxu0
    %6041 = vmatprep.subr.bf16.mxu0 %v4561
    %6042 = vmatpush1.bf16.msra.mxu0 %v4560
    %6043 = vmatprep.subr.bf16.mxu0 %v4567
    %6044 = vmatpush1.bf16.msra.mxu0 %v4566
    %6045 = vmatprep.subr.bf16.mxu0 %v4573
    %6046 = vmatpush1.bf16.msra.mxu0 %v4572
    %6047 = vmatprep.subr.bf16.mxu0 %v4579
    %6048 = vmatpush1.bf16.msra.mxu0 %v4578
    %6049 = vmatprep.subr.bf16.mxu0 %v4585
    %6050 = vmatpush1.bf16.msra.mxu0 %v4584
    %6051 = vmatprep.subr.bf16.mxu0 %v4591
    %6052 = vmatpush1.bf16.msra.mxu0 %v4590
    %6053 = vmatprep.subr.bf16.mxu0 %v4597
    %6054 = vmatpush1.bf16.msra.mxu0 %v4596
    %6055 = vmatprep.subr.bf16.mxu0 %v4603
    %6056 = vmatpush1.bf16.msra.mxu0 %v4602
    %6057 = vmatprep.subr.bf16.mxu0 %v4609
    %6058 = vmatpush1.bf16.msra.mxu0 %v4608
    %6059 = vmatprep.subr.bf16.mxu0 %v4615
    %6060 = vmatpush1.bf16.msra.mxu0 %v4614
    %6061 = vmatprep.subr.bf16.mxu0 %v4621
    %6062 = vmatpush1.bf16.msra.mxu0 %v4620
    %6063 = vmatprep.subr.bf16.mxu0 %v4627
    %6064 = vmatpush1.bf16.msra.mxu0 %v4626
    %6065 = vmatprep.subr.bf16.mxu0 %v4633
    %6066 = vmatpush1.bf16.msra.mxu0 %v4632
    %6067 = vmatprep.subr.bf16.mxu0 %v4639
    %6068 = vmatpush1.bf16.msra.mxu0 %v4638
    %6069 = vmatprep.subr.bf16.mxu0 %v4645
    %6070 = vmatpush1.bf16.msra.mxu0 %v4644
    %6071 = vmatprep.subr.bf16.mxu0 %v4651
    %6072 = vmatpush1.bf16.msra.mxu0 %v4650
    %6073 = vmatprep.mubr.bf16.mxu0 %v2131
    %6074 = vmatmul.mubr.bf16.gmra.mrb[0].mxu0 %v2130
    %v6075 = vpop.f32.mrb[0].mxu0
    %v6076 = vadd.f32 %v6035, %v6075
    %v6077 = vpop.f32.mrb[0].mxu0
    %v6078 = vadd.f32 %v6037, %v6077
    %v6079 = vpop.f32.mrb[0].mxu0
    %v6080 = vpop.f32.mrb[0].mxu0
    %6081 = vdwg.mxu0
    %6082 = vmatprep.subr.bf16.mxu0 %v4657
    %6083 = vmatpush1.bf16.msra.mxu0 %v4656
    %6084 = vmatprep.subr.bf16.mxu0 %v4663
    %6085 = vmatpush1.bf16.msra.mxu0 %v4662
    %6086 = vmatprep.subr.bf16.mxu0 %v4669
    %6087 = vmatpush1.bf16.msra.mxu0 %v4668
    %6088 = vmatprep.subr.bf16.mxu0 %v4675
    %6089 = vmatpush1.bf16.msra.mxu0 %v4674
    %6090 = vmatprep.subr.bf16.mxu0 %v4681
    %6091 = vmatpush1.bf16.msra.mxu0 %v4680
    %6092 = vmatprep.subr.bf16.mxu0 %v4687
    %6093 = vmatpush1.bf16.msra.mxu0 %v4686
    %6094 = vmatprep.subr.bf16.mxu0 %v4693
    %6095 = vmatpush1.bf16.msra.mxu0 %v4692
    %6096 = vmatprep.subr.bf16.mxu0 %v4699
    %6097 = vmatpush1.bf16.msra.mxu0 %v4698
    %6098 = vmatprep.subr.bf16.mxu0 %v4705
    %6099 = vmatpush1.bf16.msra.mxu0 %v4704
    %6100 = vmatprep.subr.bf16.mxu0 %v4711
    %6101 = vmatpush1.bf16.msra.mxu0 %v4710
    %6102 = vmatprep.subr.bf16.mxu0 %v4717
    %6103 = vmatpush1.bf16.msra.mxu0 %v4716
    %6104 = vmatprep.subr.bf16.mxu0 %v4723
    %6105 = vmatpush1.bf16.msra.mxu0 %v4722
    %6106 = vmatprep.subr.bf16.mxu0 %v4729
    %6107 = vmatpush1.bf16.msra.mxu0 %v4728
    %6108 = vmatprep.subr.bf16.mxu0 %v4735
    %6109 = vmatpush1.bf16.msra.mxu0 %v4734
    %6110 = vmatprep.subr.bf16.mxu0 %v4741
    %6111 = vmatpush1.bf16.msra.mxu0 %v4740
    %6112 = vmatprep.subr.bf16.mxu0 %v4747
    %6113 = vmatpush1.bf16.msra.mxu0 %v4746
    %6114 = vmatprep.mubr.bf16.mxu0 %v2133
    %6115 = vmatmul.mubr.bf16.gmra.mrb[0].mxu0 %v2132
    %v6116 = vpop.f32.mrb[0].mxu0
    %v6117 = vadd.f32 %v6076, %v6116
    %v6118 = vpop.f32.mrb[0].mxu0
    %v6119 = vadd.f32 %v6078, %v6118
    %v6120 = vpop.f32.mrb[0].mxu0
    %v6121 = vpop.f32.mrb[0].mxu0
    %6122 = vdwg.mxu0
    %6123 = vmatprep.subr.bf16.mxu0 %v4753
    %6124 = vmatpush1.bf16.msra.mxu0 %v4752
    %6125 = vmatprep.subr.bf16.mxu0 %v4759
    %6126 = vmatpush1.bf16.msra.mxu0 %v4758
    %6127 = vmatprep.subr.bf16.mxu0 %v4765
    %6128 = vmatpush1.bf16.msra.mxu0 %v4764
    %6129 = vmatprep.subr.bf16.mxu0 %v4771
    %6130 = vmatpush1.bf16.msra.mxu0 %v4770
    %6131 = vmatprep.subr.bf16.mxu0 %v4777
    %6132 = vmatpush1.bf16.msra.mxu0 %v4776
    %6133 = vmatprep.subr.bf16.mxu0 %v4783
    %6134 = vmatpush1.bf16.msra.mxu0 %v4782
    %6135 = vmatprep.subr.bf16.mxu0 %v4789
    %6136 = vmatpush1.bf16.msra.mxu0 %v4788
    %6137 = vmatprep.subr.bf16.mxu0 %v4795
    %6138 = vmatpush1.bf16.msra.mxu0 %v4794
    %6139 = vmatprep.subr.bf16.mxu0 %v4801
    %6140 = vmatpush1.bf16.msra.mxu0 %v4800
    %6141 = vmatprep.subr.bf16.mxu0 %v4807
    %6142 = vmatpush1.bf16.msra.mxu0 %v4806
    %6143 = vmatprep.subr.bf16.mxu0 %v4813
    %6144 = vmatpush1.bf16.msra.mxu0 %v4812
    %6145 = vmatprep.subr.bf16.mxu0 %v4819
    %6146 = vmatpush1.bf16.msra.mxu0 %v4818
    %6147 = vmatprep.subr.bf16.mxu0 %v4825
    %6148 = vmatpush1.bf16.msra.mxu0 %v4824
    %6149 = vmatprep.subr.bf16.mxu0 %v4831
    %6150 = vmatpush1.bf16.msra.mxu0 %v4830
    %6151 = vmatprep.subr.bf16.mxu0 %v4837
    %6152 = vmatpush1.bf16.msra.mxu0 %v4836
    %6153 = vmatprep.subr.bf16.mxu0 %v4843
    %6154 = vmatpush1.bf16.msra.mxu0 %v4842
    %6155 = vmatprep.mubr.bf16.mxu0 %v2135
    %6156 = vmatmul.mubr.bf16.gmra.mrb[0].mxu0 %v2134
    %v6157 = vpop.f32.mrb[0].mxu0
    %v6158 = vadd.f32 %v6117, %v6157
    %v6159 = vpop.f32.mrb[0].mxu0
    %v6160 = vadd.f32 %v6119, %v6159
    %v6161 = vpop.f32.mrb[0].mxu0
    %v6162 = vpop.f32.mrb[0].mxu0
    %6163 = vdwg.mxu0
    %6164 = vmatprep.subr.bf16.mxu0 %v4849
    %6165 = vmatpush1.bf16.msra.mxu0 %v4848
    %6166 = vmatprep.subr.bf16.mxu0 %v4855
    %6167 = vmatpush1.bf16.msra.mxu0 %v4854
    %6168 = vmatprep.subr.bf16.mxu0 %v4861
    %6169 = vmatpush1.bf16.msra.mxu0 %v4860
    %6170 = vmatprep.subr.bf16.mxu0 %v4867
    %6171 = vmatpush1.bf16.msra.mxu0 %v4866
    %6172 = vmatprep.subr.bf16.mxu0 %v4873
    %6173 = vmatpush1.bf16.msra.mxu0 %v4872
    %6174 = vmatprep.subr.bf16.mxu0 %v4879
    %6175 = vmatpush1.bf16.msra.mxu0 %v4878
    %6176 = vmatprep.subr.bf16.mxu0 %v4885
    %6177 = vmatpush1.bf16.msra.mxu0 %v4884
    %6178 = vmatprep.subr.bf16.mxu0 %v4891
    %6179 = vmatpush1.bf16.msra.mxu0 %v4890
    %6180 = vmatprep.subr.bf16.mxu0 %v4897
    %6181 = vmatpush1.bf16.msra.mxu0 %v4896
    %6182 = vmatprep.subr.bf16.mxu0 %v4903
    %6183 = vmatpush1.bf16.msra.mxu0 %v4902
    %6184 = vmatprep.subr.bf16.mxu0 %v4909
    %6185 = vmatpush1.bf16.msra.mxu0 %v4908
    %6186 = vmatprep.subr.bf16.mxu0 %v4915
    %6187 = vmatpush1.bf16.msra.mxu0 %v4914
    %6188 = vmatprep.subr.bf16.mxu0 %v4921
    %6189 = vmatpush1.bf16.msra.mxu0 %v4920
    %6190 = vmatprep.subr.bf16.mxu0 %v4927
    %6191 = vmatpush1.bf16.msra.mxu0 %v4926
    %6192 = vmatprep.subr.bf16.mxu0 %v4933
    %6193 = vmatpush1.bf16.msra.mxu0 %v4932
    %6194 = vmatprep.subr.bf16.mxu0 %v4939
    %6195 = vmatpush1.bf16.msra.mxu0 %v4938
    %6196 = vmatprep.mubr.bf16.mxu0 %v2137
    %6197 = vmatmul.mubr.bf16.gmra.mrb[0].mxu0 %v2136
    %v6198 = vpop.f32.mrb[0].mxu0
    %v6199 = vadd.f32 %v6158, %v6198
    %v6200 = vpop.f32.mrb[0].mxu0
    %v6201 = vadd.f32 %v6160, %v6200
    %v6202 = vpop.f32.mrb[0].mxu0
    %v6203 = vpop.f32.mrb[0].mxu0
    %6204 = vdwg.mxu0
    %6205 = vmatprep.subr.bf16.mxu0 %v4945
    %6206 = vmatpush1.bf16.msra.mxu0 %v4944
    %6207 = vmatprep.subr.bf16.mxu0 %v4951
    %6208 = vmatpush1.bf16.msra.mxu0 %v4950
    %6209 = vmatprep.subr.bf16.mxu0 %v4957
    %6210 = vmatpush1.bf16.msra.mxu0 %v4956
    %6211 = vmatprep.subr.bf16.mxu0 %v4963
    %6212 = vmatpush1.bf16.msra.mxu0 %v4962
    %6213 = vmatprep.subr.bf16.mxu0 %v4969
    %6214 = vmatpush1.bf16.msra.mxu0 %v4968
    %6215 = vmatprep.subr.bf16.mxu0 %v4975
    %6216 = vmatpush1.bf16.msra.mxu0 %v4974
    %6217 = vmatprep.subr.bf16.mxu0 %v4981
    %6218 = vmatpush1.bf16.msra.mxu0 %v4980
    %6219 = vmatprep.subr.bf16.mxu0 %v4987
    %6220 = vmatpush1.bf16.msra.mxu0 %v4986
    %6221 = vmatprep.subr.bf16.mxu0 %v4993
    %6222 = vmatpush1.bf16.msra.mxu0 %v4992
    %6223 = vmatprep.subr.bf16.mxu0 %v4999
    %6224 = vmatpush1.bf16.msra.mxu0 %v4998
    %6225 = vmatprep.subr.bf16.mxu0 %v5005
    %6226 = vmatpush1.bf16.msra.mxu0 %v5004
    %6227 = vmatprep.subr.bf16.mxu0 %v5011
    %6228 = vmatpush1.bf16.msra.mxu0 %v5010
    %6229 = vmatprep.subr.bf16.mxu0 %v5017
    %6230 = vmatpush1.bf16.msra.mxu0 %v5016
    %6231 = vmatprep.subr.bf16.mxu0 %v5023
    %6232 = vmatpush1.bf16.msra.mxu0 %v5022
    %6233 = vmatprep.subr.bf16.mxu0 %v5029
    %6234 = vmatpush1.bf16.msra.mxu0 %v5028
    %6235 = vmatprep.subr.bf16.mxu0 %v5035
    %6236 = vmatpush1.bf16.msra.mxu0 %v5034
    %6237 = vmatprep.mubr.bf16.mxu0 %v2139
    %6238 = vmatmul.mubr.bf16.gmra.mrb[0].mxu0 %v2138
    %v6239 = vpop.f32.mrb[0].mxu0
    %v6240 = vadd.f32 %v6199, %v6239
    %v6241 = vpop.f32.mrb[0].mxu0
    %v6242 = vadd.f32 %v6201, %v6241
    %v6243 = vpop.f32.mrb[0].mxu0
    %v6244 = vpop.f32.mrb[0].mxu0
    %6245 = vdwg.mxu0
    %6246 = vmatprep.subr.bf16.mxu0 %v5041
    %6247 = vmatpush1.bf16.msra.mxu0 %v5040
    %6248 = vmatprep.subr.bf16.mxu0 %v5047
    %6249 = vmatpush1.bf16.msra.mxu0 %v5046
    %6250 = vmatprep.subr.bf16.mxu0 %v5053
    %6251 = vmatpush1.bf16.msra.mxu0 %v5052
    %6252 = vmatprep.subr.bf16.mxu0 %v5059
    %6253 = vmatpush1.bf16.msra.mxu0 %v5058
    %6254 = vmatprep.subr.bf16.mxu0 %v5065
    %6255 = vmatpush1.bf16.msra.mxu0 %v5064
    %6256 = vmatprep.subr.bf16.mxu0 %v5071
    %6257 = vmatpush1.bf16.msra.mxu0 %v5070
    %6258 = vmatprep.subr.bf16.mxu0 %v5077
    %6259 = vmatpush1.bf16.msra.mxu0 %v5076
    %6260 = vmatprep.subr.bf16.mxu0 %v5083
    %6261 = vmatpush1.bf16.msra.mxu0 %v5082
    %6262 = vmatprep.subr.bf16.mxu0 %v5089
    %6263 = vmatpush1.bf16.msra.mxu0 %v5088
    %6264 = vmatprep.subr.bf16.mxu0 %v5095
    %6265 = vmatpush1.bf16.msra.mxu0 %v5094
    %6266 = vmatprep.subr.bf16.mxu0 %v5101
    %6267 = vmatpush1.bf16.msra.mxu0 %v5100
    %6268 = vmatprep.subr.bf16.mxu0 %v5107
    %6269 = vmatpush1.bf16.msra.mxu0 %v5106
    %6270 = vmatprep.subr.bf16.mxu0 %v5113
    %6271 = vmatpush1.bf16.msra.mxu0 %v5112
    %6272 = vmatprep.subr.bf16.mxu0 %v5119
    %6273 = vmatpush1.bf16.msra.mxu0 %v5118
    %6274 = vmatprep.subr.bf16.mxu0 %v5125
    %6275 = vmatpush1.bf16.msra.mxu0 %v5124
    %6276 = vmatprep.subr.bf16.mxu0 %v5131
    %6277 = vmatpush1.bf16.msra.mxu0 %v5130
    %6278 = vmatprep.mubr.bf16.mxu0 %v2141
    %6279 = vmatmul.mubr.bf16.gmra.mrb[0].mxu0 %v2140
    %v6280 = vpop.f32.mrb[0].mxu0
    %v6281 = vadd.f32 %v6240, %v6280
    %v6282 = vpop.f32.mrb[0].mxu0
    %v6283 = vadd.f32 %v6242, %v6282
    %v6284 = vpop.f32.mrb[0].mxu0
    %v6285 = vpop.f32.mrb[0].mxu0
    %6286 = vdwg.mxu0
    %6287 = vmatprep.subr.bf16.mxu0 %v5137
    %6288 = vmatpush1.bf16.msra.mxu0 %v5136
    %6289 = vmatprep.subr.bf16.mxu0 %v5143
    %6290 = vmatpush1.bf16.msra.mxu0 %v5142
    %6291 = vmatprep.subr.bf16.mxu0 %v5149
    %6292 = vmatpush1.bf16.msra.mxu0 %v5148
    %6293 = vmatprep.subr.bf16.mxu0 %v5155
    %6294 = vmatpush1.bf16.msra.mxu0 %v5154
    %6295 = vmatprep.subr.bf16.mxu0 %v5161
    %6296 = vmatpush1.bf16.msra.mxu0 %v5160
    %6297 = vmatprep.subr.bf16.mxu0 %v5167
    %6298 = vmatpush1.bf16.msra.mxu0 %v5166
    %6299 = vmatprep.subr.bf16.mxu0 %v5173
    %6300 = vmatpush1.bf16.msra.mxu0 %v5172
    %6301 = vmatprep.subr.bf16.mxu0 %v5179
    %6302 = vmatpush1.bf16.msra.mxu0 %v5178
    %6303 = vmatprep.subr.bf16.mxu0 %v5185
    %6304 = vmatpush1.bf16.msra.mxu0 %v5184
    %6305 = vmatprep.subr.bf16.mxu0 %v5191
    %6306 = vmatpush1.bf16.msra.mxu0 %v5190
    %6307 = vmatprep.subr.bf16.mxu0 %v5197
    %6308 = vmatpush1.bf16.msra.mxu0 %v5196
    %6309 = vmatprep.subr.bf16.mxu0 %v5203
    %6310 = vmatpush1.bf16.msra.mxu0 %v5202
    %6311 = vmatprep.subr.bf16.mxu0 %v5209
    %6312 = vmatpush1.bf16.msra.mxu0 %v5208
    %6313 = vmatprep.subr.bf16.mxu0 %v5215
    %6314 = vmatpush1.bf16.msra.mxu0 %v5214
    %6315 = vmatprep.subr.bf16.mxu0 %v5221
    %6316 = vmatpush1.bf16.msra.mxu0 %v5220
    %6317 = vmatprep.subr.bf16.mxu0 %v5227
    %6318 = vmatpush1.bf16.msra.mxu0 %v5226
    %6319 = vmatprep.mubr.bf16.mxu0 %v2143
    %6320 = vmatmul.mubr.bf16.gmra.mrb[0].mxu0 %v2142
    %v6321 = vpop.f32.mrb[0].mxu0
    %v6322 = vadd.f32 %v6281, %v6321
    %v6323 = vpop.f32.mrb[0].mxu0
    %v6324 = vadd.f32 %v6283, %v6323
    %v6325 = vpop.f32.mrb[0].mxu0
    %v6326 = vpop.f32.mrb[0].mxu0
    %6327 = vdwg.mxu0
    %6328 = vmatprep.subr.bf16.mxu0 %v4467
    %6329 = vmatpush1.bf16.msra.mxu0 %v4466
    %6330 = vmatprep.subr.bf16.mxu0 %v4473
    %6331 = vmatpush1.bf16.msra.mxu0 %v4472
    %6332 = vmatprep.subr.bf16.mxu0 %v4479
    %6333 = vmatpush1.bf16.msra.mxu0 %v4478
    %6334 = vmatprep.subr.bf16.mxu0 %v4485
    %6335 = vmatpush1.bf16.msra.mxu0 %v4484
    %6336 = vmatprep.subr.bf16.mxu0 %v4491
    %6337 = vmatpush1.bf16.msra.mxu0 %v4490
    %6338 = vmatprep.subr.bf16.mxu0 %v4497
    %6339 = vmatpush1.bf16.msra.mxu0 %v4496
    %6340 = vmatprep.subr.bf16.mxu0 %v4503
    %6341 = vmatpush1.bf16.msra.mxu0 %v4502
    %6342 = vmatprep.subr.bf16.mxu0 %v4509
    %6343 = vmatpush1.bf16.msra.mxu0 %v4508
    %6344 = vmatprep.subr.bf16.mxu0 %v4515
    %6345 = vmatpush1.bf16.msra.mxu0 %v4514
    %6346 = vmatprep.subr.bf16.mxu0 %v4521
    %6347 = vmatpush1.bf16.msra.mxu0 %v4520
    %6348 = vmatprep.subr.bf16.mxu0 %v4527
    %6349 = vmatpush1.bf16.msra.mxu0 %v4526
    %6350 = vmatprep.subr.bf16.mxu0 %v4533
    %6351 = vmatpush1.bf16.msra.mxu0 %v4532
    %6352 = vmatprep.subr.bf16.mxu0 %v4539
    %6353 = vmatpush1.bf16.msra.mxu0 %v4538
    %6354 = vmatprep.subr.bf16.mxu0 %v4545
    %6355 = vmatpush1.bf16.msra.mxu0 %v4544
    %6356 = vmatprep.subr.bf16.mxu0 %v4551
    %6357 = vmatpush1.bf16.msra.mxu0 %v4550
    %6358 = vmatprep.subr.bf16.mxu0 %v4557
    %6359 = vmatpush1.bf16.msra.mxu0 %v4556
    %6360 = vmatprep.mubr.bf16.mxu0 %v2129
    %6361 = vmatmul.mubr.bf16.gmra.mrb[0].mxu0 %v2128
    %v6362 = vpop.f32.mrb[0].mxu0
    %v6363 = vadd.f32 0.0, %v6362
    %v6364 = vpop.f32.mrb[0].mxu0
    %v6365 = vadd.f32 0.0, %v6364
    %v6366 = vpop.f32.mrb[0].mxu0
    %v6367 = vpop.f32.mrb[0].mxu0
    %6368 = vdwg.mxu0
    %6369 = vmatprep.subr.bf16.mxu0 %v4563
    %6370 = vmatpush1.bf16.msra.mxu0 %v4562
    %6371 = vmatprep.subr.bf16.mxu0 %v4569
    %6372 = vmatpush1.bf16.msra.mxu0 %v4568
    %6373 = vmatprep.subr.bf16.mxu0 %v4575
    %6374 = vmatpush1.bf16.msra.mxu0 %v4574
    %6375 = vmatprep.subr.bf16.mxu0 %v4581
    %6376 = vmatpush1.bf16.msra.mxu0 %v4580
    %6377 = vmatprep.subr.bf16.mxu0 %v4587
    %6378 = vmatpush1.bf16.msra.mxu0 %v4586
    %6379 = vmatprep.subr.bf16.mxu0 %v4593
    %6380 = vmatpush1.bf16.msra.mxu0 %v4592
    %6381 = vmatprep.subr.bf16.mxu0 %v4599
    %6382 = vmatpush1.bf16.msra.mxu0 %v4598
    %6383 = vmatprep.subr.bf16.mxu0 %v4605
    %6384 = vmatpush1.bf16.msra.mxu0 %v4604
    %6385 = vmatprep.subr.bf16.mxu0 %v4611
    %6386 = vmatpush1.bf16.msra.mxu0 %v4610
    %6387 = vmatprep.subr.bf16.mxu0 %v4617
    %6388 = vmatpush1.bf16.msra.mxu0 %v4616
    %6389 = vmatprep.subr.bf16.mxu0 %v4623
    %6390 = vmatpush1.bf16.msra.mxu0 %v4622
    %6391 = vmatprep.subr.bf16.mxu0 %v4629
    %6392 = vmatpush1.bf16.msra.mxu0 %v4628
    %6393 = vmatprep.subr.bf16.mxu0 %v4635
    %6394 = vmatpush1.bf16.msra.mxu0 %v4634
    %6395 = vmatprep.subr.bf16.mxu0 %v4641
    %6396 = vmatpush1.bf16.msra.mxu0 %v4640
    %6397 = vmatprep.subr.bf16.mxu0 %v4647
    %6398 = vmatpush1.bf16.msra.mxu0 %v4646
    %6399 = vmatprep.subr.bf16.mxu0 %v4653
    %6400 = vmatpush1.bf16.msra.mxu0 %v4652
    %6401 = vmatprep.mubr.bf16.mxu0 %v2131
    %6402 = vmatmul.mubr.bf16.gmra.mrb[0].mxu0 %v2130
    %v6403 = vpop.f32.mrb[0].mxu0
    %v6404 = vadd.f32 %v6363, %v6403
    %v6405 = vpop.f32.mrb[0].mxu0
    %v6406 = vadd.f32 %v6365, %v6405
    %v6407 = vpop.f32.mrb[0].mxu0
    %v6408 = vpop.f32.mrb[0].mxu0
    %6409 = vdwg.mxu0
    %6410 = vmatprep.subr.bf16.mxu0 %v4659
    %6411 = vmatpush1.bf16.msra.mxu0 %v4658
    %6412 = vmatprep.subr.bf16.mxu0 %v4665
    %6413 = vmatpush1.bf16.msra.mxu0 %v4664
    %6414 = vmatprep.subr.bf16.mxu0 %v4671
    %6415 = vmatpush1.bf16.msra.mxu0 %v4670
    %6416 = vmatprep.subr.bf16.mxu0 %v4677
    %6417 = vmatpush1.bf16.msra.mxu0 %v4676
    %6418 = vmatprep.subr.bf16.mxu0 %v4683
    %6419 = vmatpush1.bf16.msra.mxu0 %v4682
    %6420 = vmatprep.subr.bf16.mxu0 %v4689
    %6421 = vmatpush1.bf16.msra.mxu0 %v4688
    %6422 = vmatprep.subr.bf16.mxu0 %v4695
    %6423 = vmatpush1.bf16.msra.mxu0 %v4694
    %6424 = vmatprep.subr.bf16.mxu0 %v4701
    %6425 = vmatpush1.bf16.msra.mxu0 %v4700
    %6426 = vmatprep.subr.bf16.mxu0 %v4707
    %6427 = vmatpush1.bf16.msra.mxu0 %v4706
    %6428 = vmatprep.subr.bf16.mxu0 %v4713
    %6429 = vmatpush1.bf16.msra.mxu0 %v4712
    %6430 = vmatprep.subr.bf16.mxu0 %v4719
    %6431 = vmatpush1.bf16.msra.mxu0 %v4718
    %6432 = vmatprep.subr.bf16.mxu0 %v4725
    %6433 = vmatpush1.bf16.msra.mxu0 %v4724
    %6434 = vmatprep.subr.bf16.mxu0 %v4731
    %6435 = vmatpush1.bf16.msra.mxu0 %v4730
    %6436 = vmatprep.subr.bf16.mxu0 %v4737
    %6437 = vmatpush1.bf16.msra.mxu0 %v4736
    %6438 = vmatprep.subr.bf16.mxu0 %v4743
    %6439 = vmatpush1.bf16.msra.mxu0 %v4742
    %6440 = vmatprep.subr.bf16.mxu0 %v4749
    %6441 = vmatpush1.bf16.msra.mxu0 %v4748
    %6442 = vmatprep.mubr.bf16.mxu0 %v2133
    %6443 = vmatmul.mubr.bf16.gmra.mrb[0].mxu0 %v2132
    %v6444 = vpop.f32.mrb[0].mxu0
    %v6445 = vadd.f32 %v6404, %v6444
    %v6446 = vpop.f32.mrb[0].mxu0
    %v6447 = vadd.f32 %v6406, %v6446
    %v6448 = vpop.f32.mrb[0].mxu0
    %v6449 = vpop.f32.mrb[0].mxu0
    %6450 = vdwg.mxu0
    %6451 = vmatprep.subr.bf16.mxu0 %v4755
    %6452 = vmatpush1.bf16.msra.mxu0 %v4754
    %6453 = vmatprep.subr.bf16.mxu0 %v4761
    %6454 = vmatpush1.bf16.msra.mxu0 %v4760
    %6455 = vmatprep.subr.bf16.mxu0 %v4767
    %6456 = vmatpush1.bf16.msra.mxu0 %v4766
    %6457 = vmatprep.subr.bf16.mxu0 %v4773
    %6458 = vmatpush1.bf16.msra.mxu0 %v4772
    %6459 = vmatprep.subr.bf16.mxu0 %v4779
    %6460 = vmatpush1.bf16.msra.mxu0 %v4778
    %6461 = vmatprep.subr.bf16.mxu0 %v4785
    %6462 = vmatpush1.bf16.msra.mxu0 %v4784
    %6463 = vmatprep.subr.bf16.mxu0 %v4791
    %6464 = vmatpush1.bf16.msra.mxu0 %v4790
    %6465 = vmatprep.subr.bf16.mxu0 %v4797
    %6466 = vmatpush1.bf16.msra.mxu0 %v4796
    %6467 = vmatprep.subr.bf16.mxu0 %v4803
    %6468 = vmatpush1.bf16.msra.mxu0 %v4802
    %6469 = vmatprep.subr.bf16.mxu0 %v4809
    %6470 = vmatpush1.bf16.msra.mxu0 %v4808
    %6471 = vmatprep.subr.bf16.mxu0 %v4815
    %6472 = vmatpush1.bf16.msra.mxu0 %v4814
    %6473 = vmatprep.subr.bf16.mxu0 %v4821
    %6474 = vmatpush1.bf16.msra.mxu0 %v4820
    %6475 = vmatprep.subr.bf16.mxu0 %v4827
    %6476 = vmatpush1.bf16.msra.mxu0 %v4826
    %6477 = vmatprep.subr.bf16.mxu0 %v4833
    %6478 = vmatpush1.bf16.msra.mxu0 %v4832
    %6479 = vmatprep.subr.bf16.mxu0 %v4839
    %6480 = vmatpush1.bf16.msra.mxu0 %v4838
    %6481 = vmatprep.subr.bf16.mxu0 %v4845
    %6482 = vmatpush1.bf16.msra.mxu0 %v4844
    %6483 = vmatprep.mubr.bf16.mxu0 %v2135
    %6484 = vmatmul.mubr.bf16.gmra.mrb[0].mxu0 %v2134
    %v6485 = vpop.f32.mrb[0].mxu0
    %v6486 = vadd.f32 %v6445, %v6485
    %v6487 = vpop.f32.mrb[0].mxu0
    %v6488 = vadd.f32 %v6447, %v6487
    %v6489 = vpop.f32.mrb[0].mxu0
    %v6490 = vpop.f32.mrb[0].mxu0
    %6491 = vdwg.mxu0
    %6492 = vmatprep.subr.bf16.mxu0 %v4851
    %6493 = vmatpush1.bf16.msra.mxu0 %v4850
    %6494 = vmatprep.subr.bf16.mxu0 %v4857
    %6495 = vmatpush1.bf16.msra.mxu0 %v4856
    %6496 = vmatprep.subr.bf16.mxu0 %v4863
    %6497 = vmatpush1.bf16.msra.mxu0 %v4862
    %6498 = vmatprep.subr.bf16.mxu0 %v4869
    %6499 = vmatpush1.bf16.msra.mxu0 %v4868
    %6500 = vmatprep.subr.bf16.mxu0 %v4875
    %6501 = vmatpush1.bf16.msra.mxu0 %v4874
    %6502 = vmatprep.subr.bf16.mxu0 %v4881
    %6503 = vmatpush1.bf16.msra.mxu0 %v4880
    %6504 = vmatprep.subr.bf16.mxu0 %v4887
    %6505 = vmatpush1.bf16.msra.mxu0 %v4886
    %6506 = vmatprep.subr.bf16.mxu0 %v4893
    %6507 = vmatpush1.bf16.msra.mxu0 %v4892
    %6508 = vmatprep.subr.bf16.mxu0 %v4899
    %6509 = vmatpush1.bf16.msra.mxu0 %v4898
    %6510 = vmatprep.subr.bf16.mxu0 %v4905
    %6511 = vmatpush1.bf16.msra.mxu0 %v4904
    %6512 = vmatprep.subr.bf16.mxu0 %v4911
    %6513 = vmatpush1.bf16.msra.mxu0 %v4910
    %6514 = vmatprep.subr.bf16.mxu0 %v4917
    %6515 = vmatpush1.bf16.msra.mxu0 %v4916
    %6516 = vmatprep.subr.bf16.mxu0 %v4923
    %6517 = vmatpush1.bf16.msra.mxu0 %v4922
    %6518 = vmatprep.subr.bf16.mxu0 %v4929
    %6519 = vmatpush1.bf16.msra.mxu0 %v4928
    %6520 = vmatprep.subr.bf16.mxu0 %v4935
    %6521 = vmatpush1.bf16.msra.mxu0 %v4934
    %6522 = vmatprep.subr.bf16.mxu0 %v4941
    %6523 = vmatpush1.bf16.msra.mxu0 %v4940
    %6524 = vmatprep.mubr.bf16.mxu0 %v2137
    %6525 = vmatmul.mubr.bf16.gmra.mrb[0].mxu0 %v2136
    %v6526 = vpop.f32.mrb[0].mxu0
    %v6527 = vadd.f32 %v6486, %v6526
    %v6528 = vpop.f32.mrb[0].mxu0
    %v6529 = vadd.f32 %v6488, %v6528
    %v6530 = vpop.f32.mrb[0].mxu0
    %v6531 = vpop.f32.mrb[0].mxu0
    %6532 = vdwg.mxu0
    %6533 = vmatprep.subr.bf16.mxu0 %v4947
    %6534 = vmatpush1.bf16.msra.mxu0 %v4946
    %6535 = vmatprep.subr.bf16.mxu0 %v4953
    %6536 = vmatpush1.bf16.msra.mxu0 %v4952
    %6537 = vmatprep.subr.bf16.mxu0 %v4959
    %6538 = vmatpush1.bf16.msra.mxu0 %v4958
    %6539 = vmatprep.subr.bf16.mxu0 %v4965
    %6540 = vmatpush1.bf16.msra.mxu0 %v4964
    %6541 = vmatprep.subr.bf16.mxu0 %v4971
    %6542 = vmatpush1.bf16.msra.mxu0 %v4970
    %6543 = vmatprep.subr.bf16.mxu0 %v4977
    %6544 = vmatpush1.bf16.msra.mxu0 %v4976
    %6545 = vmatprep.subr.bf16.mxu0 %v4983
    %6546 = vmatpush1.bf16.msra.mxu0 %v4982
    %6547 = vmatprep.subr.bf16.mxu0 %v4989
    %6548 = vmatpush1.bf16.msra.mxu0 %v4988
    %6549 = vmatprep.subr.bf16.mxu0 %v4995
    %6550 = vmatpush1.bf16.msra.mxu0 %v4994
    %6551 = vmatprep.subr.bf16.mxu0 %v5001
    %6552 = vmatpush1.bf16.msra.mxu0 %v5000
    %6553 = vmatprep.subr.bf16.mxu0 %v5007
    %6554 = vmatpush1.bf16.msra.mxu0 %v5006
    %6555 = vmatprep.subr.bf16.mxu0 %v5013
    %6556 = vmatpush1.bf16.msra.mxu0 %v5012
    %6557 = vmatprep.subr.bf16.mxu0 %v5019
    %6558 = vmatpush1.bf16.msra.mxu0 %v5018
    %6559 = vmatprep.subr.bf16.mxu0 %v5025
    %6560 = vmatpush1.bf16.msra.mxu0 %v5024
    %6561 = vmatprep.subr.bf16.mxu0 %v5031
    %6562 = vmatpush1.bf16.msra.mxu0 %v5030
    %6563 = vmatprep.subr.bf16.mxu0 %v5037
    %6564 = vmatpush1.bf16.msra.mxu0 %v5036
    %6565 = vmatprep.mubr.bf16.mxu0 %v2139
    %6566 = vmatmul.mubr.bf16.gmra.mrb[0].mxu0 %v2138
    %v6567 = vpop.f32.mrb[0].mxu0
    %v6568 = vadd.f32 %v6527, %v6567
    %v6569 = vpop.f32.mrb[0].mxu0
    %v6570 = vadd.f32 %v6529, %v6569
    %v6571 = vpop.f32.mrb[0].mxu0
    %v6572 = vpop.f32.mrb[0].mxu0
    %6573 = vdwg.mxu0
    %6574 = vmatprep.subr.bf16.mxu0 %v5043
    %6575 = vmatpush1.bf16.msra.mxu0 %v5042
    %6576 = vmatprep.subr.bf16.mxu0 %v5049
    %6577 = vmatpush1.bf16.msra.mxu0 %v5048
    %6578 = vmatprep.subr.bf16.mxu0 %v5055
    %6579 = vmatpush1.bf16.msra.mxu0 %v5054
    %6580 = vmatprep.subr.bf16.mxu0 %v5061
    %6581 = vmatpush1.bf16.msra.mxu0 %v5060
    %6582 = vmatprep.subr.bf16.mxu0 %v5067
    %6583 = vmatpush1.bf16.msra.mxu0 %v5066
    %6584 = vmatprep.subr.bf16.mxu0 %v5073
    %6585 = vmatpush1.bf16.msra.mxu0 %v5072
    %6586 = vmatprep.subr.bf16.mxu0 %v5079
    %6587 = vmatpush1.bf16.msra.mxu0 %v5078
    %6588 = vmatprep.subr.bf16.mxu0 %v5085
    %6589 = vmatpush1.bf16.msra.mxu0 %v5084
    %6590 = vmatprep.subr.bf16.mxu0 %v5091
    %6591 = vmatpush1.bf16.msra.mxu0 %v5090
    %6592 = vmatprep.subr.bf16.mxu0 %v5097
    %6593 = vmatpush1.bf16.msra.mxu0 %v5096
    %6594 = vmatprep.subr.bf16.mxu0 %v5103
    %6595 = vmatpush1.bf16.msra.mxu0 %v5102
    %6596 = vmatprep.subr.bf16.mxu0 %v5109
    %6597 = vmatpush1.bf16.msra.mxu0 %v5108
    %6598 = vmatprep.subr.bf16.mxu0 %v5115
    %6599 = vmatpush1.bf16.msra.mxu0 %v5114
    %6600 = vmatprep.subr.bf16.mxu0 %v5121
    %6601 = vmatpush1.bf16.msra.mxu0 %v5120
    %6602 = vmatprep.subr.bf16.mxu0 %v5127
    %6603 = vmatpush1.bf16.msra.mxu0 %v5126
    %6604 = vmatprep.subr.bf16.mxu0 %v5133
    %6605 = vmatpush1.bf16.msra.mxu0 %v5132
    %6606 = vmatprep.mubr.bf16.mxu0 %v2141
    %6607 = vmatmul.mubr.bf16.gmra.mrb[0].mxu0 %v2140
    %v6608 = vpop.f32.mrb[0].mxu0
    %v6609 = vadd.f32 %v6568, %v6608
    %v6610 = vpop.f32.mrb[0].mxu0
    %v6611 = vadd.f32 %v6570, %v6610
    %v6612 = vpop.f32.mrb[0].mxu0
    %v6613 = vpop.f32.mrb[0].mxu0
    %6614 = vdwg.mxu0
    %6615 = vmatprep.subr.bf16.mxu0 %v5139
    %6616 = vmatpush1.bf16.msra.mxu0 %v5138
    %6617 = vmatprep.subr.bf16.mxu0 %v5145
    %6618 = vmatpush1.bf16.msra.mxu0 %v5144
    %6619 = vmatprep.subr.bf16.mxu0 %v5151
    %6620 = vmatpush1.bf16.msra.mxu0 %v5150
    %6621 = vmatprep.subr.bf16.mxu0 %v5157
    %6622 = vmatpush1.bf16.msra.mxu0 %v5156
    %6623 = vmatprep.subr.bf16.mxu0 %v5163
    %6624 = vmatpush1.bf16.msra.mxu0 %v5162
    %6625 = vmatprep.subr.bf16.mxu0 %v5169
    %6626 = vmatpush1.bf16.msra.mxu0 %v5168
    %6627 = vmatprep.subr.bf16.mxu0 %v5175
    %6628 = vmatpush1.bf16.msra.mxu0 %v5174
    %6629 = vmatprep.subr.bf16.mxu0 %v5181
    %6630 = vmatpush1.bf16.msra.mxu0 %v5180
    %6631 = vmatprep.subr.bf16.mxu0 %v5187
    %6632 = vmatpush1.bf16.msra.mxu0 %v5186
    %6633 = vmatprep.subr.bf16.mxu0 %v5193
    %6634 = vmatpush1.bf16.msra.mxu0 %v5192
    %6635 = vmatprep.subr.bf16.mxu0 %v5199
    %6636 = vmatpush1.bf16.msra.mxu0 %v5198
    %6637 = vmatprep.subr.bf16.mxu0 %v5205
    %6638 = vmatpush1.bf16.msra.mxu0 %v5204
    %6639 = vmatprep.subr.bf16.mxu0 %v5211
    %6640 = vmatpush1.bf16.msra.mxu0 %v5210
    %6641 = vmatprep.subr.bf16.mxu0 %v5217
    %6642 = vmatpush1.bf16.msra.mxu0 %v5216
    %6643 = vmatprep.subr.bf16.mxu0 %v5223
    %6644 = vmatpush1.bf16.msra.mxu0 %v5222
    %6645 = vmatprep.subr.bf16.mxu0 %v5229
    %6646 = vmatpush1.bf16.msra.mxu0 %v5228
    %6647 = vmatprep.mubr.bf16.mxu0 %v2143
    %6648 = vmatmul.mubr.bf16.gmra.mrb[0].mxu0 %v2142
    %v6649 = vpop.f32.mrb[0].mxu0
    %v6650 = vadd.f32 %v6609, %v6649
    %v6651 = vpop.f32.mrb[0].mxu0
    %v6652 = vadd.f32 %v6611, %v6651
    %v6653 = vpop.f32.mrb[0].mxu0
    %v6654 = vpop.f32.mrb[0].mxu0
    %6655 = vdwg.mxu0
    %6656 = vmatprep.subr.bf16.mxu0 %v4469
    %6657 = vmatpush1.bf16.msra.mxu0 %v4468
    %6658 = vmatprep.subr.bf16.mxu0 %v4475
    %6659 = vmatpush1.bf16.msra.mxu0 %v4474
    %6660 = vmatprep.subr.bf16.mxu0 %v4481
    %6661 = vmatpush1.bf16.msra.mxu0 %v4480
    %6662 = vmatprep.subr.bf16.mxu0 %v4487
    %6663 = vmatpush1.bf16.msra.mxu0 %v4486
    %6664 = vmatprep.subr.bf16.mxu0 %v4493
    %6665 = vmatpush1.bf16.msra.mxu0 %v4492
    %6666 = vmatprep.subr.bf16.mxu0 %v4499
    %6667 = vmatpush1.bf16.msra.mxu0 %v4498
    %6668 = vmatprep.subr.bf16.mxu0 %v4505
    %6669 = vmatpush1.bf16.msra.mxu0 %v4504
    %6670 = vmatprep.subr.bf16.mxu0 %v4511
    %6671 = vmatpush1.bf16.msra.mxu0 %v4510
    %6672 = vmatprep.subr.bf16.mxu0 %v4517
    %6673 = vmatpush1.bf16.msra.mxu0 %v4516
    %6674 = vmatprep.subr.bf16.mxu0 %v4523
    %6675 = vmatpush1.bf16.msra.mxu0 %v4522
    %6676 = vmatprep.subr.bf16.mxu0 %v4529
    %6677 = vmatpush1.bf16.msra.mxu0 %v4528
    %6678 = vmatprep.subr.bf16.mxu0 %v4535
    %6679 = vmatpush1.bf16.msra.mxu0 %v4534
    %6680 = vmatprep.subr.bf16.mxu0 %v4541
    %6681 = vmatpush1.bf16.msra.mxu0 %v4540
    %6682 = vmatprep.subr.bf16.mxu0 %v4547
    %6683 = vmatpush1.bf16.msra.mxu0 %v4546
    %6684 = vmatprep.subr.bf16.mxu0 %v4553
    %6685 = vmatpush1.bf16.msra.mxu0 %v4552
    %6686 = vmatprep.subr.bf16.mxu0 %v4559
    %6687 = vmatpush1.bf16.msra.mxu0 %v4558
    %6688 = vmatprep.mubr.bf16.mxu0 %v2129
    %6689 = vmatmul.mubr.bf16.gmra.mrb[0].mxu0 %v2128
    %v6690 = vpop.f32.mrb[0].mxu0
    %v6691 = vadd.f32 0.0, %v6690
    %v6692 = vpop.f32.mrb[0].mxu0
    %v6693 = vadd.f32 0.0, %v6692
    %v6694 = vpop.f32.mrb[0].mxu0
    %v6695 = vpop.f32.mrb[0].mxu0
    %6696 = vdwg.mxu0
    %6697 = vmatprep.subr.bf16.mxu0 %v4565
    %6698 = vmatpush1.bf16.msra.mxu0 %v4564
    %6699 = vmatprep.subr.bf16.mxu0 %v4571
    %6700 = vmatpush1.bf16.msra.mxu0 %v4570
    %6701 = vmatprep.subr.bf16.mxu0 %v4577
    %6702 = vmatpush1.bf16.msra.mxu0 %v4576
    %6703 = vmatprep.subr.bf16.mxu0 %v4583
    %6704 = vmatpush1.bf16.msra.mxu0 %v4582
    %6705 = vmatprep.subr.bf16.mxu0 %v4589
    %6706 = vmatpush1.bf16.msra.mxu0 %v4588
    %6707 = vmatprep.subr.bf16.mxu0 %v4595
    %6708 = vmatpush1.bf16.msra.mxu0 %v4594
    %6709 = vmatprep.subr.bf16.mxu0 %v4601
    %6710 = vmatpush1.bf16.msra.mxu0 %v4600
    %6711 = vmatprep.subr.bf16.mxu0 %v4607
    %6712 = vmatpush1.bf16.msra.mxu0 %v4606
    %6713 = vmatprep.subr.bf16.mxu0 %v4613
    %6714 = vmatpush1.bf16.msra.mxu0 %v4612
    %6715 = vmatprep.subr.bf16.mxu0 %v4619
    %6716 = vmatpush1.bf16.msra.mxu0 %v4618
    %6717 = vmatprep.subr.bf16.mxu0 %v4625
    %6718 = vmatpush1.bf16.msra.mxu0 %v4624
    %6719 = vmatprep.subr.bf16.mxu0 %v4631
    %6720 = vmatpush1.bf16.msra.mxu0 %v4630
    %6721 = vmatprep.subr.bf16.mxu0 %v4637
    %6722 = vmatpush1.bf16.msra.mxu0 %v4636
    %6723 = vmatprep.subr.bf16.mxu0 %v4643
    %6724 = vmatpush1.bf16.msra.mxu0 %v4642
    %6725 = vmatprep.subr.bf16.mxu0 %v4649
    %6726 = vmatpush1.bf16.msra.mxu0 %v4648
    %6727 = vmatprep.subr.bf16.mxu0 %v4655
    %6728 = vmatpush1.bf16.msra.mxu0 %v4654
    %6729 = vmatprep.mubr.bf16.mxu0 %v2131
    %6730 = vmatmul.mubr.bf16.gmra.mrb[0].mxu0 %v2130
    %v6731 = vpop.f32.mrb[0].mxu0
    %v6732 = vadd.f32 %v6691, %v6731
    %v6733 = vpop.f32.mrb[0].mxu0
    %v6734 = vadd.f32 %v6693, %v6733
    %v6735 = vpop.f32.mrb[0].mxu0
    %v6736 = vpop.f32.mrb[0].mxu0
    %6737 = vdwg.mxu0
    %6738 = vmatprep.subr.bf16.mxu0 %v4661
    %6739 = vmatpush1.bf16.msra.mxu0 %v4660
    %6740 = vmatprep.subr.bf16.mxu0 %v4667
    %6741 = vmatpush1.bf16.msra.mxu0 %v4666
    %6742 = vmatprep.subr.bf16.mxu0 %v4673
    %6743 = vmatpush1.bf16.msra.mxu0 %v4672
    %6744 = vmatprep.subr.bf16.mxu0 %v4679
    %6745 = vmatpush1.bf16.msra.mxu0 %v4678
    %6746 = vmatprep.subr.bf16.mxu0 %v4685
    %6747 = vmatpush1.bf16.msra.mxu0 %v4684
    %6748 = vmatprep.subr.bf16.mxu0 %v4691
    %6749 = vmatpush1.bf16.msra.mxu0 %v4690
    %6750 = vmatprep.subr.bf16.mxu0 %v4697
    %6751 = vmatpush1.bf16.msra.mxu0 %v4696
    %6752 = vmatprep.subr.bf16.mxu0 %v4703
    %6753 = vmatpush1.bf16.msra.mxu0 %v4702
    %6754 = vmatprep.subr.bf16.mxu0 %v4709
    %6755 = vmatpush1.bf16.msra.mxu0 %v4708
    %6756 = vmatprep.subr.bf16.mxu0 %v4715
    %6757 = vmatpush1.bf16.msra.mxu0 %v4714
    %6758 = vmatprep.subr.bf16.mxu0 %v4721
    %6759 = vmatpush1.bf16.msra.mxu0 %v4720
    %6760 = vmatprep.subr.bf16.mxu0 %v4727
    %6761 = vmatpush1.bf16.msra.mxu0 %v4726
    %6762 = vmatprep.subr.bf16.mxu0 %v4733
    %6763 = vmatpush1.bf16.msra.mxu0 %v4732
    %6764 = vmatprep.subr.bf16.mxu0 %v4739
    %6765 = vmatpush1.bf16.msra.mxu0 %v4738
    %6766 = vmatprep.subr.bf16.mxu0 %v4745
    %6767 = vmatpush1.bf16.msra.mxu0 %v4744
    %6768 = vmatprep.subr.bf16.mxu0 %v4751
    %6769 = vmatpush1.bf16.msra.mxu0 %v4750
    %6770 = vmatprep.mubr.bf16.mxu0 %v2133
    %6771 = vmatmul.mubr.bf16.gmra.mrb[0].mxu0 %v2132
    %v6772 = vpop.f32.mrb[0].mxu0
    %v6773 = vadd.f32 %v6732, %v6772
    %v6774 = vpop.f32.mrb[0].mxu0
    %v6775 = vadd.f32 %v6734, %v6774
    %v6776 = vpop.f32.mrb[0].mxu0
    %v6777 = vpop.f32.mrb[0].mxu0
    %6778 = vdwg.mxu0
    %6779 = vmatprep.subr.bf16.mxu0 %v4757
    %6780 = vmatpush1.bf16.msra.mxu0 %v4756
    %6781 = vmatprep.subr.bf16.mxu0 %v4763
    %6782 = vmatpush1.bf16.msra.mxu0 %v4762
    %6783 = vmatprep.subr.bf16.mxu0 %v4769
    %6784 = vmatpush1.bf16.msra.mxu0 %v4768
    %6785 = vmatprep.subr.bf16.mxu0 %v4775
    %6786 = vmatpush1.bf16.msra.mxu0 %v4774
    %6787 = vmatprep.subr.bf16.mxu0 %v4781
    %6788 = vmatpush1.bf16.msra.mxu0 %v4780
    %6789 = vmatprep.subr.bf16.mxu0 %v4787
    %6790 = vmatpush1.bf16.msra.mxu0 %v4786
    %6791 = vmatprep.subr.bf16.mxu0 %v4793
    %6792 = vmatpush1.bf16.msra.mxu0 %v4792
    %6793 = vmatprep.subr.bf16.mxu0 %v4799
    %6794 = vmatpush1.bf16.msra.mxu0 %v4798
    %6795 = vmatprep.subr.bf16.mxu0 %v4805
    %6796 = vmatpush1.bf16.msra.mxu0 %v4804
    %6797 = vmatprep.subr.bf16.mxu0 %v4811
    %6798 = vmatpush1.bf16.msra.mxu0 %v4810
    %6799 = vmatprep.subr.bf16.mxu0 %v4817
    %6800 = vmatpush1.bf16.msra.mxu0 %v4816
    %6801 = vmatprep.subr.bf16.mxu0 %v4823
    %6802 = vmatpush1.bf16.msra.mxu0 %v4822
    %6803 = vmatprep.subr.bf16.mxu0 %v4829
    %6804 = vmatpush1.bf16.msra.mxu0 %v4828
    %6805 = vmatprep.subr.bf16.mxu0 %v4835
    %6806 = vmatpush1.bf16.msra.mxu0 %v4834
    %6807 = vmatprep.subr.bf16.mxu0 %v4841
    %6808 = vmatpush1.bf16.msra.mxu0 %v4840
    %6809 = vmatprep.subr.bf16.mxu0 %v4847
    %6810 = vmatpush1.bf16.msra.mxu0 %v4846
    %6811 = vmatprep.mubr.bf16.mxu0 %v2135
    %6812 = vmatmul.mubr.bf16.gmra.mrb[0].mxu0 %v2134
    %v6813 = vpop.f32.mrb[0].mxu0
    %v6814 = vadd.f32 %v6773, %v6813
    %v6815 = vpop.f32.mrb[0].mxu0
    %v6816 = vadd.f32 %v6775, %v6815
    %v6817 = vpop.f32.mrb[0].mxu0
    %v6818 = vpop.f32.mrb[0].mxu0
    %6819 = vdwg.mxu0
    %6820 = vmatprep.subr.bf16.mxu0 %v4853
    %6821 = vmatpush1.bf16.msra.mxu0 %v4852
    %6822 = vmatprep.subr.bf16.mxu0 %v4859
    %6823 = vmatpush1.bf16.msra.mxu0 %v4858
    %6824 = vmatprep.subr.bf16.mxu0 %v4865
    %6825 = vmatpush1.bf16.msra.mxu0 %v4864
    %6826 = vmatprep.subr.bf16.mxu0 %v4871
    %6827 = vmatpush1.bf16.msra.mxu0 %v4870
    %6828 = vmatprep.subr.bf16.mxu0 %v4877
    %6829 = vmatpush1.bf16.msra.mxu0 %v4876
    %6830 = vmatprep.subr.bf16.mxu0 %v4883
    %6831 = vmatpush1.bf16.msra.mxu0 %v4882
    %6832 = vmatprep.subr.bf16.mxu0 %v4889
    %6833 = vmatpush1.bf16.msra.mxu0 %v4888
    %6834 = vmatprep.subr.bf16.mxu0 %v4895
    %6835 = vmatpush1.bf16.msra.mxu0 %v4894
    %6836 = vmatprep.subr.bf16.mxu0 %v4901
    %6837 = vmatpush1.bf16.msra.mxu0 %v4900
    %6838 = vmatprep.subr.bf16.mxu0 %v4907
    %6839 = vmatpush1.bf16.msra.mxu0 %v4906
    %6840 = vmatprep.subr.bf16.mxu0 %v4913
    %6841 = vmatpush1.bf16.msra.mxu0 %v4912
    %6842 = vmatprep.subr.bf16.mxu0 %v4919
    %6843 = vmatpush1.bf16.msra.mxu0 %v4918
    %6844 = vmatprep.subr.bf16.mxu0 %v4925
    %6845 = vmatpush1.bf16.msra.mxu0 %v4924
    %6846 = vmatprep.subr.bf16.mxu0 %v4931
    %6847 = vmatpush1.bf16.msra.mxu0 %v4930
    %6848 = vmatprep.subr.bf16.mxu0 %v4937
    %6849 = vmatpush1.bf16.msra.mxu0 %v4936
    %6850 = vmatprep.subr.bf16.mxu0 %v4943
    %6851 = vmatpush1.bf16.msra.mxu0 %v4942
    %6852 = vmatprep.mubr.bf16.mxu0 %v2137
    %6853 = vmatmul.mubr.bf16.gmra.mrb[0].mxu0 %v2136
    %v6854 = vpop.f32.mrb[0].mxu0
    %v6855 = vadd.f32 %v6814, %v6854
    %v6856 = vpop.f32.mrb[0].mxu0
    %v6857 = vadd.f32 %v6816, %v6856
    %v6858 = vpop.f32.mrb[0].mxu0
    %v6859 = vpop.f32.mrb[0].mxu0
    %6860 = vdwg.mxu0
    %6861 = vmatprep.subr.bf16.mxu0 %v4949
    %6862 = vmatpush1.bf16.msra.mxu0 %v4948
    %6863 = vmatprep.subr.bf16.mxu0 %v4955
    %6864 = vmatpush1.bf16.msra.mxu0 %v4954
    %6865 = vmatprep.subr.bf16.mxu0 %v4961
    %6866 = vmatpush1.bf16.msra.mxu0 %v4960
    %6867 = vmatprep.subr.bf16.mxu0 %v4967
    %6868 = vmatpush1.bf16.msra.mxu0 %v4966
    %6869 = vmatprep.subr.bf16.mxu0 %v4973
    %6870 = vmatpush1.bf16.msra.mxu0 %v4972
    %6871 = vmatprep.subr.bf16.mxu0 %v4979
    %6872 = vmatpush1.bf16.msra.mxu0 %v4978
    %6873 = vmatprep.subr.bf16.mxu0 %v4985
    %6874 = vmatpush1.bf16.msra.mxu0 %v4984
    %6875 = vmatprep.subr.bf16.mxu0 %v4991
    %6876 = vmatpush1.bf16.msra.mxu0 %v4990
    %6877 = vmatprep.subr.bf16.mxu0 %v4997
    %6878 = vmatpush1.bf16.msra.mxu0 %v4996
    %6879 = vmatprep.subr.bf16.mxu0 %v5003
    %6880 = vmatpush1.bf16.msra.mxu0 %v5002
    %6881 = vmatprep.subr.bf16.mxu0 %v5009
    %6882 = vmatpush1.bf16.msra.mxu0 %v5008
    %6883 = vmatprep.subr.bf16.mxu0 %v5015
    %6884 = vmatpush1.bf16.msra.mxu0 %v5014
    %6885 = vmatprep.subr.bf16.mxu0 %v5021
    %6886 = vmatpush1.bf16.msra.mxu0 %v5020
    %6887 = vmatprep.subr.bf16.mxu0 %v5027
    %6888 = vmatpush1.bf16.msra.mxu0 %v5026
    %6889 = vmatprep.subr.bf16.mxu0 %v5033
    %6890 = vmatpush1.bf16.msra.mxu0 %v5032
    %6891 = vmatprep.subr.bf16.mxu0 %v5039
    %6892 = vmatpush1.bf16.msra.mxu0 %v5038
    %6893 = vmatprep.mubr.bf16.mxu0 %v2139
    %6894 = vmatmul.mubr.bf16.gmra.mrb[0].mxu0 %v2138
    %v6895 = vpop.f32.mrb[0].mxu0
    %v6896 = vadd.f32 %v6855, %v6895
    %v6897 = vpop.f32.mrb[0].mxu0
    %v6898 = vadd.f32 %v6857, %v6897
    %v6899 = vpop.f32.mrb[0].mxu0
    %v6900 = vpop.f32.mrb[0].mxu0
    %6901 = vdwg.mxu0
    %6902 = vmatprep.subr.bf16.mxu0 %v5045
    %6903 = vmatpush1.bf16.msra.mxu0 %v5044
    %6904 = vmatprep.subr.bf16.mxu0 %v5051
    %6905 = vmatpush1.bf16.msra.mxu0 %v5050
    %6906 = vmatprep.subr.bf16.mxu0 %v5057
    %6907 = vmatpush1.bf16.msra.mxu0 %v5056
    %6908 = vmatprep.subr.bf16.mxu0 %v5063
    %6909 = vmatpush1.bf16.msra.mxu0 %v5062
    %6910 = vmatprep.subr.bf16.mxu0 %v5069
    %6911 = vmatpush1.bf16.msra.mxu0 %v5068
    %6912 = vmatprep.subr.bf16.mxu0 %v5075
    %6913 = vmatpush1.bf16.msra.mxu0 %v5074
    %6914 = vmatprep.subr.bf16.mxu0 %v5081
    %6915 = vmatpush1.bf16.msra.mxu0 %v5080
    %6916 = vmatprep.subr.bf16.mxu0 %v5087
    %6917 = vmatpush1.bf16.msra.mxu0 %v5086
    %6918 = vmatprep.subr.bf16.mxu0 %v5093
    %6919 = vmatpush1.bf16.msra.mxu0 %v5092
    %6920 = vmatprep.subr.bf16.mxu0 %v5099
    %6921 = vmatpush1.bf16.msra.mxu0 %v5098
    %6922 = vmatprep.subr.bf16.mxu0 %v5105
    %6923 = vmatpush1.bf16.msra.mxu0 %v5104
    %6924 = vmatprep.subr.bf16.mxu0 %v5111
    %6925 = vmatpush1.bf16.msra.mxu0 %v5110
    %6926 = vmatprep.subr.bf16.mxu0 %v5117
    %6927 = vmatpush1.bf16.msra.mxu0 %v5116
    %6928 = vmatprep.subr.bf16.mxu0 %v5123
    %6929 = vmatpush1.bf16.msra.mxu0 %v5122
    %6930 = vmatprep.subr.bf16.mxu0 %v5129
    %6931 = vmatpush1.bf16.msra.mxu0 %v5128
    %6932 = vmatprep.subr.bf16.mxu0 %v5135
    %6933 = vmatpush1.bf16.msra.mxu0 %v5134
    %6934 = vmatprep.mubr.bf16.mxu0 %v2141
    %6935 = vmatmul.mubr.bf16.gmra.mrb[0].mxu0 %v2140
    %v6936 = vpop.f32.mrb[0].mxu0
    %v6937 = vadd.f32 %v6896, %v6936
    %v6938 = vpop.f32.mrb[0].mxu0
    %v6939 = vadd.f32 %v6898, %v6938
    %v6940 = vpop.f32.mrb[0].mxu0
    %v6941 = vpop.f32.mrb[0].mxu0
    %6942 = vdwg.mxu0
    %6943 = vmatprep.subr.bf16.mxu0 %v5141
    %6944 = vmatpush1.bf16.msra.mxu0 %v5140
    %6945 = vmatprep.subr.bf16.mxu0 %v5147
    %6946 = vmatpush1.bf16.msra.mxu0 %v5146
    %6947 = vmatprep.subr.bf16.mxu0 %v5153
    %6948 = vmatpush1.bf16.msra.mxu0 %v5152
    %6949 = vmatprep.subr.bf16.mxu0 %v5159
    %6950 = vmatpush1.bf16.msra.mxu0 %v5158
    %6951 = vmatprep.subr.bf16.mxu0 %v5165
    %6952 = vmatpush1.bf16.msra.mxu0 %v5164
    %6953 = vmatprep.subr.bf16.mxu0 %v5171
    %6954 = vmatpush1.bf16.msra.mxu0 %v5170
    %6955 = vmatprep.subr.bf16.mxu0 %v5177
    %6956 = vmatpush1.bf16.msra.mxu0 %v5176
    %6957 = vmatprep.subr.bf16.mxu0 %v5183
    %6958 = vmatpush1.bf16.msra.mxu0 %v5182
    %6959 = vmatprep.subr.bf16.mxu0 %v5189
    %6960 = vmatpush1.bf16.msra.mxu0 %v5188
    %6961 = vmatprep.subr.bf16.mxu0 %v5195
    %6962 = vmatpush1.bf16.msra.mxu0 %v5194
    %6963 = vmatprep.subr.bf16.mxu0 %v5201
    %6964 = vmatpush1.bf16.msra.mxu0 %v5200
    %6965 = vmatprep.subr.bf16.mxu0 %v5207
    %6966 = vmatpush1.bf16.msra.mxu0 %v5206
    %6967 = vmatprep.subr.bf16.mxu0 %v5213
    %6968 = vmatpush1.bf16.msra.mxu0 %v5212
    %6969 = vmatprep.subr.bf16.mxu0 %v5219
    %6970 = vmatpush1.bf16.msra.mxu0 %v5218
    %6971 = vmatprep.subr.bf16.mxu0 %v5225
    %6972 = vmatpush1.bf16.msra.mxu0 %v5224
    %6973 = vmatprep.subr.bf16.mxu0 %v5231
    %6974 = vmatpush1.bf16.msra.mxu0 %v5230
    %6975 = vmatprep.mubr.bf16.mxu0 %v2143
    %6976 = vmatmul.mubr.bf16.gmra.mrb[0].mxu0 %v2142
    %v6977 = vpop.f32.mrb[0].mxu0
    %v6978 = vadd.f32 %v6937, %v6977
    %v6979 = vpop.f32.mrb[0].mxu0
    %v6980 = vadd.f32 %v6939, %v6979
    %v6981 = vpop.f32.mrb[0].mxu0
    %v6982 = vpop.f32.mrb[0].mxu0
    %6983 = vdwg.mxu0
    %v6990 = vcombine.low %v6322, %v6324
    %v6991 = vcombine.high %v6322, %v6324
    %v6992 = vcombine.low %v6650, %v6652
    %v6993 = vcombine.high %v6650, %v6652
    %v6994 = vcombine.low %v6978, %v6980
    %v6995 = vcombine.high %v6978, %v6980
    %v6997 = vunpack.c.l.s4 1966171168
    %v6998 = vunpack.c.0.s8 %v6997
    %v6999 = vlaneseq
    %v7000 = vshrl.u32 %v6999, 7
    %v7001 = vsub.s32 %v6998, %v7000
    %v7002 = vrot.slane %v6990, %v7001
    %v7004 = vunpack.c.l.s4 1966171168
    %v7005 = vunpack.c.0.s8 %v7004
    %v7006 = vlaneseq
    %v7007 = vshrl.u32 %v7006, 7
    %v7008 = vsub.s32 %v7005, %v7007
    %v7009 = vrot.slane %v6991, %v7008
    %v7011 = vunpack.c.l.s4 1966171168
    %v7012 = vunpack.c.0.s8 %v7011
    %v7013 = vlaneseq
    %v7014 = vshrl.u32 %v7013, 7
    %v7015 = vsub.s32 %v7012, %v7014
    %v7016 = vrot.slane %v6992, %v7015
    %v7018 = vunpack.c.l.s4 1966171168
    %v7019 = vunpack.c.0.s8 %v7018
    %v7020 = vlaneseq
    %v7021 = vshrl.u32 %v7020, 7
    %v7022 = vsub.s32 %v7019, %v7021
    %v7023 = vrot.slane %v6993, %v7022
    %v7025 = vunpack.c.l.s4 1966171168
    %v7026 = vunpack.c.0.s8 %v7025
    %v7027 = vlaneseq
    %v7028 = vshrl.u32 %v7027, 7
    %v7029 = vsub.s32 %v7026, %v7028
    %v7030 = vrot.slane %v6994, %v7029
    %v7032 = vunpack.c.l.s4 1966171168
    %v7033 = vunpack.c.0.s8 %v7032
    %v7034 = vlaneseq
    %v7035 = vshrl.u32 %v7034, 7
    %v7036 = vsub.s32 %v7033, %v7035
    %v7037 = vrot.slane %v6995, %v7036
    %v7038 = vcombine.low %v7002, %v7016
    %v7039 = vcombine.high %v7002, %v7016
    %v7040 = vcombine.low %v7009, %v7023
    %v7041 = vcombine.high %v7009, %v7023
    %v7042 = vcombine.high %v7030, %v7030
    %v7043 = vcombine.high %v7037, %v7037
    %v7045 = vunpack.c.l.s4 1966171168
    %v7046 = vunpack.c.0.s8 %v7045
    %v7047 = vlaneseq
    %v7048 = vshrl.u32 %v7047, 7
    %v7049 = vsub.s32 %v7046, %v7048
    %v7050 = vrot.slane %v7038, %v7049
    %v7052 = vunpack.c.l.s4 1966171168
    %v7053 = vunpack.c.0.s8 %v7052
    %v7054 = vlaneseq
    %v7055 = vshrl.u32 %v7054, 7
    %v7056 = vsub.s32 %v7053, %v7055
    %v7057 = vrot.slane %v7040, %v7056
    %v7059 = vunpack.c.l.s4 1966171168
    %v7060 = vunpack.c.0.s8 %v7059
    %v7061 = vlaneseq
    %v7062 = vshrl.u32 %v7061, 7
    %v7063 = vsub.s32 %v7060, %v7062
    %v7064 = vrot.slane %v7039, %v7063
    %v7066 = vunpack.c.l.s4 1966171168
    %v7067 = vunpack.c.0.s8 %v7066
    %v7068 = vlaneseq
    %v7069 = vshrl.u32 %v7068, 7
    %v7070 = vsub.s32 %v7067, %v7069
    %v7071 = vrot.slane %v7041, %v7070
    %v7073 = vunpack.c.l.s4 1966171168
    %v7074 = vunpack.c.0.s8 %v7073
    %v7075 = vlaneseq
    %v7076 = vshrl.u32 %v7075, 7
    %v7077 = vsub.s32 %v7074, %v7076
    %v7078 = vrot.slane %v7030, %v7077
    %v7080 = vunpack.c.l.s4 1966171168
    %v7081 = vunpack.c.0.s8 %v7080
    %v7082 = vlaneseq
    %v7083 = vshrl.u32 %v7082, 7
    %v7084 = vsub.s32 %v7081, %v7083
    %v7085 = vrot.slane %v7037, %v7084
    %v7087 = vunpack.c.l.s4 1966171168
    %v7088 = vunpack.c.0.s8 %v7087
    %v7089 = vlaneseq
    %v7090 = vshrl.u32 %v7089, 7
    %v7091 = vsub.s32 %v7088, %v7090
    %v7092 = vrot.slane %v7042, %v7091
    %v7094 = vunpack.c.l.s4 1966171168
    %v7095 = vunpack.c.0.s8 %v7094
    %v7096 = vlaneseq
    %v7097 = vshrl.u32 %v7096, 7
    %v7098 = vsub.s32 %v7095, %v7097
    %v7099 = vrot.slane %v7043, %v7098
    %v7100 = vcombine.low %v7050, %v7078
    %v7101 = vcombine.high %v7050, %v7078
    %v7102 = vcombine.low %v7057, %v7085
    %v7103 = vcombine.low %v7064, %v7092
    %v7104 = vcombine.high %v7064, %v7092
    %v7105 = vcombine.low %v7071, %v7099
    %v7112 = vld [vmem:[#allocation6] sm:$0x7]
    %v7113 = vld [vmem:[#allocation6 + $0x8] sm:$0x7]
    %v7114 = vld [vmem:[#allocation6 + $0x10] sm:$0x7]
    %v7115 = vld [vmem:[#allocation6 + $0x18] sm:$0x7]
    %v7116 = vld [vmem:[#allocation6 + $0x20] sm:$0x7]
    %v7117 = vld [vmem:[#allocation6 + $0x28] sm:$0x7]
    %v7124 = vcombine.low %v7112, %v7113
    %v7125 = vcombine.low %v7114, %v7115
    %v7126 = vcombine.low %v7116, %v7117
    %v7128 = vunpack.c.l.s4 1966171168
    %v7129 = vunpack.c.0.s8 %v7128
    %v7130 = vlaneseq
    %v7131 = vshrl.u32 %v7130, 7
    %v7132 = vsub.s32 %v7129, %v7131
    %v7133 = vrot.slane %v7124, %v7132
    %v7135 = vunpack.c.l.s4 1966171168
    %v7136 = vunpack.c.0.s8 %v7135
    %v7137 = vlaneseq
    %v7138 = vshrl.u32 %v7137, 7
    %v7139 = vsub.s32 %v7136, %v7138
    %v7140 = vrot.slane %v7125, %v7139
    %v7142 = vunpack.c.l.s4 1966171168
    %v7143 = vunpack.c.0.s8 %v7142
    %v7144 = vlaneseq
    %v7145 = vshrl.u32 %v7144, 7
    %v7146 = vsub.s32 %v7143, %v7145
    %v7147 = vrot.slane %v7126, %v7146
    %v7148 = vcombine.low %v7133, %v7140
    %v7149 = vcombine.high %v7133, %v7140
    %v7150 = vcombine.high %v7147, %v7147
    %v7152 = vunpack.c.l.s4 1966171168
    %v7153 = vunpack.c.0.s8 %v7152
    %v7154 = vlaneseq
    %v7155 = vshrl.u32 %v7154, 7
    %v7156 = vsub.s32 %v7153, %v7155
    %v7157 = vrot.slane %v7148, %v7156
    %v7159 = vunpack.c.l.s4 1966171168
    %v7160 = vunpack.c.0.s8 %v7159
    %v7161 = vlaneseq
    %v7162 = vshrl.u32 %v7161, 7
    %v7163 = vsub.s32 %v7160, %v7162
    %v7164 = vrot.slane %v7149, %v7163
    %v7166 = vunpack.c.l.s4 1966171168
    %v7167 = vunpack.c.0.s8 %v7166
    %v7168 = vlaneseq
    %v7169 = vshrl.u32 %v7168, 7
    %v7170 = vsub.s32 %v7167, %v7169
    %v7171 = vrot.slane %v7147, %v7170
    %v7173 = vunpack.c.l.s4 1966171168
    %v7174 = vunpack.c.0.s8 %v7173
    %v7175 = vlaneseq
    %v7176 = vshrl.u32 %v7175, 7
    %v7177 = vsub.s32 %v7174, %v7176
    %v7178 = vrot.slane %v7150, %v7177
    %v7179 = vcombine.low %v7157, %v7171
    %v7180 = vcombine.high %v7157, %v7171
    %v7181 = vcombine.low %v7164, %v7178
    %v7185 = vadd.f32 %v7100, %v7179
    %v7186 = vadd.f32 %v7103, %v7181
    %v7187 = vadd.f32 %v7101, %v7180
    %v7188 = vadd.f32 %v7104, %v7179
    %v7189 = vadd.f32 %v7102, %v7181
    %v7190 = vadd.f32 %v7105, %v7180
    %v7197 = vcombine.low %v7185, %v7186
    %v7198 = vcombine.high %v7185, %v7186
    %v7199 = vcombine.high %v7187, %v7187
    %v7201 = vunpack.c.l.s4 1966171168
    %v7202 = vunpack.c.0.s8 %v7201
    %v7203 = vlaneseq
    %v7204 = vshrl.u32 %v7203, 7
    %v7205 = vsub.s32 %v7202, %v7204
    %v7206 = vrot.slane %v7197, %v7205
    %v7208 = vunpack.c.l.s4 1966171168
    %v7209 = vunpack.c.0.s8 %v7208
    %v7210 = vlaneseq
    %v7211 = vshrl.u32 %v7210, 7
    %v7212 = vsub.s32 %v7209, %v7211
    %v7213 = vrot.slane %v7198, %v7212
    %v7215 = vunpack.c.l.s4 1966171168
    %v7216 = vunpack.c.0.s8 %v7215
    %v7217 = vlaneseq
    %v7218 = vshrl.u32 %v7217, 7
    %v7219 = vsub.s32 %v7216, %v7218
    %v7220 = vrot.slane %v7187, %v7219
    %v7222 = vunpack.c.l.s4 1966171168
    %v7223 = vunpack.c.0.s8 %v7222
    %v7224 = vlaneseq
    %v7225 = vshrl.u32 %v7224, 7
    %v7226 = vsub.s32 %v7223, %v7225
    %v7227 = vrot.slane %v7199, %v7226
    %v7228 = vcombine.low %v7206, %v7220
    %v7229 = vcombine.high %v7206, %v7220
    %v7230 = vcombine.low %v7213, %v7227
    %v7231 = vcombine.high %v7213, %v7227
    %v7233 = vunpack.c.l.s4 1966171168
    %v7234 = vunpack.c.0.s8 %v7233
    %v7235 = vlaneseq
    %v7236 = vshrl.u32 %v7235, 7
    %v7237 = vsub.s32 %v7234, %v7236
    %v7238 = vrot.slane %v7228, %v7237
    %v7240 = vunpack.c.l.s4 1966171168
    %v7241 = vunpack.c.0.s8 %v7240
    %v7242 = vlaneseq
    %v7243 = vshrl.u32 %v7242, 7
    %v7244 = vsub.s32 %v7241, %v7243
    %v7245 = vrot.slane %v7230, %v7244
    %v7247 = vunpack.c.l.s4 1966171168
    %v7248 = vunpack.c.0.s8 %v7247
    %v7249 = vlaneseq
    %v7250 = vshrl.u32 %v7249, 7
    %v7251 = vsub.s32 %v7248, %v7250
    %v7252 = vrot.slane %v7229, %v7251
    %v7254 = vunpack.c.l.s4 1966171168
    %v7255 = vunpack.c.0.s8 %v7254
    %v7256 = vlaneseq
    %v7257 = vshrl.u32 %v7256, 7
    %v7258 = vsub.s32 %v7255, %v7257
    %v7259 = vrot.slane %v7231, %v7258
    %v7260 = vcombine.high %v7238, %v7238
    %v7261 = vcombine.high %v7252, %v7252
    %v7262 = vcombine.low %v7188, %v7189
    %v7263 = vcombine.high %v7188, %v7189
    %v7264 = vcombine.high %v7190, %v7190
    %v7266 = vunpack.c.l.s4 1966171168
    %v7267 = vunpack.c.0.s8 %v7266
    %v7268 = vlaneseq
    %v7269 = vshrl.u32 %v7268, 7
    %v7270 = vsub.s32 %v7267, %v7269
    %v7271 = vrot.slane %v7262, %v7270
    %v7273 = vunpack.c.l.s4 1966171168
    %v7274 = vunpack.c.0.s8 %v7273
    %v7275 = vlaneseq
    %v7276 = vshrl.u32 %v7275, 7
    %v7277 = vsub.s32 %v7274, %v7276
    %v7278 = vrot.slane %v7263, %v7277
    %v7280 = vunpack.c.l.s4 1966171168
    %v7281 = vunpack.c.0.s8 %v7280
    %v7282 = vlaneseq
    %v7283 = vshrl.u32 %v7282, 7
    %v7284 = vsub.s32 %v7281, %v7283
    %v7285 = vrot.slane %v7190, %v7284
    %v7287 = vunpack.c.l.s4 1966171168
    %v7288 = vunpack.c.0.s8 %v7287
    %v7289 = vlaneseq
    %v7290 = vshrl.u32 %v7289, 7
    %v7291 = vsub.s32 %v7288, %v7290
    %v7292 = vrot.slane %v7264, %v7291
    %v7293 = vcombine.low %v7271, %v7285
    %v7294 = vcombine.high %v7271, %v7285
    %v7295 = vcombine.low %v7278, %v7292
    %v7296 = vcombine.high %v7278, %v7292
    %v7298 = vunpack.c.l.s4 1966171168
    %v7299 = vunpack.c.0.s8 %v7298
    %v7300 = vlaneseq
    %v7301 = vshrl.u32 %v7300, 7
    %v7302 = vsub.s32 %v7299, %v7301
    %v7303 = vrot.slane %v7293, %v7302
    %v7305 = vunpack.c.l.s4 1966171168
    %v7306 = vunpack.c.0.s8 %v7305
    %v7307 = vlaneseq
    %v7308 = vshrl.u32 %v7307, 7
    %v7309 = vsub.s32 %v7306, %v7308
    %v7310 = vrot.slane %v7295, %v7309
    %v7312 = vunpack.c.l.s4 1966171168
    %v7313 = vunpack.c.0.s8 %v7312
    %v7314 = vlaneseq
    %v7315 = vshrl.u32 %v7314, 7
    %v7316 = vsub.s32 %v7313, %v7315
    %v7317 = vrot.slane %v7294, %v7316
    %v7319 = vunpack.c.l.s4 1966171168
    %v7320 = vunpack.c.0.s8 %v7319
    %v7321 = vlaneseq
    %v7322 = vshrl.u32 %v7321, 7
    %v7323 = vsub.s32 %v7320, %v7322
    %v7324 = vrot.slane %v7296, %v7323
    %v7325 = vcombine.high %v7303, %v7303
    %v7326 = vcombine.high %v7317, %v7317
    %vm7339 = vcmask 1042432
    %v7340 = vsel %vm7339, %v7238, 0.0
    %v7341 = vsel %vm7339, %v7252, 0.0
    %v7342 = vadd.f32 %v7340, %v7341
    %v7343 = vsel %vm7339, %v7260, 0.0
    %v7344 = vadd.f32 %v7342, %v7343
    %v7345 = vsel %vm7339, %v7261, 0.0
    %v7346 = vadd.f32 %v7344, %v7345
    %v7347 = vsel %vm7339, %v7245, 0.0
    %v7348 = vadd.f32 %v7346, %v7347
    %v7349 = vsel %vm7339, %v7259, 0.0
    %v7350 = vadd.f32 %v7348, %v7349
    %7351 = vadd.xlane.f32.xlu0 %v7350
    %v7352 = vpop.xlane.xlu0 %7351
    %v7353 = vsel %vm7339, %v7303, 0.0
    %v7354 = vsel %vm7339, %v7317, 0.0
    %v7355 = vadd.f32 %v7353, %v7354
    %v7356 = vsel %vm7339, %v7325, 0.0
    %v7357 = vadd.f32 %v7355, %v7356
    %v7358 = vsel %vm7339, %v7326, 0.0
    %v7359 = vadd.f32 %v7357, %v7358
    %v7360 = vsel %vm7339, %v7310, 0.0
    %v7361 = vadd.f32 %v7359, %v7360
    %v7362 = vsel %vm7339, %v7324, 0.0
    %v7363 = vadd.f32 %v7361, %v7362
    %7364 = vadd.xlane.f32.xlu0 %v7363
    %v7365 = vpop.xlane.xlu0 %7364
    %v7366 = vrcp.pop 768.0
    %v7367 = vmul.f32 %v7352, %v7366
    %v7368 = vmul.f32 %v7365, %v7366
    %v7371 = vlaneseq
    %v7372 = vshrl.u32 %v7371, 7
    %v7373 = vsub.s32 0, %v7372
    %v7374 = vrot.slane %v7367, %v7373
    %v7375 = vlaneseq
    %v7376 = vshrl.u32 %v7375, 7
    %v7377 = vsub.s32 1, %v7376
    %v7378 = vrot.slane %v7367, %v7377
    %v7379 = vlaneseq
    %v7380 = vshrl.u32 %v7379, 7
    %v7381 = vsub.s32 2, %v7380
    %v7382 = vrot.slane %v7367, %v7381
    %v7383 = vlaneseq
    %v7384 = vshrl.u32 %v7383, 7
    %v7385 = vsub.s32 0, %v7384
    %v7386 = vrot.slane %v7368, %v7385
    %v7387 = vlaneseq
    %v7388 = vshrl.u32 %v7387, 7
    %v7389 = vsub.s32 1, %v7388
    %v7390 = vrot.slane %v7368, %v7389
    %v7391 = vlaneseq
    %v7392 = vshrl.u32 %v7391, 7
    %v7393 = vsub.s32 2, %v7392
    %v7394 = vrot.slane %v7368, %v7393
    %v7401 = vsub.f32 %v7185, %v7374
    %v7402 = vsub.f32 %v7186, %v7378
    %v7403 = vsub.f32 %v7187, %v7382
    %v7404 = vsub.f32 %v7188, %v7386
    %v7405 = vsub.f32 %v7189, %v7390
    %v7406 = vsub.f32 %v7190, %v7394
    %v7407 = vmul.f32 %v7401, %v7401
    %v7408 = vmul.f32 %v7402, %v7402
    %v7409 = vmul.f32 %v7403, %v7403
    %v7410 = vmul.f32 %v7404, %v7404
    %v7411 = vmul.f32 %v7405, %v7405
    %v7412 = vmul.f32 %v7406, %v7406
    %v7419 = vcombine.low %v7407, %v7408
    %v7420 = vcombine.high %v7407, %v7408
    %v7421 = vcombine.high %v7409, %v7409
    %v7423 = vunpack.c.l.s4 1966171168
    %v7424 = vunpack.c.0.s8 %v7423
    %v7425 = vlaneseq
    %v7426 = vshrl.u32 %v7425, 7
    %v7427 = vsub.s32 %v7424, %v7426
    %v7428 = vrot.slane %v7419, %v7427
    %v7430 = vunpack.c.l.s4 1966171168
    %v7431 = vunpack.c.0.s8 %v7430
    %v7432 = vlaneseq
    %v7433 = vshrl.u32 %v7432, 7
    %v7434 = vsub.s32 %v7431, %v7433
    %v7435 = vrot.slane %v7420, %v7434
    %v7437 = vunpack.c.l.s4 1966171168
    %v7438 = vunpack.c.0.s8 %v7437
    %v7439 = vlaneseq
    %v7440 = vshrl.u32 %v7439, 7
    %v7441 = vsub.s32 %v7438, %v7440
    %v7442 = vrot.slane %v7409, %v7441
    %v7444 = vunpack.c.l.s4 1966171168
    %v7445 = vunpack.c.0.s8 %v7444
    %v7446 = vlaneseq
    %v7447 = vshrl.u32 %v7446, 7
    %v7448 = vsub.s32 %v7445, %v7447
    %v7449 = vrot.slane %v7421, %v7448
    %v7450 = vcombine.low %v7428, %v7442
    %v7451 = vcombine.high %v7428, %v7442
    %v7452 = vcombine.low %v7435, %v7449
    %v7453 = vcombine.high %v7435, %v7449
    %v7455 = vunpack.c.l.s4 1966171168
    %v7456 = vunpack.c.0.s8 %v7455
    %v7457 = vlaneseq
    %v7458 = vshrl.u32 %v7457, 7
    %v7459 = vsub.s32 %v7456, %v7458
    %v7460 = vrot.slane %v7450, %v7459
    %v7462 = vunpack.c.l.s4 1966171168
    %v7463 = vunpack.c.0.s8 %v7462
    %v7464 = vlaneseq
    %v7465 = vshrl.u32 %v7464, 7
    %v7466 = vsub.s32 %v7463, %v7465
    %v7467 = vrot.slane %v7452, %v7466
    %v7469 = vunpack.c.l.s4 1966171168
    %v7470 = vunpack.c.0.s8 %v7469
    %v7471 = vlaneseq
    %v7472 = vshrl.u32 %v7471, 7
    %v7473 = vsub.s32 %v7470, %v7472
    %v7474 = vrot.slane %v7451, %v7473
    %v7476 = vunpack.c.l.s4 1966171168
    %v7477 = vunpack.c.0.s8 %v7476
    %v7478 = vlaneseq
    %v7479 = vshrl.u32 %v7478, 7
    %v7480 = vsub.s32 %v7477, %v7479
    %v7481 = vrot.slane %v7453, %v7480
    %v7482 = vcombine.high %v7460, %v7460
    %v7483 = vcombine.high %v7474, %v7474
    %v7484 = vcombine.low %v7410, %v7411
    %v7485 = vcombine.high %v7410, %v7411
    %v7486 = vcombine.high %v7412, %v7412
    %v7488 = vunpack.c.l.s4 1966171168
    %v7489 = vunpack.c.0.s8 %v7488
    %v7490 = vlaneseq
    %v7491 = vshrl.u32 %v7490, 7
    %v7492 = vsub.s32 %v7489, %v7491
    %v7493 = vrot.slane %v7484, %v7492
    %v7495 = vunpack.c.l.s4 1966171168
    %v7496 = vunpack.c.0.s8 %v7495
    %v7497 = vlaneseq
    %v7498 = vshrl.u32 %v7497, 7
    %v7499 = vsub.s32 %v7496, %v7498
    %v7500 = vrot.slane %v7485, %v7499
    %v7502 = vunpack.c.l.s4 1966171168
    %v7503 = vunpack.c.0.s8 %v7502
    %v7504 = vlaneseq
    %v7505 = vshrl.u32 %v7504, 7
    %v7506 = vsub.s32 %v7503, %v7505
    %v7507 = vrot.slane %v7412, %v7506
    %v7509 = vunpack.c.l.s4 1966171168
    %v7510 = vunpack.c.0.s8 %v7509
    %v7511 = vlaneseq
    %v7512 = vshrl.u32 %v7511, 7
    %v7513 = vsub.s32 %v7510, %v7512
    %v7514 = vrot.slane %v7486, %v7513
    %v7515 = vcombine.low %v7493, %v7507
    %v7516 = vcombine.high %v7493, %v7507
    %v7517 = vcombine.low %v7500, %v7514
    %v7518 = vcombine.high %v7500, %v7514
    %v7520 = vunpack.c.l.s4 1966171168
    %v7521 = vunpack.c.0.s8 %v7520
    %v7522 = vlaneseq
    %v7523 = vshrl.u32 %v7522, 7
    %v7524 = vsub.s32 %v7521, %v7523
    %v7525 = vrot.slane %v7515, %v7524
    %v7527 = vunpack.c.l.s4 1966171168
    %v7528 = vunpack.c.0.s8 %v7527
    %v7529 = vlaneseq
    %v7530 = vshrl.u32 %v7529, 7
    %v7531 = vsub.s32 %v7528, %v7530
    %v7532 = vrot.slane %v7517, %v7531
    %v7534 = vunpack.c.l.s4 1966171168
    %v7535 = vunpack.c.0.s8 %v7534
    %v7536 = vlaneseq
    %v7537 = vshrl.u32 %v7536, 7
    %v7538 = vsub.s32 %v7535, %v7537
    %v7539 = vrot.slane %v7516, %v7538
    %v7541 = vunpack.c.l.s4 1966171168
    %v7542 = vunpack.c.0.s8 %v7541
    %v7543 = vlaneseq
    %v7544 = vshrl.u32 %v7543, 7
    %v7545 = vsub.s32 %v7542, %v7544
    %v7546 = vrot.slane %v7518, %v7545
    %v7547 = vcombine.high %v7525, %v7525
    %v7548 = vcombine.high %v7539, %v7539
    %v7561 = vsel %vm7339, %v7460, 0.0
    %v7562 = vsel %vm7339, %v7474, 0.0
    %v7563 = vadd.f32 %v7561, %v7562
    %v7564 = vsel %vm7339, %v7482, 0.0
    %v7565 = vadd.f32 %v7563, %v7564
    %v7566 = vsel %vm7339, %v7483, 0.0
    %v7567 = vadd.f32 %v7565, %v7566
    %v7568 = vsel %vm7339, %v7467, 0.0
    %v7569 = vadd.f32 %v7567, %v7568
    %v7570 = vsel %vm7339, %v7481, 0.0
    %v7571 = vadd.f32 %v7569, %v7570
    %7572 = vadd.xlane.f32.xlu0 %v7571
    %v7573 = vpop.xlane.xlu0 %7572
    %v7574 = vsel %vm7339, %v7525, 0.0
    %v7575 = vsel %vm7339, %v7539, 0.0
    %v7576 = vadd.f32 %v7574, %v7575
    %v7577 = vsel %vm7339, %v7547, 0.0
    %v7578 = vadd.f32 %v7576, %v7577
    %v7579 = vsel %vm7339, %v7548, 0.0
    %v7580 = vadd.f32 %v7578, %v7579
    %v7581 = vsel %vm7339, %v7532, 0.0
    %v7582 = vadd.f32 %v7580, %v7581
    %v7583 = vsel %vm7339, %v7546, 0.0
    %v7584 = vadd.f32 %v7582, %v7583
    %7585 = vadd.xlane.f32.xlu0 %v7584
    %v7586 = vpop.xlane.xlu0 %7585
    %v7587 = vmul.f32 %v7573, %v7366
    %v7588 = vmul.f32 %v7586, %v7366
    %v7589 = vadd.f32 %v7587, 1e-12
    %v7590 = vadd.f32 %v7588, 1e-12
    %v7591 = vrsqrt.pop %v7589
    %v7592 = vrsqrt.pop %v7590
    %v7595 = vlaneseq
    %v7596 = vshrl.u32 %v7595, 7
    %v7597 = vsub.s32 0, %v7596
    %v7598 = vrot.slane %v7591, %v7597
    %v7599 = vlaneseq
    %v7600 = vshrl.u32 %v7599, 7
    %v7601 = vsub.s32 1, %v7600
    %v7602 = vrot.slane %v7591, %v7601
    %v7603 = vlaneseq
    %v7604 = vshrl.u32 %v7603, 7
    %v7605 = vsub.s32 2, %v7604
    %v7606 = vrot.slane %v7591, %v7605
    %v7607 = vlaneseq
    %v7608 = vshrl.u32 %v7607, 7
    %v7609 = vsub.s32 0, %v7608
    %v7610 = vrot.slane %v7592, %v7609
    %v7611 = vlaneseq
    %v7612 = vshrl.u32 %v7611, 7
    %v7613 = vsub.s32 1, %v7612
    %v7614 = vrot.slane %v7592, %v7613
    %v7615 = vlaneseq
    %v7616 = vshrl.u32 %v7615, 7
    %v7617 = vsub.s32 2, %v7616
    %v7618 = vrot.slane %v7592, %v7617
    %v7625 = vmul.f32 %v7401, %v7598
    %v7626 = vmul.f32 %v7402, %v7602
    %v7627 = vmul.f32 %v7403, %v7606
    %v7628 = vmul.f32 %v7404, %v7610
    %v7629 = vmul.f32 %v7405, %v7614
    %v7630 = vmul.f32 %v7406, %v7618
    %s7631 = scalar_lea.vmem [#allocation6], 3
    %v7632 = vld [vmem:[%s7631] ss:$8 sm:$0xf]
    %v7633 = vld [vmem:[%s7631] ss:$8 sm:$0x30]
    %v7634 = vor.u32 %v7632, %v7633
    %v7636 = vlaneseq
    %v7637 = vshrl.u32 %v7636, 7
    %v7638 = vsub.s32 0, %v7637
    %v7639 = vrot.slane %v7634, %v7638
    %v7640 = vlaneseq
    %v7641 = vshrl.u32 %v7640, 7
    %v7642 = vsub.s32 1, %v7641
    %v7643 = vrot.slane %v7634, %v7642
    %v7644 = vlaneseq
    %v7645 = vshrl.u32 %v7644, 7
    %v7646 = vsub.s32 2, %v7645
    %v7647 = vrot.slane %v7634, %v7646
    %v7648 = vlaneseq
    %v7649 = vshrl.u32 %v7648, 7
    %v7650 = vsub.s32 3, %v7649
    %v7651 = vrot.slane %v7634, %v7650
    %v7652 = vlaneseq
    %v7653 = vshrl.u32 %v7652, 7
    %v7654 = vsub.s32 4, %v7653
    %v7655 = vrot.slane %v7634, %v7654
    %v7656 = vlaneseq
    %v7657 = vshrl.u32 %v7656, 7
    %v7658 = vsub.s32 5, %v7657
    %v7659 = vrot.slane %v7634, %v7658
    %v7660 = vcombine.low %v7639, %v7643
    %v7661 = vcombine.low %v7647, %v7651
    %v7662 = vcombine.low %v7655, %v7659
    %v7664 = vunpack.c.l.s4 1966171168
    %v7665 = vunpack.c.0.s8 %v7664
    %v7666 = vlaneseq
    %v7667 = vshrl.u32 %v7666, 7
    %v7668 = vsub.s32 %v7665, %v7667
    %v7669 = vrot.slane %v7660, %v7668
    %v7671 = vunpack.c.l.s4 1966171168
    %v7672 = vunpack.c.0.s8 %v7671
    %v7673 = vlaneseq
    %v7674 = vshrl.u32 %v7673, 7
    %v7675 = vsub.s32 %v7672, %v7674
    %v7676 = vrot.slane %v7661, %v7675
    %v7678 = vunpack.c.l.s4 1966171168
    %v7679 = vunpack.c.0.s8 %v7678
    %v7680 = vlaneseq
    %v7681 = vshrl.u32 %v7680, 7
    %v7682 = vsub.s32 %v7679, %v7681
    %v7683 = vrot.slane %v7662, %v7682
    %v7684 = vcombine.low %v7669, %v7676
    %v7685 = vcombine.high %v7669, %v7676
    %v7686 = vcombine.high %v7683, %v7683
    %v7688 = vunpack.c.l.s4 1966171168
    %v7689 = vunpack.c.0.s8 %v7688
    %v7690 = vlaneseq
    %v7691 = vshrl.u32 %v7690, 7
    %v7692 = vsub.s32 %v7689, %v7691
    %v7693 = vrot.slane %v7684, %v7692
    %v7695 = vunpack.c.l.s4 1966171168
    %v7696 = vunpack.c.0.s8 %v7695
    %v7697 = vlaneseq
    %v7698 = vshrl.u32 %v7697, 7
    %v7699 = vsub.s32 %v7696, %v7698
    %v7700 = vrot.slane %v7685, %v7699
    %v7702 = vunpack.c.l.s4 1966171168
    %v7703 = vunpack.c.0.s8 %v7702
    %v7704 = vlaneseq
    %v7705 = vshrl.u32 %v7704, 7
    %v7706 = vsub.s32 %v7703, %v7705
    %v7707 = vrot.slane %v7683, %v7706
    %v7709 = vunpack.c.l.s4 1966171168
    %v7710 = vunpack.c.0.s8 %v7709
    %v7711 = vlaneseq
    %v7712 = vshrl.u32 %v7711, 7
    %v7713 = vsub.s32 %v7710, %v7712
    %v7714 = vrot.slane %v7686, %v7713
    %v7715 = vcombine.low %v7693, %v7707
    %v7716 = vcombine.high %v7693, %v7707
    %v7717 = vcombine.low %v7700, %v7714
    %v7721 = vmul.f32 %v7625, %v7715
    %v7722 = vmul.f32 %v7626, %v7717
    %v7723 = vmul.f32 %v7627, %v7716
    %v7724 = vmul.f32 %v7628, %v7715
    %v7725 = vmul.f32 %v7629, %v7717
    %v7726 = vmul.f32 %v7630, %v7716
    %s7727 = scalar_lea.vmem [#allocation6], 4
    %v7728 = vld [vmem:[%s7727] ss:$8 sm:$0xf]
    %v7729 = vld [vmem:[%s7727] ss:$8 sm:$0x30]
    %v7730 = vor.u32 %v7728, %v7729
    %v7732 = vlaneseq
    %v7733 = vshrl.u32 %v7732, 7
    %v7734 = vsub.s32 0, %v7733
    %v7735 = vrot.slane %v7730, %v7734
    %v7736 = vlaneseq
    %v7737 = vshrl.u32 %v7736, 7
    %v7738 = vsub.s32 1, %v7737
    %v7739 = vrot.slane %v7730, %v7738
    %v7740 = vlaneseq
    %v7741 = vshrl.u32 %v7740, 7
    %v7742 = vsub.s32 2, %v7741
    %v7743 = vrot.slane %v7730, %v7742
    %v7744 = vlaneseq
    %v7745 = vshrl.u32 %v7744, 7
    %v7746 = vsub.s32 3, %v7745
    %v7747 = vrot.slane %v7730, %v7746
    %v7748 = vlaneseq
    %v7749 = vshrl.u32 %v7748, 7
    %v7750 = vsub.s32 4, %v7749
    %v7751 = vrot.slane %v7730, %v7750
    %v7752 = vlaneseq
    %v7753 = vshrl.u32 %v7752, 7
    %v7754 = vsub.s32 5, %v7753
    %v7755 = vrot.slane %v7730, %v7754
    %v7756 = vcombine.low %v7735, %v7739
    %v7757 = vcombine.low %v7743, %v7747
    %v7758 = vcombine.low %v7751, %v7755
    %v7760 = vunpack.c.l.s4 1966171168
    %v7761 = vunpack.c.0.s8 %v7760
    %v7762 = vlaneseq
    %v7763 = vshrl.u32 %v7762, 7
    %v7764 = vsub.s32 %v7761, %v7763
    %v7765 = vrot.slane %v7756, %v7764
    %v7767 = vunpack.c.l.s4 1966171168
    %v7768 = vunpack.c.0.s8 %v7767
    %v7769 = vlaneseq
    %v7770 = vshrl.u32 %v7769, 7
    %v7771 = vsub.s32 %v7768, %v7770
    %v7772 = vrot.slane %v7757, %v7771
    %v7774 = vunpack.c.l.s4 1966171168
    %v7775 = vunpack.c.0.s8 %v7774
    %v7776 = vlaneseq
    %v7777 = vshrl.u32 %v7776, 7
    %v7778 = vsub.s32 %v7775, %v7777
    %v7779 = vrot.slane %v7758, %v7778
    %v7780 = vcombine.low %v7765, %v7772
    %v7781 = vcombine.high %v7765, %v7772
    %v7782 = vcombine.high %v7779, %v7779
    %v7784 = vunpack.c.l.s4 1966171168
    %v7785 = vunpack.c.0.s8 %v7784
    %v7786 = vlaneseq
    %v7787 = vshrl.u32 %v7786, 7
    %v7788 = vsub.s32 %v7785, %v7787
    %v7789 = vrot.slane %v7780, %v7788
    %v7791 = vunpack.c.l.s4 1966171168
    %v7792 = vunpack.c.0.s8 %v7791
    %v7793 = vlaneseq
    %v7794 = vshrl.u32 %v7793, 7
    %v7795 = vsub.s32 %v7792, %v7794
    %v7796 = vrot.slane %v7781, %v7795
    %v7798 = vunpack.c.l.s4 1966171168
    %v7799 = vunpack.c.0.s8 %v7798
    %v7800 = vlaneseq
    %v7801 = vshrl.u32 %v7800, 7
    %v7802 = vsub.s32 %v7799, %v7801
    %v7803 = vrot.slane %v7779, %v7802
    %v7805 = vunpack.c.l.s4 1966171168
    %v7806 = vunpack.c.0.s8 %v7805
    %v7807 = vlaneseq
    %v7808 = vshrl.u32 %v7807, 7
    %v7809 = vsub.s32 %v7806, %v7808
    %v7810 = vrot.slane %v7782, %v7809
    %v7811 = vcombine.low %v7789, %v7803
    %v7812 = vcombine.high %v7789, %v7803
    %v7813 = vcombine.low %v7796, %v7810
    %v7817 = vadd.f32 %v7721, %v7811
    %v7818 = vadd.f32 %v7722, %v7813
    %v7819 = vadd.f32 %v7723, %v7812
    %v7820 = vadd.f32 %v7724, %v7811
    %v7821 = vadd.f32 %v7725, %v7813
    %v7822 = vadd.f32 %v7726, %v7812
    %s7823 = scalar_lea.vmem [#allocation6], 5
    %v7824 = vld [vmem:[%s7823] ss:$8 sm:$0xf]
    %v7825 = vld [vmem:[%s7823] ss:$8 sm:$0x30]
    %v7826 = vor.u32 %v7824, %v7825
    %s7827 = scalar_lea.vmem [#allocation6], 6
    %v7828 = vld [vmem:[%s7827] ss:$8 sm:$0xf]
    %v7829 = vld [vmem:[%s7827] ss:$8 sm:$0x30]
    %v7830 = vor.u32 %v7828, %v7829
    %v7831 = vld [vmem:[%s4] ss:$8 sm:$0xf]
    %v7832 = vld [vmem:[%s4] ss:$8 sm:$0x30]
    %v7833 = vor.u32 %v7831, %v7832
    %s7834 = scalar_lea.vmem %s4, 48
    %v7835 = vld [vmem:[%s7834] ss:$8 sm:$0xf]
    %v7836 = vld [vmem:[%s7834] ss:$8 sm:$0x30]
    %v7837 = vor.u32 %v7835, %v7836
    %v7838 = vmul.f32 %v7826, %v7833
    %v7839 = vmul.f32 %v7826, %v7837
    %v7840 = vlaneseq
    %vm7841 = vcmp.ge.s32.totalorder %v7840, 0
    %vm7842 = vcmp.lt.s32.totalorder %v7840, 768
    %vm7843 = vmand %vm7841, %vm7842
    %7844 = vst.msk [vmem:[%s5] ss:$8 sm:$0xf] %vm7843, %v7838
    %7845 = vst.msk [vmem:[%s5] ss:$8 sm:$0x30] %vm7843, %v7838
    %s7846 = scalar_lea.vmem %s5, 48
    %7847 = vst.msk [vmem:[%s7846] ss:$8 sm:$0xf] %vm7843, %v7839
    %7848 = vst.msk [vmem:[%s7846] ss:$8 sm:$0x30] %vm7843, %v7839
    %v7849 = vld [vmem:[%s4] sm:$0xe]
    %v7850 = vld [vmem:[%s4 + $0x8] sm:$0xe]
    %v7851 = vld [vmem:[%s4 + $0x10] sm:$0xe]
    %v7852 = vld [vmem:[%s4 + $0x18] sm:$0xe]
    %v7853 = vld [vmem:[%s4 + $0x20] sm:$0xe]
    %v7854 = vld [vmem:[%s4 + $0x28] sm:$0xe]
    %v7855 = vld [vmem:[%s4 + $0x30] sm:$0xe]
    %v7856 = vld [vmem:[%s4 + $0x38] sm:$0xe]
    %v7857 = vld [vmem:[%s4 + $0x40] sm:$0xe]
    %v7858 = vld [vmem:[%s4 + $0x48] sm:$0xe]
    %v7859 = vld [vmem:[%s4 + $0x50] sm:$0xe]
    %v7860 = vld [vmem:[%s4 + $0x58] sm:$0xe]
    %v7873 = vcombine.low %v7849, %v7850
    %v7874 = vcombine.low %v7851, %v7852
    %v7875 = vcombine.low %v7853, %v7854
    %v7877 = vunpack.c.l.s4 1966171168
    %v7878 = vunpack.c.0.s8 %v7877
    %v7879 = vlaneseq
    %v7880 = vshrl.u32 %v7879, 7
    %v7881 = vsub.s32 %v7878, %v7880
    %v7882 = vrot.slane %v7873, %v7881
    %v7884 = vunpack.c.l.s4 1966171168
    %v7885 = vunpack.c.0.s8 %v7884
    %v7886 = vlaneseq
    %v7887 = vshrl.u32 %v7886, 7
    %v7888 = vsub.s32 %v7885, %v7887
    %v7889 = vrot.slane %v7874, %v7888
    %v7891 = vunpack.c.l.s4 1966171168
    %v7892 = vunpack.c.0.s8 %v7891
    %v7893 = vlaneseq
    %v7894 = vshrl.u32 %v7893, 7
    %v7895 = vsub.s32 %v7892, %v7894
    %v7896 = vrot.slane %v7875, %v7895
    %v7897 = vcombine.low %v7882, %v7889
    %v7898 = vcombine.high %v7882, %v7889
    %v7899 = vcombine.high %v7896, %v7896
    %v7901 = vunpack.c.l.s4 1966171168
    %v7902 = vunpack.c.0.s8 %v7901
    %v7903 = vlaneseq
    %v7904 = vshrl.u32 %v7903, 7
    %v7905 = vsub.s32 %v7902, %v7904
    %v7906 = vrot.slane %v7897, %v7905
    %v7908 = vunpack.c.l.s4 1966171168
    %v7909 = vunpack.c.0.s8 %v7908
    %v7910 = vlaneseq
    %v7911 = vshrl.u32 %v7910, 7
    %v7912 = vsub.s32 %v7909, %v7911
    %v7913 = vrot.slane %v7898, %v7912
    %v7915 = vunpack.c.l.s4 1966171168
    %v7916 = vunpack.c.0.s8 %v7915
    %v7917 = vlaneseq
    %v7918 = vshrl.u32 %v7917, 7
    %v7919 = vsub.s32 %v7916, %v7918
    %v7920 = vrot.slane %v7896, %v7919
    %v7922 = vunpack.c.l.s4 1966171168
    %v7923 = vunpack.c.0.s8 %v7922
    %v7924 = vlaneseq
    %v7925 = vshrl.u32 %v7924, 7
    %v7926 = vsub.s32 %v7923, %v7925
    %v7927 = vrot.slane %v7899, %v7926
    %v7928 = vcombine.high %v7906, %v7920
    %v7929 = vcombine.low %v7913, %v7927
    %v7930 = vcombine.high %v7913, %v7927
    %v7931 = vcombine.low %v7855, %v7856
    %v7932 = vcombine.low %v7857, %v7858
    %v7933 = vcombine.low %v7859, %v7860
    %v7935 = vunpack.c.l.s4 1966171168
    %v7936 = vunpack.c.0.s8 %v7935
    %v7937 = vlaneseq
    %v7938 = vshrl.u32 %v7937, 7
    %v7939 = vsub.s32 %v7936, %v7938
    %v7940 = vrot.slane %v7931, %v7939
    %v7942 = vunpack.c.l.s4 1966171168
    %v7943 = vunpack.c.0.s8 %v7942
    %v7944 = vlaneseq
    %v7945 = vshrl.u32 %v7944, 7
    %v7946 = vsub.s32 %v7943, %v7945
    %v7947 = vrot.slane %v7932, %v7946
    %v7949 = vunpack.c.l.s4 1966171168
    %v7950 = vunpack.c.0.s8 %v7949
    %v7951 = vlaneseq
    %v7952 = vshrl.u32 %v7951, 7
    %v7953 = vsub.s32 %v7950, %v7952
    %v7954 = vrot.slane %v7933, %v7953
    %v7955 = vcombine.low %v7940, %v7947
    %v7956 = vcombine.high %v7940, %v7947
    %v7957 = vcombine.high %v7954, %v7954
    %v7959 = vunpack.c.l.s4 1966171168
    %v7960 = vunpack.c.0.s8 %v7959
    %v7961 = vlaneseq
    %v7962 = vshrl.u32 %v7961, 7
    %v7963 = vsub.s32 %v7960, %v7962
    %v7964 = vrot.slane %v7955, %v7963
    %v7966 = vunpack.c.l.s4 1966171168
    %v7967 = vunpack.c.0.s8 %v7966
    %v7968 = vlaneseq
    %v7969 = vshrl.u32 %v7968, 7
    %v7970 = vsub.s32 %v7967, %v7969
    %v7971 = vrot.slane %v7956, %v7970
    %v7973 = vunpack.c.l.s4 1966171168
    %v7974 = vunpack.c.0.s8 %v7973
    %v7975 = vlaneseq
    %v7976 = vshrl.u32 %v7975, 7
    %v7977 = vsub.s32 %v7974, %v7976
    %v7978 = vrot.slane %v7954, %v7977
    %v7980 = vunpack.c.l.s4 1966171168
    %v7981 = vunpack.c.0.s8 %v7980
    %v7982 = vlaneseq
    %v7983 = vshrl.u32 %v7982, 7
    %v7984 = vsub.s32 %v7981, %v7983
    %v7985 = vrot.slane %v7957, %v7984
    %v7986 = vcombine.high %v7964, %v7978
    %v7987 = vcombine.low %v7971, %v7985
    %v7988 = vcombine.high %v7971, %v7985
    %v7995 = vmul.f32 %v7817, %v7929
    %v7996 = vmul.f32 %v7818, %v7928
    %v7997 = vmul.f32 %v7819, %v7930
    %v7998 = vmul.f32 %v7820, %v7987
    %v7999 = vmul.f32 %v7821, %v7986
    %v8000 = vmul.f32 %v7822, %v7988
    %v8007 = vcombine.low %v7995, %v7995
    %v8008 = vcombine.low %v7996, %v7997
    %v8009 = vcombine.high %v7996, %v7997
    %v8011 = vunpack.c.l.s4 1966171168
    %v8012 = vunpack.c.0.s8 %v8011
    %v8013 = vlaneseq
    %v8014 = vshrl.u32 %v8013, 7
    %v8015 = vsub.s32 %v8012, %v8014
    %v8016 = vrot.slane %v8007, %v8015
    %v8018 = vunpack.c.l.s4 1966171168
    %v8019 = vunpack.c.0.s8 %v8018
    %v8020 = vlaneseq
    %v8021 = vshrl.u32 %v8020, 7
    %v8022 = vsub.s32 %v8019, %v8021
    %v8023 = vrot.slane %v7995, %v8022
    %v8025 = vunpack.c.l.s4 1966171168
    %v8026 = vunpack.c.0.s8 %v8025
    %v8027 = vlaneseq
    %v8028 = vshrl.u32 %v8027, 7
    %v8029 = vsub.s32 %v8026, %v8028
    %v8030 = vrot.slane %v8008, %v8029
    %v8032 = vunpack.c.l.s4 1966171168
    %v8033 = vunpack.c.0.s8 %v8032
    %v8034 = vlaneseq
    %v8035 = vshrl.u32 %v8034, 7
    %v8036 = vsub.s32 %v8033, %v8035
    %v8037 = vrot.slane %v8009, %v8036
    %v8038 = vcombine.low %v8016, %v8030
    %v8039 = vcombine.high %v8016, %v8030
    %v8040 = vcombine.low %v8023, %v8037
    %v8041 = vcombine.high %v8023, %v8037
    %v8043 = vunpack.c.l.s4 1966171168
    %v8044 = vunpack.c.0.s8 %v8043
    %v8045 = vlaneseq
    %v8046 = vshrl.u32 %v8045, 7
    %v8047 = vsub.s32 %v8044, %v8046
    %v8048 = vrot.slane %v8038, %v8047
    %v8050 = vunpack.c.l.s4 1966171168
    %v8051 = vunpack.c.0.s8 %v8050
    %v8052 = vlaneseq
    %v8053 = vshrl.u32 %v8052, 7
    %v8054 = vsub.s32 %v8051, %v8053
    %v8055 = vrot.slane %v8040, %v8054
    %v8057 = vunpack.c.l.s4 1966171168
    %v8058 = vunpack.c.0.s8 %v8057
    %v8059 = vlaneseq
    %v8060 = vshrl.u32 %v8059, 7
    %v8061 = vsub.s32 %v8058, %v8060
    %v8062 = vrot.slane %v8039, %v8061
    %v8064 = vunpack.c.l.s4 1966171168
    %v8065 = vunpack.c.0.s8 %v8064
    %v8066 = vlaneseq
    %v8067 = vshrl.u32 %v8066, 7
    %v8068 = vsub.s32 %v8065, %v8067
    %v8069 = vrot.slane %v8041, %v8068
    %v8070 = vcombine.high %v8048, %v8048
    %v8071 = vcombine.high %v8062, %v8062
    %v8072 = vcombine.low %v7998, %v7998
    %v8073 = vcombine.low %v7999, %v8000
    %v8074 = vcombine.high %v7999, %v8000
    %v8076 = vunpack.c.l.s4 1966171168
    %v8077 = vunpack.c.0.s8 %v8076
    %v8078 = vlaneseq
    %v8079 = vshrl.u32 %v8078, 7
    %v8080 = vsub.s32 %v8077, %v8079
    %v8081 = vrot.slane %v8072, %v8080
    %v8083 = vunpack.c.l.s4 1966171168
    %v8084 = vunpack.c.0.s8 %v8083
    %v8085 = vlaneseq
    %v8086 = vshrl.u32 %v8085, 7
    %v8087 = vsub.s32 %v8084, %v8086
    %v8088 = vrot.slane %v7998, %v8087
    %v8090 = vunpack.c.l.s4 1966171168
    %v8091 = vunpack.c.0.s8 %v8090
    %v8092 = vlaneseq
    %v8093 = vshrl.u32 %v8092, 7
    %v8094 = vsub.s32 %v8091, %v8093
    %v8095 = vrot.slane %v8073, %v8094
    %v8097 = vunpack.c.l.s4 1966171168
    %v8098 = vunpack.c.0.s8 %v8097
    %v8099 = vlaneseq
    %v8100 = vshrl.u32 %v8099, 7
    %v8101 = vsub.s32 %v8098, %v8100
    %v8102 = vrot.slane %v8074, %v8101
    %v8103 = vcombine.low %v8081, %v8095
    %v8104 = vcombine.high %v8081, %v8095
    %v8105 = vcombine.low %v8088, %v8102
    %v8106 = vcombine.high %v8088, %v8102
    %v8108 = vunpack.c.l.s4 1966171168
    %v8109 = vunpack.c.0.s8 %v8108
    %v8110 = vlaneseq
    %v8111 = vshrl.u32 %v8110, 7
    %v8112 = vsub.s32 %v8109, %v8111
    %v8113 = vrot.slane %v8103, %v8112
    %v8115 = vunpack.c.l.s4 1966171168
    %v8116 = vunpack.c.0.s8 %v8115
    %v8117 = vlaneseq
    %v8118 = vshrl.u32 %v8117, 7
    %v8119 = vsub.s32 %v8116, %v8118
    %v8120 = vrot.slane %v8105, %v8119
    %v8122 = vunpack.c.l.s4 1966171168
    %v8123 = vunpack.c.0.s8 %v8122
    %v8124 = vlaneseq
    %v8125 = vshrl.u32 %v8124, 7
    %v8126 = vsub.s32 %v8123, %v8125
    %v8127 = vrot.slane %v8104, %v8126
    %v8129 = vunpack.c.l.s4 1966171168
    %v8130 = vunpack.c.0.s8 %v8129
    %v8131 = vlaneseq
    %v8132 = vshrl.u32 %v8131, 7
    %v8133 = vsub.s32 %v8130, %v8132
    %v8134 = vrot.slane %v8106, %v8133
    %v8135 = vcombine.high %v8113, %v8113
    %v8136 = vcombine.high %v8127, %v8127
    %8149 = vst [vmem:[%s5] sm:$0xe] %v8048
    %8150 = vst [vmem:[%s5 + $0x8] sm:$0xe] %v8062
    %8151 = vst [vmem:[%s5 + $0x10] sm:$0xe] %v8070
    %8152 = vst [vmem:[%s5 + $0x18] sm:$0xe] %v8071
    %8153 = vst [vmem:[%s5 + $0x20] sm:$0xe] %v8055
    %8154 = vst [vmem:[%s5 + $0x28] sm:$0xe] %v8069
    %8155 = vst [vmem:[%s5 + $0x30] sm:$0xe] %v8113
    %8156 = vst [vmem:[%s5 + $0x38] sm:$0xe] %v8127
    %8157 = vst [vmem:[%s5 + $0x40] sm:$0xe] %v8135
    %8158 = vst [vmem:[%s5 + $0x48] sm:$0xe] %v8136
    %8159 = vst [vmem:[%s5 + $0x50] sm:$0xe] %v8120
    %8160 = vst [vmem:[%s5 + $0x58] sm:$0xe] %v8134
    %s8161 = scalar_lea.vmem %s4, 4
    %v8162 = vld [vmem:[%s8161] ss:$8 sm:$0xf]
    %v8163 = vld [vmem:[%s8161] ss:$8 sm:$0x30]
    %v8164 = vor.u32 %v8162, %v8163
    %s8165 = scalar_lea.vmem %s4, 52
    %v8166 = vld [vmem:[%s8165] ss:$8 sm:$0xf]
    %v8167 = vld [vmem:[%s8165] ss:$8 sm:$0x30]
    %v8168 = vor.u32 %v8166, %v8167
    %v8169 = vmul.f32 %v7830, %v8164
    %v8170 = vmul.f32 %v7830, %v8168
    %s8171 = scalar_lea.vmem %s5, 4
    %8172 = vst.msk [vmem:[%s8171] ss:$8 sm:$0xf] %vm7843, %v8169
    %8173 = vst.msk [vmem:[%s8171] ss:$8 sm:$0x30] %vm7843, %v8169
    %s8174 = scalar_lea.vmem %s5, 52
    %8175 = vst.msk [vmem:[%s8174] ss:$8 sm:$0xf] %vm7843, %v8170
    %8176 = vst.msk [vmem:[%s8174] ss:$8 sm:$0x30] %vm7843, %v8170
    // Predicated region
    $region34: #{tpu_custom_call.1} parent=1 // pred_check
      _
    $region35: #{tpu_custom_call.1} parent=1 // pred_check_branch
      %8178 = sbr.rel (0) target = $region37
    $region36: #{tpu_custom_call.1} parent=1 // pred_region
      _
    $region37: #{tpu_custom_call.1} parent=1 // pred_fallthru
      _
    // Predicated region
    $region38: #{tpu_custom_call.1} parent=1 // pred_check
      _
    $region39: #{tpu_custom_call.1} parent=1 // pred_check_branch
      %8180 = sbr.rel (0) target = $region41
    $region40: #{tpu_custom_call.1} parent=1 // pred_region
      _
    $region41: #{tpu_custom_call.1} parent=1 // pred_fallthru
      _
    %8181 = vsyncpa [#allocation3], 1
    %8182 = vsyncpa [#allocation5], 1

</llo_original>
